<compile_context>
chip_gen: v5e
topology: v5e:2x2
jax: 0.10.0
libtpu: 0.0.40
codegen_flags: <defaults>
</compile_context>

<pallas_src>
import jax
import jax.numpy as jnp
from jax.experimental import pallas as pl
from jax.experimental.pallas import tpu as pltpu

NUM_CLASSES = 62


def _round_up(x, m):
    return (x + m - 1) // m * m


def _pick_tm(m, tm_max):
    """Row tile (multiple of 8): grid >= 2 whenever the problem allows, minimal padding."""
    m8 = _round_up(m, 8)
    if m8 <= 8:
        return 8
    if m8 <= 2 * tm_max:
        return _round_up((m8 + 1) // 2, 8)      # two blocks -> one per TensorCore on v7x
    for tm in range(tm_max, 7, -8):             # largest divisor tile <= tm_max (no padding)
        if m8 % tm == 0:
            return tm
    return tm_max


# ----------------------------------------------------------------------------
# Kernels
# ----------------------------------------------------------------------------
def conv_bn_relu_pool_kernel(p_ref, w_ref, scale_ref, shift_ref, o_ref):
    """One grid step of fused 3x3 conv + folded BN + ReLU + 2x2 max-pool.

    p_ref : (4*TM, K) bf16 im2col patches; rows [q*TM:(q+1)*TM] hold pool-window
            position q for the same TM pooled output pixels.
    w_ref : (K, Cp)  bf16 conv weights.  scale/shift: (1, Cp) f32 folded BN(+bias).
    o_ref : (TM, Cp) bf16 pooled output.
    """
    tm = o_ref.shape[0]
    acc = jnp.dot(p_ref[...], w_ref[...], preferred_element_type=jnp.float32)  # (4*TM, Cp)
    z = acc * scale_ref[...] + shift_ref[...]
    z = jnp.maximum(jnp.maximum(z[0 * tm:1 * tm], z[1 * tm:2 * tm]),
                    jnp.maximum(z[2 * tm:3 * tm], z[3 * tm:4 * tm]))
    # pool(relu(bn(conv))) == relu(max over window of bn(conv))
    o_ref[...] = jnp.maximum(z, 0.0).astype(o_ref.dtype)


def conv3_head_kernel(p_ref, w3_ref, s3_ref, t3_ref,
                      w1_ref, b1_ref, w2_ref, b2_ref, o_ref):
    """Fused conv3+BN+ReLU+pool -> fc1 -> ReLU -> (dropout: identity) -> fc2.

    p_ref : (9, 4*BT, K3) bf16 conv3 patches; axis 0 = pooled 3x3 pixel, rows
            [q*BT:(q+1)*BT] = pool-window position q for BT batch rows.
    w3_ref: (K3, C3) bf16; s3/t3: (1, C3) f32 folded BN.
    w1_ref: (9, C3, D1) bf16 fc1 weights grouped per pooled pixel; b1: (1, D1) f32.
    w2_ref: (D1, D2p) bf16; b2: (1, D2p) f32.   o_ref: (BT, D2p) f32 logits.
    """
    bt = o_ref.shape[0]
    d1 = b1_ref.shape[1]
    w3 = w3_ref[...]
    s3 = s3_ref[...]
    t3 = t3_ref[...]
    h = jnp.zeros((bt, d1), jnp.float32)
    for p in range(9):                          # statically unrolled over pooled pixels
        acc = jnp.dot(p_ref[p], w3, preferred_element_type=jnp.float32)     # (4*BT, C3)
        z = acc * s3 + t3
        z = jnp.maximum(jnp.maximum(z[0 * bt:1 * bt], z[1 * bt:2 * bt]),
                        jnp.maximum(z[2 * bt:3 * bt], z[3 * bt:4 * bt]))
        a = jnp.maximum(z, 0.0)                 # (BT, C3) pooled conv3 output at pixel p
        h = h + jnp.dot(a.astype(jnp.bfloat16), w1_ref[p],
                        preferred_element_type=jnp.float32)
    h = jnp.maximum(h + b1_ref[...], 0.0)       # fc1 + ReLU
    # TODO(synk): Dropout(0.5) is identity in eval mode; train-mode masking not implemented.
    out = jnp.dot(h.astype(jnp.bfloat16), w2_ref[...],
                  preferred_element_type=jnp.float32) + b2_ref[...]
    o_ref[...] = out


# ----------------------------------------------------------------------------
# Layer wrappers
# ----------------------------------------------------------------------------
def _im2col_quarters(x_nhwc):
    """(N,H,W,Cin) -> (4, N*(H//2)*(W//2), 9*Cin) bf16.

    Axis 0 enumerates the four positions of each 2x2 max-pool window; each row is
    the 3x3 (pad=1) im2col patch of the corresponding conv-output pixel, with K
    ordered (dy, dx, cin) to match w.reshape(9*Cin, Cout).
    """
    n, h, w, cin = x_nhwc.shape
    ho, wo = h // 2, w // 2                     # floor-mode pooling (drops odd last row/col)
    xp = jnp.pad(x_nhwc, ((0, 0), (1, 1), (1, 1), (0, 0)))
    quarters = []
    for py in range(2):
        for px in range(2):
            taps = [xp[:, py + dy: py + dy + 2 * ho: 2,
                       px + dx: px + dx + 2 * wo: 2, :]
                    for dy in range(3) for dx in range(3)]
            q = jnp.concatenate(taps, axis=-1).reshape(n * ho * wo, 9 * cin)
            quarters.append(q)
    return jnp.stack(quarters, axis=0).astype(jnp.bfloat16)


def conv_bn_relu_pool(x_nhwc, w, scale, shift, *, tm_max=512):
    """Fused 3x3 conv (pad=1) + inference BN + ReLU + 2x2 max-pool.

    x_nhwc: (N,H,W,Cin) bf16.  w: (9*Cin, Cp) bf16.  scale/shift: (1, Cp) f32.
    Returns (N, H//2, W//2, Cp) bf16 (padded channels, if any, are exact zeros).
    """
    n, h, wd, cin = x_nhwc.shape
    ho, wo = h // 2, wd // 2
    k = 9 * cin
    cp = w.shape[1]
    assert w.shape[0] == k

    patches = _im2col_quarters(x_nhwc)          # (4, m, k)
    m = n * ho * wo
    tm = _pick_tm(m, tm_max)
    mp = _round_up(m, tm)
    nb = mp // tm
    if mp > m:
        patches = jnp.pad(patches, ((0, 0), (0, mp - m), (0, 0)))
    # Interleave so grid step i reads ONE contiguous (4*tm, k) slab:
    # final row order = (m-block, window-position, row-within-block).
    patches = (patches.reshape(4, nb, tm, k)
               .transpose(1, 0, 2, 3)
               .reshape(nb * 4 * tm, k))

    flops = 2 * (4 * mp) * k * cp
    bytes_accessed = (4 * mp * k + k * cp + mp * cp) * 2 + 2 * cp * 4

    out = pl.pallas_call(
        conv_bn_relu_pool_kernel,
        out_shape=jax.ShapeDtypeStruct((mp, cp), jnp.bfloat16),
        grid=(nb,),
        in_specs=[
            pl.BlockSpec((4 * tm, k), lambda i: (i, 0)),   # single patch stream
            pl.BlockSpec((k, cp), lambda i: (0, 0)),       # weights VMEM-resident
            pl.BlockSpec((1, cp), lambda i: (0, 0)),
            pl.BlockSpec((1, cp), lambda i: (0, 0)),
        ],
        out_specs=pl.BlockSpec((tm, cp), lambda i: (i, 0)),
        compiler_params=pltpu.CompilerParams(
            dimension_semantics=("parallel",),
            vmem_limit_bytes=32 * 1024 * 1024,
        ),
        cost_estimate=pl.CostEstimate(
            flops=flops, transcendentals=0, bytes_accessed=bytes_accessed),
    )(patches, w, scale, shift)

    return out[:m].reshape(n, ho, wo, cp)


def conv3_mlp_head(x_nhwc, w3, s3, t3, w1, b1, w2, b2, *, bt_max=64):
    """Fused conv3(+BN+ReLU+pool) -> flatten -> fc1 -> ReLU -> fc2.

    x_nhwc: (N,7,7,Cin3) bf16. Grid is over batch blocks; all weights stay
    VMEM-resident (constant index maps). Returns (N, NUM_CLASSES) f32 logits.
    """
    n = x_nhwc.shape[0]
    k3, c3 = w3.shape
    d1 = w1.shape[2]
    d2p = w2.shape[1]

    patches = _im2col_quarters(x_nhwc)                     # (4, n*9, k3), rows (n, pixel)
    bt = _pick_tm(n, bt_max)
    bp = _round_up(n, bt)
    nb = bp // bt
    patches = patches.reshape(4, n, 9, k3).transpose(2, 0, 1, 3)   # (9, 4, n, k3)
    if bp > n:
        patches = jnp.pad(patches, ((0, 0), (0, 0), (0, bp - n), (0, 0)))
    # Per pixel, interleave rows as (batch-block, window-position, batch-row) so a
    # grid step reads one contiguous (9, 4*bt, k3) slab.
    patches = (patches.reshape(9, 4, nb, bt, k3)
               .transpose(0, 2, 1, 3, 4)
               .reshape(9, nb * 4 * bt, k3))

    flops = 2 * bp * (4 * 9 * k3 * c3 + 9 * c3 * d1 + d1 * d2p)
    bytes_accessed = ((9 * 4 * bp * k3 + k3 * c3 + 9 * c3 * d1 + d1 * d2p) * 2
                      + (2 * c3 + d1 + d2p) * 4 + bp * d2p * 4)

    out = pl.pallas_call(
        conv3_head_kernel,
        out_shape=jax.ShapeDtypeStruct((bp, d2p), jnp.float32),
        grid=(nb,),
        in_specs=[
            pl.BlockSpec((9, 4 * bt, k3), lambda i: (0, i, 0)),
            pl.BlockSpec((k3, c3), lambda i: (0, 0)),
            pl.BlockSpec((1, c3), lambda i: (0, 0)),
            pl.BlockSpec((1, c3), lambda i: (0, 0)),
            pl.BlockSpec((9, c3, d1), lambda i: (0, 0, 0)),
            pl.BlockSpec((1, d1), lambda i: (0, 0)),
            pl.BlockSpec((d1, d2p), lambda i: (0, 0)),
            pl.BlockSpec((1, d2p), lambda i: (0, 0)),
        ],
        out_specs=pl.BlockSpec((bt, d2p), lambda i: (i, 0)),
        compiler_params=pltpu.CompilerParams(
            dimension_semantics=("parallel",),
            vmem_limit_bytes=32 * 1024 * 1024,
        ),
        cost_estimate=pl.CostEstimate(
            flops=flops, transcendentals=0, bytes_accessed=bytes_accessed),
    )(patches, w3, s3, t3, w1, b1, w2, b2)

    return out[:n, :NUM_CLASSES]


# ----------------------------------------------------------------------------
# Parameters (synthetic, deterministic; PyTorch module shapes)
# ----------------------------------------------------------------------------
def init_params(key):
    ks = jax.random.split(key, 16)

    def conv_block(kw, kb, kg, kbt, cin, cout):
        return {
            "w": 0.05 * jax.random.normal(kw, (3, 3, cin, cout), jnp.float32),
            "b": 0.05 * jax.random.normal(kb, (cout,), jnp.float32),
            "gamma": 1.0 + 0.1 * jax.random.normal(kg, (cout,), jnp.float32),
            "beta": 0.1 * jax.random.normal(kbt, (cout,), jnp.float32),
            "mean": jnp.zeros((cout,), jnp.float32),   # PyTorch-default running stats
            "var": jnp.ones((cout,), jnp.float32),
        }

    return {
        "c1": conv_block(ks[0], ks[1], ks[2], ks[3], 1, 64),
        "c2": conv_block(ks[4], ks[5], ks[6], ks[7], 64, 128),
        "c3": conv_block(ks[8], ks[9], ks[10], ks[11], 128, 256),
        # fc1 rows are in PyTorch NCHW-flatten order (c*9 + h*3 + w).
        "fc1_w": 0.02 * jax.random.normal(ks[12], (256 * 3 * 3, 256), jnp.float32),
        "fc1_b": 0.02 * jax.random.normal(ks[13], (256,), jnp.float32),
        "fc2_w": 0.02 * jax.random.normal(ks[14], (256, NUM_CLASSES), jnp.float32),
        "fc2_b": 0.02 * jax.random.normal(ks[15], (NUM_CLASSES,), jnp.float32),
    }


def prepare_params(p, eps=1e-5):
    """Fold BN, pad/reshape/cast weights into the layouts the kernels consume."""

    def fold_conv(blk, cin_pad, cout_pad):
        w = blk["w"]                                        # (3,3,cin,cout)
        cin, cout = w.shape[2], w.shape[3]
        scale = blk["gamma"] / jnp.sqrt(blk["var"] + eps)
        shift = blk["beta"] + (blk["b"] - blk["mean"]) * scale
        w = jnp.pad(w, ((0, 0), (0, 0), (0, cin_pad - cin), (0, cout_pad - cout)))
        scale = jnp.pad(scale, (0, cout_pad - cout))
        shift = jnp.pad(shift, (0, cout_pad - cout))
        wm = w.reshape(9 * cin_pad, cout_pad).astype(jnp.bfloat16)
        return (wm, scale.reshape(1, -1).astype(jnp.float32),
                shift.reshape(1, -1).astype(jnp.float32))

    out = {
        "c1": fold_conv(p["c1"], 1, 128),     # K stays 9; 64->128 lane-dense out channels
        "c2": fold_conv(p["c2"], 128, 128),   # absorbs conv1's zero channels (K = 1152)
        "c3": fold_conv(p["c3"], 128, 256),
    }

    # fc1: permute PyTorch NCHW-flatten rows (c*9+h*3+w) to NHWC (h,w,c) order,
    # then group rows per pooled 3x3 pixel -> (9, 256, 256).
    hh, ww, cc = jnp.meshgrid(jnp.arange(3), jnp.arange(3), jnp.arange(256),
                              indexing="ij")
    nchw_rows_in_hwc_order = (cc * 9 + hh * 3 + ww).reshape(-1)
    w1 = p["fc1_w"][nchw_rows_in_hwc_order, :]
    out["fc1_w"] = w1.reshape(9, 256, 256).astype(jnp.bfloat16)
    out["fc1_b"] = p["fc1_b"].reshape(1, 256).astype(jnp.float32)

    d2 = p["fc2_w"].shape[1]
    d2p = _round_up(d2, 128)
    out["fc2_w"] = jnp.pad(p["fc2_w"], ((0, 0), (0, d2p - d2))).astype(jnp.bfloat16)
    out["fc2_b"] = jnp.pad(p["fc2_b"], (0, d2p - d2)).reshape(1, d2p).astype(jnp.float32)
    return out


# ----------------------------------------------------------------------------
# Full forward pass
# ----------------------------------------------------------------------------
def cnn_forward(x_nchw, params):
    """Inference forward of CNNModel. x_nchw: (N,1,28,28) f32 -> (N,62) f32 logits."""
    x = jnp.transpose(x_nchw, (0, 2, 3, 1)).astype(jnp.bfloat16)     # NCHW -> NHWC
    w1c, s1, t1 = params["c1"]
    x = conv_bn_relu_pool(x, w1c, s1, t1)       # (N,14,14,128): 64 real + 64 zero channels
    w2c, s2, t2 = params["c2"]
    x = conv_bn_relu_pool(x, w2c, s2, t2)       # (N,7,7,128)
    w3c, s3, t3 = params["c3"]
    return conv3_mlp_head(x, w3c, s3, t3,
                          params["fc1_w"], params["fc1_b"],
                          params["fc2_w"], params["fc2_b"])          # (N,62)


if __name__ == "__main__":
    key = jax.random.PRNGKey(0)
    k_in, k_par = jax.random.split(key)
    # Input shape implied by the module: 1 channel, 28x28 (28->14->7->3 => 256*3*3).
    x = jax.random.normal(k_in, (2, 1, 28, 28), jnp.float32)
    params = prepare_params(init_params(k_par))

    fwd = jax.jit(cnn_forward)
    out = fwd(x, params)
    jax.block_until_ready(out)
    assert out.shape == (2, NUM_CLASSES) and out.dtype == jnp.float32
    print("KERNEL_OK")
</pallas_src>

<mosaic_0001>
module attributes {stable_mosaic.version = 11 : i64} {
  func.func @conv_bn_relu_pool_kernel(%arg0: i32, %arg1: memref<800x9xbf16, #tpu.memory_space<vmem>>, %arg2: memref<9x128xbf16, #tpu.memory_space<vmem>>, %arg3: memref<1x128xf32, #tpu.memory_space<vmem>>, %arg4: memref<1x128xf32, #tpu.memory_space<vmem>>, %arg5: memref<200x128xbf16, #tpu.memory_space<vmem>>) attributes {dimension_semantics = [#tpu.dimension_semantics<parallel>], iteration_bounds = array<i64: 2>, scalar_prefetch = 0 : i64, scratch_operands = 0 : i64, tpu.core_type = #tpu.core_type<tc>, window_params = [{transform_indices = @transform_0, window_bounds = array<i64: 800, 9>}, {pipeline_mode = #tpu.pipeline_mode<synchronous>, transform_indices = @transform_1, window_bounds = array<i64: 9, 128>}, {pipeline_mode = #tpu.pipeline_mode<synchronous>, transform_indices = @transform_2, window_bounds = array<i64: 1, 128>}, {pipeline_mode = #tpu.pipeline_mode<synchronous>, transform_indices = @transform_3, window_bounds = array<i64: 1, 128>}, {transform_indices = @transform_4, window_bounds = array<i64: 200, 128>}]} {
    %c0 = arith.constant 0 : index
    %c0_0 = arith.constant 0 : index
    %0 = vector.load %arg1[%c0, %c0_0] : memref<800x9xbf16, #tpu.memory_space<vmem>>, vector<800x9xbf16>
    %c0_1 = arith.constant 0 : index
    %c0_2 = arith.constant 0 : index
    %1 = vector.load %arg2[%c0_1, %c0_2] : memref<9x128xbf16, #tpu.memory_space<vmem>>, vector<9x128xbf16>
    %cst = arith.constant dense<0.000000e+00> : vector<800x128xf32>
    %2 = tpu.matmul %0, %1, %cst {dimension_numbers = #tpu.dot_dimension_numbers<[1], [0], [0], [1], [0, 0, 1, 1], [], []>} : vector<800x9xbf16>, vector<9x128xbf16>, vector<800x128xf32> -> vector<800x128xf32>
    %c0_3 = arith.constant 0 : index
    %c0_4 = arith.constant 0 : index
    %3 = vector.load %arg3[%c0_3, %c0_4] : memref<1x128xf32, #tpu.memory_space<vmem>>, vector<1x128xf32>
    %4 = vector.broadcast %3 : vector<1x128xf32> to vector<800x128xf32>
    %5 = arith.mulf %2, %4 : vector<800x128xf32>
    %c0_5 = arith.constant 0 : index
    %c0_6 = arith.constant 0 : index
    %6 = vector.load %arg4[%c0_5, %c0_6] : memref<1x128xf32, #tpu.memory_space<vmem>>, vector<1x128xf32>
    %7 = vector.broadcast %6 : vector<1x128xf32> to vector<800x128xf32>
    %8 = arith.addf %5, %7 : vector<800x128xf32>
    %9 = vector.extract_strided_slice %8 {offsets = [0, 0], sizes = [200, 128], strides = [1, 1]} : vector<800x128xf32> to vector<200x128xf32>
    %10 = vector.extract_strided_slice %8 {offsets = [200, 0], sizes = [200, 128], strides = [1, 1]} : vector<800x128xf32> to vector<200x128xf32>
    %11 = arith.maximumf %9, %10 : vector<200x128xf32>
    %12 = vector.extract_strided_slice %8 {offsets = [400, 0], sizes = [200, 128], strides = [1, 1]} : vector<800x128xf32> to vector<200x128xf32>
    %13 = vector.extract_strided_slice %8 {offsets = [600, 0], sizes = [200, 128], strides = [1, 1]} : vector<800x128xf32> to vector<200x128xf32>
    %14 = arith.maximumf %12, %13 : vector<200x128xf32>
    %15 = arith.maximumf %11, %14 : vector<200x128xf32>
    %cst_7 = arith.constant 0.000000e+00 : f32
    %16 = vector.broadcast %cst_7 : f32 to vector<200x128xf32>
    %17 = arith.maximumf %15, %16 : vector<200x128xf32>
    %18 = arith.truncf %17 : vector<200x128xf32> to vector<200x128xbf16>
    %c0_8 = arith.constant 0 : index
    %c0_9 = arith.constant 0 : index
    %19 = vector.load %arg5[%c0_8, %c0_9] : memref<200x128xbf16, #tpu.memory_space<vmem>>, vector<200x128xbf16>
    tpu.vector_store %arg5[%c0_8, %c0_9], %18 {strides = array<i32>} : memref<200x128xbf16, #tpu.memory_space<vmem>>, vector<200x128xbf16>,
    return
  }
  func.func @transform_0(%arg0: i32) -> (i32, i32) {
    %c0_i32 = arith.constant 0 : i32
    %c0_i32_0 = arith.constant 0 : i32
    return %arg0, %c0_i32 : i32, i32
  }
  func.func @transform_1(%arg0: i32) -> (i32, i32) {
    %c0_i32 = arith.constant 0 : i32
    %c0_i32_0 = arith.constant 0 : i32
    %c0_i32_1 = arith.constant 0 : i32
    return %c0_i32, %c0_i32_0 : i32, i32
  }
  func.func @transform_2(%arg0: i32) -> (i32, i32) {
    %c0_i32 = arith.constant 0 : i32
    %c0_i32_0 = arith.constant 0 : i32
    %c0_i32_1 = arith.constant 0 : i32
    return %c0_i32, %c0_i32_0 : i32, i32
  }
  func.func @transform_3(%arg0: i32) -> (i32, i32) {
    %c0_i32 = arith.constant 0 : i32
    %c0_i32_0 = arith.constant 0 : i32
    %c0_i32_1 = arith.constant 0 : i32
    return %c0_i32, %c0_i32_0 : i32, i32
  }
  func.func @transform_4(%arg0: i32) -> (i32, i32) {
    %c0_i32 = arith.constant 0 : i32
    %c0_i32_0 = arith.constant 0 : i32
    return %arg0, %c0_i32 : i32, i32
  }
}

module attributes {stable_mosaic.version = 11 : i64} {
  func.func @conv_bn_relu_pool_kernel(%arg0: i32, %arg1: memref<224x1152xbf16, #tpu.memory_space<vmem>>, %arg2: memref<1152x128xbf16, #tpu.memory_space<vmem>>, %arg3: memref<1x128xf32, #tpu.memory_space<vmem>>, %arg4: memref<1x128xf32, #tpu.memory_space<vmem>>, %arg5: memref<56x128xbf16, #tpu.memory_space<vmem>>) attributes {dimension_semantics = [#tpu.dimension_semantics<parallel>], iteration_bounds = array<i64: 2>, scalar_prefetch = 0 : i64, scratch_operands = 0 : i64, tpu.core_type = #tpu.core_type<tc>, window_params = [{transform_indices = @transform_0, window_bounds = array<i64: 224, 1152>}, {pipeline_mode = #tpu.pipeline_mode<synchronous>, transform_indices = @transform_1, window_bounds = array<i64: 1152, 128>}, {pipeline_mode = #tpu.pipeline_mode<synchronous>, transform_indices = @transform_2, window_bounds = array<i64: 1, 128>}, {pipeline_mode = #tpu.pipeline_mode<synchronous>, transform_indices = @transform_3, window_bounds = array<i64: 1, 128>}, {transform_indices = @transform_4, window_bounds = array<i64: 56, 128>}]} {
    %c0 = arith.constant 0 : index
    %c0_0 = arith.constant 0 : index
    %0 = vector.load %arg1[%c0, %c0_0] : memref<224x1152xbf16, #tpu.memory_space<vmem>>, vector<224x1152xbf16>
    %c0_1 = arith.constant 0 : index
    %c0_2 = arith.constant 0 : index
    %1 = vector.load %arg2[%c0_1, %c0_2] : memref<1152x128xbf16, #tpu.memory_space<vmem>>, vector<1152x128xbf16>
    %cst = arith.constant dense<0.000000e+00> : vector<224x128xf32>
    %2 = tpu.matmul %0, %1, %cst {dimension_numbers = #tpu.dot_dimension_numbers<[1], [0], [0], [1], [0, 0, 1, 1], [], []>} : vector<224x1152xbf16>, vector<1152x128xbf16>, vector<224x128xf32> -> vector<224x128xf32>
    %c0_3 = arith.constant 0 : index
    %c0_4 = arith.constant 0 : index
    %3 = vector.load %arg3[%c0_3, %c0_4] : memref<1x128xf32, #tpu.memory_space<vmem>>, vector<1x128xf32>
    %4 = vector.broadcast %3 : vector<1x128xf32> to vector<224x128xf32>
    %5 = arith.mulf %2, %4 : vector<224x128xf32>
    %c0_5 = arith.constant 0 : index
    %c0_6 = arith.constant 0 : index
    %6 = vector.load %arg4[%c0_5, %c0_6] : memref<1x128xf32, #tpu.memory_space<vmem>>, vector<1x128xf32>
    %7 = vector.broadcast %6 : vector<1x128xf32> to vector<224x128xf32>
    %8 = arith.addf %5, %7 : vector<224x128xf32>
    %9 = vector.extract_strided_slice %8 {offsets = [0, 0], sizes = [56, 128], strides = [1, 1]} : vector<224x128xf32> to vector<56x128xf32>
    %10 = vector.extract_strided_slice %8 {offsets = [56, 0], sizes = [56, 128], strides = [1, 1]} : vector<224x128xf32> to vector<56x128xf32>
    %11 = arith.maximumf %9, %10 : vector<56x128xf32>
    %12 = vector.extract_strided_slice %8 {offsets = [112, 0], sizes = [56, 128], strides = [1, 1]} : vector<224x128xf32> to vector<56x128xf32>
    %13 = vector.extract_strided_slice %8 {offsets = [168, 0], sizes = [56, 128], strides = [1, 1]} : vector<224x128xf32> to vector<56x128xf32>
    %14 = arith.maximumf %12, %13 : vector<56x128xf32>
    %15 = arith.maximumf %11, %14 : vector<56x128xf32>
    %cst_7 = arith.constant 0.000000e+00 : f32
    %16 = vector.broadcast %cst_7 : f32 to vector<56x128xf32>
    %17 = arith.maximumf %15, %16 : vector<56x128xf32>
    %18 = arith.truncf %17 : vector<56x128xf32> to vector<56x128xbf16>
    %c0_8 = arith.constant 0 : index
    %c0_9 = arith.constant 0 : index
    %19 = vector.load %arg5[%c0_8, %c0_9] : memref<56x128xbf16, #tpu.memory_space<vmem>>, vector<56x128xbf16>
    tpu.vector_store %arg5[%c0_8, %c0_9], %18 {strides = array<i32>} : memref<56x128xbf16, #tpu.memory_space<vmem>>, vector<56x128xbf16>,
    return
  }
  func.func @transform_0(%arg0: i32) -> (i32, i32) {
    %c0_i32 = arith.constant 0 : i32
    %c0_i32_0 = arith.constant 0 : i32
    return %arg0, %c0_i32 : i32, i32
  }
  func.func @transform_1(%arg0: i32) -> (i32, i32) {
    %c0_i32 = arith.constant 0 : i32
    %c0_i32_0 = arith.constant 0 : i32
    %c0_i32_1 = arith.constant 0 : i32
    return %c0_i32, %c0_i32_0 : i32, i32
  }
  func.func @transform_2(%arg0: i32) -> (i32, i32) {
    %c0_i32 = arith.constant 0 : i32
    %c0_i32_0 = arith.constant 0 : i32
    %c0_i32_1 = arith.constant 0 : i32
    return %c0_i32, %c0_i32_0 : i32, i32
  }
  func.func @transform_3(%arg0: i32) -> (i32, i32) {
    %c0_i32 = arith.constant 0 : i32
    %c0_i32_0 = arith.constant 0 : i32
    %c0_i32_1 = arith.constant 0 : i32
    return %c0_i32, %c0_i32_0 : i32, i32
  }
  func.func @transform_4(%arg0: i32) -> (i32, i32) {
    %c0_i32 = arith.constant 0 : i32
    %c0_i32_0 = arith.constant 0 : i32
    return %arg0, %c0_i32 : i32, i32
  }
}

module attributes {stable_mosaic.version = 11 : i64} {
  func.func @conv3_head_kernel(%arg0: i32, %arg1: memref<9x32x1152xbf16, #tpu.memory_space<vmem>>, %arg2: memref<1152x256xbf16, #tpu.memory_space<vmem>>, %arg3: memref<1x256xf32, #tpu.memory_space<vmem>>, %arg4: memref<1x256xf32, #tpu.memory_space<vmem>>, %arg5: memref<9x256x256xbf16, #tpu.memory_space<vmem>>, %arg6: memref<1x256xf32, #tpu.memory_space<vmem>>, %arg7: memref<256x128xbf16, #tpu.memory_space<vmem>>, %arg8: memref<1x128xf32, #tpu.memory_space<vmem>>, %arg9: memref<8x128xf32, #tpu.memory_space<vmem>>) attributes {dimension_semantics = [#tpu.dimension_semantics<parallel>], iteration_bounds = array<i64: 1>, scalar_prefetch = 0 : i64, scratch_operands = 0 : i64, tpu.core_type = #tpu.core_type<tc>, window_params = [{transform_indices = @transform_0, window_bounds = array<i64: 9, 32, 1152>}, {pipeline_mode = #tpu.pipeline_mode<synchronous>, transform_indices = @transform_1, window_bounds = array<i64: 1152, 256>}, {pipeline_mode = #tpu.pipeline_mode<synchronous>, transform_indices = @transform_2, window_bounds = array<i64: 1, 256>}, {pipeline_mode = #tpu.pipeline_mode<synchronous>, transform_indices = @transform_3, window_bounds = array<i64: 1, 256>}, {pipeline_mode = #tpu.pipeline_mode<synchronous>, transform_indices = @transform_4, window_bounds = array<i64: 9, 256, 256>}, {pipeline_mode = #tpu.pipeline_mode<synchronous>, transform_indices = @transform_5, window_bounds = array<i64: 1, 256>}, {pipeline_mode = #tpu.pipeline_mode<synchronous>, transform_indices = @transform_6, window_bounds = array<i64: 256, 128>}, {pipeline_mode = #tpu.pipeline_mode<synchronous>, transform_indices = @transform_7, window_bounds = array<i64: 1, 128>}, {transform_indices = @transform_8, window_bounds = array<i64: 8, 128>}]} {
    %c0 = arith.constant 0 : index
    %c0_0 = arith.constant 0 : index
    %0 = vector.load %arg2[%c0, %c0_0] : memref<1152x256xbf16, #tpu.memory_space<vmem>>, vector<1152x256xbf16>
    %c0_1 = arith.constant 0 : index
    %c0_2 = arith.constant 0 : index
    %1 = vector.load %arg3[%c0_1, %c0_2] : memref<1x256xf32, #tpu.memory_space<vmem>>, vector<1x256xf32>
    %c0_3 = arith.constant 0 : index
    %c0_4 = arith.constant 0 : index
    %2 = vector.load %arg4[%c0_3, %c0_4] : memref<1x256xf32, #tpu.memory_space<vmem>>, vector<1x256xf32>
    %cst = arith.constant 0.000000e+00 : f32
    %3 = vector.broadcast %cst : f32 to vector<8x256xf32>
    %c0_5 = arith.constant 0 : index
    %c0_6 = arith.constant 0 : index
    %c0_7 = arith.constant 0 : index
    %4 = vector.load %arg1[%c0_5, %c0_6, %c0_7] : memref<9x32x1152xbf16, #tpu.memory_space<vmem>>, vector<1x32x1152xbf16>
    %5 = vector.shape_cast %4 : vector<1x32x1152xbf16> to vector<32x1152xbf16>
    %cst_8 = arith.constant dense<0.000000e+00> : vector<32x256xf32>
    %6 = tpu.matmul %5, %0, %cst_8 {dimension_numbers = #tpu.dot_dimension_numbers<[1], [0], [0], [1], [0, 0, 1, 1], [], []>} : vector<32x1152xbf16>, vector<1152x256xbf16>, vector<32x256xf32> -> vector<32x256xf32>
    %7 = vector.broadcast %1 : vector<1x256xf32> to vector<32x256xf32>
    %8 = arith.mulf %6, %7 : vector<32x256xf32>
    %9 = vector.broadcast %2 : vector<1x256xf32> to vector<32x256xf32>
    %10 = arith.addf %8, %9 : vector<32x256xf32>
    %11 = vector.extract_strided_slice %10 {offsets = [0, 0], sizes = [8, 256], strides = [1, 1]} : vector<32x256xf32> to vector<8x256xf32>
    %12 = vector.extract_strided_slice %10 {offsets = [8, 0], sizes = [8, 256], strides = [1, 1]} : vector<32x256xf32> to vector<8x256xf32>
    %13 = arith.maximumf %11, %12 : vector<8x256xf32>
    %14 = vector.extract_strided_slice %10 {offsets = [16, 0], sizes = [8, 256], strides = [1, 1]} : vector<32x256xf32> to vector<8x256xf32>
    %15 = vector.extract_strided_slice %10 {offsets = [24, 0], sizes = [8, 256], strides = [1, 1]} : vector<32x256xf32> to vector<8x256xf32>
    %16 = arith.maximumf %14, %15 : vector<8x256xf32>
    %17 = arith.maximumf %13, %16 : vector<8x256xf32>
    %cst_9 = arith.constant 0.000000e+00 : f32
    %18 = vector.broadcast %cst_9 : f32 to vector<8x256xf32>
    %19 = arith.maximumf %17, %18 : vector<8x256xf32>
    %20 = arith.truncf %19 : vector<8x256xf32> to vector<8x256xbf16>
    %c0_10 = arith.constant 0 : index
    %c0_11 = arith.constant 0 : index
    %c0_12 = arith.constant 0 : index
    %21 = vector.load %arg5[%c0_10, %c0_11, %c0_12] : memref<9x256x256xbf16, #tpu.memory_space<vmem>>, vector<1x256x256xbf16>
    %22 = vector.shape_cast %21 : vector<1x256x256xbf16> to vector<256x256xbf16>
    %cst_13 = arith.constant dense<0.000000e+00> : vector<8x256xf32>
    %23 = tpu.matmul %20, %22, %cst_13 {dimension_numbers = #tpu.dot_dimension_numbers<[1], [0], [0], [1], [0, 0, 1, 1], [], []>} : vector<8x256xbf16>, vector<256x256xbf16>, vector<8x256xf32> -> vector<8x256xf32>
    %24 = arith.addf %3, %23 : vector<8x256xf32>
    %c1 = arith.constant 1 : index
    %c0_14 = arith.constant 0 : index
    %c0_15 = arith.constant 0 : index
    %25 = vector.load %arg1[%c1, %c0_14, %c0_15] : memref<9x32x1152xbf16, #tpu.memory_space<vmem>>, vector<1x32x1152xbf16>
    %26 = vector.shape_cast %25 : vector<1x32x1152xbf16> to vector<32x1152xbf16>
    %cst_16 = arith.constant dense<0.000000e+00> : vector<32x256xf32>
    %27 = tpu.matmul %26, %0, %cst_16 {dimension_numbers = #tpu.dot_dimension_numbers<[1], [0], [0], [1], [0, 0, 1, 1], [], []>} : vector<32x1152xbf16>, vector<1152x256xbf16>, vector<32x256xf32> -> vector<32x256xf32>
    %28 = vector.broadcast %1 : vector<1x256xf32> to vector<32x256xf32>
    %29 = arith.mulf %27, %28 : vector<32x256xf32>
    %30 = vector.broadcast %2 : vector<1x256xf32> to vector<32x256xf32>
    %31 = arith.addf %29, %30 : vector<32x256xf32>
    %32 = vector.extract_strided_slice %31 {offsets = [0, 0], sizes = [8, 256], strides = [1, 1]} : vector<32x256xf32> to vector<8x256xf32>
    %33 = vector.extract_strided_slice %31 {offsets = [8, 0], sizes = [8, 256], strides = [1, 1]} : vector<32x256xf32> to vector<8x256xf32>
    %34 = arith.maximumf %32, %33 : vector<8x256xf32>
    %35 = vector.extract_strided_slice %31 {offsets = [16, 0], sizes = [8, 256], strides = [1, 1]} : vector<32x256xf32> to vector<8x256xf32>
    %36 = vector.extract_strided_slice %31 {offsets = [24, 0], sizes = [8, 256], strides = [1, 1]} : vector<32x256xf32> to vector<8x256xf32>
    %37 = arith.maximumf %35, %36 : vector<8x256xf32>
    %38 = arith.maximumf %34, %37 : vector<8x256xf32>
    %cst_17 = arith.constant 0.000000e+00 : f32
    %39 = vector.broadcast %cst_17 : f32 to vector<8x256xf32>
    %40 = arith.maximumf %38, %39 : vector<8x256xf32>
    %41 = arith.truncf %40 : vector<8x256xf32> to vector<8x256xbf16>
    %c1_18 = arith.constant 1 : index
    %c0_19 = arith.constant 0 : index
    %c0_20 = arith.constant 0 : index
    %42 = vector.load %arg5[%c1_18, %c0_19, %c0_20] : memref<9x256x256xbf16, #tpu.memory_space<vmem>>, vector<1x256x256xbf16>
    %43 = vector.shape_cast %42 : vector<1x256x256xbf16> to vector<256x256xbf16>
    %cst_21 = arith.constant dense<0.000000e+00> : vector<8x256xf32>
    %44 = tpu.matmul %41, %43, %cst_21 {dimension_numbers = #tpu.dot_dimension_numbers<[1], [0], [0], [1], [0, 0, 1, 1], [], []>} : vector<8x256xbf16>, vector<256x256xbf16>, vector<8x256xf32> -> vector<8x256xf32>
    %45 = arith.addf %24, %44 : vector<8x256xf32>
    %c2 = arith.constant 2 : index
    %c0_22 = arith.constant 0 : index
    %c0_23 = arith.constant 0 : index
    %46 = vector.load %arg1[%c2, %c0_22, %c0_23] : memref<9x32x1152xbf16, #tpu.memory_space<vmem>>, vector<1x32x1152xbf16>
    %47 = vector.shape_cast %46 : vector<1x32x1152xbf16> to vector<32x1152xbf16>
    %cst_24 = arith.constant dense<0.000000e+00> : vector<32x256xf32>
    %48 = tpu.matmul %47, %0, %cst_24 {dimension_numbers = #tpu.dot_dimension_numbers<[1], [0], [0], [1], [0, 0, 1, 1], [], []>} : vector<32x1152xbf16>, vector<1152x256xbf16>, vector<32x256xf32> -> vector<32x256xf32>
    %49 = vector.broadcast %1 : vector<1x256xf32> to vector<32x256xf32>
    %50 = arith.mulf %48, %49 : vector<32x256xf32>
    %51 = vector.broadcast %2 : vector<1x256xf32> to vector<32x256xf32>
    %52 = arith.addf %50, %51 : vector<32x256xf32>
    %53 = vector.extract_strided_slice %52 {offsets = [0, 0], sizes = [8, 256], strides = [1, 1]} : vector<32x256xf32> to vector<8x256xf32>
    %54 = vector.extract_strided_slice %52 {offsets = [8, 0], sizes = [8, 256], strides = [1, 1]} : vector<32x256xf32> to vector<8x256xf32>
    %55 = arith.maximumf %53, %54 : vector<8x256xf32>
    %56 = vector.extract_strided_slice %52 {offsets = [16, 0], sizes = [8, 256], strides = [1, 1]} : vector<32x256xf32> to vector<8x256xf32>
    %57 = vector.extract_strided_slice %52 {offsets = [24, 0], sizes = [8, 256], strides = [1, 1]} : vector<32x256xf32> to vector<8x256xf32>
    %58 = arith.maximumf %56, %57 : vector<8x256xf32>
    %59 = arith.maximumf %55, %58 : vector<8x256xf32>
    %cst_25 = arith.constant 0.000000e+00 : f32
    %60 = vector.broadcast %cst_25 : f32 to vector<8x256xf32>
    %61 = arith.maximumf %59, %60 : vector<8x256xf32>
    %62 = arith.truncf %61 : vector<8x256xf32> to vector<8x256xbf16>
    %c2_26 = arith.constant 2 : index
    %c0_27 = arith.constant 0 : index
    %c0_28 = arith.constant 0 : index
    %63 = vector.load %arg5[%c2_26, %c0_27, %c0_28] : memref<9x256x256xbf16, #tpu.memory_space<vmem>>, vector<1x256x256xbf16>
    %64 = vector.shape_cast %63 : vector<1x256x256xbf16> to vector<256x256xbf16>
    %cst_29 = arith.constant dense<0.000000e+00> : vector<8x256xf32>
    %65 = tpu.matmul %62, %64, %cst_29 {dimension_numbers = #tpu.dot_dimension_numbers<[1], [0], [0], [1], [0, 0, 1, 1], [], []>} : vector<8x256xbf16>, vector<256x256xbf16>, vector<8x256xf32> -> vector<8x256xf32>
    %66 = arith.addf %45, %65 : vector<8x256xf32>
    %c3 = arith.constant 3 : index
    %c0_30 = arith.constant 0 : index
    %c0_31 = arith.constant 0 : index
    %67 = vector.load %arg1[%c3, %c0_30, %c0_31] : memref<9x32x1152xbf16, #tpu.memory_space<vmem>>, vector<1x32x1152xbf16>
    %68 = vector.shape_cast %67 : vector<1x32x1152xbf16> to vector<32x1152xbf16>
    %cst_32 = arith.constant dense<0.000000e+00> : vector<32x256xf32>
    %69 = tpu.matmul %68, %0, %cst_32 {dimension_numbers = #tpu.dot_dimension_numbers<[1], [0], [0], [1], [0, 0, 1, 1], [], []>} : vector<32x1152xbf16>, vector<1152x256xbf16>, vector<32x256xf32> -> vector<32x256xf32>
    %70 = vector.broadcast %1 : vector<1x256xf32> to vector<32x256xf32>
    %71 = arith.mulf %69, %70 : vector<32x256xf32>
    %72 = vector.broadcast %2 : vector<1x256xf32> to vector<32x256xf32>
    %73 = arith.addf %71, %72 : vector<32x256xf32>
    %74 = vector.extract_strided_slice %73 {offsets = [0, 0], sizes = [8, 256], strides = [1, 1]} : vector<32x256xf32> to vector<8x256xf32>
    %75 = vector.extract_strided_slice %73 {offsets = [8, 0], sizes = [8, 256], strides = [1, 1]} : vector<32x256xf32> to vector<8x256xf32>
    %76 = arith.maximumf %74, %75 : vector<8x256xf32>
    %77 = vector.extract_strided_slice %73 {offsets = [16, 0], sizes = [8, 256], strides = [1, 1]} : vector<32x256xf32> to vector<8x256xf32>
    %78 = vector.extract_strided_slice %73 {offsets = [24, 0], sizes = [8, 256], strides = [1, 1]} : vector<32x256xf32> to vector<8x256xf32>
    %79 = arith.maximumf %77, %78 : vector<8x256xf32>
    %80 = arith.maximumf %76, %79 : vector<8x256xf32>
    %cst_33 = arith.constant 0.000000e+00 : f32
    %81 = vector.broadcast %cst_33 : f32 to vector<8x256xf32>
    %82 = arith.maximumf %80, %81 : vector<8x256xf32>
    %83 = arith.truncf %82 : vector<8x256xf32> to vector<8x256xbf16>
    %c3_34 = arith.constant 3 : index
    %c0_35 = arith.constant 0 : index
    %c0_36 = arith.constant 0 : index
    %84 = vector.load %arg5[%c3_34, %c0_35, %c0_36] : memref<9x256x256xbf16, #tpu.memory_space<vmem>>, vector<1x256x256xbf16>
    %85 = vector.shape_cast %84 : vector<1x256x256xbf16> to vector<256x256xbf16>
    %cst_37 = arith.constant dense<0.000000e+00> : vector<8x256xf32>
    %86 = tpu.matmul %83, %85, %cst_37 {dimension_numbers = #tpu.dot_dimension_numbers<[1], [0], [0], [1], [0, 0, 1, 1], [], []>} : vector<8x256xbf16>, vector<256x256xbf16>, vector<8x256xf32> -> vector<8x256xf32>
    %87 = arith.addf %66, %86 : vector<8x256xf32>
    %c4 = arith.constant 4 : index
    %c0_38 = arith.constant 0 : index
    %c0_39 = arith.constant 0 : index
    %88 = vector.load %arg1[%c4, %c0_38, %c0_39] : memref<9x32x1152xbf16, #tpu.memory_space<vmem>>, vector<1x32x1152xbf16>
    %89 = vector.shape_cast %88 : vector<1x32x1152xbf16> to vector<32x1152xbf16>
    %cst_40 = arith.constant dense<0.000000e+00> : vector<32x256xf32>
    %90 = tpu.matmul %89, %0, %cst_40 {dimension_numbers = #tpu.dot_dimension_numbers<[1], [0], [0], [1], [0, 0, 1, 1], [], []>} : vector<32x1152xbf16>, vector<1152x256xbf16>, vector<32x256xf32> -> vector<32x256xf32>
    %91 = vector.broadcast %1 : vector<1x256xf32> to vector<32x256xf32>
    %92 = arith.mulf %90, %91 : vector<32x256xf32>
    %93 = vector.broadcast %2 : vector<1x256xf32> to vector<32x256xf32>
    %94 = arith.addf %92, %93 : vector<32x256xf32>
    %95 = vector.extract_strided_slice %94 {offsets = [0, 0], sizes = [8, 256], strides = [1, 1]} : vector<32x256xf32> to vector<8x256xf32>
    %96 = vector.extract_strided_slice %94 {offsets = [8, 0], sizes = [8, 256], strides = [1, 1]} : vector<32x256xf32> to vector<8x256xf32>
    %97 = arith.maximumf %95, %96 : vector<8x256xf32>
    %98 = vector.extract_strided_slice %94 {offsets = [16, 0], sizes = [8, 256], strides = [1, 1]} : vector<32x256xf32> to vector<8x256xf32>
    %99 = vector.extract_strided_slice %94 {offsets = [24, 0], sizes = [8, 256], strides = [1, 1]} : vector<32x256xf32> to vector<8x256xf32>
    %100 = arith.maximumf %98, %99 : vector<8x256xf32>
    %101 = arith.maximumf %97, %100 : vector<8x256xf32>
    %cst_41 = arith.constant 0.000000e+00 : f32
    %102 = vector.broadcast %cst_41 : f32 to vector<8x256xf32>
    %103 = arith.maximumf %101, %102 : vector<8x256xf32>
    %104 = arith.truncf %103 : vector<8x256xf32> to vector<8x256xbf16>
    %c4_42 = arith.constant 4 : index
    %c0_43 = arith.constant 0 : index
    %c0_44 = arith.constant 0 : index
    %105 = vector.load %arg5[%c4_42, %c0_43, %c0_44] : memref<9x256x256xbf16, #tpu.memory_space<vmem>>, vector<1x256x256xbf16>
    %106 = vector.shape_cast %105 : vector<1x256x256xbf16> to vector<256x256xbf16>
    %cst_45 = arith.constant dense<0.000000e+00> : vector<8x256xf32>
    %107 = tpu.matmul %104, %106, %cst_45 {dimension_numbers = #tpu.dot_dimension_numbers<[1], [0], [0], [1], [0, 0, 1, 1], [], []>} : vector<8x256xbf16>, vector<256x256xbf16>, vector<8x256xf32> -> vector<8x256xf32>
    %108 = arith.addf %87, %107 : vector<8x256xf32>
    %c5 = arith.constant 5 : index
    %c0_46 = arith.constant 0 : index
    %c0_47 = arith.constant 0 : index
    %109 = vector.load %arg1[%c5, %c0_46, %c0_47] : memref<9x32x1152xbf16, #tpu.memory_space<vmem>>, vector<1x32x1152xbf16>
    %110 = vector.shape_cast %109 : vector<1x32x1152xbf16> to vector<32x1152xbf16>
    %cst_48 = arith.constant dense<0.000000e+00> : vector<32x256xf32>
    %111 = tpu.matmul %110, %0, %cst_48 {dimension_numbers = #tpu.dot_dimension_numbers<[1], [0], [0], [1], [0, 0, 1, 1], [], []>} : vector<32x1152xbf16>, vector<1152x256xbf16>, vector<32x256xf32> -> vector<32x256xf32>
    %112 = vector.broadcast %1 : vector<1x256xf32> to vector<32x256xf32>
    %113 = arith.mulf %111, %112 : vector<32x256xf32>
    %114 = vector.broadcast %2 : vector<1x256xf32> to vector<32x256xf32>
    %115 = arith.addf %113, %114 : vector<32x256xf32>
    %116 = vector.extract_strided_slice %115 {offsets = [0, 0], sizes = [8, 256], strides = [1, 1]} : vector<32x256xf32> to vector<8x256xf32>
    %117 = vector.extract_strided_slice %115 {offsets = [8, 0], sizes = [8, 256], strides = [1, 1]} : vector<32x256xf32> to vector<8x256xf32>
    %118 = arith.maximumf %116, %117 : vector<8x256xf32>
    %119 = vector.extract_strided_slice %115 {offsets = [16, 0], sizes = [8, 256], strides = [1, 1]} : vector<32x256xf32> to vector<8x256xf32>
    %120 = vector.extract_strided_slice %115 {offsets = [24, 0], sizes = [8, 256], strides = [1, 1]} : vector<32x256xf32> to vector<8x256xf32>
    %121 = arith.maximumf %119, %120 : vector<8x256xf32>
    %122 = arith.maximumf %118, %121 : vector<8x256xf32>
    %cst_49 = arith.constant 0.000000e+00 : f32
    %123 = vector.broadcast %cst_49 : f32 to vector<8x256xf32>
    %124 = arith.maximumf %122, %123 : vector<8x256xf32>
    %125 = arith.truncf %124 : vector<8x256xf32> to vector<8x256xbf16>
    %c5_50 = arith.constant 5 : index
    %c0_51 = arith.constant 0 : index
    %c0_52 = arith.constant 0 : index
    %126 = vector.load %arg5[%c5_50, %c0_51, %c0_52] : memref<9x256x256xbf16, #tpu.memory_space<vmem>>, vector<1x256x256xbf16>
    %127 = vector.shape_cast %126 : vector<1x256x256xbf16> to vector<256x256xbf16>
    %cst_53 = arith.constant dense<0.000000e+00> : vector<8x256xf32>
    %128 = tpu.matmul %125, %127, %cst_53 {dimension_numbers = #tpu.dot_dimension_numbers<[1], [0], [0], [1], [0, 0, 1, 1], [], []>} : vector<8x256xbf16>, vector<256x256xbf16>, vector<8x256xf32> -> vector<8x256xf32>
    %129 = arith.addf %108, %128 : vector<8x256xf32>
    %c6 = arith.constant 6 : index
    %c0_54 = arith.constant 0 : index
    %c0_55 = arith.constant 0 : index
    %130 = vector.load %arg1[%c6, %c0_54, %c0_55] : memref<9x32x1152xbf16, #tpu.memory_space<vmem>>, vector<1x32x1152xbf16>
    %131 = vector.shape_cast %130 : vector<1x32x1152xbf16> to vector<32x1152xbf16>
    %cst_56 = arith.constant dense<0.000000e+00> : vector<32x256xf32>
    %132 = tpu.matmul %131, %0, %cst_56 {dimension_numbers = #tpu.dot_dimension_numbers<[1], [0], [0], [1], [0, 0, 1, 1], [], []>} : vector<32x1152xbf16>, vector<1152x256xbf16>, vector<32x256xf32> -> vector<32x256xf32>
    %133 = vector.broadcast %1 : vector<1x256xf32> to vector<32x256xf32>
    %134 = arith.mulf %132, %133 : vector<32x256xf32>
    %135 = vector.broadcast %2 : vector<1x256xf32> to vector<32x256xf32>
    %136 = arith.addf %134, %135 : vector<32x256xf32>
    %137 = vector.extract_strided_slice %136 {offsets = [0, 0], sizes = [8, 256], strides = [1, 1]} : vector<32x256xf32> to vector<8x256xf32>
    %138 = vector.extract_strided_slice %136 {offsets = [8, 0], sizes = [8, 256], strides = [1, 1]} : vector<32x256xf32> to vector<8x256xf32>
    %139 = arith.maximumf %137, %138 : vector<8x256xf32>
    %140 = vector.extract_strided_slice %136 {offsets = [16, 0], sizes = [8, 256], strides = [1, 1]} : vector<32x256xf32> to vector<8x256xf32>
    %141 = vector.extract_strided_slice %136 {offsets = [24, 0], sizes = [8, 256], strides = [1, 1]} : vector<32x256xf32> to vector<8x256xf32>
    %142 = arith.maximumf %140, %141 : vector<8x256xf32>
    %143 = arith.maximumf %139, %142 : vector<8x256xf32>
    %cst_57 = arith.constant 0.000000e+00 : f32
    %144 = vector.broadcast %cst_57 : f32 to vector<8x256xf32>
    %145 = arith.maximumf %143, %144 : vector<8x256xf32>
    %146 = arith.truncf %145 : vector<8x256xf32> to vector<8x256xbf16>
    %c6_58 = arith.constant 6 : index
    %c0_59 = arith.constant 0 : index
    %c0_60 = arith.constant 0 : index
    %147 = vector.load %arg5[%c6_58, %c0_59, %c0_60] : memref<9x256x256xbf16, #tpu.memory_space<vmem>>, vector<1x256x256xbf16>
    %148 = vector.shape_cast %147 : vector<1x256x256xbf16> to vector<256x256xbf16>
    %cst_61 = arith.constant dense<0.000000e+00> : vector<8x256xf32>
    %149 = tpu.matmul %146, %148, %cst_61 {dimension_numbers = #tpu.dot_dimension_numbers<[1], [0], [0], [1], [0, 0, 1, 1], [], []>} : vector<8x256xbf16>, vector<256x256xbf16>, vector<8x256xf32> -> vector<8x256xf32>
    %150 = arith.addf %129, %149 : vector<8x256xf32>
    %c7 = arith.constant 7 : index
    %c0_62 = arith.constant 0 : index
    %c0_63 = arith.constant 0 : index
    %151 = vector.load %arg1[%c7, %c0_62, %c0_63] : memref<9x32x1152xbf16, #tpu.memory_space<vmem>>, vector<1x32x1152xbf16>
    %152 = vector.shape_cast %151 : vector<1x32x1152xbf16> to vector<32x1152xbf16>
    %cst_64 = arith.constant dense<0.000000e+00> : vector<32x256xf32>
    %153 = tpu.matmul %152, %0, %cst_64 {dimension_numbers = #tpu.dot_dimension_numbers<[1], [0], [0], [1], [0, 0, 1, 1], [], []>} : vector<32x1152xbf16>, vector<1152x256xbf16>, vector<32x256xf32> -> vector<32x256xf32>
    %154 = vector.broadcast %1 : vector<1x256xf32> to vector<32x256xf32>
    %155 = arith.mulf %153, %154 : vector<32x256xf32>
    %156 = vector.broadcast %2 : vector<1x256xf32> to vector<32x256xf32>
    %157 = arith.addf %155, %156 : vector<32x256xf32>
    %158 = vector.extract_strided_slice %157 {offsets = [0, 0], sizes = [8, 256], strides = [1, 1]} : vector<32x256xf32> to vector<8x256xf32>
    %159 = vector.extract_strided_slice %157 {offsets = [8, 0], sizes = [8, 256], strides = [1, 1]} : vector<32x256xf32> to vector<8x256xf32>
    %160 = arith.maximumf %158, %159 : vector<8x256xf32>
    %161 = vector.extract_strided_slice %157 {offsets = [16, 0], sizes = [8, 256], strides = [1, 1]} : vector<32x256xf32> to vector<8x256xf32>
    %162 = vector.extract_strided_slice %157 {offsets = [24, 0], sizes = [8, 256], strides = [1, 1]} : vector<32x256xf32> to vector<8x256xf32>
    %163 = arith.maximumf %161, %162 : vector<8x256xf32>
    %164 = arith.maximumf %160, %163 : vector<8x256xf32>
    %cst_65 = arith.constant 0.000000e+00 : f32
    %165 = vector.broadcast %cst_65 : f32 to vector<8x256xf32>
    %166 = arith.maximumf %164, %165 : vector<8x256xf32>
    %167 = arith.truncf %166 : vector<8x256xf32> to vector<8x256xbf16>
    %c7_66 = arith.constant 7 : index
    %c0_67 = arith.constant 0 : index
    %c0_68 = arith.constant 0 : index
    %168 = vector.load %arg5[%c7_66, %c0_67, %c0_68] : memref<9x256x256xbf16, #tpu.memory_space<vmem>>, vector<1x256x256xbf16>
    %169 = vector.shape_cast %168 : vector<1x256x256xbf16> to vector<256x256xbf16>
    %cst_69 = arith.constant dense<0.000000e+00> : vector<8x256xf32>
    %170 = tpu.matmul %167, %169, %cst_69 {dimension_numbers = #tpu.dot_dimension_numbers<[1], [0], [0], [1], [0, 0, 1, 1], [], []>} : vector<8x256xbf16>, vector<256x256xbf16>, vector<8x256xf32> -> vector<8x256xf32>
    %171 = arith.addf %150, %170 : vector<8x256xf32>
    %c8 = arith.constant 8 : index
    %c0_70 = arith.constant 0 : index
    %c0_71 = arith.constant 0 : index
    %172 = vector.load %arg1[%c8, %c0_70, %c0_71] : memref<9x32x1152xbf16, #tpu.memory_space<vmem>>, vector<1x32x1152xbf16>
    %173 = vector.shape_cast %172 : vector<1x32x1152xbf16> to vector<32x1152xbf16>
    %cst_72 = arith.constant dense<0.000000e+00> : vector<32x256xf32>
    %174 = tpu.matmul %173, %0, %cst_72 {dimension_numbers = #tpu.dot_dimension_numbers<[1], [0], [0], [1], [0, 0, 1, 1], [], []>} : vector<32x1152xbf16>, vector<1152x256xbf16>, vector<32x256xf32> -> vector<32x256xf32>
    %175 = vector.broadcast %1 : vector<1x256xf32> to vector<32x256xf32>
    %176 = arith.mulf %174, %175 : vector<32x256xf32>
    %177 = vector.broadcast %2 : vector<1x256xf32> to vector<32x256xf32>
    %178 = arith.addf %176, %177 : vector<32x256xf32>
    %179 = vector.extract_strided_slice %178 {offsets = [0, 0], sizes = [8, 256], strides = [1, 1]} : vector<32x256xf32> to vector<8x256xf32>
    %180 = vector.extract_strided_slice %178 {offsets = [8, 0], sizes = [8, 256], strides = [1, 1]} : vector<32x256xf32> to vector<8x256xf32>
    %181 = arith.maximumf %179, %180 : vector<8x256xf32>
    %182 = vector.extract_strided_slice %178 {offsets = [16, 0], sizes = [8, 256], strides = [1, 1]} : vector<32x256xf32> to vector<8x256xf32>
    %183 = vector.extract_strided_slice %178 {offsets = [24, 0], sizes = [8, 256], strides = [1, 1]} : vector<32x256xf32> to vector<8x256xf32>
    %184 = arith.maximumf %182, %183 : vector<8x256xf32>
    %185 = arith.maximumf %181, %184 : vector<8x256xf32>
    %cst_73 = arith.constant 0.000000e+00 : f32
    %186 = vector.broadcast %cst_73 : f32 to vector<8x256xf32>
    %187 = arith.maximumf %185, %186 : vector<8x256xf32>
    %188 = arith.truncf %187 : vector<8x256xf32> to vector<8x256xbf16>
    %c8_74 = arith.constant 8 : index
    %c0_75 = arith.constant 0 : index
    %c0_76 = arith.constant 0 : index
    %189 = vector.load %arg5[%c8_74, %c0_75, %c0_76] : memref<9x256x256xbf16, #tpu.memory_space<vmem>>, vector<1x256x256xbf16>
    %190 = vector.shape_cast %189 : vector<1x256x256xbf16> to vector<256x256xbf16>
    %cst_77 = arith.constant dense<0.000000e+00> : vector<8x256xf32>
    %191 = tpu.matmul %188, %190, %cst_77 {dimension_numbers = #tpu.dot_dimension_numbers<[1], [0], [0], [1], [0, 0, 1, 1], [], []>} : vector<8x256xbf16>, vector<256x256xbf16>, vector<8x256xf32> -> vector<8x256xf32>
    %192 = arith.addf %171, %191 : vector<8x256xf32>
    %c0_78 = arith.constant 0 : index
    %c0_79 = arith.constant 0 : index
    %193 = vector.load %arg6[%c0_78, %c0_79] : memref<1x256xf32, #tpu.memory_space<vmem>>, vector<1x256xf32>
    %194 = vector.broadcast %193 : vector<1x256xf32> to vector<8x256xf32>
    %195 = arith.addf %192, %194 : vector<8x256xf32>
    %cst_80 = arith.constant 0.000000e+00 : f32
    %196 = vector.broadcast %cst_80 : f32 to vector<8x256xf32>
    %197 = arith.maximumf %195, %196 : vector<8x256xf32>
    %198 = arith.truncf %197 : vector<8x256xf32> to vector<8x256xbf16>
    %c0_81 = arith.constant 0 : index
    %c0_82 = arith.constant 0 : index
    %199 = vector.load %arg7[%c0_81, %c0_82] : memref<256x128xbf16, #tpu.memory_space<vmem>>, vector<256x128xbf16>
    %cst_83 = arith.constant dense<0.000000e+00> : vector<8x128xf32>
    %200 = tpu.matmul %198, %199, %cst_83 {dimension_numbers = #tpu.dot_dimension_numbers<[1], [0], [0], [1], [0, 0, 1, 1], [], []>} : vector<8x256xbf16>, vector<256x128xbf16>, vector<8x128xf32> -> vector<8x128xf32>
    %c0_84 = arith.constant 0 : index
    %c0_85 = arith.constant 0 : index
    %201 = vector.load %arg8[%c0_84, %c0_85] : memref<1x128xf32, #tpu.memory_space<vmem>>, vector<1x128xf32>
    %202 = vector.broadcast %201 : vector<1x128xf32> to vector<8x128xf32>
    %203 = arith.addf %200, %202 : vector<8x128xf32>
    %c0_86 = arith.constant 0 : index
    %c0_87 = arith.constant 0 : index
    %204 = vector.load %arg9[%c0_86, %c0_87] : memref<8x128xf32, #tpu.memory_space<vmem>>, vector<8x128xf32>
    tpu.vector_store %arg9[%c0_86, %c0_87], %203 {strides = array<i32>} : memref<8x128xf32, #tpu.memory_space<vmem>>, vector<8x128xf32>,
    return
  }
  func.func @transform_0(%arg0: i32) -> (i32, i32, i32) {
    %c0_i32 = arith.constant 0 : i32
    %c0_i32_0 = arith.constant 0 : i32
    %c0_i32_1 = arith.constant 0 : i32
    return %c0_i32, %arg0, %c0_i32_0 : i32, i32, i32
  }
  func.func @transform_1(%arg0: i32) -> (i32, i32) {
    %c0_i32 = arith.constant 0 : i32
    %c0_i32_0 = arith.constant 0 : i32
    %c0_i32_1 = arith.constant 0 : i32
    return %c0_i32, %c0_i32_0 : i32, i32
  }
  func.func @transform_2(%arg0: i32) -> (i32, i32) {
    %c0_i32 = arith.constant 0 : i32
    %c0_i32_0 = arith.constant 0 : i32
    %c0_i32_1 = arith.constant 0 : i32
    return %c0_i32, %c0_i32_0 : i32, i32
  }
  func.func @transform_3(%arg0: i32) -> (i32, i32) {
    %c0_i32 = arith.constant 0 : i32
    %c0_i32_0 = arith.constant 0 : i32
    %c0_i32_1 = arith.constant 0 : i32
    return %c0_i32, %c0_i32_0 : i32, i32
  }
  func.func @transform_4(%arg0: i32) -> (i32, i32, i32) {
    %c0_i32 = arith.constant 0 : i32
    %c0_i32_0 = arith.constant 0 : i32
    %c0_i32_1 = arith.constant 0 : i32
    %c0_i32_2 = arith.constant 0 : i32
    return %c0_i32, %c0_i32_0, %c0_i32_1 : i32, i32, i32
  }
  func.func @transform_5(%arg0: i32) -> (i32, i32) {
    %c0_i32 = arith.constant 0 : i32
    %c0_i32_0 = arith.constant 0 : i32
    %c0_i32_1 = arith.constant 0 : i32
    return %c0_i32, %c0_i32_0 : i32, i32
  }
  func.func @transform_6(%arg0: i32) -> (i32, i32) {
    %c0_i32 = arith.constant 0 : i32
    %c0_i32_0 = arith.constant 0 : i32
    %c0_i32_1 = arith.constant 0 : i32
    return %c0_i32, %c0_i32_0 : i32, i32
  }
  func.func @transform_7(%arg0: i32) -> (i32, i32) {
    %c0_i32 = arith.constant 0 : i32
    %c0_i32_0 = arith.constant 0 : i32
    %c0_i32_1 = arith.constant 0 : i32
    return %c0_i32, %c0_i32_0 : i32, i32
  }
  func.func @transform_8(%arg0: i32) -> (i32, i32) {
    %c0_i32 = arith.constant 0 : i32
    %c0_i32_0 = arith.constant 0 : i32
    return %arg0, %c0_i32 : i32, i32
  }
}

</mosaic_0001>

<llo_original>
// kernel: cnn_forward.3
$region0: #{cnn_forward.3}
  #allocation0 [shape = 'u32[]', space=smem, size = 0x4, offset = 0x4, fixed_abs, tag = 'smem constant byte address 0x4 - core index']
  #allocation1 [shape = 'u32[72,128]{1,0:T(1,128)}', space=vmem, size = 0x9000, scoped, tag = 'internal scratch']
  %s0 = inlined_call_operand.vmem [shape: bf16[1600,9], index: 0, kind: input, shape index: {}]
  %s1 = inlined_call_operand.vmem [shape: bf16[9,128], index: 1, kind: input, shape index: {}]
  %s2 = inlined_call_operand.vmem [shape: f32[1,128], index: 2, kind: input, shape index: {}]
  %s3 = inlined_call_operand.vmem [shape: f32[1,128], index: 3, kind: input, shape index: {}]
  %s4 = inlined_call_operand.vmem [shape: bf16[400,128], index: 4, kind: output, shape index: {}]
  %s5 = sld [smem:[#allocation0]]
  $region49: #{cnn_forward.3} parent=0
    _
  %s7 = ssub.s32 1, %s5
  %s8 = scalar_select 0, %s7, %s5
  loop: start=0, step=1, limit=4
  $region2: #{cnn_forward.3} parent=0 // loop_pre_header
    _
  $region3: #{cnn_forward.3} parent=0 // loop_header
    %s10 = sphi 0, %s14
    %p11 = scmp.ge.s32.totalorder %s10, 4
    %s20 = sphi 0, %s22
    %s23 = sphi 0, %s20
    %s24 = sphi 0, %s23
    %s40 = sphi 0, %s24
    %s44 = sphi 0, %s44
    %s46 = sphi 0, %s44
    %s47 = sphi 0, %s46
    %s61 = sphi 0, %s47
    %s65 = sphi 0, %s65
    %s67 = sphi 0, %s65
    %s68 = sphi 0, %s67
    %s82 = sphi 0, %s68
    %s86 = sphi 0, %s86
    %s88 = sphi 0, %s86
    %s89 = sphi 0, %s88
    %s103 = sphi 0, %s89
    %s109 = sphi 0, %s111
    %s112 = sphi 0, %s109
    %s113 = sphi 0, %s112
    %s129 = sphi 0, %s113
  $region4: #{cnn_forward.3} parent=0 // loop_header_branch
    %13 = sbr.rel (%p11) target = $region8
  $region5: #{cnn_forward.3} parent=0 // loop_body
    %s15 = ssub.s32 %s10, 1
    %s16 = ssub.s32 %s10, 2
    %s17 = sadd.s32 %s10, 1
    %s18 = ssub.s32 %s10, %s17
    %p19 = scmp.eq.s32.totalorder %s18, 0
    %s21 = sadd.s32 %s20, 1
    %s22 = scalar_select %p19, %s20, %s21
    %p25 = pneg %p19
    %p26 = scmp.eq.s32.totalorder %s10, 1
    %p27 = por %p25, %p26
    %p28 = scmp.ne.s32.totalorder %s20, %s23
    %p29 = scmp.eq.s32.totalorder %s10, 0
    %p30 = por %p28, %p29
    %p31 = scmp.ne.s32.totalorder %s20, %s23
    %p32 = scmp.eq.s32.totalorder %s15, 1
    %p33 = por %p31, %p32
    %p34 = scmp.ne.s32.totalorder %s23, %s24
    %p35 = scmp.eq.s32.totalorder %s15, 0
    %p36 = por %p34, %p35
    %p37 = scmp.ne.s32.totalorder %s23, %s24
    %p38 = scmp.eq.s32.totalorder %s16, 1
    %p39 = por %p37, %p38
    %p41 = scmp.ne.s32.totalorder %s24, %s40
    %p42 = scmp.eq.s32.totalorder %s16, 0
    %p43 = por %p41, %p42
    %s45 = sadd.s32 %s44, 1
    %p48 = scmp.eq.s32.totalorder %s10, 1
    %p49 = scmp.ne.s32.totalorder %s44, %s46
    %p50 = scmp.eq.s32.totalorder %s10, 0
    %p51 = por %p49, %p50
    %p52 = scmp.ne.s32.totalorder %s44, %s46
    %p53 = scmp.eq.s32.totalorder %s15, 1
    %p54 = por %p52, %p53
    %p55 = scmp.ne.s32.totalorder %s46, %s47
    %p56 = scmp.eq.s32.totalorder %s15, 0
    %p57 = por %p55, %p56
    %p58 = scmp.ne.s32.totalorder %s46, %s47
    %p59 = scmp.eq.s32.totalorder %s16, 1
    %p60 = por %p58, %p59
    %p62 = scmp.ne.s32.totalorder %s47, %s61
    %p63 = scmp.eq.s32.totalorder %s16, 0
    %p64 = por %p62, %p63
    %s66 = sadd.s32 %s65, 1
    %p69 = scmp.eq.s32.totalorder %s10, 1
    %p70 = scmp.ne.s32.totalorder %s65, %s67
    %p71 = scmp.eq.s32.totalorder %s10, 0
    %p72 = por %p70, %p71
    %p73 = scmp.ne.s32.totalorder %s65, %s67
    %p74 = scmp.eq.s32.totalorder %s15, 1
    %p75 = por %p73, %p74
    %p76 = scmp.ne.s32.totalorder %s67, %s68
    %p77 = scmp.eq.s32.totalorder %s15, 0
    %p78 = por %p76, %p77
    %p79 = scmp.ne.s32.totalorder %s67, %s68
    %p80 = scmp.eq.s32.totalorder %s16, 1
    %p81 = por %p79, %p80
    %p83 = scmp.ne.s32.totalorder %s68, %s82
    %p84 = scmp.eq.s32.totalorder %s16, 0
    %p85 = por %p83, %p84
    %s87 = sadd.s32 %s86, 1
    %p90 = scmp.eq.s32.totalorder %s10, 1
    %p91 = scmp.ne.s32.totalorder %s86, %s88
    %p92 = scmp.eq.s32.totalorder %s10, 0
    %p93 = por %p91, %p92
    %p94 = scmp.ne.s32.totalorder %s86, %s88
    %p95 = scmp.eq.s32.totalorder %s15, 1
    %p96 = por %p94, %p95
    %p97 = scmp.ne.s32.totalorder %s88, %s89
    %p98 = scmp.eq.s32.totalorder %s15, 0
    %p99 = por %p97, %p98
    %p100 = scmp.ne.s32.totalorder %s88, %s89
    %p101 = scmp.eq.s32.totalorder %s16, 1
    %p102 = por %p100, %p101
    %p104 = scmp.ne.s32.totalorder %s89, %s103
    %p105 = scmp.eq.s32.totalorder %s16, 0
    %p106 = por %p104, %p105
    %s107 = ssub.s32 %s10, %s17
    %p108 = scmp.eq.s32.totalorder %s107, 0
    %s110 = sadd.s32 %s109, 1
    %s111 = scalar_select %p108, %s109, %s110
    %p114 = pneg %p108
    %p115 = scmp.eq.s32.totalorder %s10, 1
    %p116 = por %p114, %p115
    %p117 = scmp.ne.s32.totalorder %s109, %s112
    %p118 = scmp.eq.s32.totalorder %s10, 0
    %p119 = por %p117, %p118
    %p120 = scmp.ne.s32.totalorder %s109, %s112
    %p121 = scmp.eq.s32.totalorder %s15, 1
    %p122 = por %p120, %p121
    %p123 = scmp.ne.s32.totalorder %s112, %s113
    %p124 = scmp.eq.s32.totalorder %s15, 0
    %p125 = por %p123, %p124
    %p126 = scmp.ne.s32.totalorder %s112, %s113
    %p127 = scmp.eq.s32.totalorder %s16, 1
    %p128 = por %p126, %p127
    %p130 = scmp.ne.s32.totalorder %s113, %s129
    %p131 = scmp.eq.s32.totalorder %s16, 0
    %p132 = por %p130, %p131
    %p133 = scmp.le.s32.totalorder 1, %s10
    %p134 = scmp.lt.s32.totalorder %s10, 3
    %p135 = pnand %p133, %p134
    %p136 = pneg %p135
    // Predicated region
    $region9: #{cnn_forward.3} parent=5 // pred_check
      _
    $region10: #{cnn_forward.3} parent=5 // pred_check_branch
      %138 = sbr.rel (%p135) target = $region12
    $region11: #{cnn_forward.3} parent=5 // pred_region
      %s139 = ssub.s32 %s10, 1
      // Predicated region
      $region13: #{cnn_forward.3} parent=11 // pred_check
        %p140 = pneg %p57
      $region14: #{cnn_forward.3} parent=11 // pred_check_branch
        %142 = sbr.rel (%p140) target = $region16
      $region15: #{cnn_forward.3} parent=11 // pred_region
        _
      $region16: #{cnn_forward.3} parent=11 // pred_fallthru
        _
      // Predicated region
      $region17: #{cnn_forward.3} parent=11 // pred_check
        %p143 = pneg %p78
      $region18: #{cnn_forward.3} parent=11 // pred_check_branch
        %145 = sbr.rel (%p143) target = $region20
      $region19: #{cnn_forward.3} parent=11 // pred_region
        _
      $region20: #{cnn_forward.3} parent=11 // pred_fallthru
        _
      // Predicated region
      $region21: #{cnn_forward.3} parent=11 // pred_check
        %p146 = pneg %p99
      $region22: #{cnn_forward.3} parent=11 // pred_check_branch
        %148 = sbr.rel (%p146) target = $region24
      $region23: #{cnn_forward.3} parent=11 // pred_region
        _
      $region24: #{cnn_forward.3} parent=11 // pred_fallthru
        _
    $region12: #{cnn_forward.3} parent=5 // pred_fallthru
      _
    %p149 = scmp.lt.s32.totalorder %s10, 2
    // Predicated region
    $region25: #{cnn_forward.3} parent=5 // pred_check
      %p150 = pneg %p149
    $region26: #{cnn_forward.3} parent=5 // pred_check_branch
      %152 = sbr.rel (%p150) target = $region28
    $region27: #{cnn_forward.3} parent=5 // pred_region
      // Predicated region
      $region29: #{cnn_forward.3} parent=27 // pred_check
        %p153 = pneg %p30
      $region30: #{cnn_forward.3} parent=27 // pred_check_branch
        %155 = sbr.rel (%p153) target = $region32
      $region31: #{cnn_forward.3} parent=27 // pred_region
        %s156 = smul.u32 100, %s10
        %p157 = scmp.lt.s32.totalorder %s156, 199
        %s158 = scalar_select %p157, %s156, 199
        %s159 = smul.addr %s158, 4
        %s160 = scalar_lea.vmem %s0, %s159
        %s161 = smul.u32 100, %s10
      $region32: #{cnn_forward.3} parent=27 // pred_fallthru
        _
    $region28: #{cnn_forward.3} parent=5 // pred_fallthru
      _
    %p162 = scmp.le.s32.totalorder 1, %s10
    %p163 = scmp.lt.s32.totalorder %s10, 3
    %p164 = pnand %p162, %p163
    %p165 = pneg %p164
    // Predicated region
    $region33: #{cnn_forward.3} parent=5 // pred_check
      _
    $region34: #{cnn_forward.3} parent=5 // pred_check_branch
      %167 = sbr.rel (%p164) target = $region36
    $region35: #{cnn_forward.3} parent=5 // pred_region
      %s168 = ssub.s32 %s10, 1
      %s169 = smul.u32 100, %s15
      %p170 = scmp.lt.s32.totalorder %s169, 199
      %s171 = scalar_select %p170, %s169, 199
      %s172 = smul.addr %s171, 4
      %s173 = scalar_lea.vmem %s0, %s172
      %p174 = pneg %p36
      %p175 = pneg %p33
      %p176 = pneg %p57
      %p177 = pneg %p54
      %p178 = pneg %p78
      %p179 = pneg %p75
      %p180 = pneg %p99
      %p181 = pneg %p96
      %p182 = pneg %p125
      %p183 = pneg %p122
      %s184 = smul.u32 25, %s15
      %p185 = scmp.lt.s32.totalorder %s184, 49
      %s186 = scalar_select %p185, %s184, 49
      %s187 = smul.addr %s186, 4
      %s188 = scalar_lea.vmem %s4, %s187
      %s189 = smul.u32 100, %s15
      %p190 = scmp.lt.s32.totalorder %s189, 199
      %s191 = scalar_select %p190, %s189, 199
      %s192 = smul.addr %s191, 4
      %s193 = scalar_lea.vmem %s0, %s192
      %s194 = smul.u32 100, %s15
      %s195 = smul.u32 25, %s15
      %p196 = scmp.lt.s32.totalorder %s195, 49
      %s197 = scalar_select %p196, %s195, 49
      %s198 = smul.addr %s197, 4
      %s199 = scalar_lea.vmem %s4, %s198
      %s200 = smul.u32 25, %s15
      %v202 = vld [vmem:[%s193] sm:$0xf]
      %v203 = vld [vmem:[%s193 + $0x4] sm:$0xf]
      %v204 = vld [vmem:[%s193 + $0x8] sm:$0xf]
      %v205 = vld [vmem:[%s193 + $0xc] sm:$0xf]
      %v206 = vld [vmem:[%s193 + $0x10] sm:$0xf]
      %v207 = vld [vmem:[%s193 + $0x14] sm:$0xf]
      %v208 = vld [vmem:[%s193 + $0x18] sm:$0xf]
      %v209 = vld [vmem:[%s193 + $0x1c] sm:$0xf]
      %v210 = vld [vmem:[%s193 + $0x20] sm:$0xf]
      %v211 = vld [vmem:[%s193 + $0x24] sm:$0xf]
      %v212 = vld [vmem:[%s193 + $0x28] sm:$0xf]
      %v213 = vld [vmem:[%s193 + $0x2c] sm:$0xf]
      %v214 = vld [vmem:[%s193 + $0x30] sm:$0xf]
      %v215 = vld [vmem:[%s193 + $0x34] sm:$0xf]
      %v216 = vld [vmem:[%s193 + $0x38] sm:$0xf]
      %v217 = vld [vmem:[%s193 + $0x3c] sm:$0xf]
      %v218 = vld [vmem:[%s193 + $0x40] sm:$0xf]
      %v219 = vld [vmem:[%s193 + $0x44] sm:$0xf]
      %v220 = vld [vmem:[%s193 + $0x48] sm:$0xf]
      %v221 = vld [vmem:[%s193 + $0x4c] sm:$0xf]
      %v222 = vld [vmem:[%s193 + $0x50] sm:$0xf]
      %v223 = vld [vmem:[%s193 + $0x54] sm:$0xf]
      %v224 = vld [vmem:[%s193 + $0x58] sm:$0xf]
      %v225 = vld [vmem:[%s193 + $0x5c] sm:$0xf]
      %v226 = vld [vmem:[%s193 + $0x60] sm:$0xf]
      %v227 = vld [vmem:[%s193 + $0x64] sm:$0xf]
      %v228 = vld [vmem:[%s193 + $0x68] sm:$0xf]
      %v229 = vld [vmem:[%s193 + $0x6c] sm:$0xf]
      %v230 = vld [vmem:[%s193 + $0x70] sm:$0xf]
      %v231 = vld [vmem:[%s193 + $0x74] sm:$0xf]
      %v232 = vld [vmem:[%s193 + $0x78] sm:$0xf]
      %v233 = vld [vmem:[%s193 + $0x7c] sm:$0xf]
      %v234 = vld [vmem:[%s193 + $0x80] sm:$0xf]
      %v235 = vld [vmem:[%s193 + $0x84] sm:$0xf]
      %v236 = vld [vmem:[%s193 + $0x88] sm:$0xf]
      %v237 = vld [vmem:[%s193 + $0x8c] sm:$0xf]
      %v238 = vld [vmem:[%s193 + $0x90] sm:$0xf]
      %v239 = vld [vmem:[%s193 + $0x94] sm:$0xf]
      %v240 = vld [vmem:[%s193 + $0x98] sm:$0xf]
      %v241 = vld [vmem:[%s193 + $0x9c] sm:$0xf]
      %v242 = vld [vmem:[%s193 + $0xa0] sm:$0xf]
      %v243 = vld [vmem:[%s193 + $0xa4] sm:$0xf]
      %v244 = vld [vmem:[%s193 + $0xa8] sm:$0xf]
      %v245 = vld [vmem:[%s193 + $0xac] sm:$0xf]
      %v246 = vld [vmem:[%s193 + $0xb0] sm:$0xf]
      %v247 = vld [vmem:[%s193 + $0xb4] sm:$0xf]
      %v248 = vld [vmem:[%s193 + $0xb8] sm:$0xf]
      %v249 = vld [vmem:[%s193 + $0xbc] sm:$0xf]
      %v250 = vld [vmem:[%s193 + $0xc0] sm:$0xf]
      %v251 = vld [vmem:[%s193 + $0xc4] sm:$0xf]
      %v252 = vld [vmem:[%s193 + $0xc8] sm:$0xf]
      %v253 = vld [vmem:[%s193 + $0xcc] sm:$0xf]
      %v254 = vld [vmem:[%s193 + $0xd0] sm:$0xf]
      %v255 = vld [vmem:[%s193 + $0xd4] sm:$0xf]
      %v256 = vld [vmem:[%s193 + $0xd8] sm:$0xf]
      %v257 = vld [vmem:[%s193 + $0xdc] sm:$0xf]
      %v258 = vld [vmem:[%s193 + $0xe0] sm:$0xf]
      %v259 = vld [vmem:[%s193 + $0xe4] sm:$0xf]
      %v260 = vld [vmem:[%s193 + $0xe8] sm:$0xf]
      %v261 = vld [vmem:[%s193 + $0xec] sm:$0xf]
      %v262 = vld [vmem:[%s193 + $0xf0] sm:$0xf]
      %v263 = vld [vmem:[%s193 + $0xf4] sm:$0xf]
      %v264 = vld [vmem:[%s193 + $0xf8] sm:$0xf]
      %v265 = vld [vmem:[%s193 + $0xfc] sm:$0xf]
      %v266 = vld [vmem:[%s193 + $0x100] sm:$0xf]
      %v267 = vld [vmem:[%s193 + $0x104] sm:$0xf]
      %v268 = vld [vmem:[%s193 + $0x108] sm:$0xf]
      %v269 = vld [vmem:[%s193 + $0x10c] sm:$0xf]
      %v270 = vld [vmem:[%s193 + $0x110] sm:$0xf]
      %v271 = vld [vmem:[%s193 + $0x114] sm:$0xf]
      %v272 = vld [vmem:[%s193 + $0x118] sm:$0xf]
      %v273 = vld [vmem:[%s193 + $0x11c] sm:$0xf]
      %v274 = vld [vmem:[%s193 + $0x120] sm:$0xf]
      %v275 = vld [vmem:[%s193 + $0x124] sm:$0xf]
      %v276 = vld [vmem:[%s193 + $0x128] sm:$0xf]
      %v277 = vld [vmem:[%s193 + $0x12c] sm:$0xf]
      %v278 = vld [vmem:[%s193 + $0x130] sm:$0xf]
      %v279 = vld [vmem:[%s193 + $0x134] sm:$0xf]
      %v280 = vld [vmem:[%s193 + $0x138] sm:$0xf]
      %v281 = vld [vmem:[%s193 + $0x13c] sm:$0xf]
      %v282 = vld [vmem:[%s193 + $0x140] sm:$0xf]
      %v283 = vld [vmem:[%s193 + $0x144] sm:$0xf]
      %v284 = vld [vmem:[%s193 + $0x148] sm:$0xf]
      %v285 = vld [vmem:[%s193 + $0x14c] sm:$0xf]
      %v286 = vld [vmem:[%s193 + $0x150] sm:$0xf]
      %v287 = vld [vmem:[%s193 + $0x154] sm:$0xf]
      %v288 = vld [vmem:[%s193 + $0x158] sm:$0xf]
      %v289 = vld [vmem:[%s193 + $0x15c] sm:$0xf]
      %v290 = vld [vmem:[%s193 + $0x160] sm:$0xf]
      %v291 = vld [vmem:[%s193 + $0x164] sm:$0xf]
      %v292 = vld [vmem:[%s193 + $0x168] sm:$0xf]
      %v293 = vld [vmem:[%s193 + $0x16c] sm:$0xf]
      %v294 = vld [vmem:[%s193 + $0x170] sm:$0xf]
      %v295 = vld [vmem:[%s193 + $0x174] sm:$0xf]
      %v296 = vld [vmem:[%s193 + $0x178] sm:$0xf]
      %v297 = vld [vmem:[%s193 + $0x17c] sm:$0xf]
      %v298 = vld [vmem:[%s193 + $0x180] sm:$0xf]
      %v299 = vld [vmem:[%s193 + $0x184] sm:$0xf]
      %v300 = vld [vmem:[%s193 + $0x188] sm:$0xf]
      %v301 = vld [vmem:[%s193 + $0x18c] sm:$0xf]
      %v302 = vld [vmem:[%s1] sm:$0xf]
      %v303 = vld [vmem:[%s1 + $0x4] sm:$0x1]
      %v404 = vunpack.c.l.b16 %v202
      %v405 = vunpack.c.l.b16 %v203
      %v406 = vunpack.c.l.b16 %v204
      %v407 = vunpack.c.l.b16 %v205
      %v408 = vunpack.c.l.b16 %v206
      %v409 = vunpack.c.l.b16 %v207
      %v410 = vunpack.c.l.b16 %v208
      %v411 = vunpack.c.l.b16 %v209
      %v412 = vunpack.c.l.b16 %v210
      %v413 = vunpack.c.l.b16 %v211
      %v414 = vunpack.c.l.b16 %v212
      %v415 = vunpack.c.l.b16 %v213
      %v416 = vunpack.c.l.b16 %v214
      %v417 = vunpack.c.l.b16 %v215
      %v418 = vunpack.c.l.b16 %v216
      %v419 = vunpack.c.l.b16 %v217
      %v420 = vunpack.c.l.b16 %v218
      %v421 = vunpack.c.l.b16 %v219
      %v422 = vunpack.c.l.b16 %v220
      %v423 = vunpack.c.l.b16 %v221
      %v424 = vunpack.c.l.b16 %v222
      %v425 = vunpack.c.l.b16 %v223
      %v426 = vunpack.c.l.b16 %v224
      %v427 = vunpack.c.l.b16 %v225
      %v428 = vunpack.c.l.b16 %v226
      %v429 = vunpack.c.l.b16 %v227
      %v430 = vunpack.c.l.b16 %v228
      %v431 = vunpack.c.l.b16 %v229
      %v432 = vunpack.c.l.b16 %v230
      %v433 = vunpack.c.l.b16 %v231
      %v434 = vunpack.c.l.b16 %v232
      %v435 = vunpack.c.l.b16 %v233
      %v436 = vunpack.c.l.b16 %v234
      %v437 = vunpack.c.l.b16 %v235
      %v438 = vunpack.c.l.b16 %v236
      %v439 = vunpack.c.l.b16 %v237
      %v440 = vunpack.c.l.b16 %v238
      %v441 = vunpack.c.l.b16 %v239
      %v442 = vunpack.c.l.b16 %v240
      %v443 = vunpack.c.l.b16 %v241
      %v444 = vunpack.c.l.b16 %v242
      %v445 = vunpack.c.l.b16 %v243
      %v446 = vunpack.c.l.b16 %v244
      %v447 = vunpack.c.l.b16 %v245
      %v448 = vunpack.c.l.b16 %v246
      %v449 = vunpack.c.l.b16 %v247
      %v450 = vunpack.c.l.b16 %v248
      %v451 = vunpack.c.l.b16 %v249
      %v452 = vunpack.c.l.b16 %v250
      %v453 = vunpack.c.l.b16 %v251
      %v454 = vunpack.c.l.b16 %v252
      %v455 = vunpack.c.l.b16 %v253
      %v456 = vunpack.c.l.b16 %v254
      %v457 = vunpack.c.l.b16 %v255
      %v458 = vunpack.c.l.b16 %v256
      %v459 = vunpack.c.l.b16 %v257
      %v460 = vunpack.c.l.b16 %v258
      %v461 = vunpack.c.l.b16 %v259
      %v462 = vunpack.c.l.b16 %v260
      %v463 = vunpack.c.l.b16 %v261
      %v464 = vunpack.c.l.b16 %v262
      %v465 = vunpack.c.l.b16 %v263
      %v466 = vunpack.c.l.b16 %v264
      %v467 = vunpack.c.l.b16 %v265
      %v468 = vunpack.c.l.b16 %v266
      %v469 = vunpack.c.l.b16 %v267
      %v470 = vunpack.c.l.b16 %v268
      %v471 = vunpack.c.l.b16 %v269
      %v472 = vunpack.c.l.b16 %v270
      %v473 = vunpack.c.l.b16 %v271
      %v474 = vunpack.c.l.b16 %v272
      %v475 = vunpack.c.l.b16 %v273
      %v476 = vunpack.c.l.b16 %v274
      %v477 = vunpack.c.l.b16 %v275
      %v478 = vunpack.c.l.b16 %v276
      %v479 = vunpack.c.l.b16 %v277
      %v480 = vunpack.c.l.b16 %v278
      %v481 = vunpack.c.l.b16 %v279
      %v482 = vunpack.c.l.b16 %v280
      %v483 = vunpack.c.l.b16 %v281
      %v484 = vunpack.c.l.b16 %v282
      %v485 = vunpack.c.l.b16 %v283
      %v486 = vunpack.c.l.b16 %v284
      %v487 = vunpack.c.l.b16 %v285
      %v488 = vunpack.c.l.b16 %v286
      %v489 = vunpack.c.l.b16 %v287
      %v490 = vunpack.c.l.b16 %v288
      %v491 = vunpack.c.l.b16 %v289
      %v492 = vunpack.c.l.b16 %v290
      %v493 = vunpack.c.l.b16 %v291
      %v494 = vunpack.c.l.b16 %v292
      %v495 = vunpack.c.l.b16 %v293
      %v496 = vunpack.c.l.b16 %v294
      %v497 = vunpack.c.l.b16 %v295
      %v498 = vunpack.c.l.b16 %v296
      %v499 = vunpack.c.l.b16 %v297
      %v500 = vunpack.c.l.b16 %v298
      %v501 = vunpack.c.l.b16 %v299
      %v502 = vunpack.c.l.b16 %v300
      %v503 = vunpack.c.l.b16 %v301
      %v504 = vpack.c.b16 %v405, %v404
      %v505 = vpack.c.b16 %v407, %v406
      %v506 = vpack.c.b16 %v409, %v408
      %v507 = vpack.c.b16 %v411, %v410
      %v508 = vpack.c.b16 %v413, %v412
      %v509 = vpack.c.b16 %v415, %v414
      %v510 = vpack.c.b16 %v417, %v416
      %v511 = vpack.c.b16 %v419, %v418
      %v512 = vpack.c.b16 %v421, %v420
      %v513 = vpack.c.b16 %v423, %v422
      %v514 = vpack.c.b16 %v425, %v424
      %v515 = vpack.c.b16 %v427, %v426
      %v516 = vpack.c.b16 %v429, %v428
      %v517 = vpack.c.b16 %v431, %v430
      %v518 = vpack.c.b16 %v433, %v432
      %v519 = vpack.c.b16 %v435, %v434
      %v520 = vpack.c.b16 %v437, %v436
      %v521 = vpack.c.b16 %v439, %v438
      %v522 = vpack.c.b16 %v441, %v440
      %v523 = vpack.c.b16 %v443, %v442
      %v524 = vpack.c.b16 %v445, %v444
      %v525 = vpack.c.b16 %v447, %v446
      %v526 = vpack.c.b16 %v449, %v448
      %v527 = vpack.c.b16 %v451, %v450
      %v528 = vpack.c.b16 %v453, %v452
      %v529 = vpack.c.b16 %v455, %v454
      %v530 = vpack.c.b16 %v457, %v456
      %v531 = vpack.c.b16 %v459, %v458
      %v532 = vpack.c.b16 %v461, %v460
      %v533 = vpack.c.b16 %v463, %v462
      %v534 = vpack.c.b16 %v465, %v464
      %v535 = vpack.c.b16 %v467, %v466
      %v536 = vpack.c.b16 %v469, %v468
      %v537 = vpack.c.b16 %v471, %v470
      %v538 = vpack.c.b16 %v473, %v472
      %v539 = vpack.c.b16 %v475, %v474
      %v540 = vpack.c.b16 %v477, %v476
      %v541 = vpack.c.b16 %v479, %v478
      %v542 = vpack.c.b16 %v481, %v480
      %v543 = vpack.c.b16 %v483, %v482
      %v544 = vpack.c.b16 %v485, %v484
      %v545 = vpack.c.b16 %v487, %v486
      %v546 = vpack.c.b16 %v489, %v488
      %v547 = vpack.c.b16 %v491, %v490
      %v548 = vpack.c.b16 %v493, %v492
      %v549 = vpack.c.b16 %v495, %v494
      %v550 = vpack.c.b16 %v497, %v496
      %v551 = vpack.c.b16 %v499, %v498
      %v552 = vpack.c.b16 %v501, %v500
      %v553 = vpack.c.b16 %v503, %v502
      %v556 = vunpack.c.l.b16 %v302
      %v557 = vunpack.c.l.b16 %v303
      %v558 = vpack.c.b16 %v557, %v556
      %vm559 = vcmask 72704
      %v561 = vsel %vm559, %v504, 0
      %v564 = vsel %vm559, %v505, 0
      %v567 = vsel %vm559, %v506, 0
      %v570 = vsel %vm559, %v507, 0
      %v573 = vsel %vm559, %v508, 0
      %v576 = vsel %vm559, %v509, 0
      %v579 = vsel %vm559, %v510, 0
      %v582 = vsel %vm559, %v511, 0
      %v585 = vsel %vm559, %v512, 0
      %v588 = vsel %vm559, %v513, 0
      %v591 = vsel %vm559, %v514, 0
      %v594 = vsel %vm559, %v515, 0
      %v597 = vsel %vm559, %v516, 0
      %v600 = vsel %vm559, %v517, 0
      %v603 = vsel %vm559, %v518, 0
      %v606 = vsel %vm559, %v519, 0
      %v609 = vsel %vm559, %v520, 0
      %v612 = vsel %vm559, %v521, 0
      %v615 = vsel %vm559, %v522, 0
      %v618 = vsel %vm559, %v523, 0
      %v621 = vsel %vm559, %v524, 0
      %v624 = vsel %vm559, %v525, 0
      %v627 = vsel %vm559, %v526, 0
      %v630 = vsel %vm559, %v527, 0
      %v633 = vsel %vm559, %v528, 0
      %v636 = vsel %vm559, %v529, 0
      %v639 = vsel %vm559, %v530, 0
      %v642 = vsel %vm559, %v531, 0
      %v645 = vsel %vm559, %v532, 0
      %v648 = vsel %vm559, %v533, 0
      %v651 = vsel %vm559, %v534, 0
      %v654 = vsel %vm559, %v535, 0
      %v657 = vsel %vm559, %v536, 0
      %v660 = vsel %vm559, %v537, 0
      %v663 = vsel %vm559, %v538, 0
      %v666 = vsel %vm559, %v539, 0
      %v669 = vsel %vm559, %v540, 0
      %v672 = vsel %vm559, %v541, 0
      %v675 = vsel %vm559, %v542, 0
      %v678 = vsel %vm559, %v543, 0
      %v681 = vsel %vm559, %v544, 0
      %v684 = vsel %vm559, %v545, 0
      %v687 = vsel %vm559, %v546, 0
      %v690 = vsel %vm559, %v547, 0
      %v693 = vsel %vm559, %v548, 0
      %v696 = vsel %vm559, %v549, 0
      %v699 = vsel %vm559, %v550, 0
      %v702 = vsel %vm559, %v551, 0
      %v705 = vsel %vm559, %v552, 0
      %v708 = vsel %vm559, %v553, 0
      %vm710 = vcmask 1043456
      %vm711 = vcmask 1044480
      %v712 = vsel %vm710, 4294967295, 65535
      %v713 = vsel %vm711, %v712, 0
      %v715 = vand.u32 %v558, %v713
      %717 = vmatpush.bf16.msra.mxu0 0
      %718 = vmatpush.bf16.msra.mxu0 0
      %719 = vmatpush.bf16.msra.mxu0 0
      %720 = vmatpush.bf16.msra.mxu0 0
      %721 = vmatpush.bf16.msra.mxu0 0
      %722 = vmatpush.bf16.msra.mxu0 0
      %723 = vmatpush.bf16.msra.mxu0 0
      %724 = vmatpush.bf16.msra.mxu0 %v715
      %725 = vmatmul.bf16.gmra.mxu0 %v561
      %v726 = vpop.f32.mrf.mxu0
      %v727 = vadd.f32 0.0, %v726
      %v728 = vpop.f32.mrf.mxu0
      %v729 = vadd.f32 0.0, %v728
      %730 = vmatmul.bf16.gmra.mxu0 %v564
      %v731 = vpop.f32.mrf.mxu0
      %v732 = vadd.f32 0.0, %v731
      %v733 = vpop.f32.mrf.mxu0
      %v734 = vadd.f32 0.0, %v733
      %735 = vmatmul.bf16.gmra.mxu0 %v567
      %v736 = vpop.f32.mrf.mxu0
      %v737 = vadd.f32 0.0, %v736
      %v738 = vpop.f32.mrf.mxu0
      %v739 = vadd.f32 0.0, %v738
      %740 = vmatmul.bf16.gmra.mxu0 %v570
      %v741 = vpop.f32.mrf.mxu0
      %v742 = vadd.f32 0.0, %v741
      %v743 = vpop.f32.mrf.mxu0
      %v744 = vadd.f32 0.0, %v743
      %745 = vmatmul.bf16.gmra.mxu0 %v573
      %v746 = vpop.f32.mrf.mxu0
      %v747 = vadd.f32 0.0, %v746
      %v748 = vpop.f32.mrf.mxu0
      %v749 = vadd.f32 0.0, %v748
      %750 = vmatmul.bf16.gmra.mxu0 %v576
      %v751 = vpop.f32.mrf.mxu0
      %v752 = vadd.f32 0.0, %v751
      %v753 = vpop.f32.mrf.mxu0
      %v754 = vadd.f32 0.0, %v753
      %755 = vmatmul.bf16.gmra.mxu0 %v579
      %v756 = vpop.f32.mrf.mxu0
      %v757 = vadd.f32 0.0, %v756
      %v758 = vpop.f32.mrf.mxu0
      %v759 = vadd.f32 0.0, %v758
      %760 = vmatmul.bf16.gmra.mxu0 %v582
      %v761 = vpop.f32.mrf.mxu0
      %v762 = vadd.f32 0.0, %v761
      %v763 = vpop.f32.mrf.mxu0
      %v764 = vadd.f32 0.0, %v763
      %765 = vmatmul.bf16.gmra.mxu0 %v585
      %v766 = vpop.f32.mrf.mxu0
      %v767 = vadd.f32 0.0, %v766
      %v768 = vpop.f32.mrf.mxu0
      %v769 = vadd.f32 0.0, %v768
      %770 = vmatmul.bf16.gmra.mxu0 %v588
      %v771 = vpop.f32.mrf.mxu0
      %v772 = vadd.f32 0.0, %v771
      %v773 = vpop.f32.mrf.mxu0
      %v774 = vadd.f32 0.0, %v773
      %775 = vmatmul.bf16.gmra.mxu0 %v591
      %v776 = vpop.f32.mrf.mxu0
      %v777 = vadd.f32 0.0, %v776
      %v778 = vpop.f32.mrf.mxu0
      %v779 = vadd.f32 0.0, %v778
      %780 = vmatmul.bf16.gmra.mxu0 %v594
      %v781 = vpop.f32.mrf.mxu0
      %v782 = vadd.f32 0.0, %v781
      %v783 = vpop.f32.mrf.mxu0
      %v784 = vadd.f32 0.0, %v783
      %785 = vmatmul.bf16.gmra.mxu0 %v597
      %v786 = vpop.f32.mrf.mxu0
      %v787 = vadd.f32 0.0, %v786
      %v788 = vpop.f32.mrf.mxu0
      %v789 = vadd.f32 0.0, %v788
      %790 = vmatmul.bf16.gmra.mxu0 %v600
      %v791 = vpop.f32.mrf.mxu0
      %v792 = vadd.f32 0.0, %v791
      %v793 = vpop.f32.mrf.mxu0
      %v794 = vadd.f32 0.0, %v793
      %795 = vmatmul.bf16.gmra.mxu0 %v603
      %v796 = vpop.f32.mrf.mxu0
      %v797 = vadd.f32 0.0, %v796
      %v798 = vpop.f32.mrf.mxu0
      %v799 = vadd.f32 0.0, %v798
      %800 = vmatmul.bf16.gmra.mxu0 %v606
      %v801 = vpop.f32.mrf.mxu0
      %v802 = vadd.f32 0.0, %v801
      %v803 = vpop.f32.mrf.mxu0
      %v804 = vadd.f32 0.0, %v803
      %805 = vmatmul.bf16.gmra.mxu0 %v609
      %v806 = vpop.f32.mrf.mxu0
      %v807 = vadd.f32 0.0, %v806
      %v808 = vpop.f32.mrf.mxu0
      %v809 = vadd.f32 0.0, %v808
      %810 = vmatmul.bf16.gmra.mxu0 %v612
      %v811 = vpop.f32.mrf.mxu0
      %v812 = vadd.f32 0.0, %v811
      %v813 = vpop.f32.mrf.mxu0
      %v814 = vadd.f32 0.0, %v813
      %815 = vmatmul.bf16.gmra.mxu0 %v615
      %v816 = vpop.f32.mrf.mxu0
      %v817 = vadd.f32 0.0, %v816
      %v818 = vpop.f32.mrf.mxu0
      %v819 = vadd.f32 0.0, %v818
      %820 = vmatmul.bf16.gmra.mxu0 %v618
      %v821 = vpop.f32.mrf.mxu0
      %v822 = vadd.f32 0.0, %v821
      %v823 = vpop.f32.mrf.mxu0
      %v824 = vadd.f32 0.0, %v823
      %825 = vmatmul.bf16.gmra.mxu0 %v621
      %v826 = vpop.f32.mrf.mxu0
      %v827 = vadd.f32 0.0, %v826
      %v828 = vpop.f32.mrf.mxu0
      %v829 = vadd.f32 0.0, %v828
      %830 = vmatmul.bf16.gmra.mxu0 %v624
      %v831 = vpop.f32.mrf.mxu0
      %v832 = vadd.f32 0.0, %v831
      %v833 = vpop.f32.mrf.mxu0
      %v834 = vadd.f32 0.0, %v833
      %835 = vmatmul.bf16.gmra.mxu0 %v627
      %v836 = vpop.f32.mrf.mxu0
      %v837 = vadd.f32 0.0, %v836
      %v838 = vpop.f32.mrf.mxu0
      %v839 = vadd.f32 0.0, %v838
      %840 = vmatmul.bf16.gmra.mxu0 %v630
      %v841 = vpop.f32.mrf.mxu0
      %v842 = vadd.f32 0.0, %v841
      %v843 = vpop.f32.mrf.mxu0
      %v844 = vadd.f32 0.0, %v843
      %845 = vmatmul.bf16.gmra.mxu0 %v633
      %v846 = vpop.f32.mrf.mxu0
      %v847 = vadd.f32 0.0, %v846
      %v848 = vpop.f32.mrf.mxu0
      %v849 = vadd.f32 0.0, %v848
      %850 = vmatmul.bf16.gmra.mxu0 %v636
      %v851 = vpop.f32.mrf.mxu0
      %v852 = vadd.f32 0.0, %v851
      %v853 = vpop.f32.mrf.mxu0
      %v854 = vadd.f32 0.0, %v853
      %855 = vmatmul.bf16.gmra.mxu0 %v639
      %v856 = vpop.f32.mrf.mxu0
      %v857 = vadd.f32 0.0, %v856
      %v858 = vpop.f32.mrf.mxu0
      %v859 = vadd.f32 0.0, %v858
      %860 = vmatmul.bf16.gmra.mxu0 %v642
      %v861 = vpop.f32.mrf.mxu0
      %v862 = vadd.f32 0.0, %v861
      %v863 = vpop.f32.mrf.mxu0
      %v864 = vadd.f32 0.0, %v863
      %865 = vmatmul.bf16.gmra.mxu0 %v645
      %v866 = vpop.f32.mrf.mxu0
      %v867 = vadd.f32 0.0, %v866
      %v868 = vpop.f32.mrf.mxu0
      %v869 = vadd.f32 0.0, %v868
      %870 = vmatmul.bf16.gmra.mxu0 %v648
      %v871 = vpop.f32.mrf.mxu0
      %v872 = vadd.f32 0.0, %v871
      %v873 = vpop.f32.mrf.mxu0
      %v874 = vadd.f32 0.0, %v873
      %875 = vmatmul.bf16.gmra.mxu0 %v651
      %v876 = vpop.f32.mrf.mxu0
      %v877 = vadd.f32 0.0, %v876
      %v878 = vpop.f32.mrf.mxu0
      %v879 = vadd.f32 0.0, %v878
      %880 = vmatmul.bf16.gmra.mxu0 %v654
      %v881 = vpop.f32.mrf.mxu0
      %v882 = vadd.f32 0.0, %v881
      %v883 = vpop.f32.mrf.mxu0
      %v884 = vadd.f32 0.0, %v883
      %885 = vmatmul.bf16.gmra.mxu0 %v657
      %v886 = vpop.f32.mrf.mxu0
      %v887 = vadd.f32 0.0, %v886
      %v888 = vpop.f32.mrf.mxu0
      %v889 = vadd.f32 0.0, %v888
      %890 = vmatmul.bf16.gmra.mxu0 %v660
      %v891 = vpop.f32.mrf.mxu0
      %v892 = vadd.f32 0.0, %v891
      %v893 = vpop.f32.mrf.mxu0
      %v894 = vadd.f32 0.0, %v893
      %895 = vmatmul.bf16.gmra.mxu0 %v663
      %v896 = vpop.f32.mrf.mxu0
      %v897 = vadd.f32 0.0, %v896
      %v898 = vpop.f32.mrf.mxu0
      %v899 = vadd.f32 0.0, %v898
      %900 = vmatmul.bf16.gmra.mxu0 %v666
      %v901 = vpop.f32.mrf.mxu0
      %v902 = vadd.f32 0.0, %v901
      %v903 = vpop.f32.mrf.mxu0
      %v904 = vadd.f32 0.0, %v903
      %905 = vmatmul.bf16.gmra.mxu0 %v669
      %v906 = vpop.f32.mrf.mxu0
      %v907 = vadd.f32 0.0, %v906
      %v908 = vpop.f32.mrf.mxu0
      %v909 = vadd.f32 0.0, %v908
      %910 = vmatmul.bf16.gmra.mxu0 %v672
      %v911 = vpop.f32.mrf.mxu0
      %v912 = vadd.f32 0.0, %v911
      %v913 = vpop.f32.mrf.mxu0
      %v914 = vadd.f32 0.0, %v913
      %915 = vmatmul.bf16.gmra.mxu0 %v675
      %v916 = vpop.f32.mrf.mxu0
      %v917 = vadd.f32 0.0, %v916
      %v918 = vpop.f32.mrf.mxu0
      %v919 = vadd.f32 0.0, %v918
      %920 = vmatmul.bf16.gmra.mxu0 %v678
      %v921 = vpop.f32.mrf.mxu0
      %v922 = vadd.f32 0.0, %v921
      %v923 = vpop.f32.mrf.mxu0
      %v924 = vadd.f32 0.0, %v923
      %925 = vmatmul.bf16.gmra.mxu0 %v681
      %v926 = vpop.f32.mrf.mxu0
      %v927 = vadd.f32 0.0, %v926
      %v928 = vpop.f32.mrf.mxu0
      %v929 = vadd.f32 0.0, %v928
      %930 = vmatmul.bf16.gmra.mxu0 %v684
      %v931 = vpop.f32.mrf.mxu0
      %v932 = vadd.f32 0.0, %v931
      %v933 = vpop.f32.mrf.mxu0
      %v934 = vadd.f32 0.0, %v933
      %935 = vmatmul.bf16.gmra.mxu0 %v687
      %v936 = vpop.f32.mrf.mxu0
      %v937 = vadd.f32 0.0, %v936
      %v938 = vpop.f32.mrf.mxu0
      %v939 = vadd.f32 0.0, %v938
      %940 = vmatmul.bf16.gmra.mxu0 %v690
      %v941 = vpop.f32.mrf.mxu0
      %v942 = vadd.f32 0.0, %v941
      %v943 = vpop.f32.mrf.mxu0
      %v944 = vadd.f32 0.0, %v943
      %945 = vmatmul.bf16.gmra.mxu0 %v693
      %v946 = vpop.f32.mrf.mxu0
      %v947 = vadd.f32 0.0, %v946
      %v948 = vpop.f32.mrf.mxu0
      %v949 = vadd.f32 0.0, %v948
      %950 = vmatmul.bf16.gmra.mxu0 %v696
      %v951 = vpop.f32.mrf.mxu0
      %v952 = vadd.f32 0.0, %v951
      %v953 = vpop.f32.mrf.mxu0
      %v954 = vadd.f32 0.0, %v953
      %955 = vmatmul.bf16.gmra.mxu0 %v699
      %v956 = vpop.f32.mrf.mxu0
      %v957 = vadd.f32 0.0, %v956
      %v958 = vpop.f32.mrf.mxu0
      %v959 = vadd.f32 0.0, %v958
      %960 = vmatmul.bf16.gmra.mxu0 %v702
      %v961 = vpop.f32.mrf.mxu0
      %v962 = vadd.f32 0.0, %v961
      %v963 = vpop.f32.mrf.mxu0
      %v964 = vadd.f32 0.0, %v963
      %965 = vmatmul.bf16.gmra.mxu0 %v705
      %v966 = vpop.f32.mrf.mxu0
      %v967 = vadd.f32 0.0, %v966
      %v968 = vpop.f32.mrf.mxu0
      %v969 = vadd.f32 0.0, %v968
      %970 = vmatmul.bf16.gmra.mxu0 %v708
      %v971 = vpop.f32.mrf.mxu0
      %v972 = vadd.f32 0.0, %v971
      %v973 = vpop.f32.mrf.mxu0
      %v974 = vadd.f32 0.0, %v973
      %975 = vdwg.mxu0
      %v976 = vld [vmem:[%s2] sm:$0x1]
      %v978 = vperm.slane %v976, 0
      %v980 = vmul.f32 %v727, %v978
      %v981 = vmul.f32 %v729, %v978
      %v982 = vmul.f32 %v732, %v978
      %v983 = vmul.f32 %v734, %v978
      %v984 = vmul.f32 %v737, %v978
      %v985 = vmul.f32 %v739, %v978
      %v986 = vmul.f32 %v742, %v978
      %v987 = vmul.f32 %v744, %v978
      %v988 = vmul.f32 %v747, %v978
      %v989 = vmul.f32 %v749, %v978
      %v990 = vmul.f32 %v752, %v978
      %v991 = vmul.f32 %v754, %v978
      %v992 = vmul.f32 %v757, %v978
      %v993 = vmul.f32 %v759, %v978
      %v994 = vmul.f32 %v762, %v978
      %v995 = vmul.f32 %v764, %v978
      %v996 = vmul.f32 %v767, %v978
      %v997 = vmul.f32 %v769, %v978
      %v998 = vmul.f32 %v772, %v978
      %v999 = vmul.f32 %v774, %v978
      %v1000 = vmul.f32 %v777, %v978
      %v1001 = vmul.f32 %v779, %v978
      %v1002 = vmul.f32 %v782, %v978
      %v1003 = vmul.f32 %v784, %v978
      %v1004 = vmul.f32 %v787, %v978
      %v1005 = vmul.f32 %v789, %v978
      %v1006 = vmul.f32 %v792, %v978
      %v1007 = vmul.f32 %v794, %v978
      %v1008 = vmul.f32 %v797, %v978
      %v1009 = vmul.f32 %v799, %v978
      %v1010 = vmul.f32 %v802, %v978
      %v1011 = vmul.f32 %v804, %v978
      %v1012 = vmul.f32 %v807, %v978
      %v1013 = vmul.f32 %v809, %v978
      %v1014 = vmul.f32 %v812, %v978
      %v1015 = vmul.f32 %v814, %v978
      %v1016 = vmul.f32 %v817, %v978
      %v1017 = vmul.f32 %v819, %v978
      %v1018 = vmul.f32 %v822, %v978
      %v1019 = vmul.f32 %v824, %v978
      %v1020 = vmul.f32 %v827, %v978
      %v1021 = vmul.f32 %v829, %v978
      %v1022 = vmul.f32 %v832, %v978
      %v1023 = vmul.f32 %v834, %v978
      %v1024 = vmul.f32 %v837, %v978
      %v1025 = vmul.f32 %v839, %v978
      %v1026 = vmul.f32 %v842, %v978
      %v1027 = vmul.f32 %v844, %v978
      %v1028 = vmul.f32 %v847, %v978
      %v1029 = vmul.f32 %v849, %v978
      %v1030 = vmul.f32 %v852, %v978
      %v1031 = vmul.f32 %v854, %v978
      %v1032 = vmul.f32 %v857, %v978
      %v1033 = vmul.f32 %v859, %v978
      %v1034 = vmul.f32 %v862, %v978
      %v1035 = vmul.f32 %v864, %v978
      %v1036 = vmul.f32 %v867, %v978
      %v1037 = vmul.f32 %v869, %v978
      %v1038 = vmul.f32 %v872, %v978
      %v1039 = vmul.f32 %v874, %v978
      %v1040 = vmul.f32 %v877, %v978
      %v1041 = vmul.f32 %v879, %v978
      %v1042 = vmul.f32 %v882, %v978
      %v1043 = vmul.f32 %v884, %v978
      %v1044 = vmul.f32 %v887, %v978
      %v1045 = vmul.f32 %v889, %v978
      %v1046 = vmul.f32 %v892, %v978
      %v1047 = vmul.f32 %v894, %v978
      %v1048 = vmul.f32 %v897, %v978
      %v1049 = vmul.f32 %v899, %v978
      %v1050 = vmul.f32 %v902, %v978
      %v1051 = vmul.f32 %v904, %v978
      %v1052 = vmul.f32 %v907, %v978
      %v1053 = vmul.f32 %v909, %v978
      %v1054 = vmul.f32 %v912, %v978
      %v1055 = vmul.f32 %v914, %v978
      %v1056 = vmul.f32 %v917, %v978
      %v1057 = vmul.f32 %v919, %v978
      %v1058 = vmul.f32 %v922, %v978
      %v1059 = vmul.f32 %v924, %v978
      %v1060 = vmul.f32 %v927, %v978
      %v1061 = vmul.f32 %v929, %v978
      %v1062 = vmul.f32 %v932, %v978
      %v1063 = vmul.f32 %v934, %v978
      %v1064 = vmul.f32 %v937, %v978
      %v1065 = vmul.f32 %v939, %v978
      %v1066 = vmul.f32 %v942, %v978
      %v1067 = vmul.f32 %v944, %v978
      %v1068 = vmul.f32 %v947, %v978
      %v1069 = vmul.f32 %v949, %v978
      %v1070 = vmul.f32 %v952, %v978
      %v1071 = vmul.f32 %v954, %v978
      %v1072 = vmul.f32 %v957, %v978
      %v1073 = vmul.f32 %v959, %v978
      %v1074 = vmul.f32 %v962, %v978
      %v1075 = vmul.f32 %v964, %v978
      %v1076 = vmul.f32 %v967, %v978
      %v1077 = vmul.f32 %v969, %v978
      %v1078 = vmul.f32 %v972, %v978
      %v1079 = vmul.f32 %v974, %v978
      %v1080 = vld [vmem:[%s3] sm:$0x1]
      %v1082 = vperm.slane %v1080, 0
      %v1084 = vadd.f32 %v980, %v1082
      %v1085 = vadd.f32 %v981, %v1082
      %v1086 = vadd.f32 %v982, %v1082
      %v1087 = vadd.f32 %v983, %v1082
      %v1088 = vadd.f32 %v984, %v1082
      %v1089 = vadd.f32 %v985, %v1082
      %v1090 = vadd.f32 %v986, %v1082
      %v1091 = vadd.f32 %v987, %v1082
      %v1092 = vadd.f32 %v988, %v1082
      %v1093 = vadd.f32 %v989, %v1082
      %v1094 = vadd.f32 %v990, %v1082
      %v1095 = vadd.f32 %v991, %v1082
      %v1096 = vadd.f32 %v992, %v1082
      %v1097 = vadd.f32 %v993, %v1082
      %v1098 = vadd.f32 %v994, %v1082
      %v1099 = vadd.f32 %v995, %v1082
      %v1100 = vadd.f32 %v996, %v1082
      %v1101 = vadd.f32 %v997, %v1082
      %v1102 = vadd.f32 %v998, %v1082
      %v1103 = vadd.f32 %v999, %v1082
      %v1104 = vadd.f32 %v1000, %v1082
      %v1105 = vadd.f32 %v1001, %v1082
      %v1106 = vadd.f32 %v1002, %v1082
      %v1107 = vadd.f32 %v1003, %v1082
      %v1108 = vadd.f32 %v1004, %v1082
      %v1109 = vadd.f32 %v1005, %v1082
      %v1110 = vadd.f32 %v1006, %v1082
      %v1111 = vadd.f32 %v1007, %v1082
      %v1112 = vadd.f32 %v1008, %v1082
      %v1113 = vadd.f32 %v1009, %v1082
      %v1114 = vadd.f32 %v1010, %v1082
      %v1115 = vadd.f32 %v1011, %v1082
      %v1116 = vadd.f32 %v1012, %v1082
      %v1117 = vadd.f32 %v1013, %v1082
      %v1118 = vadd.f32 %v1014, %v1082
      %v1119 = vadd.f32 %v1015, %v1082
      %v1120 = vadd.f32 %v1016, %v1082
      %v1121 = vadd.f32 %v1017, %v1082
      %v1122 = vadd.f32 %v1018, %v1082
      %v1123 = vadd.f32 %v1019, %v1082
      %v1124 = vadd.f32 %v1020, %v1082
      %v1125 = vadd.f32 %v1021, %v1082
      %v1126 = vadd.f32 %v1022, %v1082
      %v1127 = vadd.f32 %v1023, %v1082
      %v1128 = vadd.f32 %v1024, %v1082
      %v1129 = vadd.f32 %v1025, %v1082
      %v1130 = vadd.f32 %v1026, %v1082
      %v1131 = vadd.f32 %v1027, %v1082
      %v1132 = vadd.f32 %v1028, %v1082
      %v1133 = vadd.f32 %v1029, %v1082
      %v1134 = vadd.f32 %v1030, %v1082
      %v1135 = vadd.f32 %v1031, %v1082
      %v1136 = vadd.f32 %v1032, %v1082
      %v1137 = vadd.f32 %v1033, %v1082
      %v1138 = vadd.f32 %v1034, %v1082
      %v1139 = vadd.f32 %v1035, %v1082
      %v1140 = vadd.f32 %v1036, %v1082
      %v1141 = vadd.f32 %v1037, %v1082
      %v1142 = vadd.f32 %v1038, %v1082
      %v1143 = vadd.f32 %v1039, %v1082
      %v1144 = vadd.f32 %v1040, %v1082
      %v1145 = vadd.f32 %v1041, %v1082
      %v1146 = vadd.f32 %v1042, %v1082
      %v1147 = vadd.f32 %v1043, %v1082
      %v1148 = vadd.f32 %v1044, %v1082
      %v1149 = vadd.f32 %v1045, %v1082
      %v1150 = vadd.f32 %v1046, %v1082
      %v1151 = vadd.f32 %v1047, %v1082
      %v1152 = vadd.f32 %v1048, %v1082
      %v1153 = vadd.f32 %v1049, %v1082
      %v1154 = vadd.f32 %v1050, %v1082
      %v1155 = vadd.f32 %v1051, %v1082
      %v1156 = vadd.f32 %v1052, %v1082
      %v1157 = vadd.f32 %v1053, %v1082
      %v1158 = vadd.f32 %v1054, %v1082
      %v1159 = vadd.f32 %v1055, %v1082
      %v1160 = vadd.f32 %v1056, %v1082
      %v1161 = vadd.f32 %v1057, %v1082
      %v1162 = vadd.f32 %v1058, %v1082
      %v1163 = vadd.f32 %v1059, %v1082
      %v1164 = vadd.f32 %v1060, %v1082
      %v1165 = vadd.f32 %v1061, %v1082
      %v1166 = vadd.f32 %v1062, %v1082
      %v1167 = vadd.f32 %v1063, %v1082
      %v1168 = vadd.f32 %v1064, %v1082
      %v1169 = vadd.f32 %v1065, %v1082
      %v1170 = vadd.f32 %v1066, %v1082
      %v1171 = vadd.f32 %v1067, %v1082
      %v1172 = vadd.f32 %v1068, %v1082
      %v1173 = vadd.f32 %v1069, %v1082
      %v1174 = vadd.f32 %v1070, %v1082
      %v1175 = vadd.f32 %v1071, %v1082
      %v1176 = vadd.f32 %v1072, %v1082
      %v1177 = vadd.f32 %v1073, %v1082
      %v1178 = vadd.f32 %v1074, %v1082
      %v1179 = vadd.f32 %v1075, %v1082
      %v1180 = vadd.f32 %v1076, %v1082
      %v1181 = vadd.f32 %v1077, %v1082
      %v1182 = vadd.f32 %v1078, %v1082
      %v1183 = vadd.f32 %v1079, %v1082
      %v1184 = vmax.f32 %v1084, %v1109
      %v1185 = vmax.f32 %v1085, %v1110
      %v1186 = vmax.f32 %v1086, %v1111
      %v1187 = vmax.f32 %v1087, %v1112
      %v1188 = vmax.f32 %v1088, %v1113
      %v1189 = vmax.f32 %v1089, %v1114
      %v1190 = vmax.f32 %v1090, %v1115
      %v1191 = vmax.f32 %v1091, %v1116
      %v1192 = vmax.f32 %v1092, %v1117
      %v1193 = vmax.f32 %v1093, %v1118
      %v1194 = vmax.f32 %v1094, %v1119
      %v1195 = vmax.f32 %v1095, %v1120
      %v1196 = vmax.f32 %v1096, %v1121
      %v1197 = vmax.f32 %v1097, %v1122
      %v1198 = vmax.f32 %v1098, %v1123
      %v1199 = vmax.f32 %v1099, %v1124
      %v1200 = vmax.f32 %v1100, %v1125
      %v1201 = vmax.f32 %v1101, %v1126
      %v1202 = vmax.f32 %v1102, %v1127
      %v1203 = vmax.f32 %v1103, %v1128
      %v1204 = vmax.f32 %v1104, %v1129
      %v1205 = vmax.f32 %v1105, %v1130
      %v1206 = vmax.f32 %v1106, %v1131
      %v1207 = vmax.f32 %v1107, %v1132
      %v1208 = vmax.f32 %v1108, %v1133
      %v1209 = vmax.f32 %v1134, %v1159
      %v1210 = vmax.f32 %v1135, %v1160
      %v1211 = vmax.f32 %v1136, %v1161
      %v1212 = vmax.f32 %v1137, %v1162
      %v1213 = vmax.f32 %v1138, %v1163
      %v1214 = vmax.f32 %v1139, %v1164
      %v1215 = vmax.f32 %v1140, %v1165
      %v1216 = vmax.f32 %v1141, %v1166
      %v1217 = vmax.f32 %v1142, %v1167
      %v1218 = vmax.f32 %v1143, %v1168
      %v1219 = vmax.f32 %v1144, %v1169
      %v1220 = vmax.f32 %v1145, %v1170
      %v1221 = vmax.f32 %v1146, %v1171
      %v1222 = vmax.f32 %v1147, %v1172
      %v1223 = vmax.f32 %v1148, %v1173
      %v1224 = vmax.f32 %v1149, %v1174
      %v1225 = vmax.f32 %v1150, %v1175
      %v1226 = vmax.f32 %v1151, %v1176
      %v1227 = vmax.f32 %v1152, %v1177
      %v1228 = vmax.f32 %v1153, %v1178
      %v1229 = vmax.f32 %v1154, %v1179
      %v1230 = vmax.f32 %v1155, %v1180
      %v1231 = vmax.f32 %v1156, %v1181
      %v1232 = vmax.f32 %v1157, %v1182
      %v1233 = vmax.f32 %v1158, %v1183
      %v1234 = vmax.f32 %v1184, %v1209
      %v1235 = vmax.f32 %v1185, %v1210
      %v1236 = vmax.f32 %v1186, %v1211
      %v1237 = vmax.f32 %v1187, %v1212
      %v1238 = vmax.f32 %v1188, %v1213
      %v1239 = vmax.f32 %v1189, %v1214
      %v1240 = vmax.f32 %v1190, %v1215
      %v1241 = vmax.f32 %v1191, %v1216
      %v1242 = vmax.f32 %v1192, %v1217
      %v1243 = vmax.f32 %v1193, %v1218
      %v1244 = vmax.f32 %v1194, %v1219
      %v1245 = vmax.f32 %v1195, %v1220
      %v1246 = vmax.f32 %v1196, %v1221
      %v1247 = vmax.f32 %v1197, %v1222
      %v1248 = vmax.f32 %v1198, %v1223
      %v1249 = vmax.f32 %v1199, %v1224
      %v1250 = vmax.f32 %v1200, %v1225
      %v1251 = vmax.f32 %v1201, %v1226
      %v1252 = vmax.f32 %v1202, %v1227
      %v1253 = vmax.f32 %v1203, %v1228
      %v1254 = vmax.f32 %v1204, %v1229
      %v1255 = vmax.f32 %v1205, %v1230
      %v1256 = vmax.f32 %v1206, %v1231
      %v1257 = vmax.f32 %v1207, %v1232
      %v1258 = vmax.f32 %v1208, %v1233
      %v1259 = vmax.f32 %v1234, 0.0
      %v1260 = vmax.f32 %v1235, 0.0
      %v1261 = vmax.f32 %v1236, 0.0
      %v1262 = vmax.f32 %v1237, 0.0
      %v1263 = vmax.f32 %v1238, 0.0
      %v1264 = vmax.f32 %v1239, 0.0
      %v1265 = vmax.f32 %v1240, 0.0
      %v1266 = vmax.f32 %v1241, 0.0
      %v1267 = vmax.f32 %v1242, 0.0
      %v1268 = vmax.f32 %v1243, 0.0
      %v1269 = vmax.f32 %v1244, 0.0
      %v1270 = vmax.f32 %v1245, 0.0
      %v1271 = vmax.f32 %v1246, 0.0
      %v1272 = vmax.f32 %v1247, 0.0
      %v1273 = vmax.f32 %v1248, 0.0
      %v1274 = vmax.f32 %v1249, 0.0
      %v1275 = vmax.f32 %v1250, 0.0
      %v1276 = vmax.f32 %v1251, 0.0
      %v1277 = vmax.f32 %v1252, 0.0
      %v1278 = vmax.f32 %v1253, 0.0
      %v1279 = vmax.f32 %v1254, 0.0
      %v1280 = vmax.f32 %v1255, 0.0
      %v1281 = vmax.f32 %v1256, 0.0
      %v1282 = vmax.f32 %v1257, 0.0
      %v1283 = vmax.f32 %v1258, 0.0
      %v1284 = vpack.c.bf16 %v1259, %v1259
      %v1285 = vpack.c.bf16 %v1260, %v1260
      %v1286 = vpack.c.bf16 %v1261, %v1261
      %v1287 = vpack.c.bf16 %v1262, %v1262
      %v1288 = vpack.c.bf16 %v1263, %v1263
      %v1289 = vpack.c.bf16 %v1264, %v1264
      %v1290 = vpack.c.bf16 %v1265, %v1265
      %v1291 = vpack.c.bf16 %v1266, %v1266
      %v1292 = vpack.c.bf16 %v1267, %v1267
      %v1293 = vpack.c.bf16 %v1268, %v1268
      %v1294 = vpack.c.bf16 %v1269, %v1269
      %v1295 = vpack.c.bf16 %v1270, %v1270
      %v1296 = vpack.c.bf16 %v1271, %v1271
      %v1297 = vpack.c.bf16 %v1272, %v1272
      %v1298 = vpack.c.bf16 %v1273, %v1273
      %v1299 = vpack.c.bf16 %v1274, %v1274
      %v1300 = vpack.c.bf16 %v1275, %v1275
      %v1301 = vpack.c.bf16 %v1276, %v1276
      %v1302 = vpack.c.bf16 %v1277, %v1277
      %v1303 = vpack.c.bf16 %v1278, %v1278
      %v1304 = vpack.c.bf16 %v1279, %v1279
      %v1305 = vpack.c.bf16 %v1280, %v1280
      %v1306 = vpack.c.bf16 %v1281, %v1281
      %v1307 = vpack.c.bf16 %v1282, %v1282
      %v1308 = vpack.c.bf16 %v1283, %v1283
      %1309 = vst [vmem:[%s199] sm:$0xf] %v1284
      %1310 = vst [vmem:[%s199 + $0x4] sm:$0xf] %v1285
      %1311 = vst [vmem:[%s199 + $0x8] sm:$0xf] %v1286
      %1312 = vst [vmem:[%s199 + $0xc] sm:$0xf] %v1287
      %1313 = vst [vmem:[%s199 + $0x10] sm:$0xf] %v1288
      %1314 = vst [vmem:[%s199 + $0x14] sm:$0xf] %v1289
      %1315 = vst [vmem:[%s199 + $0x18] sm:$0xf] %v1290
      %1316 = vst [vmem:[%s199 + $0x1c] sm:$0xf] %v1291
      %1317 = vst [vmem:[%s199 + $0x20] sm:$0xf] %v1292
      %1318 = vst [vmem:[%s199 + $0x24] sm:$0xf] %v1293
      %1319 = vst [vmem:[%s199 + $0x28] sm:$0xf] %v1294
      %1320 = vst [vmem:[%s199 + $0x2c] sm:$0xf] %v1295
      %1321 = vst [vmem:[%s199 + $0x30] sm:$0xf] %v1296
      %1322 = vst [vmem:[%s199 + $0x34] sm:$0xf] %v1297
      %1323 = vst [vmem:[%s199 + $0x38] sm:$0xf] %v1298
      %1324 = vst [vmem:[%s199 + $0x3c] sm:$0xf] %v1299
      %1325 = vst [vmem:[%s199 + $0x40] sm:$0xf] %v1300
      %1326 = vst [vmem:[%s199 + $0x44] sm:$0xf] %v1301
      %1327 = vst [vmem:[%s199 + $0x48] sm:$0xf] %v1302
      %1328 = vst [vmem:[%s199 + $0x4c] sm:$0xf] %v1303
      %1329 = vst [vmem:[%s199 + $0x50] sm:$0xf] %v1304
      %1330 = vst [vmem:[%s199 + $0x54] sm:$0xf] %v1305
      %1331 = vst [vmem:[%s199 + $0x58] sm:$0xf] %v1306
      %1332 = vst [vmem:[%s199 + $0x5c] sm:$0xf] %v1307
      %1333 = vst [vmem:[%s199 + $0x60] sm:$0xf] %v1308
      %s1334 = smul.u32 25, %s15
      %p1335 = scmp.lt.s32.totalorder %s1334, 49
      %s1336 = scalar_select %p1335, %s1334, 49
      %s1337 = smul.addr %s1336, 4
      %s1338 = scalar_lea.vmem %s4, %s1337
      // Predicated region
      $region37: #{cnn_forward.3} parent=35 // pred_check
        %p1339 = pneg %p122
      $region38: #{cnn_forward.3} parent=35 // pred_check_branch
        %1341 = sbr.rel (%p1339) target = $region40
      $region39: #{cnn_forward.3} parent=35 // pred_region
        %s1342 = smul.u32 25, %s15
      $region40: #{cnn_forward.3} parent=35 // pred_fallthru
        _
    $region36: #{cnn_forward.3} parent=5 // pred_fallthru
      _
    %p1343 = scmp.le.s32.totalorder 2, %s10
    // Predicated region
    $region41: #{cnn_forward.3} parent=5 // pred_check
      %p1344 = pneg %p1343
    $region42: #{cnn_forward.3} parent=5 // pred_check_branch
      %1346 = sbr.rel (%p1344) target = $region44
    $region43: #{cnn_forward.3} parent=5 // pred_region
      %s1347 = ssub.s32 %s10, 2
      // Predicated region
      $region45: #{cnn_forward.3} parent=43 // pred_check
        %p1348 = pneg %p128
      $region46: #{cnn_forward.3} parent=43 // pred_check_branch
        %1350 = sbr.rel (%p1348) target = $region48
      $region47: #{cnn_forward.3} parent=43 // pred_region
        %s1351 = smul.u32 25, %s16
        %p1352 = scmp.lt.s32.totalorder %s1351, 49
        %s1353 = scalar_select %p1352, %s1351, 49
        %s1354 = smul.addr %s1353, 4
        %s1355 = scalar_lea.vmem %s4, %s1354
      $region48: #{cnn_forward.3} parent=43 // pred_fallthru
        _
    $region44: #{cnn_forward.3} parent=5 // pred_fallthru
      _
  $region6: #{cnn_forward.3} parent=0 // loop_footer
    %s14 = sadd.s32 1, %s10
  $region7: #{cnn_forward.3} parent=0 // loop_footer_branch
    %9 = sbr.rel target = $region3
  $region8: #{cnn_forward.3} parent=0 // loop_exit
    _

// kernel: cnn_forward.4
$region0: #{cnn_forward.4}
  #allocation0 [shape = 'u32[]', space=smem, size = 0x4, offset = 0x4, fixed_abs, tag = 'smem constant byte address 0x4 - core index']
  #allocation1 [shape = 'u32[72,128]{1,0:T(1,128)}', space=vmem, size = 0x9000, scoped, tag = 'internal scratch']
  %s0 = inlined_call_operand.vmem [shape: bf16[448,1152], index: 0, kind: input, shape index: {}]
  %s1 = inlined_call_operand.vmem [shape: bf16[1152,128], index: 1, kind: input, shape index: {}]
  %s2 = inlined_call_operand.vmem [shape: f32[1,128], index: 2, kind: input, shape index: {}]
  %s3 = inlined_call_operand.vmem [shape: f32[1,128], index: 3, kind: input, shape index: {}]
  %s4 = inlined_call_operand.vmem [shape: bf16[112,128], index: 4, kind: output, shape index: {}]
  %s5 = sld [smem:[#allocation0]]
  $region49: #{cnn_forward.4} parent=0
    _
  %s7 = ssub.s32 1, %s5
  %s8 = scalar_select 0, %s7, %s5
  loop: start=0, step=1, limit=4
  $region2: #{cnn_forward.4} parent=0 // loop_pre_header
    _
  $region3: #{cnn_forward.4} parent=0 // loop_header
    %s10 = sphi 0, %s14
    %p11 = scmp.ge.s32.totalorder %s10, 4
    %s20 = sphi 0, %s22
    %s23 = sphi 0, %s20
    %s24 = sphi 0, %s23
    %s40 = sphi 0, %s24
    %s44 = sphi 0, %s44
    %s46 = sphi 0, %s44
    %s47 = sphi 0, %s46
    %s61 = sphi 0, %s47
    %s65 = sphi 0, %s65
    %s67 = sphi 0, %s65
    %s68 = sphi 0, %s67
    %s82 = sphi 0, %s68
    %s86 = sphi 0, %s86
    %s88 = sphi 0, %s86
    %s89 = sphi 0, %s88
    %s103 = sphi 0, %s89
    %s109 = sphi 0, %s111
    %s112 = sphi 0, %s109
    %s113 = sphi 0, %s112
    %s129 = sphi 0, %s113
  $region4: #{cnn_forward.4} parent=0 // loop_header_branch
    %13 = sbr.rel (%p11) target = $region8
  $region5: #{cnn_forward.4} parent=0 // loop_body
    %s15 = ssub.s32 %s10, 1
    %s16 = ssub.s32 %s10, 2
    %s17 = sadd.s32 %s10, 1
    %s18 = ssub.s32 %s10, %s17
    %p19 = scmp.eq.s32.totalorder %s18, 0
    %s21 = sadd.s32 %s20, 1
    %s22 = scalar_select %p19, %s20, %s21
    %p25 = pneg %p19
    %p26 = scmp.eq.s32.totalorder %s10, 1
    %p27 = por %p25, %p26
    %p28 = scmp.ne.s32.totalorder %s20, %s23
    %p29 = scmp.eq.s32.totalorder %s10, 0
    %p30 = por %p28, %p29
    %p31 = scmp.ne.s32.totalorder %s20, %s23
    %p32 = scmp.eq.s32.totalorder %s15, 1
    %p33 = por %p31, %p32
    %p34 = scmp.ne.s32.totalorder %s23, %s24
    %p35 = scmp.eq.s32.totalorder %s15, 0
    %p36 = por %p34, %p35
    %p37 = scmp.ne.s32.totalorder %s23, %s24
    %p38 = scmp.eq.s32.totalorder %s16, 1
    %p39 = por %p37, %p38
    %p41 = scmp.ne.s32.totalorder %s24, %s40
    %p42 = scmp.eq.s32.totalorder %s16, 0
    %p43 = por %p41, %p42
    %s45 = sadd.s32 %s44, 1
    %p48 = scmp.eq.s32.totalorder %s10, 1
    %p49 = scmp.ne.s32.totalorder %s44, %s46
    %p50 = scmp.eq.s32.totalorder %s10, 0
    %p51 = por %p49, %p50
    %p52 = scmp.ne.s32.totalorder %s44, %s46
    %p53 = scmp.eq.s32.totalorder %s15, 1
    %p54 = por %p52, %p53
    %p55 = scmp.ne.s32.totalorder %s46, %s47
    %p56 = scmp.eq.s32.totalorder %s15, 0
    %p57 = por %p55, %p56
    %p58 = scmp.ne.s32.totalorder %s46, %s47
    %p59 = scmp.eq.s32.totalorder %s16, 1
    %p60 = por %p58, %p59
    %p62 = scmp.ne.s32.totalorder %s47, %s61
    %p63 = scmp.eq.s32.totalorder %s16, 0
    %p64 = por %p62, %p63
    %s66 = sadd.s32 %s65, 1
    %p69 = scmp.eq.s32.totalorder %s10, 1
    %p70 = scmp.ne.s32.totalorder %s65, %s67
    %p71 = scmp.eq.s32.totalorder %s10, 0
    %p72 = por %p70, %p71
    %p73 = scmp.ne.s32.totalorder %s65, %s67
    %p74 = scmp.eq.s32.totalorder %s15, 1
    %p75 = por %p73, %p74
    %p76 = scmp.ne.s32.totalorder %s67, %s68
    %p77 = scmp.eq.s32.totalorder %s15, 0
    %p78 = por %p76, %p77
    %p79 = scmp.ne.s32.totalorder %s67, %s68
    %p80 = scmp.eq.s32.totalorder %s16, 1
    %p81 = por %p79, %p80
    %p83 = scmp.ne.s32.totalorder %s68, %s82
    %p84 = scmp.eq.s32.totalorder %s16, 0
    %p85 = por %p83, %p84
    %s87 = sadd.s32 %s86, 1
    %p90 = scmp.eq.s32.totalorder %s10, 1
    %p91 = scmp.ne.s32.totalorder %s86, %s88
    %p92 = scmp.eq.s32.totalorder %s10, 0
    %p93 = por %p91, %p92
    %p94 = scmp.ne.s32.totalorder %s86, %s88
    %p95 = scmp.eq.s32.totalorder %s15, 1
    %p96 = por %p94, %p95
    %p97 = scmp.ne.s32.totalorder %s88, %s89
    %p98 = scmp.eq.s32.totalorder %s15, 0
    %p99 = por %p97, %p98
    %p100 = scmp.ne.s32.totalorder %s88, %s89
    %p101 = scmp.eq.s32.totalorder %s16, 1
    %p102 = por %p100, %p101
    %p104 = scmp.ne.s32.totalorder %s89, %s103
    %p105 = scmp.eq.s32.totalorder %s16, 0
    %p106 = por %p104, %p105
    %s107 = ssub.s32 %s10, %s17
    %p108 = scmp.eq.s32.totalorder %s107, 0
    %s110 = sadd.s32 %s109, 1
    %s111 = scalar_select %p108, %s109, %s110
    %p114 = pneg %p108
    %p115 = scmp.eq.s32.totalorder %s10, 1
    %p116 = por %p114, %p115
    %p117 = scmp.ne.s32.totalorder %s109, %s112
    %p118 = scmp.eq.s32.totalorder %s10, 0
    %p119 = por %p117, %p118
    %p120 = scmp.ne.s32.totalorder %s109, %s112
    %p121 = scmp.eq.s32.totalorder %s15, 1
    %p122 = por %p120, %p121
    %p123 = scmp.ne.s32.totalorder %s112, %s113
    %p124 = scmp.eq.s32.totalorder %s15, 0
    %p125 = por %p123, %p124
    %p126 = scmp.ne.s32.totalorder %s112, %s113
    %p127 = scmp.eq.s32.totalorder %s16, 1
    %p128 = por %p126, %p127
    %p130 = scmp.ne.s32.totalorder %s113, %s129
    %p131 = scmp.eq.s32.totalorder %s16, 0
    %p132 = por %p130, %p131
    %p133 = scmp.le.s32.totalorder 1, %s10
    %p134 = scmp.lt.s32.totalorder %s10, 3
    %p135 = pnand %p133, %p134
    %p136 = pneg %p135
    // Predicated region
    $region9: #{cnn_forward.4} parent=5 // pred_check
      _
    $region10: #{cnn_forward.4} parent=5 // pred_check_branch
      %138 = sbr.rel (%p135) target = $region12
    $region11: #{cnn_forward.4} parent=5 // pred_region
      %s139 = ssub.s32 %s10, 1
      // Predicated region
      $region13: #{cnn_forward.4} parent=11 // pred_check
        %p140 = pneg %p57
      $region14: #{cnn_forward.4} parent=11 // pred_check_branch
        %142 = sbr.rel (%p140) target = $region16
      $region15: #{cnn_forward.4} parent=11 // pred_region
        _
      $region16: #{cnn_forward.4} parent=11 // pred_fallthru
        _
      // Predicated region
      $region17: #{cnn_forward.4} parent=11 // pred_check
        %p143 = pneg %p78
      $region18: #{cnn_forward.4} parent=11 // pred_check_branch
        %145 = sbr.rel (%p143) target = $region20
      $region19: #{cnn_forward.4} parent=11 // pred_region
        _
      $region20: #{cnn_forward.4} parent=11 // pred_fallthru
        _
      // Predicated region
      $region21: #{cnn_forward.4} parent=11 // pred_check
        %p146 = pneg %p99
      $region22: #{cnn_forward.4} parent=11 // pred_check_branch
        %148 = sbr.rel (%p146) target = $region24
      $region23: #{cnn_forward.4} parent=11 // pred_region
        _
      $region24: #{cnn_forward.4} parent=11 // pred_fallthru
        _
    $region12: #{cnn_forward.4} parent=5 // pred_fallthru
      _
    %p149 = scmp.lt.s32.totalorder %s10, 2
    // Predicated region
    $region25: #{cnn_forward.4} parent=5 // pred_check
      %p150 = pneg %p149
    $region26: #{cnn_forward.4} parent=5 // pred_check_branch
      %152 = sbr.rel (%p150) target = $region28
    $region27: #{cnn_forward.4} parent=5 // pred_region
      // Predicated region
      $region29: #{cnn_forward.4} parent=27 // pred_check
        %p153 = pneg %p30
      $region30: #{cnn_forward.4} parent=27 // pred_check_branch
        %155 = sbr.rel (%p153) target = $region32
      $region31: #{cnn_forward.4} parent=27 // pred_region
        %s156 = smul.u32 28, %s10
        %p157 = scmp.lt.s32.totalorder %s156, 55
        %s158 = scalar_select %p157, %s156, 55
        %s159 = smul.addr %s158, 9
        %s160 = smul.addr %s159, 4
        %s161 = scalar_lea.vmem %s0, %s160
        %s162 = smul.u32 28, %s10
      $region32: #{cnn_forward.4} parent=27 // pred_fallthru
        _
    $region28: #{cnn_forward.4} parent=5 // pred_fallthru
      _
    %p163 = scmp.le.s32.totalorder 1, %s10
    %p164 = scmp.lt.s32.totalorder %s10, 3
    %p165 = pnand %p163, %p164
    %p166 = pneg %p165
    // Predicated region
    $region33: #{cnn_forward.4} parent=5 // pred_check
      _
    $region34: #{cnn_forward.4} parent=5 // pred_check_branch
      %168 = sbr.rel (%p165) target = $region36
    $region35: #{cnn_forward.4} parent=5 // pred_region
      %s169 = ssub.s32 %s10, 1
      %s170 = smul.u32 28, %s15
      %p171 = scmp.lt.s32.totalorder %s170, 55
      %s172 = scalar_select %p171, %s170, 55
      %s173 = smul.addr %s172, 9
      %s174 = smul.addr %s173, 4
      %s175 = scalar_lea.vmem %s0, %s174
      %p176 = pneg %p36
      %p177 = pneg %p33
      %p178 = pneg %p57
      %p179 = pneg %p54
      %p180 = pneg %p78
      %p181 = pneg %p75
      %p182 = pneg %p99
      %p183 = pneg %p96
      %p184 = pneg %p125
      %p185 = pneg %p122
      %s186 = smul.u32 7, %s15
      %p187 = scmp.lt.s32.totalorder %s186, 13
      %s188 = scalar_select %p187, %s186, 13
      %s189 = smul.addr %s188, 4
      %s190 = scalar_lea.vmem %s4, %s189
      %s191 = smul.u32 28, %s15
      %p192 = scmp.lt.s32.totalorder %s191, 55
      %s193 = scalar_select %p192, %s191, 55
      %s194 = smul.addr %s193, 9
      %s195 = smul.addr %s194, 4
      %s196 = scalar_lea.vmem %s0, %s195
      %s197 = smul.u32 28, %s15
      %s198 = smul.u32 7, %s15
      %p199 = scmp.lt.s32.totalorder %s198, 13
      %s200 = scalar_select %p199, %s198, 13
      %s201 = smul.addr %s200, 4
      %s202 = scalar_lea.vmem %s4, %s201
      %s203 = smul.u32 7, %s15
      %v204 = vld [vmem:[%s196] sm:$0xff]
      %v205 = vld [vmem:[%s196 + $0x8] sm:$0xff]
      %v206 = vld [vmem:[%s196 + $0x10] sm:$0xff]
      %v207 = vld [vmem:[%s196 + $0x18] sm:$0xff]
      %v208 = vld [vmem:[%s196 + $0x20] sm:$0xf]
      %v209 = vld [vmem:[%s196 + $0x24] sm:$0xff]
      %v210 = vld [vmem:[%s196 + $0x2c] sm:$0xff]
      %v211 = vld [vmem:[%s196 + $0x34] sm:$0xff]
      %v212 = vld [vmem:[%s196 + $0x3c] sm:$0xff]
      %v213 = vld [vmem:[%s196 + $0x44] sm:$0xf]
      %v214 = vld [vmem:[%s196 + $0x48] sm:$0xff]
      %v215 = vld [vmem:[%s196 + $0x50] sm:$0xff]
      %v216 = vld [vmem:[%s196 + $0x58] sm:$0xff]
      %v217 = vld [vmem:[%s196 + $0x60] sm:$0xff]
      %v218 = vld [vmem:[%s196 + $0x68] sm:$0xf]
      %v219 = vld [vmem:[%s196 + $0x6c] sm:$0xff]
      %v220 = vld [vmem:[%s196 + $0x74] sm:$0xff]
      %v221 = vld [vmem:[%s196 + $0x7c] sm:$0xff]
      %v222 = vld [vmem:[%s196 + $0x84] sm:$0xff]
      %v223 = vld [vmem:[%s196 + $0x8c] sm:$0xf]
      %v224 = vld [vmem:[%s196 + $0x90] sm:$0xff]
      %v225 = vld [vmem:[%s196 + $0x98] sm:$0xff]
      %v226 = vld [vmem:[%s196 + $0xa0] sm:$0xff]
      %v227 = vld [vmem:[%s196 + $0xa8] sm:$0xff]
      %v228 = vld [vmem:[%s196 + $0xb0] sm:$0xf]
      %v229 = vld [vmem:[%s196 + $0xb4] sm:$0xff]
      %v230 = vld [vmem:[%s196 + $0xbc] sm:$0xff]
      %v231 = vld [vmem:[%s196 + $0xc4] sm:$0xff]
      %v232 = vld [vmem:[%s196 + $0xcc] sm:$0xff]
      %v233 = vld [vmem:[%s196 + $0xd4] sm:$0xf]
      %v234 = vld [vmem:[%s196 + $0xd8] sm:$0xff]
      %v235 = vld [vmem:[%s196 + $0xe0] sm:$0xff]
      %v236 = vld [vmem:[%s196 + $0xe8] sm:$0xff]
      %v237 = vld [vmem:[%s196 + $0xf0] sm:$0xff]
      %v238 = vld [vmem:[%s196 + $0xf8] sm:$0xf]
      %v239 = vld [vmem:[%s196 + $0xfc] sm:$0xff]
      %v240 = vld [vmem:[%s196 + $0x104] sm:$0xff]
      %v241 = vld [vmem:[%s196 + $0x10c] sm:$0xff]
      %v242 = vld [vmem:[%s196 + $0x114] sm:$0xff]
      %v243 = vld [vmem:[%s196 + $0x11c] sm:$0xf]
      %v244 = vld [vmem:[%s196 + $0x120] sm:$0xff]
      %v245 = vld [vmem:[%s196 + $0x128] sm:$0xff]
      %v246 = vld [vmem:[%s196 + $0x130] sm:$0xff]
      %v247 = vld [vmem:[%s196 + $0x138] sm:$0xff]
      %v248 = vld [vmem:[%s196 + $0x140] sm:$0xf]
      %v249 = vld [vmem:[%s196 + $0x144] sm:$0xff]
      %v250 = vld [vmem:[%s196 + $0x14c] sm:$0xff]
      %v251 = vld [vmem:[%s196 + $0x154] sm:$0xff]
      %v252 = vld [vmem:[%s196 + $0x15c] sm:$0xff]
      %v253 = vld [vmem:[%s196 + $0x164] sm:$0xf]
      %v254 = vld [vmem:[%s196 + $0x168] sm:$0xff]
      %v255 = vld [vmem:[%s196 + $0x170] sm:$0xff]
      %v256 = vld [vmem:[%s196 + $0x178] sm:$0xff]
      %v257 = vld [vmem:[%s196 + $0x180] sm:$0xff]
      %v258 = vld [vmem:[%s196 + $0x188] sm:$0xf]
      %v259 = vld [vmem:[%s196 + $0x18c] sm:$0xff]
      %v260 = vld [vmem:[%s196 + $0x194] sm:$0xff]
      %v261 = vld [vmem:[%s196 + $0x19c] sm:$0xff]
      %v262 = vld [vmem:[%s196 + $0x1a4] sm:$0xff]
      %v263 = vld [vmem:[%s196 + $0x1ac] sm:$0xf]
      %v264 = vld [vmem:[%s196 + $0x1b0] sm:$0xff]
      %v265 = vld [vmem:[%s196 + $0x1b8] sm:$0xff]
      %v266 = vld [vmem:[%s196 + $0x1c0] sm:$0xff]
      %v267 = vld [vmem:[%s196 + $0x1c8] sm:$0xff]
      %v268 = vld [vmem:[%s196 + $0x1d0] sm:$0xf]
      %v269 = vld [vmem:[%s196 + $0x1d4] sm:$0xff]
      %v270 = vld [vmem:[%s196 + $0x1dc] sm:$0xff]
      %v271 = vld [vmem:[%s196 + $0x1e4] sm:$0xff]
      %v272 = vld [vmem:[%s196 + $0x1ec] sm:$0xff]
      %v273 = vld [vmem:[%s196 + $0x1f4] sm:$0xf]
      %v274 = vld [vmem:[%s196 + $0x1f8] sm:$0xff]
      %v275 = vld [vmem:[%s196 + $0x200] sm:$0xff]
      %v276 = vld [vmem:[%s196 + $0x208] sm:$0xff]
      %v277 = vld [vmem:[%s196 + $0x210] sm:$0xff]
      %v278 = vld [vmem:[%s196 + $0x218] sm:$0xf]
      %v279 = vld [vmem:[%s196 + $0x21c] sm:$0xff]
      %v280 = vld [vmem:[%s196 + $0x224] sm:$0xff]
      %v281 = vld [vmem:[%s196 + $0x22c] sm:$0xff]
      %v282 = vld [vmem:[%s196 + $0x234] sm:$0xff]
      %v283 = vld [vmem:[%s196 + $0x23c] sm:$0xf]
      %v284 = vld [vmem:[%s196 + $0x240] sm:$0xff]
      %v285 = vld [vmem:[%s196 + $0x248] sm:$0xff]
      %v286 = vld [vmem:[%s196 + $0x250] sm:$0xff]
      %v287 = vld [vmem:[%s196 + $0x258] sm:$0xff]
      %v288 = vld [vmem:[%s196 + $0x260] sm:$0xf]
      %v289 = vld [vmem:[%s196 + $0x264] sm:$0xff]
      %v290 = vld [vmem:[%s196 + $0x26c] sm:$0xff]
      %v291 = vld [vmem:[%s196 + $0x274] sm:$0xff]
      %v292 = vld [vmem:[%s196 + $0x27c] sm:$0xff]
      %v293 = vld [vmem:[%s196 + $0x284] sm:$0xf]
      %v294 = vld [vmem:[%s196 + $0x288] sm:$0xff]
      %v295 = vld [vmem:[%s196 + $0x290] sm:$0xff]
      %v296 = vld [vmem:[%s196 + $0x298] sm:$0xff]
      %v297 = vld [vmem:[%s196 + $0x2a0] sm:$0xff]
      %v298 = vld [vmem:[%s196 + $0x2a8] sm:$0xf]
      %v299 = vld [vmem:[%s196 + $0x2ac] sm:$0xff]
      %v300 = vld [vmem:[%s196 + $0x2b4] sm:$0xff]
      %v301 = vld [vmem:[%s196 + $0x2bc] sm:$0xff]
      %v302 = vld [vmem:[%s196 + $0x2c4] sm:$0xff]
      %v303 = vld [vmem:[%s196 + $0x2cc] sm:$0xf]
      %v304 = vld [vmem:[%s196 + $0x2d0] sm:$0xff]
      %v305 = vld [vmem:[%s196 + $0x2d8] sm:$0xff]
      %v306 = vld [vmem:[%s196 + $0x2e0] sm:$0xff]
      %v307 = vld [vmem:[%s196 + $0x2e8] sm:$0xff]
      %v308 = vld [vmem:[%s196 + $0x2f0] sm:$0xf]
      %v309 = vld [vmem:[%s196 + $0x2f4] sm:$0xff]
      %v310 = vld [vmem:[%s196 + $0x2fc] sm:$0xff]
      %v311 = vld [vmem:[%s196 + $0x304] sm:$0xff]
      %v312 = vld [vmem:[%s196 + $0x30c] sm:$0xff]
      %v313 = vld [vmem:[%s196 + $0x314] sm:$0xf]
      %v314 = vld [vmem:[%s196 + $0x318] sm:$0xff]
      %v315 = vld [vmem:[%s196 + $0x320] sm:$0xff]
      %v316 = vld [vmem:[%s196 + $0x328] sm:$0xff]
      %v317 = vld [vmem:[%s196 + $0x330] sm:$0xff]
      %v318 = vld [vmem:[%s196 + $0x338] sm:$0xf]
      %v319 = vld [vmem:[%s196 + $0x33c] sm:$0xff]
      %v320 = vld [vmem:[%s196 + $0x344] sm:$0xff]
      %v321 = vld [vmem:[%s196 + $0x34c] sm:$0xff]
      %v322 = vld [vmem:[%s196 + $0x354] sm:$0xff]
      %v323 = vld [vmem:[%s196 + $0x35c] sm:$0xf]
      %v324 = vld [vmem:[%s196 + $0x360] sm:$0xff]
      %v325 = vld [vmem:[%s196 + $0x368] sm:$0xff]
      %v326 = vld [vmem:[%s196 + $0x370] sm:$0xff]
      %v327 = vld [vmem:[%s196 + $0x378] sm:$0xff]
      %v328 = vld [vmem:[%s196 + $0x380] sm:$0xf]
      %v329 = vld [vmem:[%s196 + $0x384] sm:$0xff]
      %v330 = vld [vmem:[%s196 + $0x38c] sm:$0xff]
      %v331 = vld [vmem:[%s196 + $0x394] sm:$0xff]
      %v332 = vld [vmem:[%s196 + $0x39c] sm:$0xff]
      %v333 = vld [vmem:[%s196 + $0x3a4] sm:$0xf]
      %v334 = vld [vmem:[%s196 + $0x3a8] sm:$0xff]
      %v335 = vld [vmem:[%s196 + $0x3b0] sm:$0xff]
      %v336 = vld [vmem:[%s196 + $0x3b8] sm:$0xff]
      %v337 = vld [vmem:[%s196 + $0x3c0] sm:$0xff]
      %v338 = vld [vmem:[%s196 + $0x3c8] sm:$0xf]
      %v339 = vld [vmem:[%s196 + $0x3cc] sm:$0xff]
      %v340 = vld [vmem:[%s196 + $0x3d4] sm:$0xff]
      %v341 = vld [vmem:[%s196 + $0x3dc] sm:$0xff]
      %v342 = vld [vmem:[%s196 + $0x3e4] sm:$0xff]
      %v343 = vld [vmem:[%s196 + $0x3ec] sm:$0xf]
      %v344 = vld [vmem:[%s1] sm:$0xf]
      %v345 = vld [vmem:[%s1 + $0x4] sm:$0xf]
      %v346 = vld [vmem:[%s1 + $0x8] sm:$0xf]
      %v347 = vld [vmem:[%s1 + $0xc] sm:$0xf]
      %v348 = vld [vmem:[%s1 + $0x10] sm:$0xf]
      %v349 = vld [vmem:[%s1 + $0x14] sm:$0xf]
      %v350 = vld [vmem:[%s1 + $0x18] sm:$0xf]
      %v351 = vld [vmem:[%s1 + $0x1c] sm:$0xf]
      %v352 = vld [vmem:[%s1 + $0x20] sm:$0xf]
      %v353 = vld [vmem:[%s1 + $0x24] sm:$0xf]
      %v354 = vld [vmem:[%s1 + $0x28] sm:$0xf]
      %v355 = vld [vmem:[%s1 + $0x2c] sm:$0xf]
      %v356 = vld [vmem:[%s1 + $0x30] sm:$0xf]
      %v357 = vld [vmem:[%s1 + $0x34] sm:$0xf]
      %v358 = vld [vmem:[%s1 + $0x38] sm:$0xf]
      %v359 = vld [vmem:[%s1 + $0x3c] sm:$0xf]
      %v360 = vld [vmem:[%s1 + $0x40] sm:$0xf]
      %v361 = vld [vmem:[%s1 + $0x44] sm:$0xf]
      %v362 = vld [vmem:[%s1 + $0x48] sm:$0xf]
      %v363 = vld [vmem:[%s1 + $0x4c] sm:$0xf]
      %v364 = vld [vmem:[%s1 + $0x50] sm:$0xf]
      %v365 = vld [vmem:[%s1 + $0x54] sm:$0xf]
      %v366 = vld [vmem:[%s1 + $0x58] sm:$0xf]
      %v367 = vld [vmem:[%s1 + $0x5c] sm:$0xf]
      %v368 = vld [vmem:[%s1 + $0x60] sm:$0xf]
      %v369 = vld [vmem:[%s1 + $0x64] sm:$0xf]
      %v370 = vld [vmem:[%s1 + $0x68] sm:$0xf]
      %v371 = vld [vmem:[%s1 + $0x6c] sm:$0xf]
      %v372 = vld [vmem:[%s1 + $0x70] sm:$0xf]
      %v373 = vld [vmem:[%s1 + $0x74] sm:$0xf]
      %v374 = vld [vmem:[%s1 + $0x78] sm:$0xf]
      %v375 = vld [vmem:[%s1 + $0x7c] sm:$0xf]
      %v376 = vld [vmem:[%s1 + $0x80] sm:$0xf]
      %v377 = vld [vmem:[%s1 + $0x84] sm:$0xf]
      %v378 = vld [vmem:[%s1 + $0x88] sm:$0xf]
      %v379 = vld [vmem:[%s1 + $0x8c] sm:$0xf]
      %v380 = vld [vmem:[%s1 + $0x90] sm:$0xf]
      %v381 = vld [vmem:[%s1 + $0x94] sm:$0xf]
      %v382 = vld [vmem:[%s1 + $0x98] sm:$0xf]
      %v383 = vld [vmem:[%s1 + $0x9c] sm:$0xf]
      %v384 = vld [vmem:[%s1 + $0xa0] sm:$0xf]
      %v385 = vld [vmem:[%s1 + $0xa4] sm:$0xf]
      %v386 = vld [vmem:[%s1 + $0xa8] sm:$0xf]
      %v387 = vld [vmem:[%s1 + $0xac] sm:$0xf]
      %v388 = vld [vmem:[%s1 + $0xb0] sm:$0xf]
      %v389 = vld [vmem:[%s1 + $0xb4] sm:$0xf]
      %v390 = vld [vmem:[%s1 + $0xb8] sm:$0xf]
      %v391 = vld [vmem:[%s1 + $0xbc] sm:$0xf]
      %v392 = vld [vmem:[%s1 + $0xc0] sm:$0xf]
      %v393 = vld [vmem:[%s1 + $0xc4] sm:$0xf]
      %v394 = vld [vmem:[%s1 + $0xc8] sm:$0xf]
      %v395 = vld [vmem:[%s1 + $0xcc] sm:$0xf]
      %v396 = vld [vmem:[%s1 + $0xd0] sm:$0xf]
      %v397 = vld [vmem:[%s1 + $0xd4] sm:$0xf]
      %v398 = vld [vmem:[%s1 + $0xd8] sm:$0xf]
      %v399 = vld [vmem:[%s1 + $0xdc] sm:$0xf]
      %v400 = vld [vmem:[%s1 + $0xe0] sm:$0xf]
      %v401 = vld [vmem:[%s1 + $0xe4] sm:$0xf]
      %v402 = vld [vmem:[%s1 + $0xe8] sm:$0xf]
      %v403 = vld [vmem:[%s1 + $0xec] sm:$0xf]
      %v404 = vld [vmem:[%s1 + $0xf0] sm:$0xf]
      %v405 = vld [vmem:[%s1 + $0xf4] sm:$0xf]
      %v406 = vld [vmem:[%s1 + $0xf8] sm:$0xf]
      %v407 = vld [vmem:[%s1 + $0xfc] sm:$0xf]
      %v408 = vld [vmem:[%s1 + $0x100] sm:$0xf]
      %v409 = vld [vmem:[%s1 + $0x104] sm:$0xf]
      %v410 = vld [vmem:[%s1 + $0x108] sm:$0xf]
      %v411 = vld [vmem:[%s1 + $0x10c] sm:$0xf]
      %v412 = vld [vmem:[%s1 + $0x110] sm:$0xf]
      %v413 = vld [vmem:[%s1 + $0x114] sm:$0xf]
      %v414 = vld [vmem:[%s1 + $0x118] sm:$0xf]
      %v415 = vld [vmem:[%s1 + $0x11c] sm:$0xf]
      %v416 = vld [vmem:[%s1 + $0x120] sm:$0xf]
      %v417 = vld [vmem:[%s1 + $0x124] sm:$0xf]
      %v418 = vld [vmem:[%s1 + $0x128] sm:$0xf]
      %v419 = vld [vmem:[%s1 + $0x12c] sm:$0xf]
      %v420 = vld [vmem:[%s1 + $0x130] sm:$0xf]
      %v421 = vld [vmem:[%s1 + $0x134] sm:$0xf]
      %v422 = vld [vmem:[%s1 + $0x138] sm:$0xf]
      %v423 = vld [vmem:[%s1 + $0x13c] sm:$0xf]
      %v424 = vld [vmem:[%s1 + $0x140] sm:$0xf]
      %v425 = vld [vmem:[%s1 + $0x144] sm:$0xf]
      %v426 = vld [vmem:[%s1 + $0x148] sm:$0xf]
      %v427 = vld [vmem:[%s1 + $0x14c] sm:$0xf]
      %v428 = vld [vmem:[%s1 + $0x150] sm:$0xf]
      %v429 = vld [vmem:[%s1 + $0x154] sm:$0xf]
      %v430 = vld [vmem:[%s1 + $0x158] sm:$0xf]
      %v431 = vld [vmem:[%s1 + $0x15c] sm:$0xf]
      %v432 = vld [vmem:[%s1 + $0x160] sm:$0xf]
      %v433 = vld [vmem:[%s1 + $0x164] sm:$0xf]
      %v434 = vld [vmem:[%s1 + $0x168] sm:$0xf]
      %v435 = vld [vmem:[%s1 + $0x16c] sm:$0xf]
      %v436 = vld [vmem:[%s1 + $0x170] sm:$0xf]
      %v437 = vld [vmem:[%s1 + $0x174] sm:$0xf]
      %v438 = vld [vmem:[%s1 + $0x178] sm:$0xf]
      %v439 = vld [vmem:[%s1 + $0x17c] sm:$0xf]
      %v440 = vld [vmem:[%s1 + $0x180] sm:$0xf]
      %v441 = vld [vmem:[%s1 + $0x184] sm:$0xf]
      %v442 = vld [vmem:[%s1 + $0x188] sm:$0xf]
      %v443 = vld [vmem:[%s1 + $0x18c] sm:$0xf]
      %v444 = vld [vmem:[%s1 + $0x190] sm:$0xf]
      %v445 = vld [vmem:[%s1 + $0x194] sm:$0xf]
      %v446 = vld [vmem:[%s1 + $0x198] sm:$0xf]
      %v447 = vld [vmem:[%s1 + $0x19c] sm:$0xf]
      %v448 = vld [vmem:[%s1 + $0x1a0] sm:$0xf]
      %v449 = vld [vmem:[%s1 + $0x1a4] sm:$0xf]
      %v450 = vld [vmem:[%s1 + $0x1a8] sm:$0xf]
      %v451 = vld [vmem:[%s1 + $0x1ac] sm:$0xf]
      %v452 = vld [vmem:[%s1 + $0x1b0] sm:$0xf]
      %v453 = vld [vmem:[%s1 + $0x1b4] sm:$0xf]
      %v454 = vld [vmem:[%s1 + $0x1b8] sm:$0xf]
      %v455 = vld [vmem:[%s1 + $0x1bc] sm:$0xf]
      %v456 = vld [vmem:[%s1 + $0x1c0] sm:$0xf]
      %v457 = vld [vmem:[%s1 + $0x1c4] sm:$0xf]
      %v458 = vld [vmem:[%s1 + $0x1c8] sm:$0xf]
      %v459 = vld [vmem:[%s1 + $0x1cc] sm:$0xf]
      %v460 = vld [vmem:[%s1 + $0x1d0] sm:$0xf]
      %v461 = vld [vmem:[%s1 + $0x1d4] sm:$0xf]
      %v462 = vld [vmem:[%s1 + $0x1d8] sm:$0xf]
      %v463 = vld [vmem:[%s1 + $0x1dc] sm:$0xf]
      %v464 = vld [vmem:[%s1 + $0x1e0] sm:$0xf]
      %v465 = vld [vmem:[%s1 + $0x1e4] sm:$0xf]
      %v466 = vld [vmem:[%s1 + $0x1e8] sm:$0xf]
      %v467 = vld [vmem:[%s1 + $0x1ec] sm:$0xf]
      %v468 = vld [vmem:[%s1 + $0x1f0] sm:$0xf]
      %v469 = vld [vmem:[%s1 + $0x1f4] sm:$0xf]
      %v470 = vld [vmem:[%s1 + $0x1f8] sm:$0xf]
      %v471 = vld [vmem:[%s1 + $0x1fc] sm:$0xf]
      %v472 = vld [vmem:[%s1 + $0x200] sm:$0xf]
      %v473 = vld [vmem:[%s1 + $0x204] sm:$0xf]
      %v474 = vld [vmem:[%s1 + $0x208] sm:$0xf]
      %v475 = vld [vmem:[%s1 + $0x20c] sm:$0xf]
      %v476 = vld [vmem:[%s1 + $0x210] sm:$0xf]
      %v477 = vld [vmem:[%s1 + $0x214] sm:$0xf]
      %v478 = vld [vmem:[%s1 + $0x218] sm:$0xf]
      %v479 = vld [vmem:[%s1 + $0x21c] sm:$0xf]
      %v480 = vld [vmem:[%s1 + $0x220] sm:$0xf]
      %v481 = vld [vmem:[%s1 + $0x224] sm:$0xf]
      %v482 = vld [vmem:[%s1 + $0x228] sm:$0xf]
      %v483 = vld [vmem:[%s1 + $0x22c] sm:$0xf]
      %v484 = vld [vmem:[%s1 + $0x230] sm:$0xf]
      %v485 = vld [vmem:[%s1 + $0x234] sm:$0xf]
      %v486 = vld [vmem:[%s1 + $0x238] sm:$0xf]
      %v487 = vld [vmem:[%s1 + $0x23c] sm:$0xf]
      %v628 = vunpack.c.l.b16 %v204
      %v629 = vunpack.c.h.b16 %v204
      %v630 = vunpack.c.l.b16 %v205
      %v631 = vunpack.c.h.b16 %v205
      %v632 = vunpack.c.l.b16 %v206
      %v633 = vunpack.c.h.b16 %v206
      %v634 = vunpack.c.l.b16 %v207
      %v635 = vunpack.c.h.b16 %v207
      %v636 = vunpack.c.l.b16 %v208
      %v637 = vunpack.c.l.b16 %v209
      %v638 = vunpack.c.h.b16 %v209
      %v639 = vunpack.c.l.b16 %v210
      %v640 = vunpack.c.h.b16 %v210
      %v641 = vunpack.c.l.b16 %v211
      %v642 = vunpack.c.h.b16 %v211
      %v643 = vunpack.c.l.b16 %v212
      %v644 = vunpack.c.h.b16 %v212
      %v645 = vunpack.c.l.b16 %v213
      %v646 = vunpack.c.l.b16 %v214
      %v647 = vunpack.c.h.b16 %v214
      %v648 = vunpack.c.l.b16 %v215
      %v649 = vunpack.c.h.b16 %v215
      %v650 = vunpack.c.l.b16 %v216
      %v651 = vunpack.c.h.b16 %v216
      %v652 = vunpack.c.l.b16 %v217
      %v653 = vunpack.c.h.b16 %v217
      %v654 = vunpack.c.l.b16 %v218
      %v655 = vunpack.c.l.b16 %v219
      %v656 = vunpack.c.h.b16 %v219
      %v657 = vunpack.c.l.b16 %v220
      %v658 = vunpack.c.h.b16 %v220
      %v659 = vunpack.c.l.b16 %v221
      %v660 = vunpack.c.h.b16 %v221
      %v661 = vunpack.c.l.b16 %v222
      %v662 = vunpack.c.h.b16 %v222
      %v663 = vunpack.c.l.b16 %v223
      %v664 = vunpack.c.l.b16 %v224
      %v665 = vunpack.c.h.b16 %v224
      %v666 = vunpack.c.l.b16 %v225
      %v667 = vunpack.c.h.b16 %v225
      %v668 = vunpack.c.l.b16 %v226
      %v669 = vunpack.c.h.b16 %v226
      %v670 = vunpack.c.l.b16 %v227
      %v671 = vunpack.c.h.b16 %v227
      %v672 = vunpack.c.l.b16 %v228
      %v673 = vunpack.c.l.b16 %v229
      %v674 = vunpack.c.h.b16 %v229
      %v675 = vunpack.c.l.b16 %v230
      %v676 = vunpack.c.h.b16 %v230
      %v677 = vunpack.c.l.b16 %v231
      %v678 = vunpack.c.h.b16 %v231
      %v679 = vunpack.c.l.b16 %v232
      %v680 = vunpack.c.h.b16 %v232
      %v681 = vunpack.c.l.b16 %v233
      %v682 = vunpack.c.l.b16 %v234
      %v683 = vunpack.c.h.b16 %v234
      %v684 = vunpack.c.l.b16 %v235
      %v685 = vunpack.c.h.b16 %v235
      %v686 = vunpack.c.l.b16 %v236
      %v687 = vunpack.c.h.b16 %v236
      %v688 = vunpack.c.l.b16 %v237
      %v689 = vunpack.c.h.b16 %v237
      %v690 = vunpack.c.l.b16 %v238
      %v691 = vunpack.c.l.b16 %v239
      %v692 = vunpack.c.h.b16 %v239
      %v693 = vunpack.c.l.b16 %v240
      %v694 = vunpack.c.h.b16 %v240
      %v695 = vunpack.c.l.b16 %v241
      %v696 = vunpack.c.h.b16 %v241
      %v697 = vunpack.c.l.b16 %v242
      %v698 = vunpack.c.h.b16 %v242
      %v699 = vunpack.c.l.b16 %v243
      %v700 = vunpack.c.l.b16 %v244
      %v701 = vunpack.c.h.b16 %v244
      %v702 = vunpack.c.l.b16 %v245
      %v703 = vunpack.c.h.b16 %v245
      %v704 = vunpack.c.l.b16 %v246
      %v705 = vunpack.c.h.b16 %v246
      %v706 = vunpack.c.l.b16 %v247
      %v707 = vunpack.c.h.b16 %v247
      %v708 = vunpack.c.l.b16 %v248
      %v709 = vunpack.c.l.b16 %v249
      %v710 = vunpack.c.h.b16 %v249
      %v711 = vunpack.c.l.b16 %v250
      %v712 = vunpack.c.h.b16 %v250
      %v713 = vunpack.c.l.b16 %v251
      %v714 = vunpack.c.h.b16 %v251
      %v715 = vunpack.c.l.b16 %v252
      %v716 = vunpack.c.h.b16 %v252
      %v717 = vunpack.c.l.b16 %v253
      %v718 = vunpack.c.l.b16 %v254
      %v719 = vunpack.c.h.b16 %v254
      %v720 = vunpack.c.l.b16 %v255
      %v721 = vunpack.c.h.b16 %v255
      %v722 = vunpack.c.l.b16 %v256
      %v723 = vunpack.c.h.b16 %v256
      %v724 = vunpack.c.l.b16 %v257
      %v725 = vunpack.c.h.b16 %v257
      %v726 = vunpack.c.l.b16 %v258
      %v727 = vunpack.c.l.b16 %v259
      %v728 = vunpack.c.h.b16 %v259
      %v729 = vunpack.c.l.b16 %v260
      %v730 = vunpack.c.h.b16 %v260
      %v731 = vunpack.c.l.b16 %v261
      %v732 = vunpack.c.h.b16 %v261
      %v733 = vunpack.c.l.b16 %v262
      %v734 = vunpack.c.h.b16 %v262
      %v735 = vunpack.c.l.b16 %v263
      %v736 = vunpack.c.l.b16 %v264
      %v737 = vunpack.c.h.b16 %v264
      %v738 = vunpack.c.l.b16 %v265
      %v739 = vunpack.c.h.b16 %v265
      %v740 = vunpack.c.l.b16 %v266
      %v741 = vunpack.c.h.b16 %v266
      %v742 = vunpack.c.l.b16 %v267
      %v743 = vunpack.c.h.b16 %v267
      %v744 = vunpack.c.l.b16 %v268
      %v745 = vunpack.c.l.b16 %v269
      %v746 = vunpack.c.h.b16 %v269
      %v747 = vunpack.c.l.b16 %v270
      %v748 = vunpack.c.h.b16 %v270
      %v749 = vunpack.c.l.b16 %v271
      %v750 = vunpack.c.h.b16 %v271
      %v751 = vunpack.c.l.b16 %v272
      %v752 = vunpack.c.h.b16 %v272
      %v753 = vunpack.c.l.b16 %v273
      %v754 = vunpack.c.l.b16 %v274
      %v755 = vunpack.c.h.b16 %v274
      %v756 = vunpack.c.l.b16 %v275
      %v757 = vunpack.c.h.b16 %v275
      %v758 = vunpack.c.l.b16 %v276
      %v759 = vunpack.c.h.b16 %v276
      %v760 = vunpack.c.l.b16 %v277
      %v761 = vunpack.c.h.b16 %v277
      %v762 = vunpack.c.l.b16 %v278
      %v763 = vunpack.c.l.b16 %v279
      %v764 = vunpack.c.h.b16 %v279
      %v765 = vunpack.c.l.b16 %v280
      %v766 = vunpack.c.h.b16 %v280
      %v767 = vunpack.c.l.b16 %v281
      %v768 = vunpack.c.h.b16 %v281
      %v769 = vunpack.c.l.b16 %v282
      %v770 = vunpack.c.h.b16 %v282
      %v771 = vunpack.c.l.b16 %v283
      %v772 = vunpack.c.l.b16 %v284
      %v773 = vunpack.c.h.b16 %v284
      %v774 = vunpack.c.l.b16 %v285
      %v775 = vunpack.c.h.b16 %v285
      %v776 = vunpack.c.l.b16 %v286
      %v777 = vunpack.c.h.b16 %v286
      %v778 = vunpack.c.l.b16 %v287
      %v779 = vunpack.c.h.b16 %v287
      %v780 = vunpack.c.l.b16 %v288
      %v781 = vunpack.c.l.b16 %v289
      %v782 = vunpack.c.h.b16 %v289
      %v783 = vunpack.c.l.b16 %v290
      %v784 = vunpack.c.h.b16 %v290
      %v785 = vunpack.c.l.b16 %v291
      %v786 = vunpack.c.h.b16 %v291
      %v787 = vunpack.c.l.b16 %v292
      %v788 = vunpack.c.h.b16 %v292
      %v789 = vunpack.c.l.b16 %v293
      %v790 = vunpack.c.l.b16 %v294
      %v791 = vunpack.c.h.b16 %v294
      %v792 = vunpack.c.l.b16 %v295
      %v793 = vunpack.c.h.b16 %v295
      %v794 = vunpack.c.l.b16 %v296
      %v795 = vunpack.c.h.b16 %v296
      %v796 = vunpack.c.l.b16 %v297
      %v797 = vunpack.c.h.b16 %v297
      %v798 = vunpack.c.l.b16 %v298
      %v799 = vunpack.c.l.b16 %v299
      %v800 = vunpack.c.h.b16 %v299
      %v801 = vunpack.c.l.b16 %v300
      %v802 = vunpack.c.h.b16 %v300
      %v803 = vunpack.c.l.b16 %v301
      %v804 = vunpack.c.h.b16 %v301
      %v805 = vunpack.c.l.b16 %v302
      %v806 = vunpack.c.h.b16 %v302
      %v807 = vunpack.c.l.b16 %v303
      %v808 = vunpack.c.l.b16 %v304
      %v809 = vunpack.c.h.b16 %v304
      %v810 = vunpack.c.l.b16 %v305
      %v811 = vunpack.c.h.b16 %v305
      %v812 = vunpack.c.l.b16 %v306
      %v813 = vunpack.c.h.b16 %v306
      %v814 = vunpack.c.l.b16 %v307
      %v815 = vunpack.c.h.b16 %v307
      %v816 = vunpack.c.l.b16 %v308
      %v817 = vunpack.c.l.b16 %v309
      %v818 = vunpack.c.h.b16 %v309
      %v819 = vunpack.c.l.b16 %v310
      %v820 = vunpack.c.h.b16 %v310
      %v821 = vunpack.c.l.b16 %v311
      %v822 = vunpack.c.h.b16 %v311
      %v823 = vunpack.c.l.b16 %v312
      %v824 = vunpack.c.h.b16 %v312
      %v825 = vunpack.c.l.b16 %v313
      %v826 = vunpack.c.l.b16 %v314
      %v827 = vunpack.c.h.b16 %v314
      %v828 = vunpack.c.l.b16 %v315
      %v829 = vunpack.c.h.b16 %v315
      %v830 = vunpack.c.l.b16 %v316
      %v831 = vunpack.c.h.b16 %v316
      %v832 = vunpack.c.l.b16 %v317
      %v833 = vunpack.c.h.b16 %v317
      %v834 = vunpack.c.l.b16 %v318
      %v835 = vunpack.c.l.b16 %v319
      %v836 = vunpack.c.h.b16 %v319
      %v837 = vunpack.c.l.b16 %v320
      %v838 = vunpack.c.h.b16 %v320
      %v839 = vunpack.c.l.b16 %v321
      %v840 = vunpack.c.h.b16 %v321
      %v841 = vunpack.c.l.b16 %v322
      %v842 = vunpack.c.h.b16 %v322
      %v843 = vunpack.c.l.b16 %v323
      %v844 = vunpack.c.l.b16 %v324
      %v845 = vunpack.c.h.b16 %v324
      %v846 = vunpack.c.l.b16 %v325
      %v847 = vunpack.c.h.b16 %v325
      %v848 = vunpack.c.l.b16 %v326
      %v849 = vunpack.c.h.b16 %v326
      %v850 = vunpack.c.l.b16 %v327
      %v851 = vunpack.c.h.b16 %v327
      %v852 = vunpack.c.l.b16 %v328
      %v853 = vunpack.c.l.b16 %v329
      %v854 = vunpack.c.h.b16 %v329
      %v855 = vunpack.c.l.b16 %v330
      %v856 = vunpack.c.h.b16 %v330
      %v857 = vunpack.c.l.b16 %v331
      %v858 = vunpack.c.h.b16 %v331
      %v859 = vunpack.c.l.b16 %v332
      %v860 = vunpack.c.h.b16 %v332
      %v861 = vunpack.c.l.b16 %v333
      %v862 = vunpack.c.l.b16 %v334
      %v863 = vunpack.c.h.b16 %v334
      %v864 = vunpack.c.l.b16 %v335
      %v865 = vunpack.c.h.b16 %v335
      %v866 = vunpack.c.l.b16 %v336
      %v867 = vunpack.c.h.b16 %v336
      %v868 = vunpack.c.l.b16 %v337
      %v869 = vunpack.c.h.b16 %v337
      %v870 = vunpack.c.l.b16 %v338
      %v871 = vunpack.c.l.b16 %v339
      %v872 = vunpack.c.h.b16 %v339
      %v873 = vunpack.c.l.b16 %v340
      %v874 = vunpack.c.h.b16 %v340
      %v875 = vunpack.c.l.b16 %v341
      %v876 = vunpack.c.h.b16 %v341
      %v877 = vunpack.c.l.b16 %v342
      %v878 = vunpack.c.h.b16 %v342
      %v879 = vunpack.c.l.b16 %v343
      %v880 = vpack.c.b16 %v637, %v628
      %v881 = vpack.c.b16 %v638, %v629
      %v882 = vpack.c.b16 %v639, %v630
      %v883 = vpack.c.b16 %v640, %v631
      %v884 = vpack.c.b16 %v641, %v632
      %v885 = vpack.c.b16 %v642, %v633
      %v886 = vpack.c.b16 %v643, %v634
      %v887 = vpack.c.b16 %v644, %v635
      %v888 = vpack.c.b16 %v645, %v636
      %v889 = vpack.c.b16 %v655, %v646
      %v890 = vpack.c.b16 %v656, %v647
      %v891 = vpack.c.b16 %v657, %v648
      %v892 = vpack.c.b16 %v658, %v649
      %v893 = vpack.c.b16 %v659, %v650
      %v894 = vpack.c.b16 %v660, %v651
      %v895 = vpack.c.b16 %v661, %v652
      %v896 = vpack.c.b16 %v662, %v653
      %v897 = vpack.c.b16 %v663, %v654
      %v898 = vpack.c.b16 %v673, %v664
      %v899 = vpack.c.b16 %v674, %v665
      %v900 = vpack.c.b16 %v675, %v666
      %v901 = vpack.c.b16 %v676, %v667
      %v902 = vpack.c.b16 %v677, %v668
      %v903 = vpack.c.b16 %v678, %v669
      %v904 = vpack.c.b16 %v679, %v670
      %v905 = vpack.c.b16 %v680, %v671
      %v906 = vpack.c.b16 %v681, %v672
      %v907 = vpack.c.b16 %v691, %v682
      %v908 = vpack.c.b16 %v692, %v683
      %v909 = vpack.c.b16 %v693, %v684
      %v910 = vpack.c.b16 %v694, %v685
      %v911 = vpack.c.b16 %v695, %v686
      %v912 = vpack.c.b16 %v696, %v687
      %v913 = vpack.c.b16 %v697, %v688
      %v914 = vpack.c.b16 %v698, %v689
      %v915 = vpack.c.b16 %v699, %v690
      %v916 = vpack.c.b16 %v709, %v700
      %v917 = vpack.c.b16 %v710, %v701
      %v918 = vpack.c.b16 %v711, %v702
      %v919 = vpack.c.b16 %v712, %v703
      %v920 = vpack.c.b16 %v713, %v704
      %v921 = vpack.c.b16 %v714, %v705
      %v922 = vpack.c.b16 %v715, %v706
      %v923 = vpack.c.b16 %v716, %v707
      %v924 = vpack.c.b16 %v717, %v708
      %v925 = vpack.c.b16 %v727, %v718
      %v926 = vpack.c.b16 %v728, %v719
      %v927 = vpack.c.b16 %v729, %v720
      %v928 = vpack.c.b16 %v730, %v721
      %v929 = vpack.c.b16 %v731, %v722
      %v930 = vpack.c.b16 %v732, %v723
      %v931 = vpack.c.b16 %v733, %v724
      %v932 = vpack.c.b16 %v734, %v725
      %v933 = vpack.c.b16 %v735, %v726
      %v934 = vpack.c.b16 %v745, %v736
      %v935 = vpack.c.b16 %v746, %v737
      %v936 = vpack.c.b16 %v747, %v738
      %v937 = vpack.c.b16 %v748, %v739
      %v938 = vpack.c.b16 %v749, %v740
      %v939 = vpack.c.b16 %v750, %v741
      %v940 = vpack.c.b16 %v751, %v742
      %v941 = vpack.c.b16 %v752, %v743
      %v942 = vpack.c.b16 %v753, %v744
      %v943 = vpack.c.b16 %v763, %v754
      %v944 = vpack.c.b16 %v764, %v755
      %v945 = vpack.c.b16 %v765, %v756
      %v946 = vpack.c.b16 %v766, %v757
      %v947 = vpack.c.b16 %v767, %v758
      %v948 = vpack.c.b16 %v768, %v759
      %v949 = vpack.c.b16 %v769, %v760
      %v950 = vpack.c.b16 %v770, %v761
      %v951 = vpack.c.b16 %v771, %v762
      %v952 = vpack.c.b16 %v781, %v772
      %v953 = vpack.c.b16 %v782, %v773
      %v954 = vpack.c.b16 %v783, %v774
      %v955 = vpack.c.b16 %v784, %v775
      %v956 = vpack.c.b16 %v785, %v776
      %v957 = vpack.c.b16 %v786, %v777
      %v958 = vpack.c.b16 %v787, %v778
      %v959 = vpack.c.b16 %v788, %v779
      %v960 = vpack.c.b16 %v789, %v780
      %v961 = vpack.c.b16 %v799, %v790
      %v962 = vpack.c.b16 %v800, %v791
      %v963 = vpack.c.b16 %v801, %v792
      %v964 = vpack.c.b16 %v802, %v793
      %v965 = vpack.c.b16 %v803, %v794
      %v966 = vpack.c.b16 %v804, %v795
      %v967 = vpack.c.b16 %v805, %v796
      %v968 = vpack.c.b16 %v806, %v797
      %v969 = vpack.c.b16 %v807, %v798
      %v970 = vpack.c.b16 %v817, %v808
      %v971 = vpack.c.b16 %v818, %v809
      %v972 = vpack.c.b16 %v819, %v810
      %v973 = vpack.c.b16 %v820, %v811
      %v974 = vpack.c.b16 %v821, %v812
      %v975 = vpack.c.b16 %v822, %v813
      %v976 = vpack.c.b16 %v823, %v814
      %v977 = vpack.c.b16 %v824, %v815
      %v978 = vpack.c.b16 %v825, %v816
      %v979 = vpack.c.b16 %v835, %v826
      %v980 = vpack.c.b16 %v836, %v827
      %v981 = vpack.c.b16 %v837, %v828
      %v982 = vpack.c.b16 %v838, %v829
      %v983 = vpack.c.b16 %v839, %v830
      %v984 = vpack.c.b16 %v840, %v831
      %v985 = vpack.c.b16 %v841, %v832
      %v986 = vpack.c.b16 %v842, %v833
      %v987 = vpack.c.b16 %v843, %v834
      %v988 = vpack.c.b16 %v853, %v844
      %v989 = vpack.c.b16 %v854, %v845
      %v990 = vpack.c.b16 %v855, %v846
      %v991 = vpack.c.b16 %v856, %v847
      %v992 = vpack.c.b16 %v857, %v848
      %v993 = vpack.c.b16 %v858, %v849
      %v994 = vpack.c.b16 %v859, %v850
      %v995 = vpack.c.b16 %v860, %v851
      %v996 = vpack.c.b16 %v861, %v852
      %v997 = vpack.c.b16 %v871, %v862
      %v998 = vpack.c.b16 %v872, %v863
      %v999 = vpack.c.b16 %v873, %v864
      %v1000 = vpack.c.b16 %v874, %v865
      %v1001 = vpack.c.b16 %v875, %v866
      %v1002 = vpack.c.b16 %v876, %v867
      %v1003 = vpack.c.b16 %v877, %v868
      %v1004 = vpack.c.b16 %v878, %v869
      %v1005 = vpack.c.b16 %v879, %v870
      %v1276 = vunpack.c.l.b16 %v344
      %v1277 = vunpack.c.l.b16 %v345
      %v1278 = vunpack.c.l.b16 %v346
      %v1279 = vunpack.c.l.b16 %v347
      %v1280 = vunpack.c.l.b16 %v348
      %v1281 = vunpack.c.l.b16 %v349
      %v1282 = vunpack.c.l.b16 %v350
      %v1283 = vunpack.c.l.b16 %v351
      %v1284 = vunpack.c.l.b16 %v352
      %v1285 = vunpack.c.l.b16 %v353
      %v1286 = vunpack.c.l.b16 %v354
      %v1287 = vunpack.c.l.b16 %v355
      %v1288 = vunpack.c.l.b16 %v356
      %v1289 = vunpack.c.l.b16 %v357
      %v1290 = vunpack.c.l.b16 %v358
      %v1291 = vunpack.c.l.b16 %v359
      %v1292 = vunpack.c.l.b16 %v360
      %v1293 = vunpack.c.l.b16 %v361
      %v1294 = vunpack.c.l.b16 %v362
      %v1295 = vunpack.c.l.b16 %v363
      %v1296 = vunpack.c.l.b16 %v364
      %v1297 = vunpack.c.l.b16 %v365
      %v1298 = vunpack.c.l.b16 %v366
      %v1299 = vunpack.c.l.b16 %v367
      %v1300 = vunpack.c.l.b16 %v368
      %v1301 = vunpack.c.l.b16 %v369
      %v1302 = vunpack.c.l.b16 %v370
      %v1303 = vunpack.c.l.b16 %v371
      %v1304 = vunpack.c.l.b16 %v372
      %v1305 = vunpack.c.l.b16 %v373
      %v1306 = vunpack.c.l.b16 %v374
      %v1307 = vunpack.c.l.b16 %v375
      %v1308 = vunpack.c.l.b16 %v376
      %v1309 = vunpack.c.l.b16 %v377
      %v1310 = vunpack.c.l.b16 %v378
      %v1311 = vunpack.c.l.b16 %v379
      %v1312 = vunpack.c.l.b16 %v380
      %v1313 = vunpack.c.l.b16 %v381
      %v1314 = vunpack.c.l.b16 %v382
      %v1315 = vunpack.c.l.b16 %v383
      %v1316 = vunpack.c.l.b16 %v384
      %v1317 = vunpack.c.l.b16 %v385
      %v1318 = vunpack.c.l.b16 %v386
      %v1319 = vunpack.c.l.b16 %v387
      %v1320 = vunpack.c.l.b16 %v388
      %v1321 = vunpack.c.l.b16 %v389
      %v1322 = vunpack.c.l.b16 %v390
      %v1323 = vunpack.c.l.b16 %v391
      %v1324 = vunpack.c.l.b16 %v392
      %v1325 = vunpack.c.l.b16 %v393
      %v1326 = vunpack.c.l.b16 %v394
      %v1327 = vunpack.c.l.b16 %v395
      %v1328 = vunpack.c.l.b16 %v396
      %v1329 = vunpack.c.l.b16 %v397
      %v1330 = vunpack.c.l.b16 %v398
      %v1331 = vunpack.c.l.b16 %v399
      %v1332 = vunpack.c.l.b16 %v400
      %v1333 = vunpack.c.l.b16 %v401
      %v1334 = vunpack.c.l.b16 %v402
      %v1335 = vunpack.c.l.b16 %v403
      %v1336 = vunpack.c.l.b16 %v404
      %v1337 = vunpack.c.l.b16 %v405
      %v1338 = vunpack.c.l.b16 %v406
      %v1339 = vunpack.c.l.b16 %v407
      %v1340 = vunpack.c.l.b16 %v408
      %v1341 = vunpack.c.l.b16 %v409
      %v1342 = vunpack.c.l.b16 %v410
      %v1343 = vunpack.c.l.b16 %v411
      %v1344 = vunpack.c.l.b16 %v412
      %v1345 = vunpack.c.l.b16 %v413
      %v1346 = vunpack.c.l.b16 %v414
      %v1347 = vunpack.c.l.b16 %v415
      %v1348 = vunpack.c.l.b16 %v416
      %v1349 = vunpack.c.l.b16 %v417
      %v1350 = vunpack.c.l.b16 %v418
      %v1351 = vunpack.c.l.b16 %v419
      %v1352 = vunpack.c.l.b16 %v420
      %v1353 = vunpack.c.l.b16 %v421
      %v1354 = vunpack.c.l.b16 %v422
      %v1355 = vunpack.c.l.b16 %v423
      %v1356 = vunpack.c.l.b16 %v424
      %v1357 = vunpack.c.l.b16 %v425
      %v1358 = vunpack.c.l.b16 %v426
      %v1359 = vunpack.c.l.b16 %v427
      %v1360 = vunpack.c.l.b16 %v428
      %v1361 = vunpack.c.l.b16 %v429
      %v1362 = vunpack.c.l.b16 %v430
      %v1363 = vunpack.c.l.b16 %v431
      %v1364 = vunpack.c.l.b16 %v432
      %v1365 = vunpack.c.l.b16 %v433
      %v1366 = vunpack.c.l.b16 %v434
      %v1367 = vunpack.c.l.b16 %v435
      %v1368 = vunpack.c.l.b16 %v436
      %v1369 = vunpack.c.l.b16 %v437
      %v1370 = vunpack.c.l.b16 %v438
      %v1371 = vunpack.c.l.b16 %v439
      %v1372 = vunpack.c.l.b16 %v440
      %v1373 = vunpack.c.l.b16 %v441
      %v1374 = vunpack.c.l.b16 %v442
      %v1375 = vunpack.c.l.b16 %v443
      %v1376 = vunpack.c.l.b16 %v444
      %v1377 = vunpack.c.l.b16 %v445
      %v1378 = vunpack.c.l.b16 %v446
      %v1379 = vunpack.c.l.b16 %v447
      %v1380 = vunpack.c.l.b16 %v448
      %v1381 = vunpack.c.l.b16 %v449
      %v1382 = vunpack.c.l.b16 %v450
      %v1383 = vunpack.c.l.b16 %v451
      %v1384 = vunpack.c.l.b16 %v452
      %v1385 = vunpack.c.l.b16 %v453
      %v1386 = vunpack.c.l.b16 %v454
      %v1387 = vunpack.c.l.b16 %v455
      %v1388 = vunpack.c.l.b16 %v456
      %v1389 = vunpack.c.l.b16 %v457
      %v1390 = vunpack.c.l.b16 %v458
      %v1391 = vunpack.c.l.b16 %v459
      %v1392 = vunpack.c.l.b16 %v460
      %v1393 = vunpack.c.l.b16 %v461
      %v1394 = vunpack.c.l.b16 %v462
      %v1395 = vunpack.c.l.b16 %v463
      %v1396 = vunpack.c.l.b16 %v464
      %v1397 = vunpack.c.l.b16 %v465
      %v1398 = vunpack.c.l.b16 %v466
      %v1399 = vunpack.c.l.b16 %v467
      %v1400 = vunpack.c.l.b16 %v468
      %v1401 = vunpack.c.l.b16 %v469
      %v1402 = vunpack.c.l.b16 %v470
      %v1403 = vunpack.c.l.b16 %v471
      %v1404 = vunpack.c.l.b16 %v472
      %v1405 = vunpack.c.l.b16 %v473
      %v1406 = vunpack.c.l.b16 %v474
      %v1407 = vunpack.c.l.b16 %v475
      %v1408 = vunpack.c.l.b16 %v476
      %v1409 = vunpack.c.l.b16 %v477
      %v1410 = vunpack.c.l.b16 %v478
      %v1411 = vunpack.c.l.b16 %v479
      %v1412 = vunpack.c.l.b16 %v480
      %v1413 = vunpack.c.l.b16 %v481
      %v1414 = vunpack.c.l.b16 %v482
      %v1415 = vunpack.c.l.b16 %v483
      %v1416 = vunpack.c.l.b16 %v484
      %v1417 = vunpack.c.l.b16 %v485
      %v1418 = vunpack.c.l.b16 %v486
      %v1419 = vunpack.c.l.b16 %v487
      %v1420 = vpack.c.b16 %v1277, %v1276
      %v1421 = vpack.c.b16 %v1279, %v1278
      %v1422 = vpack.c.b16 %v1281, %v1280
      %v1423 = vpack.c.b16 %v1283, %v1282
      %v1424 = vpack.c.b16 %v1285, %v1284
      %v1425 = vpack.c.b16 %v1287, %v1286
      %v1426 = vpack.c.b16 %v1289, %v1288
      %v1427 = vpack.c.b16 %v1291, %v1290
      %v1428 = vpack.c.b16 %v1293, %v1292
      %v1429 = vpack.c.b16 %v1295, %v1294
      %v1430 = vpack.c.b16 %v1297, %v1296
      %v1431 = vpack.c.b16 %v1299, %v1298
      %v1432 = vpack.c.b16 %v1301, %v1300
      %v1433 = vpack.c.b16 %v1303, %v1302
      %v1434 = vpack.c.b16 %v1305, %v1304
      %v1435 = vpack.c.b16 %v1307, %v1306
      %v1436 = vpack.c.b16 %v1309, %v1308
      %v1437 = vpack.c.b16 %v1311, %v1310
      %v1438 = vpack.c.b16 %v1313, %v1312
      %v1439 = vpack.c.b16 %v1315, %v1314
      %v1440 = vpack.c.b16 %v1317, %v1316
      %v1441 = vpack.c.b16 %v1319, %v1318
      %v1442 = vpack.c.b16 %v1321, %v1320
      %v1443 = vpack.c.b16 %v1323, %v1322
      %v1444 = vpack.c.b16 %v1325, %v1324
      %v1445 = vpack.c.b16 %v1327, %v1326
      %v1446 = vpack.c.b16 %v1329, %v1328
      %v1447 = vpack.c.b16 %v1331, %v1330
      %v1448 = vpack.c.b16 %v1333, %v1332
      %v1449 = vpack.c.b16 %v1335, %v1334
      %v1450 = vpack.c.b16 %v1337, %v1336
      %v1451 = vpack.c.b16 %v1339, %v1338
      %v1452 = vpack.c.b16 %v1341, %v1340
      %v1453 = vpack.c.b16 %v1343, %v1342
      %v1454 = vpack.c.b16 %v1345, %v1344
      %v1455 = vpack.c.b16 %v1347, %v1346
      %v1456 = vpack.c.b16 %v1349, %v1348
      %v1457 = vpack.c.b16 %v1351, %v1350
      %v1458 = vpack.c.b16 %v1353, %v1352
      %v1459 = vpack.c.b16 %v1355, %v1354
      %v1460 = vpack.c.b16 %v1357, %v1356
      %v1461 = vpack.c.b16 %v1359, %v1358
      %v1462 = vpack.c.b16 %v1361, %v1360
      %v1463 = vpack.c.b16 %v1363, %v1362
      %v1464 = vpack.c.b16 %v1365, %v1364
      %v1465 = vpack.c.b16 %v1367, %v1366
      %v1466 = vpack.c.b16 %v1369, %v1368
      %v1467 = vpack.c.b16 %v1371, %v1370
      %v1468 = vpack.c.b16 %v1373, %v1372
      %v1469 = vpack.c.b16 %v1375, %v1374
      %v1470 = vpack.c.b16 %v1377, %v1376
      %v1471 = vpack.c.b16 %v1379, %v1378
      %v1472 = vpack.c.b16 %v1381, %v1380
      %v1473 = vpack.c.b16 %v1383, %v1382
      %v1474 = vpack.c.b16 %v1385, %v1384
      %v1475 = vpack.c.b16 %v1387, %v1386
      %v1476 = vpack.c.b16 %v1389, %v1388
      %v1477 = vpack.c.b16 %v1391, %v1390
      %v1478 = vpack.c.b16 %v1393, %v1392
      %v1479 = vpack.c.b16 %v1395, %v1394
      %v1480 = vpack.c.b16 %v1397, %v1396
      %v1481 = vpack.c.b16 %v1399, %v1398
      %v1482 = vpack.c.b16 %v1401, %v1400
      %v1483 = vpack.c.b16 %v1403, %v1402
      %v1484 = vpack.c.b16 %v1405, %v1404
      %v1485 = vpack.c.b16 %v1407, %v1406
      %v1486 = vpack.c.b16 %v1409, %v1408
      %v1487 = vpack.c.b16 %v1411, %v1410
      %v1488 = vpack.c.b16 %v1413, %v1412
      %v1489 = vpack.c.b16 %v1415, %v1414
      %v1490 = vpack.c.b16 %v1417, %v1416
      %v1491 = vpack.c.b16 %v1419, %v1418
      %1564 = vmatpush.bf16.msra.mxu0 %v1427
      %1565 = vmatpush.bf16.msra.mxu0 %v1426
      %1566 = vmatpush.bf16.msra.mxu0 %v1425
      %1567 = vmatpush.bf16.msra.mxu0 %v1424
      %1568 = vmatpush.bf16.msra.mxu0 %v1423
      %1569 = vmatpush.bf16.msra.mxu0 %v1422
      %1570 = vmatpush.bf16.msra.mxu0 %v1421
      %1571 = vmatpush.bf16.msra.mxu0 %v1420
      %1572 = vmatmul.bf16.gmra.mxu0 %v880
      %v1573 = vpop.f32.mrf.mxu0
      %v1574 = vadd.f32 0.0, %v1573
      %v1575 = vpop.f32.mrf.mxu0
      %v1576 = vadd.f32 0.0, %v1575
      %1577 = vmatmul.bf16.gmra.mxu0 %v889
      %v1578 = vpop.f32.mrf.mxu0
      %v1579 = vadd.f32 0.0, %v1578
      %v1580 = vpop.f32.mrf.mxu0
      %v1581 = vadd.f32 0.0, %v1580
      %1582 = vmatmul.bf16.gmra.mxu0 %v898
      %v1583 = vpop.f32.mrf.mxu0
      %v1584 = vadd.f32 0.0, %v1583
      %v1585 = vpop.f32.mrf.mxu0
      %v1586 = vadd.f32 0.0, %v1585
      %1587 = vmatmul.bf16.gmra.mxu0 %v907
      %v1588 = vpop.f32.mrf.mxu0
      %v1589 = vadd.f32 0.0, %v1588
      %v1590 = vpop.f32.mrf.mxu0
      %v1591 = vadd.f32 0.0, %v1590
      %1592 = vmatmul.bf16.gmra.mxu0 %v916
      %v1593 = vpop.f32.mrf.mxu0
      %v1594 = vadd.f32 0.0, %v1593
      %v1595 = vpop.f32.mrf.mxu0
      %v1596 = vadd.f32 0.0, %v1595
      %1597 = vmatmul.bf16.gmra.mxu0 %v925
      %v1598 = vpop.f32.mrf.mxu0
      %v1599 = vadd.f32 0.0, %v1598
      %v1600 = vpop.f32.mrf.mxu0
      %v1601 = vadd.f32 0.0, %v1600
      %1602 = vmatmul.bf16.gmra.mxu0 %v934
      %v1603 = vpop.f32.mrf.mxu0
      %v1604 = vadd.f32 0.0, %v1603
      %v1605 = vpop.f32.mrf.mxu0
      %v1606 = vadd.f32 0.0, %v1605
      %1607 = vmatmul.bf16.gmra.mxu0 %v943
      %v1608 = vpop.f32.mrf.mxu0
      %v1609 = vadd.f32 0.0, %v1608
      %v1610 = vpop.f32.mrf.mxu0
      %v1611 = vadd.f32 0.0, %v1610
      %1612 = vmatmul.bf16.gmra.mxu0 %v952
      %v1613 = vpop.f32.mrf.mxu0
      %v1614 = vadd.f32 0.0, %v1613
      %v1615 = vpop.f32.mrf.mxu0
      %v1616 = vadd.f32 0.0, %v1615
      %1617 = vmatmul.bf16.gmra.mxu0 %v961
      %v1618 = vpop.f32.mrf.mxu0
      %v1619 = vadd.f32 0.0, %v1618
      %v1620 = vpop.f32.mrf.mxu0
      %v1621 = vadd.f32 0.0, %v1620
      %1622 = vmatmul.bf16.gmra.mxu0 %v970
      %v1623 = vpop.f32.mrf.mxu0
      %v1624 = vadd.f32 0.0, %v1623
      %v1625 = vpop.f32.mrf.mxu0
      %v1626 = vadd.f32 0.0, %v1625
      %1627 = vmatmul.bf16.gmra.mxu0 %v979
      %v1628 = vpop.f32.mrf.mxu0
      %v1629 = vadd.f32 0.0, %v1628
      %v1630 = vpop.f32.mrf.mxu0
      %v1631 = vadd.f32 0.0, %v1630
      %1632 = vmatmul.bf16.gmra.mxu0 %v988
      %v1633 = vpop.f32.mrf.mxu0
      %v1634 = vadd.f32 0.0, %v1633
      %v1635 = vpop.f32.mrf.mxu0
      %v1636 = vadd.f32 0.0, %v1635
      %1637 = vmatmul.bf16.gmra.mxu0 %v997
      %v1638 = vpop.f32.mrf.mxu0
      %v1639 = vadd.f32 0.0, %v1638
      %v1640 = vpop.f32.mrf.mxu0
      %v1641 = vadd.f32 0.0, %v1640
      %1642 = vdwg.mxu0
      %1643 = vmatpush.bf16.msra.mxu0 %v1435
      %1644 = vmatpush.bf16.msra.mxu0 %v1434
      %1645 = vmatpush.bf16.msra.mxu0 %v1433
      %1646 = vmatpush.bf16.msra.mxu0 %v1432
      %1647 = vmatpush.bf16.msra.mxu0 %v1431
      %1648 = vmatpush.bf16.msra.mxu0 %v1430
      %1649 = vmatpush.bf16.msra.mxu0 %v1429
      %1650 = vmatpush.bf16.msra.mxu0 %v1428
      %1651 = vmatmul.bf16.gmra.mxu0 %v881
      %v1652 = vpop.f32.mrf.mxu0
      %v1653 = vadd.f32 %v1574, %v1652
      %v1654 = vpop.f32.mrf.mxu0
      %v1655 = vadd.f32 %v1576, %v1654
      %1656 = vmatmul.bf16.gmra.mxu0 %v890
      %v1657 = vpop.f32.mrf.mxu0
      %v1658 = vadd.f32 %v1579, %v1657
      %v1659 = vpop.f32.mrf.mxu0
      %v1660 = vadd.f32 %v1581, %v1659
      %1661 = vmatmul.bf16.gmra.mxu0 %v899
      %v1662 = vpop.f32.mrf.mxu0
      %v1663 = vadd.f32 %v1584, %v1662
      %v1664 = vpop.f32.mrf.mxu0
      %v1665 = vadd.f32 %v1586, %v1664
      %1666 = vmatmul.bf16.gmra.mxu0 %v908
      %v1667 = vpop.f32.mrf.mxu0
      %v1668 = vadd.f32 %v1589, %v1667
      %v1669 = vpop.f32.mrf.mxu0
      %v1670 = vadd.f32 %v1591, %v1669
      %1671 = vmatmul.bf16.gmra.mxu0 %v917
      %v1672 = vpop.f32.mrf.mxu0
      %v1673 = vadd.f32 %v1594, %v1672
      %v1674 = vpop.f32.mrf.mxu0
      %v1675 = vadd.f32 %v1596, %v1674
      %1676 = vmatmul.bf16.gmra.mxu0 %v926
      %v1677 = vpop.f32.mrf.mxu0
      %v1678 = vadd.f32 %v1599, %v1677
      %v1679 = vpop.f32.mrf.mxu0
      %v1680 = vadd.f32 %v1601, %v1679
      %1681 = vmatmul.bf16.gmra.mxu0 %v935
      %v1682 = vpop.f32.mrf.mxu0
      %v1683 = vadd.f32 %v1604, %v1682
      %v1684 = vpop.f32.mrf.mxu0
      %v1685 = vadd.f32 %v1606, %v1684
      %1686 = vmatmul.bf16.gmra.mxu0 %v944
      %v1687 = vpop.f32.mrf.mxu0
      %v1688 = vadd.f32 %v1609, %v1687
      %v1689 = vpop.f32.mrf.mxu0
      %v1690 = vadd.f32 %v1611, %v1689
      %1691 = vmatmul.bf16.gmra.mxu0 %v953
      %v1692 = vpop.f32.mrf.mxu0
      %v1693 = vadd.f32 %v1614, %v1692
      %v1694 = vpop.f32.mrf.mxu0
      %v1695 = vadd.f32 %v1616, %v1694
      %1696 = vmatmul.bf16.gmra.mxu0 %v962
      %v1697 = vpop.f32.mrf.mxu0
      %v1698 = vadd.f32 %v1619, %v1697
      %v1699 = vpop.f32.mrf.mxu0
      %v1700 = vadd.f32 %v1621, %v1699
      %1701 = vmatmul.bf16.gmra.mxu0 %v971
      %v1702 = vpop.f32.mrf.mxu0
      %v1703 = vadd.f32 %v1624, %v1702
      %v1704 = vpop.f32.mrf.mxu0
      %v1705 = vadd.f32 %v1626, %v1704
      %1706 = vmatmul.bf16.gmra.mxu0 %v980
      %v1707 = vpop.f32.mrf.mxu0
      %v1708 = vadd.f32 %v1629, %v1707
      %v1709 = vpop.f32.mrf.mxu0
      %v1710 = vadd.f32 %v1631, %v1709
      %1711 = vmatmul.bf16.gmra.mxu0 %v989
      %v1712 = vpop.f32.mrf.mxu0
      %v1713 = vadd.f32 %v1634, %v1712
      %v1714 = vpop.f32.mrf.mxu0
      %v1715 = vadd.f32 %v1636, %v1714
      %1716 = vmatmul.bf16.gmra.mxu0 %v998
      %v1717 = vpop.f32.mrf.mxu0
      %v1718 = vadd.f32 %v1639, %v1717
      %v1719 = vpop.f32.mrf.mxu0
      %v1720 = vadd.f32 %v1641, %v1719
      %1721 = vdwg.mxu0
      %1722 = vmatpush.bf16.msra.mxu0 %v1443
      %1723 = vmatpush.bf16.msra.mxu0 %v1442
      %1724 = vmatpush.bf16.msra.mxu0 %v1441
      %1725 = vmatpush.bf16.msra.mxu0 %v1440
      %1726 = vmatpush.bf16.msra.mxu0 %v1439
      %1727 = vmatpush.bf16.msra.mxu0 %v1438
      %1728 = vmatpush.bf16.msra.mxu0 %v1437
      %1729 = vmatpush.bf16.msra.mxu0 %v1436
      %1730 = vmatmul.bf16.gmra.mxu0 %v882
      %v1731 = vpop.f32.mrf.mxu0
      %v1732 = vadd.f32 %v1653, %v1731
      %v1733 = vpop.f32.mrf.mxu0
      %v1734 = vadd.f32 %v1655, %v1733
      %1735 = vmatmul.bf16.gmra.mxu0 %v891
      %v1736 = vpop.f32.mrf.mxu0
      %v1737 = vadd.f32 %v1658, %v1736
      %v1738 = vpop.f32.mrf.mxu0
      %v1739 = vadd.f32 %v1660, %v1738
      %1740 = vmatmul.bf16.gmra.mxu0 %v900
      %v1741 = vpop.f32.mrf.mxu0
      %v1742 = vadd.f32 %v1663, %v1741
      %v1743 = vpop.f32.mrf.mxu0
      %v1744 = vadd.f32 %v1665, %v1743
      %1745 = vmatmul.bf16.gmra.mxu0 %v909
      %v1746 = vpop.f32.mrf.mxu0
      %v1747 = vadd.f32 %v1668, %v1746
      %v1748 = vpop.f32.mrf.mxu0
      %v1749 = vadd.f32 %v1670, %v1748
      %1750 = vmatmul.bf16.gmra.mxu0 %v918
      %v1751 = vpop.f32.mrf.mxu0
      %v1752 = vadd.f32 %v1673, %v1751
      %v1753 = vpop.f32.mrf.mxu0
      %v1754 = vadd.f32 %v1675, %v1753
      %1755 = vmatmul.bf16.gmra.mxu0 %v927
      %v1756 = vpop.f32.mrf.mxu0
      %v1757 = vadd.f32 %v1678, %v1756
      %v1758 = vpop.f32.mrf.mxu0
      %v1759 = vadd.f32 %v1680, %v1758
      %1760 = vmatmul.bf16.gmra.mxu0 %v936
      %v1761 = vpop.f32.mrf.mxu0
      %v1762 = vadd.f32 %v1683, %v1761
      %v1763 = vpop.f32.mrf.mxu0
      %v1764 = vadd.f32 %v1685, %v1763
      %1765 = vmatmul.bf16.gmra.mxu0 %v945
      %v1766 = vpop.f32.mrf.mxu0
      %v1767 = vadd.f32 %v1688, %v1766
      %v1768 = vpop.f32.mrf.mxu0
      %v1769 = vadd.f32 %v1690, %v1768
      %1770 = vmatmul.bf16.gmra.mxu0 %v954
      %v1771 = vpop.f32.mrf.mxu0
      %v1772 = vadd.f32 %v1693, %v1771
      %v1773 = vpop.f32.mrf.mxu0
      %v1774 = vadd.f32 %v1695, %v1773
      %1775 = vmatmul.bf16.gmra.mxu0 %v963
      %v1776 = vpop.f32.mrf.mxu0
      %v1777 = vadd.f32 %v1698, %v1776
      %v1778 = vpop.f32.mrf.mxu0
      %v1779 = vadd.f32 %v1700, %v1778
      %1780 = vmatmul.bf16.gmra.mxu0 %v972
      %v1781 = vpop.f32.mrf.mxu0
      %v1782 = vadd.f32 %v1703, %v1781
      %v1783 = vpop.f32.mrf.mxu0
      %v1784 = vadd.f32 %v1705, %v1783
      %1785 = vmatmul.bf16.gmra.mxu0 %v981
      %v1786 = vpop.f32.mrf.mxu0
      %v1787 = vadd.f32 %v1708, %v1786
      %v1788 = vpop.f32.mrf.mxu0
      %v1789 = vadd.f32 %v1710, %v1788
      %1790 = vmatmul.bf16.gmra.mxu0 %v990
      %v1791 = vpop.f32.mrf.mxu0
      %v1792 = vadd.f32 %v1713, %v1791
      %v1793 = vpop.f32.mrf.mxu0
      %v1794 = vadd.f32 %v1715, %v1793
      %1795 = vmatmul.bf16.gmra.mxu0 %v999
      %v1796 = vpop.f32.mrf.mxu0
      %v1797 = vadd.f32 %v1718, %v1796
      %v1798 = vpop.f32.mrf.mxu0
      %v1799 = vadd.f32 %v1720, %v1798
      %1800 = vdwg.mxu0
      %1801 = vmatpush.bf16.msra.mxu0 %v1451
      %1802 = vmatpush.bf16.msra.mxu0 %v1450
      %1803 = vmatpush.bf16.msra.mxu0 %v1449
      %1804 = vmatpush.bf16.msra.mxu0 %v1448
      %1805 = vmatpush.bf16.msra.mxu0 %v1447
      %1806 = vmatpush.bf16.msra.mxu0 %v1446
      %1807 = vmatpush.bf16.msra.mxu0 %v1445
      %1808 = vmatpush.bf16.msra.mxu0 %v1444
      %1809 = vmatmul.bf16.gmra.mxu0 %v883
      %v1810 = vpop.f32.mrf.mxu0
      %v1811 = vadd.f32 %v1732, %v1810
      %v1812 = vpop.f32.mrf.mxu0
      %v1813 = vadd.f32 %v1734, %v1812
      %1814 = vmatmul.bf16.gmra.mxu0 %v892
      %v1815 = vpop.f32.mrf.mxu0
      %v1816 = vadd.f32 %v1737, %v1815
      %v1817 = vpop.f32.mrf.mxu0
      %v1818 = vadd.f32 %v1739, %v1817
      %1819 = vmatmul.bf16.gmra.mxu0 %v901
      %v1820 = vpop.f32.mrf.mxu0
      %v1821 = vadd.f32 %v1742, %v1820
      %v1822 = vpop.f32.mrf.mxu0
      %v1823 = vadd.f32 %v1744, %v1822
      %1824 = vmatmul.bf16.gmra.mxu0 %v910
      %v1825 = vpop.f32.mrf.mxu0
      %v1826 = vadd.f32 %v1747, %v1825
      %v1827 = vpop.f32.mrf.mxu0
      %v1828 = vadd.f32 %v1749, %v1827
      %1829 = vmatmul.bf16.gmra.mxu0 %v919
      %v1830 = vpop.f32.mrf.mxu0
      %v1831 = vadd.f32 %v1752, %v1830
      %v1832 = vpop.f32.mrf.mxu0
      %v1833 = vadd.f32 %v1754, %v1832
      %1834 = vmatmul.bf16.gmra.mxu0 %v928
      %v1835 = vpop.f32.mrf.mxu0
      %v1836 = vadd.f32 %v1757, %v1835
      %v1837 = vpop.f32.mrf.mxu0
      %v1838 = vadd.f32 %v1759, %v1837
      %1839 = vmatmul.bf16.gmra.mxu0 %v937
      %v1840 = vpop.f32.mrf.mxu0
      %v1841 = vadd.f32 %v1762, %v1840
      %v1842 = vpop.f32.mrf.mxu0
      %v1843 = vadd.f32 %v1764, %v1842
      %1844 = vmatmul.bf16.gmra.mxu0 %v946
      %v1845 = vpop.f32.mrf.mxu0
      %v1846 = vadd.f32 %v1767, %v1845
      %v1847 = vpop.f32.mrf.mxu0
      %v1848 = vadd.f32 %v1769, %v1847
      %1849 = vmatmul.bf16.gmra.mxu0 %v955
      %v1850 = vpop.f32.mrf.mxu0
      %v1851 = vadd.f32 %v1772, %v1850
      %v1852 = vpop.f32.mrf.mxu0
      %v1853 = vadd.f32 %v1774, %v1852
      %1854 = vmatmul.bf16.gmra.mxu0 %v964
      %v1855 = vpop.f32.mrf.mxu0
      %v1856 = vadd.f32 %v1777, %v1855
      %v1857 = vpop.f32.mrf.mxu0
      %v1858 = vadd.f32 %v1779, %v1857
      %1859 = vmatmul.bf16.gmra.mxu0 %v973
      %v1860 = vpop.f32.mrf.mxu0
      %v1861 = vadd.f32 %v1782, %v1860
      %v1862 = vpop.f32.mrf.mxu0
      %v1863 = vadd.f32 %v1784, %v1862
      %1864 = vmatmul.bf16.gmra.mxu0 %v982
      %v1865 = vpop.f32.mrf.mxu0
      %v1866 = vadd.f32 %v1787, %v1865
      %v1867 = vpop.f32.mrf.mxu0
      %v1868 = vadd.f32 %v1789, %v1867
      %1869 = vmatmul.bf16.gmra.mxu0 %v991
      %v1870 = vpop.f32.mrf.mxu0
      %v1871 = vadd.f32 %v1792, %v1870
      %v1872 = vpop.f32.mrf.mxu0
      %v1873 = vadd.f32 %v1794, %v1872
      %1874 = vmatmul.bf16.gmra.mxu0 %v1000
      %v1875 = vpop.f32.mrf.mxu0
      %v1876 = vadd.f32 %v1797, %v1875
      %v1877 = vpop.f32.mrf.mxu0
      %v1878 = vadd.f32 %v1799, %v1877
      %1879 = vdwg.mxu0
      %1880 = vmatpush.bf16.msra.mxu0 %v1459
      %1881 = vmatpush.bf16.msra.mxu0 %v1458
      %1882 = vmatpush.bf16.msra.mxu0 %v1457
      %1883 = vmatpush.bf16.msra.mxu0 %v1456
      %1884 = vmatpush.bf16.msra.mxu0 %v1455
      %1885 = vmatpush.bf16.msra.mxu0 %v1454
      %1886 = vmatpush.bf16.msra.mxu0 %v1453
      %1887 = vmatpush.bf16.msra.mxu0 %v1452
      %1888 = vmatmul.bf16.gmra.mxu0 %v884
      %v1889 = vpop.f32.mrf.mxu0
      %v1890 = vadd.f32 %v1811, %v1889
      %v1891 = vpop.f32.mrf.mxu0
      %v1892 = vadd.f32 %v1813, %v1891
      %1893 = vmatmul.bf16.gmra.mxu0 %v893
      %v1894 = vpop.f32.mrf.mxu0
      %v1895 = vadd.f32 %v1816, %v1894
      %v1896 = vpop.f32.mrf.mxu0
      %v1897 = vadd.f32 %v1818, %v1896
      %1898 = vmatmul.bf16.gmra.mxu0 %v902
      %v1899 = vpop.f32.mrf.mxu0
      %v1900 = vadd.f32 %v1821, %v1899
      %v1901 = vpop.f32.mrf.mxu0
      %v1902 = vadd.f32 %v1823, %v1901
      %1903 = vmatmul.bf16.gmra.mxu0 %v911
      %v1904 = vpop.f32.mrf.mxu0
      %v1905 = vadd.f32 %v1826, %v1904
      %v1906 = vpop.f32.mrf.mxu0
      %v1907 = vadd.f32 %v1828, %v1906
      %1908 = vmatmul.bf16.gmra.mxu0 %v920
      %v1909 = vpop.f32.mrf.mxu0
      %v1910 = vadd.f32 %v1831, %v1909
      %v1911 = vpop.f32.mrf.mxu0
      %v1912 = vadd.f32 %v1833, %v1911
      %1913 = vmatmul.bf16.gmra.mxu0 %v929
      %v1914 = vpop.f32.mrf.mxu0
      %v1915 = vadd.f32 %v1836, %v1914
      %v1916 = vpop.f32.mrf.mxu0
      %v1917 = vadd.f32 %v1838, %v1916
      %1918 = vmatmul.bf16.gmra.mxu0 %v938
      %v1919 = vpop.f32.mrf.mxu0
      %v1920 = vadd.f32 %v1841, %v1919
      %v1921 = vpop.f32.mrf.mxu0
      %v1922 = vadd.f32 %v1843, %v1921
      %1923 = vmatmul.bf16.gmra.mxu0 %v947
      %v1924 = vpop.f32.mrf.mxu0
      %v1925 = vadd.f32 %v1846, %v1924
      %v1926 = vpop.f32.mrf.mxu0
      %v1927 = vadd.f32 %v1848, %v1926
      %1928 = vmatmul.bf16.gmra.mxu0 %v956
      %v1929 = vpop.f32.mrf.mxu0
      %v1930 = vadd.f32 %v1851, %v1929
      %v1931 = vpop.f32.mrf.mxu0
      %v1932 = vadd.f32 %v1853, %v1931
      %1933 = vmatmul.bf16.gmra.mxu0 %v965
      %v1934 = vpop.f32.mrf.mxu0
      %v1935 = vadd.f32 %v1856, %v1934
      %v1936 = vpop.f32.mrf.mxu0
      %v1937 = vadd.f32 %v1858, %v1936
      %1938 = vmatmul.bf16.gmra.mxu0 %v974
      %v1939 = vpop.f32.mrf.mxu0
      %v1940 = vadd.f32 %v1861, %v1939
      %v1941 = vpop.f32.mrf.mxu0
      %v1942 = vadd.f32 %v1863, %v1941
      %1943 = vmatmul.bf16.gmra.mxu0 %v983
      %v1944 = vpop.f32.mrf.mxu0
      %v1945 = vadd.f32 %v1866, %v1944
      %v1946 = vpop.f32.mrf.mxu0
      %v1947 = vadd.f32 %v1868, %v1946
      %1948 = vmatmul.bf16.gmra.mxu0 %v992
      %v1949 = vpop.f32.mrf.mxu0
      %v1950 = vadd.f32 %v1871, %v1949
      %v1951 = vpop.f32.mrf.mxu0
      %v1952 = vadd.f32 %v1873, %v1951
      %1953 = vmatmul.bf16.gmra.mxu0 %v1001
      %v1954 = vpop.f32.mrf.mxu0
      %v1955 = vadd.f32 %v1876, %v1954
      %v1956 = vpop.f32.mrf.mxu0
      %v1957 = vadd.f32 %v1878, %v1956
      %1958 = vdwg.mxu0
      %1959 = vmatpush.bf16.msra.mxu0 %v1467
      %1960 = vmatpush.bf16.msra.mxu0 %v1466
      %1961 = vmatpush.bf16.msra.mxu0 %v1465
      %1962 = vmatpush.bf16.msra.mxu0 %v1464
      %1963 = vmatpush.bf16.msra.mxu0 %v1463
      %1964 = vmatpush.bf16.msra.mxu0 %v1462
      %1965 = vmatpush.bf16.msra.mxu0 %v1461
      %1966 = vmatpush.bf16.msra.mxu0 %v1460
      %1967 = vmatmul.bf16.gmra.mxu0 %v885
      %v1968 = vpop.f32.mrf.mxu0
      %v1969 = vadd.f32 %v1890, %v1968
      %v1970 = vpop.f32.mrf.mxu0
      %v1971 = vadd.f32 %v1892, %v1970
      %1972 = vmatmul.bf16.gmra.mxu0 %v894
      %v1973 = vpop.f32.mrf.mxu0
      %v1974 = vadd.f32 %v1895, %v1973
      %v1975 = vpop.f32.mrf.mxu0
      %v1976 = vadd.f32 %v1897, %v1975
      %1977 = vmatmul.bf16.gmra.mxu0 %v903
      %v1978 = vpop.f32.mrf.mxu0
      %v1979 = vadd.f32 %v1900, %v1978
      %v1980 = vpop.f32.mrf.mxu0
      %v1981 = vadd.f32 %v1902, %v1980
      %1982 = vmatmul.bf16.gmra.mxu0 %v912
      %v1983 = vpop.f32.mrf.mxu0
      %v1984 = vadd.f32 %v1905, %v1983
      %v1985 = vpop.f32.mrf.mxu0
      %v1986 = vadd.f32 %v1907, %v1985
      %1987 = vmatmul.bf16.gmra.mxu0 %v921
      %v1988 = vpop.f32.mrf.mxu0
      %v1989 = vadd.f32 %v1910, %v1988
      %v1990 = vpop.f32.mrf.mxu0
      %v1991 = vadd.f32 %v1912, %v1990
      %1992 = vmatmul.bf16.gmra.mxu0 %v930
      %v1993 = vpop.f32.mrf.mxu0
      %v1994 = vadd.f32 %v1915, %v1993
      %v1995 = vpop.f32.mrf.mxu0
      %v1996 = vadd.f32 %v1917, %v1995
      %1997 = vmatmul.bf16.gmra.mxu0 %v939
      %v1998 = vpop.f32.mrf.mxu0
      %v1999 = vadd.f32 %v1920, %v1998
      %v2000 = vpop.f32.mrf.mxu0
      %v2001 = vadd.f32 %v1922, %v2000
      %2002 = vmatmul.bf16.gmra.mxu0 %v948
      %v2003 = vpop.f32.mrf.mxu0
      %v2004 = vadd.f32 %v1925, %v2003
      %v2005 = vpop.f32.mrf.mxu0
      %v2006 = vadd.f32 %v1927, %v2005
      %2007 = vmatmul.bf16.gmra.mxu0 %v957
      %v2008 = vpop.f32.mrf.mxu0
      %v2009 = vadd.f32 %v1930, %v2008
      %v2010 = vpop.f32.mrf.mxu0
      %v2011 = vadd.f32 %v1932, %v2010
      %2012 = vmatmul.bf16.gmra.mxu0 %v966
      %v2013 = vpop.f32.mrf.mxu0
      %v2014 = vadd.f32 %v1935, %v2013
      %v2015 = vpop.f32.mrf.mxu0
      %v2016 = vadd.f32 %v1937, %v2015
      %2017 = vmatmul.bf16.gmra.mxu0 %v975
      %v2018 = vpop.f32.mrf.mxu0
      %v2019 = vadd.f32 %v1940, %v2018
      %v2020 = vpop.f32.mrf.mxu0
      %v2021 = vadd.f32 %v1942, %v2020
      %2022 = vmatmul.bf16.gmra.mxu0 %v984
      %v2023 = vpop.f32.mrf.mxu0
      %v2024 = vadd.f32 %v1945, %v2023
      %v2025 = vpop.f32.mrf.mxu0
      %v2026 = vadd.f32 %v1947, %v2025
      %2027 = vmatmul.bf16.gmra.mxu0 %v993
      %v2028 = vpop.f32.mrf.mxu0
      %v2029 = vadd.f32 %v1950, %v2028
      %v2030 = vpop.f32.mrf.mxu0
      %v2031 = vadd.f32 %v1952, %v2030
      %2032 = vmatmul.bf16.gmra.mxu0 %v1002
      %v2033 = vpop.f32.mrf.mxu0
      %v2034 = vadd.f32 %v1955, %v2033
      %v2035 = vpop.f32.mrf.mxu0
      %v2036 = vadd.f32 %v1957, %v2035
      %2037 = vdwg.mxu0
      %2038 = vmatpush.bf16.msra.mxu0 %v1475
      %2039 = vmatpush.bf16.msra.mxu0 %v1474
      %2040 = vmatpush.bf16.msra.mxu0 %v1473
      %2041 = vmatpush.bf16.msra.mxu0 %v1472
      %2042 = vmatpush.bf16.msra.mxu0 %v1471
      %2043 = vmatpush.bf16.msra.mxu0 %v1470
      %2044 = vmatpush.bf16.msra.mxu0 %v1469
      %2045 = vmatpush.bf16.msra.mxu0 %v1468
      %2046 = vmatmul.bf16.gmra.mxu0 %v886
      %v2047 = vpop.f32.mrf.mxu0
      %v2048 = vadd.f32 %v1969, %v2047
      %v2049 = vpop.f32.mrf.mxu0
      %v2050 = vadd.f32 %v1971, %v2049
      %2051 = vmatmul.bf16.gmra.mxu0 %v895
      %v2052 = vpop.f32.mrf.mxu0
      %v2053 = vadd.f32 %v1974, %v2052
      %v2054 = vpop.f32.mrf.mxu0
      %v2055 = vadd.f32 %v1976, %v2054
      %2056 = vmatmul.bf16.gmra.mxu0 %v904
      %v2057 = vpop.f32.mrf.mxu0
      %v2058 = vadd.f32 %v1979, %v2057
      %v2059 = vpop.f32.mrf.mxu0
      %v2060 = vadd.f32 %v1981, %v2059
      %2061 = vmatmul.bf16.gmra.mxu0 %v913
      %v2062 = vpop.f32.mrf.mxu0
      %v2063 = vadd.f32 %v1984, %v2062
      %v2064 = vpop.f32.mrf.mxu0
      %v2065 = vadd.f32 %v1986, %v2064
      %2066 = vmatmul.bf16.gmra.mxu0 %v922
      %v2067 = vpop.f32.mrf.mxu0
      %v2068 = vadd.f32 %v1989, %v2067
      %v2069 = vpop.f32.mrf.mxu0
      %v2070 = vadd.f32 %v1991, %v2069
      %2071 = vmatmul.bf16.gmra.mxu0 %v931
      %v2072 = vpop.f32.mrf.mxu0
      %v2073 = vadd.f32 %v1994, %v2072
      %v2074 = vpop.f32.mrf.mxu0
      %v2075 = vadd.f32 %v1996, %v2074
      %2076 = vmatmul.bf16.gmra.mxu0 %v940
      %v2077 = vpop.f32.mrf.mxu0
      %v2078 = vadd.f32 %v1999, %v2077
      %v2079 = vpop.f32.mrf.mxu0
      %v2080 = vadd.f32 %v2001, %v2079
      %2081 = vmatmul.bf16.gmra.mxu0 %v949
      %v2082 = vpop.f32.mrf.mxu0
      %v2083 = vadd.f32 %v2004, %v2082
      %v2084 = vpop.f32.mrf.mxu0
      %v2085 = vadd.f32 %v2006, %v2084
      %2086 = vmatmul.bf16.gmra.mxu0 %v958
      %v2087 = vpop.f32.mrf.mxu0
      %v2088 = vadd.f32 %v2009, %v2087
      %v2089 = vpop.f32.mrf.mxu0
      %v2090 = vadd.f32 %v2011, %v2089
      %2091 = vmatmul.bf16.gmra.mxu0 %v967
      %v2092 = vpop.f32.mrf.mxu0
      %v2093 = vadd.f32 %v2014, %v2092
      %v2094 = vpop.f32.mrf.mxu0
      %v2095 = vadd.f32 %v2016, %v2094
      %2096 = vmatmul.bf16.gmra.mxu0 %v976
      %v2097 = vpop.f32.mrf.mxu0
      %v2098 = vadd.f32 %v2019, %v2097
      %v2099 = vpop.f32.mrf.mxu0
      %v2100 = vadd.f32 %v2021, %v2099
      %2101 = vmatmul.bf16.gmra.mxu0 %v985
      %v2102 = vpop.f32.mrf.mxu0
      %v2103 = vadd.f32 %v2024, %v2102
      %v2104 = vpop.f32.mrf.mxu0
      %v2105 = vadd.f32 %v2026, %v2104
      %2106 = vmatmul.bf16.gmra.mxu0 %v994
      %v2107 = vpop.f32.mrf.mxu0
      %v2108 = vadd.f32 %v2029, %v2107
      %v2109 = vpop.f32.mrf.mxu0
      %v2110 = vadd.f32 %v2031, %v2109
      %2111 = vmatmul.bf16.gmra.mxu0 %v1003
      %v2112 = vpop.f32.mrf.mxu0
      %v2113 = vadd.f32 %v2034, %v2112
      %v2114 = vpop.f32.mrf.mxu0
      %v2115 = vadd.f32 %v2036, %v2114
      %2116 = vdwg.mxu0
      %2117 = vmatpush.bf16.msra.mxu0 %v1483
      %2118 = vmatpush.bf16.msra.mxu0 %v1482
      %2119 = vmatpush.bf16.msra.mxu0 %v1481
      %2120 = vmatpush.bf16.msra.mxu0 %v1480
      %2121 = vmatpush.bf16.msra.mxu0 %v1479
      %2122 = vmatpush.bf16.msra.mxu0 %v1478
      %2123 = vmatpush.bf16.msra.mxu0 %v1477
      %2124 = vmatpush.bf16.msra.mxu0 %v1476
      %2125 = vmatmul.bf16.gmra.mxu0 %v887
      %v2126 = vpop.f32.mrf.mxu0
      %v2127 = vadd.f32 %v2048, %v2126
      %v2128 = vpop.f32.mrf.mxu0
      %v2129 = vadd.f32 %v2050, %v2128
      %2130 = vmatmul.bf16.gmra.mxu0 %v896
      %v2131 = vpop.f32.mrf.mxu0
      %v2132 = vadd.f32 %v2053, %v2131
      %v2133 = vpop.f32.mrf.mxu0
      %v2134 = vadd.f32 %v2055, %v2133
      %2135 = vmatmul.bf16.gmra.mxu0 %v905
      %v2136 = vpop.f32.mrf.mxu0
      %v2137 = vadd.f32 %v2058, %v2136
      %v2138 = vpop.f32.mrf.mxu0
      %v2139 = vadd.f32 %v2060, %v2138
      %2140 = vmatmul.bf16.gmra.mxu0 %v914
      %v2141 = vpop.f32.mrf.mxu0
      %v2142 = vadd.f32 %v2063, %v2141
      %v2143 = vpop.f32.mrf.mxu0
      %v2144 = vadd.f32 %v2065, %v2143
      %2145 = vmatmul.bf16.gmra.mxu0 %v923
      %v2146 = vpop.f32.mrf.mxu0
      %v2147 = vadd.f32 %v2068, %v2146
      %v2148 = vpop.f32.mrf.mxu0
      %v2149 = vadd.f32 %v2070, %v2148
      %2150 = vmatmul.bf16.gmra.mxu0 %v932
      %v2151 = vpop.f32.mrf.mxu0
      %v2152 = vadd.f32 %v2073, %v2151
      %v2153 = vpop.f32.mrf.mxu0
      %v2154 = vadd.f32 %v2075, %v2153
      %2155 = vmatmul.bf16.gmra.mxu0 %v941
      %v2156 = vpop.f32.mrf.mxu0
      %v2157 = vadd.f32 %v2078, %v2156
      %v2158 = vpop.f32.mrf.mxu0
      %v2159 = vadd.f32 %v2080, %v2158
      %2160 = vmatmul.bf16.gmra.mxu0 %v950
      %v2161 = vpop.f32.mrf.mxu0
      %v2162 = vadd.f32 %v2083, %v2161
      %v2163 = vpop.f32.mrf.mxu0
      %v2164 = vadd.f32 %v2085, %v2163
      %2165 = vmatmul.bf16.gmra.mxu0 %v959
      %v2166 = vpop.f32.mrf.mxu0
      %v2167 = vadd.f32 %v2088, %v2166
      %v2168 = vpop.f32.mrf.mxu0
      %v2169 = vadd.f32 %v2090, %v2168
      %2170 = vmatmul.bf16.gmra.mxu0 %v968
      %v2171 = vpop.f32.mrf.mxu0
      %v2172 = vadd.f32 %v2093, %v2171
      %v2173 = vpop.f32.mrf.mxu0
      %v2174 = vadd.f32 %v2095, %v2173
      %2175 = vmatmul.bf16.gmra.mxu0 %v977
      %v2176 = vpop.f32.mrf.mxu0
      %v2177 = vadd.f32 %v2098, %v2176
      %v2178 = vpop.f32.mrf.mxu0
      %v2179 = vadd.f32 %v2100, %v2178
      %2180 = vmatmul.bf16.gmra.mxu0 %v986
      %v2181 = vpop.f32.mrf.mxu0
      %v2182 = vadd.f32 %v2103, %v2181
      %v2183 = vpop.f32.mrf.mxu0
      %v2184 = vadd.f32 %v2105, %v2183
      %2185 = vmatmul.bf16.gmra.mxu0 %v995
      %v2186 = vpop.f32.mrf.mxu0
      %v2187 = vadd.f32 %v2108, %v2186
      %v2188 = vpop.f32.mrf.mxu0
      %v2189 = vadd.f32 %v2110, %v2188
      %2190 = vmatmul.bf16.gmra.mxu0 %v1004
      %v2191 = vpop.f32.mrf.mxu0
      %v2192 = vadd.f32 %v2113, %v2191
      %v2193 = vpop.f32.mrf.mxu0
      %v2194 = vadd.f32 %v2115, %v2193
      %2195 = vdwg.mxu0
      %2196 = vmatpush.bf16.msra.mxu0 %v1491
      %2197 = vmatpush.bf16.msra.mxu0 %v1490
      %2198 = vmatpush.bf16.msra.mxu0 %v1489
      %2199 = vmatpush.bf16.msra.mxu0 %v1488
      %2200 = vmatpush.bf16.msra.mxu0 %v1487
      %2201 = vmatpush.bf16.msra.mxu0 %v1486
      %2202 = vmatpush.bf16.msra.mxu0 %v1485
      %2203 = vmatpush.bf16.msra.mxu0 %v1484
      %2204 = vmatmul.bf16.gmra.mxu0 %v888
      %v2205 = vpop.f32.mrf.mxu0
      %v2206 = vadd.f32 %v2127, %v2205
      %v2207 = vpop.f32.mrf.mxu0
      %v2208 = vadd.f32 %v2129, %v2207
      %2209 = vmatmul.bf16.gmra.mxu0 %v897
      %v2210 = vpop.f32.mrf.mxu0
      %v2211 = vadd.f32 %v2132, %v2210
      %v2212 = vpop.f32.mrf.mxu0
      %v2213 = vadd.f32 %v2134, %v2212
      %2214 = vmatmul.bf16.gmra.mxu0 %v906
      %v2215 = vpop.f32.mrf.mxu0
      %v2216 = vadd.f32 %v2137, %v2215
      %v2217 = vpop.f32.mrf.mxu0
      %v2218 = vadd.f32 %v2139, %v2217
      %2219 = vmatmul.bf16.gmra.mxu0 %v915
      %v2220 = vpop.f32.mrf.mxu0
      %v2221 = vadd.f32 %v2142, %v2220
      %v2222 = vpop.f32.mrf.mxu0
      %v2223 = vadd.f32 %v2144, %v2222
      %2224 = vmatmul.bf16.gmra.mxu0 %v924
      %v2225 = vpop.f32.mrf.mxu0
      %v2226 = vadd.f32 %v2147, %v2225
      %v2227 = vpop.f32.mrf.mxu0
      %v2228 = vadd.f32 %v2149, %v2227
      %2229 = vmatmul.bf16.gmra.mxu0 %v933
      %v2230 = vpop.f32.mrf.mxu0
      %v2231 = vadd.f32 %v2152, %v2230
      %v2232 = vpop.f32.mrf.mxu0
      %v2233 = vadd.f32 %v2154, %v2232
      %2234 = vmatmul.bf16.gmra.mxu0 %v942
      %v2235 = vpop.f32.mrf.mxu0
      %v2236 = vadd.f32 %v2157, %v2235
      %v2237 = vpop.f32.mrf.mxu0
      %v2238 = vadd.f32 %v2159, %v2237
      %2239 = vmatmul.bf16.gmra.mxu0 %v951
      %v2240 = vpop.f32.mrf.mxu0
      %v2241 = vadd.f32 %v2162, %v2240
      %v2242 = vpop.f32.mrf.mxu0
      %v2243 = vadd.f32 %v2164, %v2242
      %2244 = vmatmul.bf16.gmra.mxu0 %v960
      %v2245 = vpop.f32.mrf.mxu0
      %v2246 = vadd.f32 %v2167, %v2245
      %v2247 = vpop.f32.mrf.mxu0
      %v2248 = vadd.f32 %v2169, %v2247
      %2249 = vmatmul.bf16.gmra.mxu0 %v969
      %v2250 = vpop.f32.mrf.mxu0
      %v2251 = vadd.f32 %v2172, %v2250
      %v2252 = vpop.f32.mrf.mxu0
      %v2253 = vadd.f32 %v2174, %v2252
      %2254 = vmatmul.bf16.gmra.mxu0 %v978
      %v2255 = vpop.f32.mrf.mxu0
      %v2256 = vadd.f32 %v2177, %v2255
      %v2257 = vpop.f32.mrf.mxu0
      %v2258 = vadd.f32 %v2179, %v2257
      %2259 = vmatmul.bf16.gmra.mxu0 %v987
      %v2260 = vpop.f32.mrf.mxu0
      %v2261 = vadd.f32 %v2182, %v2260
      %v2262 = vpop.f32.mrf.mxu0
      %v2263 = vadd.f32 %v2184, %v2262
      %2264 = vmatmul.bf16.gmra.mxu0 %v996
      %v2265 = vpop.f32.mrf.mxu0
      %v2266 = vadd.f32 %v2187, %v2265
      %v2267 = vpop.f32.mrf.mxu0
      %v2268 = vadd.f32 %v2189, %v2267
      %2269 = vmatmul.bf16.gmra.mxu0 %v1005
      %v2270 = vpop.f32.mrf.mxu0
      %v2271 = vadd.f32 %v2192, %v2270
      %v2272 = vpop.f32.mrf.mxu0
      %v2273 = vadd.f32 %v2194, %v2272
      %2274 = vdwg.mxu0
      %v2275 = vld [vmem:[%s2] sm:$0x1]
      %v2277 = vperm.slane %v2275, 0
      %v2279 = vmul.f32 %v2206, %v2277
      %v2280 = vmul.f32 %v2208, %v2277
      %v2281 = vmul.f32 %v2211, %v2277
      %v2282 = vmul.f32 %v2213, %v2277
      %v2283 = vmul.f32 %v2216, %v2277
      %v2284 = vmul.f32 %v2218, %v2277
      %v2285 = vmul.f32 %v2221, %v2277
      %v2286 = vmul.f32 %v2223, %v2277
      %v2287 = vmul.f32 %v2226, %v2277
      %v2288 = vmul.f32 %v2228, %v2277
      %v2289 = vmul.f32 %v2231, %v2277
      %v2290 = vmul.f32 %v2233, %v2277
      %v2291 = vmul.f32 %v2236, %v2277
      %v2292 = vmul.f32 %v2238, %v2277
      %v2293 = vmul.f32 %v2241, %v2277
      %v2294 = vmul.f32 %v2243, %v2277
      %v2295 = vmul.f32 %v2246, %v2277
      %v2296 = vmul.f32 %v2248, %v2277
      %v2297 = vmul.f32 %v2251, %v2277
      %v2298 = vmul.f32 %v2253, %v2277
      %v2299 = vmul.f32 %v2256, %v2277
      %v2300 = vmul.f32 %v2258, %v2277
      %v2301 = vmul.f32 %v2261, %v2277
      %v2302 = vmul.f32 %v2263, %v2277
      %v2303 = vmul.f32 %v2266, %v2277
      %v2304 = vmul.f32 %v2268, %v2277
      %v2305 = vmul.f32 %v2271, %v2277
      %v2306 = vmul.f32 %v2273, %v2277
      %v2307 = vld [vmem:[%s3] sm:$0x1]
      %v2309 = vperm.slane %v2307, 0
      %v2311 = vadd.f32 %v2279, %v2309
      %v2312 = vadd.f32 %v2280, %v2309
      %v2313 = vadd.f32 %v2281, %v2309
      %v2314 = vadd.f32 %v2282, %v2309
      %v2315 = vadd.f32 %v2283, %v2309
      %v2316 = vadd.f32 %v2284, %v2309
      %v2317 = vadd.f32 %v2285, %v2309
      %v2318 = vadd.f32 %v2286, %v2309
      %v2319 = vadd.f32 %v2287, %v2309
      %v2320 = vadd.f32 %v2288, %v2309
      %v2321 = vadd.f32 %v2289, %v2309
      %v2322 = vadd.f32 %v2290, %v2309
      %v2323 = vadd.f32 %v2291, %v2309
      %v2324 = vadd.f32 %v2292, %v2309
      %v2325 = vadd.f32 %v2293, %v2309
      %v2326 = vadd.f32 %v2294, %v2309
      %v2327 = vadd.f32 %v2295, %v2309
      %v2328 = vadd.f32 %v2296, %v2309
      %v2329 = vadd.f32 %v2297, %v2309
      %v2330 = vadd.f32 %v2298, %v2309
      %v2331 = vadd.f32 %v2299, %v2309
      %v2332 = vadd.f32 %v2300, %v2309
      %v2333 = vadd.f32 %v2301, %v2309
      %v2334 = vadd.f32 %v2302, %v2309
      %v2335 = vadd.f32 %v2303, %v2309
      %v2336 = vadd.f32 %v2304, %v2309
      %v2337 = vadd.f32 %v2305, %v2309
      %v2338 = vadd.f32 %v2306, %v2309
      %v2339 = vmax.f32 %v2311, %v2318
      %v2340 = vmax.f32 %v2312, %v2319
      %v2341 = vmax.f32 %v2313, %v2320
      %v2342 = vmax.f32 %v2314, %v2321
      %v2343 = vmax.f32 %v2315, %v2322
      %v2344 = vmax.f32 %v2316, %v2323
      %v2345 = vmax.f32 %v2317, %v2324
      %v2346 = vmax.f32 %v2325, %v2332
      %v2347 = vmax.f32 %v2326, %v2333
      %v2348 = vmax.f32 %v2327, %v2334
      %v2349 = vmax.f32 %v2328, %v2335
      %v2350 = vmax.f32 %v2329, %v2336
      %v2351 = vmax.f32 %v2330, %v2337
      %v2352 = vmax.f32 %v2331, %v2338
      %v2353 = vmax.f32 %v2339, %v2346
      %v2354 = vmax.f32 %v2340, %v2347
      %v2355 = vmax.f32 %v2341, %v2348
      %v2356 = vmax.f32 %v2342, %v2349
      %v2357 = vmax.f32 %v2343, %v2350
      %v2358 = vmax.f32 %v2344, %v2351
      %v2359 = vmax.f32 %v2345, %v2352
      %v2360 = vmax.f32 %v2353, 0.0
      %v2361 = vmax.f32 %v2354, 0.0
      %v2362 = vmax.f32 %v2355, 0.0
      %v2363 = vmax.f32 %v2356, 0.0
      %v2364 = vmax.f32 %v2357, 0.0
      %v2365 = vmax.f32 %v2358, 0.0
      %v2366 = vmax.f32 %v2359, 0.0
      %v2367 = vpack.c.bf16 %v2360, %v2360
      %v2368 = vpack.c.bf16 %v2361, %v2361
      %v2369 = vpack.c.bf16 %v2362, %v2362
      %v2370 = vpack.c.bf16 %v2363, %v2363
      %v2371 = vpack.c.bf16 %v2364, %v2364
      %v2372 = vpack.c.bf16 %v2365, %v2365
      %v2373 = vpack.c.bf16 %v2366, %v2366
      %2374 = vst [vmem:[%s202] sm:$0xf] %v2367
      %2375 = vst [vmem:[%s202 + $0x4] sm:$0xf] %v2368
      %2376 = vst [vmem:[%s202 + $0x8] sm:$0xf] %v2369
      %2377 = vst [vmem:[%s202 + $0xc] sm:$0xf] %v2370
      %2378 = vst [vmem:[%s202 + $0x10] sm:$0xf] %v2371
      %2379 = vst [vmem:[%s202 + $0x14] sm:$0xf] %v2372
      %2380 = vst [vmem:[%s202 + $0x18] sm:$0xf] %v2373
      %s2381 = smul.u32 7, %s15
      %p2382 = scmp.lt.s32.totalorder %s2381, 13
      %s2383 = scalar_select %p2382, %s2381, 13
      %s2384 = smul.addr %s2383, 4
      %s2385 = scalar_lea.vmem %s4, %s2384
      // Predicated region
      $region37: #{cnn_forward.4} parent=35 // pred_check
        %p2386 = pneg %p122
      $region38: #{cnn_forward.4} parent=35 // pred_check_branch
        %2388 = sbr.rel (%p2386) target = $region40
      $region39: #{cnn_forward.4} parent=35 // pred_region
        %s2389 = smul.u32 7, %s15
      $region40: #{cnn_forward.4} parent=35 // pred_fallthru
        _
    $region36: #{cnn_forward.4} parent=5 // pred_fallthru
      _
    %p2390 = scmp.le.s32.totalorder 2, %s10
    // Predicated region
    $region41: #{cnn_forward.4} parent=5 // pred_check
      %p2391 = pneg %p2390
    $region42: #{cnn_forward.4} parent=5 // pred_check_branch
      %2393 = sbr.rel (%p2391) target = $region44
    $region43: #{cnn_forward.4} parent=5 // pred_region
      %s2394 = ssub.s32 %s10, 2
      // Predicated region
      $region45: #{cnn_forward.4} parent=43 // pred_check
        %p2395 = pneg %p128
      $region46: #{cnn_forward.4} parent=43 // pred_check_branch
        %2397 = sbr.rel (%p2395) target = $region48
      $region47: #{cnn_forward.4} parent=43 // pred_region
        %s2398 = smul.u32 7, %s16
        %p2399 = scmp.lt.s32.totalorder %s2398, 13
        %s2400 = scalar_select %p2399, %s2398, 13
        %s2401 = smul.addr %s2400, 4
        %s2402 = scalar_lea.vmem %s4, %s2401
      $region48: #{cnn_forward.4} parent=43 // pred_fallthru
        _
    $region44: #{cnn_forward.4} parent=5 // pred_fallthru
      _
  $region6: #{cnn_forward.4} parent=0 // loop_footer
    %s14 = sadd.s32 1, %s10
  $region7: #{cnn_forward.4} parent=0 // loop_footer_branch
    %9 = sbr.rel target = $region3
  $region8: #{cnn_forward.4} parent=0 // loop_exit
    _

// kernel: cnn_forward.5
$region0: #{cnn_forward.5}
  #allocation0 [shape = 'u32[]', space=smem, size = 0x4, offset = 0x4, fixed_abs, tag = 'smem constant byte address 0x4 - core index']
  #allocation1 [shape = 'u32[72,128]{1,0:T(1,128)}', space=vmem, size = 0x9000, scoped, tag = 'internal scratch']
  %s0 = inlined_call_operand.vmem [shape: bf16[9,32,1152], index: 0, kind: input, shape index: {}]
  %s1 = inlined_call_operand.vmem [shape: bf16[1152,256], index: 1, kind: input, shape index: {}]
  %s2 = inlined_call_operand.vmem [shape: f32[1,256], index: 2, kind: input, shape index: {}]
  %s3 = inlined_call_operand.vmem [shape: f32[1,256], index: 3, kind: input, shape index: {}]
  %s4 = inlined_call_operand.vmem [shape: bf16[9,256,256], index: 4, kind: input, shape index: {}]
  %s5 = inlined_call_operand.vmem [shape: f32[1,256], index: 5, kind: input, shape index: {}]
  %s6 = inlined_call_operand.vmem [shape: bf16[256,128], index: 6, kind: input, shape index: {}]
  %s7 = inlined_call_operand.vmem [shape: f32[1,128], index: 7, kind: input, shape index: {}]
  %s8 = inlined_call_operand.vmem [shape: f32[8,128], index: 8, kind: output, shape index: {}]
  %s9 = sld [smem:[#allocation0]]
  $region42: #{cnn_forward.5} parent=0
    _
  %s11 = ssub.s32 1, %s9
  %s12 = scalar_select 0, %s11, %s9
  // Predicated region
  $region2: #{cnn_forward.5} parent=0 // pred_check
    _
  $region3: #{cnn_forward.5} parent=0 // pred_check_branch
    %14 = sbr.rel (0) target = $region5
  $region4: #{cnn_forward.5} parent=0 // pred_region
    _
  $region5: #{cnn_forward.5} parent=0 // pred_fallthru
    _
  // Predicated region
  $region6: #{cnn_forward.5} parent=0 // pred_check
    _
  $region7: #{cnn_forward.5} parent=0 // pred_check_branch
    %16 = sbr.rel (0) target = $region9
  $region8: #{cnn_forward.5} parent=0 // pred_region
    _
  $region9: #{cnn_forward.5} parent=0 // pred_fallthru
    _
  // Predicated region
  $region10: #{cnn_forward.5} parent=0 // pred_check
    _
  $region11: #{cnn_forward.5} parent=0 // pred_check_branch
    %18 = sbr.rel (0) target = $region13
  $region12: #{cnn_forward.5} parent=0 // pred_region
    _
  $region13: #{cnn_forward.5} parent=0 // pred_fallthru
    _
  // Predicated region
  $region14: #{cnn_forward.5} parent=0 // pred_check
    _
  $region15: #{cnn_forward.5} parent=0 // pred_check_branch
    %20 = sbr.rel (0) target = $region17
  $region16: #{cnn_forward.5} parent=0 // pred_region
    _
  $region17: #{cnn_forward.5} parent=0 // pred_fallthru
    _
  // Predicated region
  $region18: #{cnn_forward.5} parent=0 // pred_check
    _
  $region19: #{cnn_forward.5} parent=0 // pred_check_branch
    %22 = sbr.rel (0) target = $region21
  $region20: #{cnn_forward.5} parent=0 // pred_region
    _
  $region21: #{cnn_forward.5} parent=0 // pred_fallthru
    _
  // Predicated region
  $region22: #{cnn_forward.5} parent=0 // pred_check
    _
  $region23: #{cnn_forward.5} parent=0 // pred_check_branch
    %24 = sbr.rel (0) target = $region25
  $region24: #{cnn_forward.5} parent=0 // pred_region
    _
  $region25: #{cnn_forward.5} parent=0 // pred_fallthru
    _
  // Predicated region
  $region26: #{cnn_forward.5} parent=0 // pred_check
    _
  $region27: #{cnn_forward.5} parent=0 // pred_check_branch
    %26 = sbr.rel (0) target = $region29
  $region28: #{cnn_forward.5} parent=0 // pred_region
    _
  $region29: #{cnn_forward.5} parent=0 // pred_fallthru
    _
  // Predicated region
  $region30: #{cnn_forward.5} parent=0 // pred_check
    _
  $region31: #{cnn_forward.5} parent=0 // pred_check_branch
    %28 = sbr.rel (0) target = $region33
  $region32: #{cnn_forward.5} parent=0 // pred_region
    _
  $region33: #{cnn_forward.5} parent=0 // pred_fallthru
    _
  %v29 = vld [vmem:[%s1] sm:$0xff]
  %v30 = vld [vmem:[%s1 + $0x8] sm:$0xff]
  %v31 = vld [vmem:[%s1 + $0x10] sm:$0xff]
  %v32 = vld [vmem:[%s1 + $0x18] sm:$0xff]
  %v33 = vld [vmem:[%s1 + $0x20] sm:$0xff]
  %v34 = vld [vmem:[%s1 + $0x28] sm:$0xff]
  %v35 = vld [vmem:[%s1 + $0x30] sm:$0xff]
  %v36 = vld [vmem:[%s1 + $0x38] sm:$0xff]
  %v37 = vld [vmem:[%s1 + $0x40] sm:$0xff]
  %v38 = vld [vmem:[%s1 + $0x48] sm:$0xff]
  %v39 = vld [vmem:[%s1 + $0x50] sm:$0xff]
  %v40 = vld [vmem:[%s1 + $0x58] sm:$0xff]
  %v41 = vld [vmem:[%s1 + $0x60] sm:$0xff]
  %v42 = vld [vmem:[%s1 + $0x68] sm:$0xff]
  %v43 = vld [vmem:[%s1 + $0x70] sm:$0xff]
  %v44 = vld [vmem:[%s1 + $0x78] sm:$0xff]
  %v45 = vld [vmem:[%s1 + $0x80] sm:$0xff]
  %v46 = vld [vmem:[%s1 + $0x88] sm:$0xff]
  %v47 = vld [vmem:[%s1 + $0x90] sm:$0xff]
  %v48 = vld [vmem:[%s1 + $0x98] sm:$0xff]
  %v49 = vld [vmem:[%s1 + $0xa0] sm:$0xff]
  %v50 = vld [vmem:[%s1 + $0xa8] sm:$0xff]
  %v51 = vld [vmem:[%s1 + $0xb0] sm:$0xff]
  %v52 = vld [vmem:[%s1 + $0xb8] sm:$0xff]
  %v53 = vld [vmem:[%s1 + $0xc0] sm:$0xff]
  %v54 = vld [vmem:[%s1 + $0xc8] sm:$0xff]
  %v55 = vld [vmem:[%s1 + $0xd0] sm:$0xff]
  %v56 = vld [vmem:[%s1 + $0xd8] sm:$0xff]
  %v57 = vld [vmem:[%s1 + $0xe0] sm:$0xff]
  %v58 = vld [vmem:[%s1 + $0xe8] sm:$0xff]
  %v59 = vld [vmem:[%s1 + $0xf0] sm:$0xff]
  %v60 = vld [vmem:[%s1 + $0xf8] sm:$0xff]
  %v61 = vld [vmem:[%s1 + $0x100] sm:$0xff]
  %v62 = vld [vmem:[%s1 + $0x108] sm:$0xff]
  %v63 = vld [vmem:[%s1 + $0x110] sm:$0xff]
  %v64 = vld [vmem:[%s1 + $0x118] sm:$0xff]
  %v65 = vld [vmem:[%s1 + $0x120] sm:$0xff]
  %v66 = vld [vmem:[%s1 + $0x128] sm:$0xff]
  %v67 = vld [vmem:[%s1 + $0x130] sm:$0xff]
  %v68 = vld [vmem:[%s1 + $0x138] sm:$0xff]
  %v69 = vld [vmem:[%s1 + $0x140] sm:$0xff]
  %v70 = vld [vmem:[%s1 + $0x148] sm:$0xff]
  %v71 = vld [vmem:[%s1 + $0x150] sm:$0xff]
  %v72 = vld [vmem:[%s1 + $0x158] sm:$0xff]
  %v73 = vld [vmem:[%s1 + $0x160] sm:$0xff]
  %v74 = vld [vmem:[%s1 + $0x168] sm:$0xff]
  %v75 = vld [vmem:[%s1 + $0x170] sm:$0xff]
  %v76 = vld [vmem:[%s1 + $0x178] sm:$0xff]
  %v77 = vld [vmem:[%s1 + $0x180] sm:$0xff]
  %v78 = vld [vmem:[%s1 + $0x188] sm:$0xff]
  %v79 = vld [vmem:[%s1 + $0x190] sm:$0xff]
  %v80 = vld [vmem:[%s1 + $0x198] sm:$0xff]
  %v81 = vld [vmem:[%s1 + $0x1a0] sm:$0xff]
  %v82 = vld [vmem:[%s1 + $0x1a8] sm:$0xff]
  %v83 = vld [vmem:[%s1 + $0x1b0] sm:$0xff]
  %v84 = vld [vmem:[%s1 + $0x1b8] sm:$0xff]
  %v85 = vld [vmem:[%s1 + $0x1c0] sm:$0xff]
  %v86 = vld [vmem:[%s1 + $0x1c8] sm:$0xff]
  %v87 = vld [vmem:[%s1 + $0x1d0] sm:$0xff]
  %v88 = vld [vmem:[%s1 + $0x1d8] sm:$0xff]
  %v89 = vld [vmem:[%s1 + $0x1e0] sm:$0xff]
  %v90 = vld [vmem:[%s1 + $0x1e8] sm:$0xff]
  %v91 = vld [vmem:[%s1 + $0x1f0] sm:$0xff]
  %v92 = vld [vmem:[%s1 + $0x1f8] sm:$0xff]
  %v93 = vld [vmem:[%s1 + $0x200] sm:$0xff]
  %v94 = vld [vmem:[%s1 + $0x208] sm:$0xff]
  %v95 = vld [vmem:[%s1 + $0x210] sm:$0xff]
  %v96 = vld [vmem:[%s1 + $0x218] sm:$0xff]
  %v97 = vld [vmem:[%s1 + $0x220] sm:$0xff]
  %v98 = vld [vmem:[%s1 + $0x228] sm:$0xff]
  %v99 = vld [vmem:[%s1 + $0x230] sm:$0xff]
  %v100 = vld [vmem:[%s1 + $0x238] sm:$0xff]
  %v101 = vld [vmem:[%s1 + $0x240] sm:$0xff]
  %v102 = vld [vmem:[%s1 + $0x248] sm:$0xff]
  %v103 = vld [vmem:[%s1 + $0x250] sm:$0xff]
  %v104 = vld [vmem:[%s1 + $0x258] sm:$0xff]
  %v105 = vld [vmem:[%s1 + $0x260] sm:$0xff]
  %v106 = vld [vmem:[%s1 + $0x268] sm:$0xff]
  %v107 = vld [vmem:[%s1 + $0x270] sm:$0xff]
  %v108 = vld [vmem:[%s1 + $0x278] sm:$0xff]
  %v109 = vld [vmem:[%s1 + $0x280] sm:$0xff]
  %v110 = vld [vmem:[%s1 + $0x288] sm:$0xff]
  %v111 = vld [vmem:[%s1 + $0x290] sm:$0xff]
  %v112 = vld [vmem:[%s1 + $0x298] sm:$0xff]
  %v113 = vld [vmem:[%s1 + $0x2a0] sm:$0xff]
  %v114 = vld [vmem:[%s1 + $0x2a8] sm:$0xff]
  %v115 = vld [vmem:[%s1 + $0x2b0] sm:$0xff]
  %v116 = vld [vmem:[%s1 + $0x2b8] sm:$0xff]
  %v117 = vld [vmem:[%s1 + $0x2c0] sm:$0xff]
  %v118 = vld [vmem:[%s1 + $0x2c8] sm:$0xff]
  %v119 = vld [vmem:[%s1 + $0x2d0] sm:$0xff]
  %v120 = vld [vmem:[%s1 + $0x2d8] sm:$0xff]
  %v121 = vld [vmem:[%s1 + $0x2e0] sm:$0xff]
  %v122 = vld [vmem:[%s1 + $0x2e8] sm:$0xff]
  %v123 = vld [vmem:[%s1 + $0x2f0] sm:$0xff]
  %v124 = vld [vmem:[%s1 + $0x2f8] sm:$0xff]
  %v125 = vld [vmem:[%s1 + $0x300] sm:$0xff]
  %v126 = vld [vmem:[%s1 + $0x308] sm:$0xff]
  %v127 = vld [vmem:[%s1 + $0x310] sm:$0xff]
  %v128 = vld [vmem:[%s1 + $0x318] sm:$0xff]
  %v129 = vld [vmem:[%s1 + $0x320] sm:$0xff]
  %v130 = vld [vmem:[%s1 + $0x328] sm:$0xff]
  %v131 = vld [vmem:[%s1 + $0x330] sm:$0xff]
  %v132 = vld [vmem:[%s1 + $0x338] sm:$0xff]
  %v133 = vld [vmem:[%s1 + $0x340] sm:$0xff]
  %v134 = vld [vmem:[%s1 + $0x348] sm:$0xff]
  %v135 = vld [vmem:[%s1 + $0x350] sm:$0xff]
  %v136 = vld [vmem:[%s1 + $0x358] sm:$0xff]
  %v137 = vld [vmem:[%s1 + $0x360] sm:$0xff]
  %v138 = vld [vmem:[%s1 + $0x368] sm:$0xff]
  %v139 = vld [vmem:[%s1 + $0x370] sm:$0xff]
  %v140 = vld [vmem:[%s1 + $0x378] sm:$0xff]
  %v141 = vld [vmem:[%s1 + $0x380] sm:$0xff]
  %v142 = vld [vmem:[%s1 + $0x388] sm:$0xff]
  %v143 = vld [vmem:[%s1 + $0x390] sm:$0xff]
  %v144 = vld [vmem:[%s1 + $0x398] sm:$0xff]
  %v145 = vld [vmem:[%s1 + $0x3a0] sm:$0xff]
  %v146 = vld [vmem:[%s1 + $0x3a8] sm:$0xff]
  %v147 = vld [vmem:[%s1 + $0x3b0] sm:$0xff]
  %v148 = vld [vmem:[%s1 + $0x3b8] sm:$0xff]
  %v149 = vld [vmem:[%s1 + $0x3c0] sm:$0xff]
  %v150 = vld [vmem:[%s1 + $0x3c8] sm:$0xff]
  %v151 = vld [vmem:[%s1 + $0x3d0] sm:$0xff]
  %v152 = vld [vmem:[%s1 + $0x3d8] sm:$0xff]
  %v153 = vld [vmem:[%s1 + $0x3e0] sm:$0xff]
  %v154 = vld [vmem:[%s1 + $0x3e8] sm:$0xff]
  %v155 = vld [vmem:[%s1 + $0x3f0] sm:$0xff]
  %v156 = vld [vmem:[%s1 + $0x3f8] sm:$0xff]
  %v157 = vld [vmem:[%s1 + $0x400] sm:$0xff]
  %v158 = vld [vmem:[%s1 + $0x408] sm:$0xff]
  %v159 = vld [vmem:[%s1 + $0x410] sm:$0xff]
  %v160 = vld [vmem:[%s1 + $0x418] sm:$0xff]
  %v161 = vld [vmem:[%s1 + $0x420] sm:$0xff]
  %v162 = vld [vmem:[%s1 + $0x428] sm:$0xff]
  %v163 = vld [vmem:[%s1 + $0x430] sm:$0xff]
  %v164 = vld [vmem:[%s1 + $0x438] sm:$0xff]
  %v165 = vld [vmem:[%s1 + $0x440] sm:$0xff]
  %v166 = vld [vmem:[%s1 + $0x448] sm:$0xff]
  %v167 = vld [vmem:[%s1 + $0x450] sm:$0xff]
  %v168 = vld [vmem:[%s1 + $0x458] sm:$0xff]
  %v169 = vld [vmem:[%s1 + $0x460] sm:$0xff]
  %v170 = vld [vmem:[%s1 + $0x468] sm:$0xff]
  %v171 = vld [vmem:[%s1 + $0x470] sm:$0xff]
  %v172 = vld [vmem:[%s1 + $0x478] sm:$0xff]
  %v173 = vld [vmem:[%s2] sm:$0x3]
  %v174 = vld [vmem:[%s3] sm:$0x3]
  %v175 = vld [vmem:[%s0] sm:$0xff]
  %v176 = vld [vmem:[%s0 + $0x8] sm:$0xff]
  %v177 = vld [vmem:[%s0 + $0x10] sm:$0xff]
  %v178 = vld [vmem:[%s0 + $0x18] sm:$0xff]
  %v179 = vld [vmem:[%s0 + $0x20] sm:$0xf]
  %v180 = vld [vmem:[%s0 + $0x24] sm:$0xff]
  %v181 = vld [vmem:[%s0 + $0x2c] sm:$0xff]
  %v182 = vld [vmem:[%s0 + $0x34] sm:$0xff]
  %v183 = vld [vmem:[%s0 + $0x3c] sm:$0xff]
  %v184 = vld [vmem:[%s0 + $0x44] sm:$0xf]
  %v185 = vld [vmem:[%s0 + $0x48] sm:$0xff]
  %v186 = vld [vmem:[%s0 + $0x50] sm:$0xff]
  %v187 = vld [vmem:[%s0 + $0x58] sm:$0xff]
  %v188 = vld [vmem:[%s0 + $0x60] sm:$0xff]
  %v189 = vld [vmem:[%s0 + $0x68] sm:$0xf]
  %v190 = vld [vmem:[%s0 + $0x6c] sm:$0xff]
  %v191 = vld [vmem:[%s0 + $0x74] sm:$0xff]
  %v192 = vld [vmem:[%s0 + $0x7c] sm:$0xff]
  %v193 = vld [vmem:[%s0 + $0x84] sm:$0xff]
  %v194 = vld [vmem:[%s0 + $0x8c] sm:$0xf]
  %v215 = vunpack.c.l.b16 %v175
  %v216 = vunpack.c.h.b16 %v175
  %v217 = vunpack.c.l.b16 %v176
  %v218 = vunpack.c.h.b16 %v176
  %v219 = vunpack.c.l.b16 %v177
  %v220 = vunpack.c.h.b16 %v177
  %v221 = vunpack.c.l.b16 %v178
  %v222 = vunpack.c.h.b16 %v178
  %v223 = vunpack.c.l.b16 %v179
  %v224 = vunpack.c.l.b16 %v180
  %v225 = vunpack.c.h.b16 %v180
  %v226 = vunpack.c.l.b16 %v181
  %v227 = vunpack.c.h.b16 %v181
  %v228 = vunpack.c.l.b16 %v182
  %v229 = vunpack.c.h.b16 %v182
  %v230 = vunpack.c.l.b16 %v183
  %v231 = vunpack.c.h.b16 %v183
  %v232 = vunpack.c.l.b16 %v184
  %v233 = vunpack.c.l.b16 %v185
  %v234 = vunpack.c.h.b16 %v185
  %v235 = vunpack.c.l.b16 %v186
  %v236 = vunpack.c.h.b16 %v186
  %v237 = vunpack.c.l.b16 %v187
  %v238 = vunpack.c.h.b16 %v187
  %v239 = vunpack.c.l.b16 %v188
  %v240 = vunpack.c.h.b16 %v188
  %v241 = vunpack.c.l.b16 %v189
  %v242 = vunpack.c.l.b16 %v190
  %v243 = vunpack.c.h.b16 %v190
  %v244 = vunpack.c.l.b16 %v191
  %v245 = vunpack.c.h.b16 %v191
  %v246 = vunpack.c.l.b16 %v192
  %v247 = vunpack.c.h.b16 %v192
  %v248 = vunpack.c.l.b16 %v193
  %v249 = vunpack.c.h.b16 %v193
  %v250 = vunpack.c.l.b16 %v194
  %v251 = vpack.c.b16 %v224, %v215
  %v252 = vpack.c.b16 %v225, %v216
  %v253 = vpack.c.b16 %v226, %v217
  %v254 = vpack.c.b16 %v227, %v218
  %v255 = vpack.c.b16 %v228, %v219
  %v256 = vpack.c.b16 %v229, %v220
  %v257 = vpack.c.b16 %v230, %v221
  %v258 = vpack.c.b16 %v231, %v222
  %v259 = vpack.c.b16 %v232, %v223
  %v260 = vpack.c.b16 %v242, %v233
  %v261 = vpack.c.b16 %v243, %v234
  %v262 = vpack.c.b16 %v244, %v235
  %v263 = vpack.c.b16 %v245, %v236
  %v264 = vpack.c.b16 %v246, %v237
  %v265 = vpack.c.b16 %v247, %v238
  %v266 = vpack.c.b16 %v248, %v239
  %v267 = vpack.c.b16 %v249, %v240
  %v268 = vpack.c.b16 %v250, %v241
  %v431 = vunpack.c.l.b16 %v29
  %v432 = vunpack.c.h.b16 %v29
  %v433 = vunpack.c.l.b16 %v30
  %v434 = vunpack.c.h.b16 %v30
  %v435 = vunpack.c.l.b16 %v31
  %v436 = vunpack.c.h.b16 %v31
  %v437 = vunpack.c.l.b16 %v32
  %v438 = vunpack.c.h.b16 %v32
  %v439 = vunpack.c.l.b16 %v33
  %v440 = vunpack.c.h.b16 %v33
  %v441 = vunpack.c.l.b16 %v34
  %v442 = vunpack.c.h.b16 %v34
  %v443 = vunpack.c.l.b16 %v35
  %v444 = vunpack.c.h.b16 %v35
  %v445 = vunpack.c.l.b16 %v36
  %v446 = vunpack.c.h.b16 %v36
  %v447 = vunpack.c.l.b16 %v37
  %v448 = vunpack.c.h.b16 %v37
  %v449 = vunpack.c.l.b16 %v38
  %v450 = vunpack.c.h.b16 %v38
  %v451 = vunpack.c.l.b16 %v39
  %v452 = vunpack.c.h.b16 %v39
  %v453 = vunpack.c.l.b16 %v40
  %v454 = vunpack.c.h.b16 %v40
  %v455 = vunpack.c.l.b16 %v41
  %v456 = vunpack.c.h.b16 %v41
  %v457 = vunpack.c.l.b16 %v42
  %v458 = vunpack.c.h.b16 %v42
  %v459 = vunpack.c.l.b16 %v43
  %v460 = vunpack.c.h.b16 %v43
  %v461 = vunpack.c.l.b16 %v44
  %v462 = vunpack.c.h.b16 %v44
  %v463 = vunpack.c.l.b16 %v45
  %v464 = vunpack.c.h.b16 %v45
  %v465 = vunpack.c.l.b16 %v46
  %v466 = vunpack.c.h.b16 %v46
  %v467 = vunpack.c.l.b16 %v47
  %v468 = vunpack.c.h.b16 %v47
  %v469 = vunpack.c.l.b16 %v48
  %v470 = vunpack.c.h.b16 %v48
  %v471 = vunpack.c.l.b16 %v49
  %v472 = vunpack.c.h.b16 %v49
  %v473 = vunpack.c.l.b16 %v50
  %v474 = vunpack.c.h.b16 %v50
  %v475 = vunpack.c.l.b16 %v51
  %v476 = vunpack.c.h.b16 %v51
  %v477 = vunpack.c.l.b16 %v52
  %v478 = vunpack.c.h.b16 %v52
  %v479 = vunpack.c.l.b16 %v53
  %v480 = vunpack.c.h.b16 %v53
  %v481 = vunpack.c.l.b16 %v54
  %v482 = vunpack.c.h.b16 %v54
  %v483 = vunpack.c.l.b16 %v55
  %v484 = vunpack.c.h.b16 %v55
  %v485 = vunpack.c.l.b16 %v56
  %v486 = vunpack.c.h.b16 %v56
  %v487 = vunpack.c.l.b16 %v57
  %v488 = vunpack.c.h.b16 %v57
  %v489 = vunpack.c.l.b16 %v58
  %v490 = vunpack.c.h.b16 %v58
  %v491 = vunpack.c.l.b16 %v59
  %v492 = vunpack.c.h.b16 %v59
  %v493 = vunpack.c.l.b16 %v60
  %v494 = vunpack.c.h.b16 %v60
  %v495 = vunpack.c.l.b16 %v61
  %v496 = vunpack.c.h.b16 %v61
  %v497 = vunpack.c.l.b16 %v62
  %v498 = vunpack.c.h.b16 %v62
  %v499 = vunpack.c.l.b16 %v63
  %v500 = vunpack.c.h.b16 %v63
  %v501 = vunpack.c.l.b16 %v64
  %v502 = vunpack.c.h.b16 %v64
  %v503 = vunpack.c.l.b16 %v65
  %v504 = vunpack.c.h.b16 %v65
  %v505 = vunpack.c.l.b16 %v66
  %v506 = vunpack.c.h.b16 %v66
  %v507 = vunpack.c.l.b16 %v67
  %v508 = vunpack.c.h.b16 %v67
  %v509 = vunpack.c.l.b16 %v68
  %v510 = vunpack.c.h.b16 %v68
  %v511 = vunpack.c.l.b16 %v69
  %v512 = vunpack.c.h.b16 %v69
  %v513 = vunpack.c.l.b16 %v70
  %v514 = vunpack.c.h.b16 %v70
  %v515 = vunpack.c.l.b16 %v71
  %v516 = vunpack.c.h.b16 %v71
  %v517 = vunpack.c.l.b16 %v72
  %v518 = vunpack.c.h.b16 %v72
  %v519 = vunpack.c.l.b16 %v73
  %v520 = vunpack.c.h.b16 %v73
  %v521 = vunpack.c.l.b16 %v74
  %v522 = vunpack.c.h.b16 %v74
  %v523 = vunpack.c.l.b16 %v75
  %v524 = vunpack.c.h.b16 %v75
  %v525 = vunpack.c.l.b16 %v76
  %v526 = vunpack.c.h.b16 %v76
  %v527 = vunpack.c.l.b16 %v77
  %v528 = vunpack.c.h.b16 %v77
  %v529 = vunpack.c.l.b16 %v78
  %v530 = vunpack.c.h.b16 %v78
  %v531 = vunpack.c.l.b16 %v79
  %v532 = vunpack.c.h.b16 %v79
  %v533 = vunpack.c.l.b16 %v80
  %v534 = vunpack.c.h.b16 %v80
  %v535 = vunpack.c.l.b16 %v81
  %v536 = vunpack.c.h.b16 %v81
  %v537 = vunpack.c.l.b16 %v82
  %v538 = vunpack.c.h.b16 %v82
  %v539 = vunpack.c.l.b16 %v83
  %v540 = vunpack.c.h.b16 %v83
  %v541 = vunpack.c.l.b16 %v84
  %v542 = vunpack.c.h.b16 %v84
  %v543 = vunpack.c.l.b16 %v85
  %v544 = vunpack.c.h.b16 %v85
  %v545 = vunpack.c.l.b16 %v86
  %v546 = vunpack.c.h.b16 %v86
  %v547 = vunpack.c.l.b16 %v87
  %v548 = vunpack.c.h.b16 %v87
  %v549 = vunpack.c.l.b16 %v88
  %v550 = vunpack.c.h.b16 %v88
  %v551 = vunpack.c.l.b16 %v89
  %v552 = vunpack.c.h.b16 %v89
  %v553 = vunpack.c.l.b16 %v90
  %v554 = vunpack.c.h.b16 %v90
  %v555 = vunpack.c.l.b16 %v91
  %v556 = vunpack.c.h.b16 %v91
  %v557 = vunpack.c.l.b16 %v92
  %v558 = vunpack.c.h.b16 %v92
  %v559 = vunpack.c.l.b16 %v93
  %v560 = vunpack.c.h.b16 %v93
  %v561 = vunpack.c.l.b16 %v94
  %v562 = vunpack.c.h.b16 %v94
  %v563 = vunpack.c.l.b16 %v95
  %v564 = vunpack.c.h.b16 %v95
  %v565 = vunpack.c.l.b16 %v96
  %v566 = vunpack.c.h.b16 %v96
  %v567 = vunpack.c.l.b16 %v97
  %v568 = vunpack.c.h.b16 %v97
  %v569 = vunpack.c.l.b16 %v98
  %v570 = vunpack.c.h.b16 %v98
  %v571 = vunpack.c.l.b16 %v99
  %v572 = vunpack.c.h.b16 %v99
  %v573 = vunpack.c.l.b16 %v100
  %v574 = vunpack.c.h.b16 %v100
  %v575 = vunpack.c.l.b16 %v101
  %v576 = vunpack.c.h.b16 %v101
  %v577 = vunpack.c.l.b16 %v102
  %v578 = vunpack.c.h.b16 %v102
  %v579 = vunpack.c.l.b16 %v103
  %v580 = vunpack.c.h.b16 %v103
  %v581 = vunpack.c.l.b16 %v104
  %v582 = vunpack.c.h.b16 %v104
  %v583 = vunpack.c.l.b16 %v105
  %v584 = vunpack.c.h.b16 %v105
  %v585 = vunpack.c.l.b16 %v106
  %v586 = vunpack.c.h.b16 %v106
  %v587 = vunpack.c.l.b16 %v107
  %v588 = vunpack.c.h.b16 %v107
  %v589 = vunpack.c.l.b16 %v108
  %v590 = vunpack.c.h.b16 %v108
  %v591 = vunpack.c.l.b16 %v109
  %v592 = vunpack.c.h.b16 %v109
  %v593 = vunpack.c.l.b16 %v110
  %v594 = vunpack.c.h.b16 %v110
  %v595 = vunpack.c.l.b16 %v111
  %v596 = vunpack.c.h.b16 %v111
  %v597 = vunpack.c.l.b16 %v112
  %v598 = vunpack.c.h.b16 %v112
  %v599 = vunpack.c.l.b16 %v113
  %v600 = vunpack.c.h.b16 %v113
  %v601 = vunpack.c.l.b16 %v114
  %v602 = vunpack.c.h.b16 %v114
  %v603 = vunpack.c.l.b16 %v115
  %v604 = vunpack.c.h.b16 %v115
  %v605 = vunpack.c.l.b16 %v116
  %v606 = vunpack.c.h.b16 %v116
  %v607 = vunpack.c.l.b16 %v117
  %v608 = vunpack.c.h.b16 %v117
  %v609 = vunpack.c.l.b16 %v118
  %v610 = vunpack.c.h.b16 %v118
  %v611 = vunpack.c.l.b16 %v119
  %v612 = vunpack.c.h.b16 %v119
  %v613 = vunpack.c.l.b16 %v120
  %v614 = vunpack.c.h.b16 %v120
  %v615 = vunpack.c.l.b16 %v121
  %v616 = vunpack.c.h.b16 %v121
  %v617 = vunpack.c.l.b16 %v122
  %v618 = vunpack.c.h.b16 %v122
  %v619 = vunpack.c.l.b16 %v123
  %v620 = vunpack.c.h.b16 %v123
  %v621 = vunpack.c.l.b16 %v124
  %v622 = vunpack.c.h.b16 %v124
  %v623 = vunpack.c.l.b16 %v125
  %v624 = vunpack.c.h.b16 %v125
  %v625 = vunpack.c.l.b16 %v126
  %v626 = vunpack.c.h.b16 %v126
  %v627 = vunpack.c.l.b16 %v127
  %v628 = vunpack.c.h.b16 %v127
  %v629 = vunpack.c.l.b16 %v128
  %v630 = vunpack.c.h.b16 %v128
  %v631 = vunpack.c.l.b16 %v129
  %v632 = vunpack.c.h.b16 %v129
  %v633 = vunpack.c.l.b16 %v130
  %v634 = vunpack.c.h.b16 %v130
  %v635 = vunpack.c.l.b16 %v131
  %v636 = vunpack.c.h.b16 %v131
  %v637 = vunpack.c.l.b16 %v132
  %v638 = vunpack.c.h.b16 %v132
  %v639 = vunpack.c.l.b16 %v133
  %v640 = vunpack.c.h.b16 %v133
  %v641 = vunpack.c.l.b16 %v134
  %v642 = vunpack.c.h.b16 %v134
  %v643 = vunpack.c.l.b16 %v135
  %v644 = vunpack.c.h.b16 %v135
  %v645 = vunpack.c.l.b16 %v136
  %v646 = vunpack.c.h.b16 %v136
  %v647 = vunpack.c.l.b16 %v137
  %v648 = vunpack.c.h.b16 %v137
  %v649 = vunpack.c.l.b16 %v138
  %v650 = vunpack.c.h.b16 %v138
  %v651 = vunpack.c.l.b16 %v139
  %v652 = vunpack.c.h.b16 %v139
  %v653 = vunpack.c.l.b16 %v140
  %v654 = vunpack.c.h.b16 %v140
  %v655 = vunpack.c.l.b16 %v141
  %v656 = vunpack.c.h.b16 %v141
  %v657 = vunpack.c.l.b16 %v142
  %v658 = vunpack.c.h.b16 %v142
  %v659 = vunpack.c.l.b16 %v143
  %v660 = vunpack.c.h.b16 %v143
  %v661 = vunpack.c.l.b16 %v144
  %v662 = vunpack.c.h.b16 %v144
  %v663 = vunpack.c.l.b16 %v145
  %v664 = vunpack.c.h.b16 %v145
  %v665 = vunpack.c.l.b16 %v146
  %v666 = vunpack.c.h.b16 %v146
  %v667 = vunpack.c.l.b16 %v147
  %v668 = vunpack.c.h.b16 %v147
  %v669 = vunpack.c.l.b16 %v148
  %v670 = vunpack.c.h.b16 %v148
  %v671 = vunpack.c.l.b16 %v149
  %v672 = vunpack.c.h.b16 %v149
  %v673 = vunpack.c.l.b16 %v150
  %v674 = vunpack.c.h.b16 %v150
  %v675 = vunpack.c.l.b16 %v151
  %v676 = vunpack.c.h.b16 %v151
  %v677 = vunpack.c.l.b16 %v152
  %v678 = vunpack.c.h.b16 %v152
  %v679 = vunpack.c.l.b16 %v153
  %v680 = vunpack.c.h.b16 %v153
  %v681 = vunpack.c.l.b16 %v154
  %v682 = vunpack.c.h.b16 %v154
  %v683 = vunpack.c.l.b16 %v155
  %v684 = vunpack.c.h.b16 %v155
  %v685 = vunpack.c.l.b16 %v156
  %v686 = vunpack.c.h.b16 %v156
  %v687 = vunpack.c.l.b16 %v157
  %v688 = vunpack.c.h.b16 %v157
  %v689 = vunpack.c.l.b16 %v158
  %v690 = vunpack.c.h.b16 %v158
  %v691 = vunpack.c.l.b16 %v159
  %v692 = vunpack.c.h.b16 %v159
  %v693 = vunpack.c.l.b16 %v160
  %v694 = vunpack.c.h.b16 %v160
  %v695 = vunpack.c.l.b16 %v161
  %v696 = vunpack.c.h.b16 %v161
  %v697 = vunpack.c.l.b16 %v162
  %v698 = vunpack.c.h.b16 %v162
  %v699 = vunpack.c.l.b16 %v163
  %v700 = vunpack.c.h.b16 %v163
  %v701 = vunpack.c.l.b16 %v164
  %v702 = vunpack.c.h.b16 %v164
  %v703 = vunpack.c.l.b16 %v165
  %v704 = vunpack.c.h.b16 %v165
  %v705 = vunpack.c.l.b16 %v166
  %v706 = vunpack.c.h.b16 %v166
  %v707 = vunpack.c.l.b16 %v167
  %v708 = vunpack.c.h.b16 %v167
  %v709 = vunpack.c.l.b16 %v168
  %v710 = vunpack.c.h.b16 %v168
  %v711 = vunpack.c.l.b16 %v169
  %v712 = vunpack.c.h.b16 %v169
  %v713 = vunpack.c.l.b16 %v170
  %v714 = vunpack.c.h.b16 %v170
  %v715 = vunpack.c.l.b16 %v171
  %v716 = vunpack.c.h.b16 %v171
  %v717 = vunpack.c.l.b16 %v172
  %v718 = vunpack.c.h.b16 %v172
  %v719 = vpack.c.b16 %v433, %v431
  %v720 = vpack.c.b16 %v434, %v432
  %v721 = vpack.c.b16 %v437, %v435
  %v722 = vpack.c.b16 %v438, %v436
  %v723 = vpack.c.b16 %v441, %v439
  %v724 = vpack.c.b16 %v442, %v440
  %v725 = vpack.c.b16 %v445, %v443
  %v726 = vpack.c.b16 %v446, %v444
  %v727 = vpack.c.b16 %v449, %v447
  %v728 = vpack.c.b16 %v450, %v448
  %v729 = vpack.c.b16 %v453, %v451
  %v730 = vpack.c.b16 %v454, %v452
  %v731 = vpack.c.b16 %v457, %v455
  %v732 = vpack.c.b16 %v458, %v456
  %v733 = vpack.c.b16 %v461, %v459
  %v734 = vpack.c.b16 %v462, %v460
  %v735 = vpack.c.b16 %v465, %v463
  %v736 = vpack.c.b16 %v466, %v464
  %v737 = vpack.c.b16 %v469, %v467
  %v738 = vpack.c.b16 %v470, %v468
  %v739 = vpack.c.b16 %v473, %v471
  %v740 = vpack.c.b16 %v474, %v472
  %v741 = vpack.c.b16 %v477, %v475
  %v742 = vpack.c.b16 %v478, %v476
  %v743 = vpack.c.b16 %v481, %v479
  %v744 = vpack.c.b16 %v482, %v480
  %v745 = vpack.c.b16 %v485, %v483
  %v746 = vpack.c.b16 %v486, %v484
  %v747 = vpack.c.b16 %v489, %v487
  %v748 = vpack.c.b16 %v490, %v488
  %v749 = vpack.c.b16 %v493, %v491
  %v750 = vpack.c.b16 %v494, %v492
  %v751 = vpack.c.b16 %v497, %v495
  %v752 = vpack.c.b16 %v498, %v496
  %v753 = vpack.c.b16 %v501, %v499
  %v754 = vpack.c.b16 %v502, %v500
  %v755 = vpack.c.b16 %v505, %v503
  %v756 = vpack.c.b16 %v506, %v504
  %v757 = vpack.c.b16 %v509, %v507
  %v758 = vpack.c.b16 %v510, %v508
  %v759 = vpack.c.b16 %v513, %v511
  %v760 = vpack.c.b16 %v514, %v512
  %v761 = vpack.c.b16 %v517, %v515
  %v762 = vpack.c.b16 %v518, %v516
  %v763 = vpack.c.b16 %v521, %v519
  %v764 = vpack.c.b16 %v522, %v520
  %v765 = vpack.c.b16 %v525, %v523
  %v766 = vpack.c.b16 %v526, %v524
  %v767 = vpack.c.b16 %v529, %v527
  %v768 = vpack.c.b16 %v530, %v528
  %v769 = vpack.c.b16 %v533, %v531
  %v770 = vpack.c.b16 %v534, %v532
  %v771 = vpack.c.b16 %v537, %v535
  %v772 = vpack.c.b16 %v538, %v536
  %v773 = vpack.c.b16 %v541, %v539
  %v774 = vpack.c.b16 %v542, %v540
  %v775 = vpack.c.b16 %v545, %v543
  %v776 = vpack.c.b16 %v546, %v544
  %v777 = vpack.c.b16 %v549, %v547
  %v778 = vpack.c.b16 %v550, %v548
  %v779 = vpack.c.b16 %v553, %v551
  %v780 = vpack.c.b16 %v554, %v552
  %v781 = vpack.c.b16 %v557, %v555
  %v782 = vpack.c.b16 %v558, %v556
  %v783 = vpack.c.b16 %v561, %v559
  %v784 = vpack.c.b16 %v562, %v560
  %v785 = vpack.c.b16 %v565, %v563
  %v786 = vpack.c.b16 %v566, %v564
  %v787 = vpack.c.b16 %v569, %v567
  %v788 = vpack.c.b16 %v570, %v568
  %v789 = vpack.c.b16 %v573, %v571
  %v790 = vpack.c.b16 %v574, %v572
  %v791 = vpack.c.b16 %v577, %v575
  %v792 = vpack.c.b16 %v578, %v576
  %v793 = vpack.c.b16 %v581, %v579
  %v794 = vpack.c.b16 %v582, %v580
  %v795 = vpack.c.b16 %v585, %v583
  %v796 = vpack.c.b16 %v586, %v584
  %v797 = vpack.c.b16 %v589, %v587
  %v798 = vpack.c.b16 %v590, %v588
  %v799 = vpack.c.b16 %v593, %v591
  %v800 = vpack.c.b16 %v594, %v592
  %v801 = vpack.c.b16 %v597, %v595
  %v802 = vpack.c.b16 %v598, %v596
  %v803 = vpack.c.b16 %v601, %v599
  %v804 = vpack.c.b16 %v602, %v600
  %v805 = vpack.c.b16 %v605, %v603
  %v806 = vpack.c.b16 %v606, %v604
  %v807 = vpack.c.b16 %v609, %v607
  %v808 = vpack.c.b16 %v610, %v608
  %v809 = vpack.c.b16 %v613, %v611
  %v810 = vpack.c.b16 %v614, %v612
  %v811 = vpack.c.b16 %v617, %v615
  %v812 = vpack.c.b16 %v618, %v616
  %v813 = vpack.c.b16 %v621, %v619
  %v814 = vpack.c.b16 %v622, %v620
  %v815 = vpack.c.b16 %v625, %v623
  %v816 = vpack.c.b16 %v626, %v624
  %v817 = vpack.c.b16 %v629, %v627
  %v818 = vpack.c.b16 %v630, %v628
  %v819 = vpack.c.b16 %v633, %v631
  %v820 = vpack.c.b16 %v634, %v632
  %v821 = vpack.c.b16 %v637, %v635
  %v822 = vpack.c.b16 %v638, %v636
  %v823 = vpack.c.b16 %v641, %v639
  %v824 = vpack.c.b16 %v642, %v640
  %v825 = vpack.c.b16 %v645, %v643
  %v826 = vpack.c.b16 %v646, %v644
  %v827 = vpack.c.b16 %v649, %v647
  %v828 = vpack.c.b16 %v650, %v648
  %v829 = vpack.c.b16 %v653, %v651
  %v830 = vpack.c.b16 %v654, %v652
  %v831 = vpack.c.b16 %v657, %v655
  %v832 = vpack.c.b16 %v658, %v656
  %v833 = vpack.c.b16 %v661, %v659
  %v834 = vpack.c.b16 %v662, %v660
  %v835 = vpack.c.b16 %v665, %v663
  %v836 = vpack.c.b16 %v666, %v664
  %v837 = vpack.c.b16 %v669, %v667
  %v838 = vpack.c.b16 %v670, %v668
  %v839 = vpack.c.b16 %v673, %v671
  %v840 = vpack.c.b16 %v674, %v672
  %v841 = vpack.c.b16 %v677, %v675
  %v842 = vpack.c.b16 %v678, %v676
  %v843 = vpack.c.b16 %v681, %v679
  %v844 = vpack.c.b16 %v682, %v680
  %v845 = vpack.c.b16 %v685, %v683
  %v846 = vpack.c.b16 %v686, %v684
  %v847 = vpack.c.b16 %v689, %v687
  %v848 = vpack.c.b16 %v690, %v688
  %v849 = vpack.c.b16 %v693, %v691
  %v850 = vpack.c.b16 %v694, %v692
  %v851 = vpack.c.b16 %v697, %v695
  %v852 = vpack.c.b16 %v698, %v696
  %v853 = vpack.c.b16 %v701, %v699
  %v854 = vpack.c.b16 %v702, %v700
  %v855 = vpack.c.b16 %v705, %v703
  %v856 = vpack.c.b16 %v706, %v704
  %v857 = vpack.c.b16 %v709, %v707
  %v858 = vpack.c.b16 %v710, %v708
  %v859 = vpack.c.b16 %v713, %v711
  %v860 = vpack.c.b16 %v714, %v712
  %v861 = vpack.c.b16 %v717, %v715
  %v862 = vpack.c.b16 %v718, %v716
  %1007 = vmatpush.bf16.msra.mxu0 %v733
  %1008 = vmatpush.bf16.msra.mxu0 %v731
  %1009 = vmatpush.bf16.msra.mxu0 %v729
  %1010 = vmatpush.bf16.msra.mxu0 %v727
  %1011 = vmatpush.bf16.msra.mxu0 %v725
  %1012 = vmatpush.bf16.msra.mxu0 %v723
  %1013 = vmatpush.bf16.msra.mxu0 %v721
  %1014 = vmatpush.bf16.msra.mxu0 %v719
  %1015 = vmatmul.bf16.gmra.mxu0 %v251
  %v1016 = vpop.f32.mrf.mxu0
  %v1017 = vadd.f32 0.0, %v1016
  %v1018 = vpop.f32.mrf.mxu0
  %v1019 = vadd.f32 0.0, %v1018
  %1020 = vmatmul.bf16.gmra.mxu0 %v260
  %v1021 = vpop.f32.mrf.mxu0
  %v1022 = vadd.f32 0.0, %v1021
  %v1023 = vpop.f32.mrf.mxu0
  %v1024 = vadd.f32 0.0, %v1023
  %1025 = vdwg.mxu0
  %1026 = vmatpush.bf16.msra.mxu0 %v749
  %1027 = vmatpush.bf16.msra.mxu0 %v747
  %1028 = vmatpush.bf16.msra.mxu0 %v745
  %1029 = vmatpush.bf16.msra.mxu0 %v743
  %1030 = vmatpush.bf16.msra.mxu0 %v741
  %1031 = vmatpush.bf16.msra.mxu0 %v739
  %1032 = vmatpush.bf16.msra.mxu0 %v737
  %1033 = vmatpush.bf16.msra.mxu0 %v735
  %1034 = vmatmul.bf16.gmra.mxu0 %v252
  %v1035 = vpop.f32.mrf.mxu0
  %v1036 = vadd.f32 %v1017, %v1035
  %v1037 = vpop.f32.mrf.mxu0
  %v1038 = vadd.f32 %v1019, %v1037
  %1039 = vmatmul.bf16.gmra.mxu0 %v261
  %v1040 = vpop.f32.mrf.mxu0
  %v1041 = vadd.f32 %v1022, %v1040
  %v1042 = vpop.f32.mrf.mxu0
  %v1043 = vadd.f32 %v1024, %v1042
  %1044 = vdwg.mxu0
  %1045 = vmatpush.bf16.msra.mxu0 %v765
  %1046 = vmatpush.bf16.msra.mxu0 %v763
  %1047 = vmatpush.bf16.msra.mxu0 %v761
  %1048 = vmatpush.bf16.msra.mxu0 %v759
  %1049 = vmatpush.bf16.msra.mxu0 %v757
  %1050 = vmatpush.bf16.msra.mxu0 %v755
  %1051 = vmatpush.bf16.msra.mxu0 %v753
  %1052 = vmatpush.bf16.msra.mxu0 %v751
  %1053 = vmatmul.bf16.gmra.mxu0 %v253
  %v1054 = vpop.f32.mrf.mxu0
  %v1055 = vadd.f32 %v1036, %v1054
  %v1056 = vpop.f32.mrf.mxu0
  %v1057 = vadd.f32 %v1038, %v1056
  %1058 = vmatmul.bf16.gmra.mxu0 %v262
  %v1059 = vpop.f32.mrf.mxu0
  %v1060 = vadd.f32 %v1041, %v1059
  %v1061 = vpop.f32.mrf.mxu0
  %v1062 = vadd.f32 %v1043, %v1061
  %1063 = vdwg.mxu0
  %1064 = vmatpush.bf16.msra.mxu0 %v781
  %1065 = vmatpush.bf16.msra.mxu0 %v779
  %1066 = vmatpush.bf16.msra.mxu0 %v777
  %1067 = vmatpush.bf16.msra.mxu0 %v775
  %1068 = vmatpush.bf16.msra.mxu0 %v773
  %1069 = vmatpush.bf16.msra.mxu0 %v771
  %1070 = vmatpush.bf16.msra.mxu0 %v769
  %1071 = vmatpush.bf16.msra.mxu0 %v767
  %1072 = vmatmul.bf16.gmra.mxu0 %v254
  %v1073 = vpop.f32.mrf.mxu0
  %v1074 = vadd.f32 %v1055, %v1073
  %v1075 = vpop.f32.mrf.mxu0
  %v1076 = vadd.f32 %v1057, %v1075
  %1077 = vmatmul.bf16.gmra.mxu0 %v263
  %v1078 = vpop.f32.mrf.mxu0
  %v1079 = vadd.f32 %v1060, %v1078
  %v1080 = vpop.f32.mrf.mxu0
  %v1081 = vadd.f32 %v1062, %v1080
  %1082 = vdwg.mxu0
  %1083 = vmatpush.bf16.msra.mxu0 %v797
  %1084 = vmatpush.bf16.msra.mxu0 %v795
  %1085 = vmatpush.bf16.msra.mxu0 %v793
  %1086 = vmatpush.bf16.msra.mxu0 %v791
  %1087 = vmatpush.bf16.msra.mxu0 %v789
  %1088 = vmatpush.bf16.msra.mxu0 %v787
  %1089 = vmatpush.bf16.msra.mxu0 %v785
  %1090 = vmatpush.bf16.msra.mxu0 %v783
  %1091 = vmatmul.bf16.gmra.mxu0 %v255
  %v1092 = vpop.f32.mrf.mxu0
  %v1093 = vadd.f32 %v1074, %v1092
  %v1094 = vpop.f32.mrf.mxu0
  %v1095 = vadd.f32 %v1076, %v1094
  %1096 = vmatmul.bf16.gmra.mxu0 %v264
  %v1097 = vpop.f32.mrf.mxu0
  %v1098 = vadd.f32 %v1079, %v1097
  %v1099 = vpop.f32.mrf.mxu0
  %v1100 = vadd.f32 %v1081, %v1099
  %1101 = vdwg.mxu0
  %1102 = vmatpush.bf16.msra.mxu0 %v813
  %1103 = vmatpush.bf16.msra.mxu0 %v811
  %1104 = vmatpush.bf16.msra.mxu0 %v809
  %1105 = vmatpush.bf16.msra.mxu0 %v807
  %1106 = vmatpush.bf16.msra.mxu0 %v805
  %1107 = vmatpush.bf16.msra.mxu0 %v803
  %1108 = vmatpush.bf16.msra.mxu0 %v801
  %1109 = vmatpush.bf16.msra.mxu0 %v799
  %1110 = vmatmul.bf16.gmra.mxu0 %v256
  %v1111 = vpop.f32.mrf.mxu0
  %v1112 = vadd.f32 %v1093, %v1111
  %v1113 = vpop.f32.mrf.mxu0
  %v1114 = vadd.f32 %v1095, %v1113
  %1115 = vmatmul.bf16.gmra.mxu0 %v265
  %v1116 = vpop.f32.mrf.mxu0
  %v1117 = vadd.f32 %v1098, %v1116
  %v1118 = vpop.f32.mrf.mxu0
  %v1119 = vadd.f32 %v1100, %v1118
  %1120 = vdwg.mxu0
  %1121 = vmatpush.bf16.msra.mxu0 %v829
  %1122 = vmatpush.bf16.msra.mxu0 %v827
  %1123 = vmatpush.bf16.msra.mxu0 %v825
  %1124 = vmatpush.bf16.msra.mxu0 %v823
  %1125 = vmatpush.bf16.msra.mxu0 %v821
  %1126 = vmatpush.bf16.msra.mxu0 %v819
  %1127 = vmatpush.bf16.msra.mxu0 %v817
  %1128 = vmatpush.bf16.msra.mxu0 %v815
  %1129 = vmatmul.bf16.gmra.mxu0 %v257
  %v1130 = vpop.f32.mrf.mxu0
  %v1131 = vadd.f32 %v1112, %v1130
  %v1132 = vpop.f32.mrf.mxu0
  %v1133 = vadd.f32 %v1114, %v1132
  %1134 = vmatmul.bf16.gmra.mxu0 %v266
  %v1135 = vpop.f32.mrf.mxu0
  %v1136 = vadd.f32 %v1117, %v1135
  %v1137 = vpop.f32.mrf.mxu0
  %v1138 = vadd.f32 %v1119, %v1137
  %1139 = vdwg.mxu0
  %1140 = vmatpush.bf16.msra.mxu0 %v845
  %1141 = vmatpush.bf16.msra.mxu0 %v843
  %1142 = vmatpush.bf16.msra.mxu0 %v841
  %1143 = vmatpush.bf16.msra.mxu0 %v839
  %1144 = vmatpush.bf16.msra.mxu0 %v837
  %1145 = vmatpush.bf16.msra.mxu0 %v835
  %1146 = vmatpush.bf16.msra.mxu0 %v833
  %1147 = vmatpush.bf16.msra.mxu0 %v831
  %1148 = vmatmul.bf16.gmra.mxu0 %v258
  %v1149 = vpop.f32.mrf.mxu0
  %v1150 = vadd.f32 %v1131, %v1149
  %v1151 = vpop.f32.mrf.mxu0
  %v1152 = vadd.f32 %v1133, %v1151
  %1153 = vmatmul.bf16.gmra.mxu0 %v267
  %v1154 = vpop.f32.mrf.mxu0
  %v1155 = vadd.f32 %v1136, %v1154
  %v1156 = vpop.f32.mrf.mxu0
  %v1157 = vadd.f32 %v1138, %v1156
  %1158 = vdwg.mxu0
  %1159 = vmatpush.bf16.msra.mxu0 %v861
  %1160 = vmatpush.bf16.msra.mxu0 %v859
  %1161 = vmatpush.bf16.msra.mxu0 %v857
  %1162 = vmatpush.bf16.msra.mxu0 %v855
  %1163 = vmatpush.bf16.msra.mxu0 %v853
  %1164 = vmatpush.bf16.msra.mxu0 %v851
  %1165 = vmatpush.bf16.msra.mxu0 %v849
  %1166 = vmatpush.bf16.msra.mxu0 %v847
  %1167 = vmatmul.bf16.gmra.mxu0 %v259
  %v1168 = vpop.f32.mrf.mxu0
  %v1169 = vadd.f32 %v1150, %v1168
  %v1170 = vpop.f32.mrf.mxu0
  %v1171 = vadd.f32 %v1152, %v1170
  %1172 = vmatmul.bf16.gmra.mxu0 %v268
  %v1173 = vpop.f32.mrf.mxu0
  %v1174 = vadd.f32 %v1155, %v1173
  %v1175 = vpop.f32.mrf.mxu0
  %v1176 = vadd.f32 %v1157, %v1175
  %1177 = vdwg.mxu0
  %1178 = vmatpush.bf16.msra.mxu0 %v734
  %1179 = vmatpush.bf16.msra.mxu0 %v732
  %1180 = vmatpush.bf16.msra.mxu0 %v730
  %1181 = vmatpush.bf16.msra.mxu0 %v728
  %1182 = vmatpush.bf16.msra.mxu0 %v726
  %1183 = vmatpush.bf16.msra.mxu0 %v724
  %1184 = vmatpush.bf16.msra.mxu0 %v722
  %1185 = vmatpush.bf16.msra.mxu0 %v720
  %1186 = vmatmul.bf16.gmra.mxu0 %v251
  %v1187 = vpop.f32.mrf.mxu0
  %v1188 = vadd.f32 0.0, %v1187
  %v1189 = vpop.f32.mrf.mxu0
  %v1190 = vadd.f32 0.0, %v1189
  %1191 = vmatmul.bf16.gmra.mxu0 %v260
  %v1192 = vpop.f32.mrf.mxu0
  %v1193 = vadd.f32 0.0, %v1192
  %v1194 = vpop.f32.mrf.mxu0
  %v1195 = vadd.f32 0.0, %v1194
  %1196 = vdwg.mxu0
  %1197 = vmatpush.bf16.msra.mxu0 %v750
  %1198 = vmatpush.bf16.msra.mxu0 %v748
  %1199 = vmatpush.bf16.msra.mxu0 %v746
  %1200 = vmatpush.bf16.msra.mxu0 %v744
  %1201 = vmatpush.bf16.msra.mxu0 %v742
  %1202 = vmatpush.bf16.msra.mxu0 %v740
  %1203 = vmatpush.bf16.msra.mxu0 %v738
  %1204 = vmatpush.bf16.msra.mxu0 %v736
  %1205 = vmatmul.bf16.gmra.mxu0 %v252
  %v1206 = vpop.f32.mrf.mxu0
  %v1207 = vadd.f32 %v1188, %v1206
  %v1208 = vpop.f32.mrf.mxu0
  %v1209 = vadd.f32 %v1190, %v1208
  %1210 = vmatmul.bf16.gmra.mxu0 %v261
  %v1211 = vpop.f32.mrf.mxu0
  %v1212 = vadd.f32 %v1193, %v1211
  %v1213 = vpop.f32.mrf.mxu0
  %v1214 = vadd.f32 %v1195, %v1213
  %1215 = vdwg.mxu0
  %1216 = vmatpush.bf16.msra.mxu0 %v766
  %1217 = vmatpush.bf16.msra.mxu0 %v764
  %1218 = vmatpush.bf16.msra.mxu0 %v762
  %1219 = vmatpush.bf16.msra.mxu0 %v760
  %1220 = vmatpush.bf16.msra.mxu0 %v758
  %1221 = vmatpush.bf16.msra.mxu0 %v756
  %1222 = vmatpush.bf16.msra.mxu0 %v754
  %1223 = vmatpush.bf16.msra.mxu0 %v752
  %1224 = vmatmul.bf16.gmra.mxu0 %v253
  %v1225 = vpop.f32.mrf.mxu0
  %v1226 = vadd.f32 %v1207, %v1225
  %v1227 = vpop.f32.mrf.mxu0
  %v1228 = vadd.f32 %v1209, %v1227
  %1229 = vmatmul.bf16.gmra.mxu0 %v262
  %v1230 = vpop.f32.mrf.mxu0
  %v1231 = vadd.f32 %v1212, %v1230
  %v1232 = vpop.f32.mrf.mxu0
  %v1233 = vadd.f32 %v1214, %v1232
  %1234 = vdwg.mxu0
  %1235 = vmatpush.bf16.msra.mxu0 %v782
  %1236 = vmatpush.bf16.msra.mxu0 %v780
  %1237 = vmatpush.bf16.msra.mxu0 %v778
  %1238 = vmatpush.bf16.msra.mxu0 %v776
  %1239 = vmatpush.bf16.msra.mxu0 %v774
  %1240 = vmatpush.bf16.msra.mxu0 %v772
  %1241 = vmatpush.bf16.msra.mxu0 %v770
  %1242 = vmatpush.bf16.msra.mxu0 %v768
  %1243 = vmatmul.bf16.gmra.mxu0 %v254
  %v1244 = vpop.f32.mrf.mxu0
  %v1245 = vadd.f32 %v1226, %v1244
  %v1246 = vpop.f32.mrf.mxu0
  %v1247 = vadd.f32 %v1228, %v1246
  %1248 = vmatmul.bf16.gmra.mxu0 %v263
  %v1249 = vpop.f32.mrf.mxu0
  %v1250 = vadd.f32 %v1231, %v1249
  %v1251 = vpop.f32.mrf.mxu0
  %v1252 = vadd.f32 %v1233, %v1251
  %1253 = vdwg.mxu0
  %1254 = vmatpush.bf16.msra.mxu0 %v798
  %1255 = vmatpush.bf16.msra.mxu0 %v796
  %1256 = vmatpush.bf16.msra.mxu0 %v794
  %1257 = vmatpush.bf16.msra.mxu0 %v792
  %1258 = vmatpush.bf16.msra.mxu0 %v790
  %1259 = vmatpush.bf16.msra.mxu0 %v788
  %1260 = vmatpush.bf16.msra.mxu0 %v786
  %1261 = vmatpush.bf16.msra.mxu0 %v784
  %1262 = vmatmul.bf16.gmra.mxu0 %v255
  %v1263 = vpop.f32.mrf.mxu0
  %v1264 = vadd.f32 %v1245, %v1263
  %v1265 = vpop.f32.mrf.mxu0
  %v1266 = vadd.f32 %v1247, %v1265
  %1267 = vmatmul.bf16.gmra.mxu0 %v264
  %v1268 = vpop.f32.mrf.mxu0
  %v1269 = vadd.f32 %v1250, %v1268
  %v1270 = vpop.f32.mrf.mxu0
  %v1271 = vadd.f32 %v1252, %v1270
  %1272 = vdwg.mxu0
  %1273 = vmatpush.bf16.msra.mxu0 %v814
  %1274 = vmatpush.bf16.msra.mxu0 %v812
  %1275 = vmatpush.bf16.msra.mxu0 %v810
  %1276 = vmatpush.bf16.msra.mxu0 %v808
  %1277 = vmatpush.bf16.msra.mxu0 %v806
  %1278 = vmatpush.bf16.msra.mxu0 %v804
  %1279 = vmatpush.bf16.msra.mxu0 %v802
  %1280 = vmatpush.bf16.msra.mxu0 %v800
  %1281 = vmatmul.bf16.gmra.mxu0 %v256
  %v1282 = vpop.f32.mrf.mxu0
  %v1283 = vadd.f32 %v1264, %v1282
  %v1284 = vpop.f32.mrf.mxu0
  %v1285 = vadd.f32 %v1266, %v1284
  %1286 = vmatmul.bf16.gmra.mxu0 %v265
  %v1287 = vpop.f32.mrf.mxu0
  %v1288 = vadd.f32 %v1269, %v1287
  %v1289 = vpop.f32.mrf.mxu0
  %v1290 = vadd.f32 %v1271, %v1289
  %1291 = vdwg.mxu0
  %1292 = vmatpush.bf16.msra.mxu0 %v830
  %1293 = vmatpush.bf16.msra.mxu0 %v828
  %1294 = vmatpush.bf16.msra.mxu0 %v826
  %1295 = vmatpush.bf16.msra.mxu0 %v824
  %1296 = vmatpush.bf16.msra.mxu0 %v822
  %1297 = vmatpush.bf16.msra.mxu0 %v820
  %1298 = vmatpush.bf16.msra.mxu0 %v818
  %1299 = vmatpush.bf16.msra.mxu0 %v816
  %1300 = vmatmul.bf16.gmra.mxu0 %v257
  %v1301 = vpop.f32.mrf.mxu0
  %v1302 = vadd.f32 %v1283, %v1301
  %v1303 = vpop.f32.mrf.mxu0
  %v1304 = vadd.f32 %v1285, %v1303
  %1305 = vmatmul.bf16.gmra.mxu0 %v266
  %v1306 = vpop.f32.mrf.mxu0
  %v1307 = vadd.f32 %v1288, %v1306
  %v1308 = vpop.f32.mrf.mxu0
  %v1309 = vadd.f32 %v1290, %v1308
  %1310 = vdwg.mxu0
  %1311 = vmatpush.bf16.msra.mxu0 %v846
  %1312 = vmatpush.bf16.msra.mxu0 %v844
  %1313 = vmatpush.bf16.msra.mxu0 %v842
  %1314 = vmatpush.bf16.msra.mxu0 %v840
  %1315 = vmatpush.bf16.msra.mxu0 %v838
  %1316 = vmatpush.bf16.msra.mxu0 %v836
  %1317 = vmatpush.bf16.msra.mxu0 %v834
  %1318 = vmatpush.bf16.msra.mxu0 %v832
  %1319 = vmatmul.bf16.gmra.mxu0 %v258
  %v1320 = vpop.f32.mrf.mxu0
  %v1321 = vadd.f32 %v1302, %v1320
  %v1322 = vpop.f32.mrf.mxu0
  %v1323 = vadd.f32 %v1304, %v1322
  %1324 = vmatmul.bf16.gmra.mxu0 %v267
  %v1325 = vpop.f32.mrf.mxu0
  %v1326 = vadd.f32 %v1307, %v1325
  %v1327 = vpop.f32.mrf.mxu0
  %v1328 = vadd.f32 %v1309, %v1327
  %1329 = vdwg.mxu0
  %1330 = vmatpush.bf16.msra.mxu0 %v862
  %1331 = vmatpush.bf16.msra.mxu0 %v860
  %1332 = vmatpush.bf16.msra.mxu0 %v858
  %1333 = vmatpush.bf16.msra.mxu0 %v856
  %1334 = vmatpush.bf16.msra.mxu0 %v854
  %1335 = vmatpush.bf16.msra.mxu0 %v852
  %1336 = vmatpush.bf16.msra.mxu0 %v850
  %1337 = vmatpush.bf16.msra.mxu0 %v848
  %1338 = vmatmul.bf16.gmra.mxu0 %v259
  %v1339 = vpop.f32.mrf.mxu0
  %v1340 = vadd.f32 %v1321, %v1339
  %v1341 = vpop.f32.mrf.mxu0
  %v1342 = vadd.f32 %v1323, %v1341
  %1343 = vmatmul.bf16.gmra.mxu0 %v268
  %v1344 = vpop.f32.mrf.mxu0
  %v1345 = vadd.f32 %v1326, %v1344
  %v1346 = vpop.f32.mrf.mxu0
  %v1347 = vadd.f32 %v1328, %v1346
  %1348 = vdwg.mxu0
  %v1350 = vperm.slane %v173, 0
  %v1351 = vperm.slane %v173, 1
  %v1354 = vmul.f32 %v1169, %v1350
  %v1355 = vmul.f32 %v1340, %v1351
  %v1356 = vmul.f32 %v1171, %v1350
  %v1357 = vmul.f32 %v1342, %v1351
  %v1358 = vmul.f32 %v1174, %v1350
  %v1359 = vmul.f32 %v1345, %v1351
  %v1360 = vmul.f32 %v1176, %v1350
  %v1361 = vmul.f32 %v1347, %v1351
  %v1363 = vperm.slane %v174, 0
  %v1364 = vperm.slane %v174, 1
  %v1367 = vadd.f32 %v1354, %v1363
  %v1368 = vadd.f32 %v1355, %v1364
  %v1369 = vadd.f32 %v1356, %v1363
  %v1370 = vadd.f32 %v1357, %v1364
  %v1371 = vadd.f32 %v1358, %v1363
  %v1372 = vadd.f32 %v1359, %v1364
  %v1373 = vadd.f32 %v1360, %v1363
  %v1374 = vadd.f32 %v1361, %v1364
  %v1375 = vmax.f32 %v1367, %v1369
  %v1376 = vmax.f32 %v1368, %v1370
  %v1377 = vmax.f32 %v1371, %v1373
  %v1378 = vmax.f32 %v1372, %v1374
  %v1379 = vmax.f32 %v1375, %v1377
  %v1380 = vmax.f32 %v1376, %v1378
  %v1381 = vmax.f32 %v1379, 0.0
  %v1382 = vmax.f32 %v1380, 0.0
  %v1383 = vpack.c.bf16 %v1381, %v1381
  %v1384 = vpack.c.bf16 %v1382, %v1382
  %v1385 = vld [vmem:[%s4] sm:$0xff]
  %v1386 = vld [vmem:[%s4 + $0x8] sm:$0xff]
  %v1387 = vld [vmem:[%s4 + $0x10] sm:$0xff]
  %v1388 = vld [vmem:[%s4 + $0x18] sm:$0xff]
  %v1389 = vld [vmem:[%s4 + $0x20] sm:$0xff]
  %v1390 = vld [vmem:[%s4 + $0x28] sm:$0xff]
  %v1391 = vld [vmem:[%s4 + $0x30] sm:$0xff]
  %v1392 = vld [vmem:[%s4 + $0x38] sm:$0xff]
  %v1393 = vld [vmem:[%s4 + $0x40] sm:$0xff]
  %v1394 = vld [vmem:[%s4 + $0x48] sm:$0xff]
  %v1395 = vld [vmem:[%s4 + $0x50] sm:$0xff]
  %v1396 = vld [vmem:[%s4 + $0x58] sm:$0xff]
  %v1397 = vld [vmem:[%s4 + $0x60] sm:$0xff]
  %v1398 = vld [vmem:[%s4 + $0x68] sm:$0xff]
  %v1399 = vld [vmem:[%s4 + $0x70] sm:$0xff]
  %v1400 = vld [vmem:[%s4 + $0x78] sm:$0xff]
  %v1401 = vld [vmem:[%s4 + $0x80] sm:$0xff]
  %v1402 = vld [vmem:[%s4 + $0x88] sm:$0xff]
  %v1403 = vld [vmem:[%s4 + $0x90] sm:$0xff]
  %v1404 = vld [vmem:[%s4 + $0x98] sm:$0xff]
  %v1405 = vld [vmem:[%s4 + $0xa0] sm:$0xff]
  %v1406 = vld [vmem:[%s4 + $0xa8] sm:$0xff]
  %v1407 = vld [vmem:[%s4 + $0xb0] sm:$0xff]
  %v1408 = vld [vmem:[%s4 + $0xb8] sm:$0xff]
  %v1409 = vld [vmem:[%s4 + $0xc0] sm:$0xff]
  %v1410 = vld [vmem:[%s4 + $0xc8] sm:$0xff]
  %v1411 = vld [vmem:[%s4 + $0xd0] sm:$0xff]
  %v1412 = vld [vmem:[%s4 + $0xd8] sm:$0xff]
  %v1413 = vld [vmem:[%s4 + $0xe0] sm:$0xff]
  %v1414 = vld [vmem:[%s4 + $0xe8] sm:$0xff]
  %v1415 = vld [vmem:[%s4 + $0xf0] sm:$0xff]
  %v1416 = vld [vmem:[%s4 + $0xf8] sm:$0xff]
  %s1417 = scalar_lea.vmem %s0, 144
  %v1418 = vld [vmem:[%s1417] sm:$0xff]
  %v1419 = vld [vmem:[%s1417 + $0x8] sm:$0xff]
  %v1420 = vld [vmem:[%s1417 + $0x10] sm:$0xff]
  %v1421 = vld [vmem:[%s1417 + $0x18] sm:$0xff]
  %v1422 = vld [vmem:[%s1417 + $0x20] sm:$0xf]
  %v1423 = vld [vmem:[%s1417 + $0x24] sm:$0xff]
  %v1424 = vld [vmem:[%s1417 + $0x2c] sm:$0xff]
  %v1425 = vld [vmem:[%s1417 + $0x34] sm:$0xff]
  %v1426 = vld [vmem:[%s1417 + $0x3c] sm:$0xff]
  %v1427 = vld [vmem:[%s1417 + $0x44] sm:$0xf]
  %v1428 = vld [vmem:[%s1417 + $0x48] sm:$0xff]
  %v1429 = vld [vmem:[%s1417 + $0x50] sm:$0xff]
  %v1430 = vld [vmem:[%s1417 + $0x58] sm:$0xff]
  %v1431 = vld [vmem:[%s1417 + $0x60] sm:$0xff]
  %v1432 = vld [vmem:[%s1417 + $0x68] sm:$0xf]
  %v1433 = vld [vmem:[%s1417 + $0x6c] sm:$0xff]
  %v1434 = vld [vmem:[%s1417 + $0x74] sm:$0xff]
  %v1435 = vld [vmem:[%s1417 + $0x7c] sm:$0xff]
  %v1436 = vld [vmem:[%s1417 + $0x84] sm:$0xff]
  %v1437 = vld [vmem:[%s1417 + $0x8c] sm:$0xf]
  %v1458 = vunpack.c.l.b16 %v1418
  %v1459 = vunpack.c.h.b16 %v1418
  %v1460 = vunpack.c.l.b16 %v1419
  %v1461 = vunpack.c.h.b16 %v1419
  %v1462 = vunpack.c.l.b16 %v1420
  %v1463 = vunpack.c.h.b16 %v1420
  %v1464 = vunpack.c.l.b16 %v1421
  %v1465 = vunpack.c.h.b16 %v1421
  %v1466 = vunpack.c.l.b16 %v1422
  %v1467 = vunpack.c.l.b16 %v1423
  %v1468 = vunpack.c.h.b16 %v1423
  %v1469 = vunpack.c.l.b16 %v1424
  %v1470 = vunpack.c.h.b16 %v1424
  %v1471 = vunpack.c.l.b16 %v1425
  %v1472 = vunpack.c.h.b16 %v1425
  %v1473 = vunpack.c.l.b16 %v1426
  %v1474 = vunpack.c.h.b16 %v1426
  %v1475 = vunpack.c.l.b16 %v1427
  %v1476 = vunpack.c.l.b16 %v1428
  %v1477 = vunpack.c.h.b16 %v1428
  %v1478 = vunpack.c.l.b16 %v1429
  %v1479 = vunpack.c.h.b16 %v1429
  %v1480 = vunpack.c.l.b16 %v1430
  %v1481 = vunpack.c.h.b16 %v1430
  %v1482 = vunpack.c.l.b16 %v1431
  %v1483 = vunpack.c.h.b16 %v1431
  %v1484 = vunpack.c.l.b16 %v1432
  %v1485 = vunpack.c.l.b16 %v1433
  %v1486 = vunpack.c.h.b16 %v1433
  %v1487 = vunpack.c.l.b16 %v1434
  %v1488 = vunpack.c.h.b16 %v1434
  %v1489 = vunpack.c.l.b16 %v1435
  %v1490 = vunpack.c.h.b16 %v1435
  %v1491 = vunpack.c.l.b16 %v1436
  %v1492 = vunpack.c.h.b16 %v1436
  %v1493 = vunpack.c.l.b16 %v1437
  %v1494 = vpack.c.b16 %v1467, %v1458
  %v1495 = vpack.c.b16 %v1468, %v1459
  %v1496 = vpack.c.b16 %v1469, %v1460
  %v1497 = vpack.c.b16 %v1470, %v1461
  %v1498 = vpack.c.b16 %v1471, %v1462
  %v1499 = vpack.c.b16 %v1472, %v1463
  %v1500 = vpack.c.b16 %v1473, %v1464
  %v1501 = vpack.c.b16 %v1474, %v1465
  %v1502 = vpack.c.b16 %v1475, %v1466
  %v1503 = vpack.c.b16 %v1485, %v1476
  %v1504 = vpack.c.b16 %v1486, %v1477
  %v1505 = vpack.c.b16 %v1487, %v1478
  %v1506 = vpack.c.b16 %v1488, %v1479
  %v1507 = vpack.c.b16 %v1489, %v1480
  %v1508 = vpack.c.b16 %v1490, %v1481
  %v1509 = vpack.c.b16 %v1491, %v1482
  %v1510 = vpack.c.b16 %v1492, %v1483
  %v1511 = vpack.c.b16 %v1493, %v1484
  %1530 = vmatpush.bf16.msra.mxu0 %v733
  %1531 = vmatpush.bf16.msra.mxu0 %v731
  %1532 = vmatpush.bf16.msra.mxu0 %v729
  %1533 = vmatpush.bf16.msra.mxu0 %v727
  %1534 = vmatpush.bf16.msra.mxu0 %v725
  %1535 = vmatpush.bf16.msra.mxu0 %v723
  %1536 = vmatpush.bf16.msra.mxu0 %v721
  %1537 = vmatpush.bf16.msra.mxu0 %v719
  %1538 = vmatmul.bf16.gmra.mxu0 %v1494
  %v1539 = vpop.f32.mrf.mxu0
  %v1540 = vadd.f32 0.0, %v1539
  %v1541 = vpop.f32.mrf.mxu0
  %v1542 = vadd.f32 0.0, %v1541
  %1543 = vmatmul.bf16.gmra.mxu0 %v1503
  %v1544 = vpop.f32.mrf.mxu0
  %v1545 = vadd.f32 0.0, %v1544
  %v1546 = vpop.f32.mrf.mxu0
  %v1547 = vadd.f32 0.0, %v1546
  %1548 = vdwg.mxu0
  %1549 = vmatpush.bf16.msra.mxu0 %v749
  %1550 = vmatpush.bf16.msra.mxu0 %v747
  %1551 = vmatpush.bf16.msra.mxu0 %v745
  %1552 = vmatpush.bf16.msra.mxu0 %v743
  %1553 = vmatpush.bf16.msra.mxu0 %v741
  %1554 = vmatpush.bf16.msra.mxu0 %v739
  %1555 = vmatpush.bf16.msra.mxu0 %v737
  %1556 = vmatpush.bf16.msra.mxu0 %v735
  %1557 = vmatmul.bf16.gmra.mxu0 %v1495
  %v1558 = vpop.f32.mrf.mxu0
  %v1559 = vadd.f32 %v1540, %v1558
  %v1560 = vpop.f32.mrf.mxu0
  %v1561 = vadd.f32 %v1542, %v1560
  %1562 = vmatmul.bf16.gmra.mxu0 %v1504
  %v1563 = vpop.f32.mrf.mxu0
  %v1564 = vadd.f32 %v1545, %v1563
  %v1565 = vpop.f32.mrf.mxu0
  %v1566 = vadd.f32 %v1547, %v1565
  %1567 = vdwg.mxu0
  %1568 = vmatpush.bf16.msra.mxu0 %v765
  %1569 = vmatpush.bf16.msra.mxu0 %v763
  %1570 = vmatpush.bf16.msra.mxu0 %v761
  %1571 = vmatpush.bf16.msra.mxu0 %v759
  %1572 = vmatpush.bf16.msra.mxu0 %v757
  %1573 = vmatpush.bf16.msra.mxu0 %v755
  %1574 = vmatpush.bf16.msra.mxu0 %v753
  %1575 = vmatpush.bf16.msra.mxu0 %v751
  %1576 = vmatmul.bf16.gmra.mxu0 %v1496
  %v1577 = vpop.f32.mrf.mxu0
  %v1578 = vadd.f32 %v1559, %v1577
  %v1579 = vpop.f32.mrf.mxu0
  %v1580 = vadd.f32 %v1561, %v1579
  %1581 = vmatmul.bf16.gmra.mxu0 %v1505
  %v1582 = vpop.f32.mrf.mxu0
  %v1583 = vadd.f32 %v1564, %v1582
  %v1584 = vpop.f32.mrf.mxu0
  %v1585 = vadd.f32 %v1566, %v1584
  %1586 = vdwg.mxu0
  %1587 = vmatpush.bf16.msra.mxu0 %v781
  %1588 = vmatpush.bf16.msra.mxu0 %v779
  %1589 = vmatpush.bf16.msra.mxu0 %v777
  %1590 = vmatpush.bf16.msra.mxu0 %v775
  %1591 = vmatpush.bf16.msra.mxu0 %v773
  %1592 = vmatpush.bf16.msra.mxu0 %v771
  %1593 = vmatpush.bf16.msra.mxu0 %v769
  %1594 = vmatpush.bf16.msra.mxu0 %v767
  %1595 = vmatmul.bf16.gmra.mxu0 %v1497
  %v1596 = vpop.f32.mrf.mxu0
  %v1597 = vadd.f32 %v1578, %v1596
  %v1598 = vpop.f32.mrf.mxu0
  %v1599 = vadd.f32 %v1580, %v1598
  %1600 = vmatmul.bf16.gmra.mxu0 %v1506
  %v1601 = vpop.f32.mrf.mxu0
  %v1602 = vadd.f32 %v1583, %v1601
  %v1603 = vpop.f32.mrf.mxu0
  %v1604 = vadd.f32 %v1585, %v1603
  %1605 = vdwg.mxu0
  %1606 = vmatpush.bf16.msra.mxu0 %v797
  %1607 = vmatpush.bf16.msra.mxu0 %v795
  %1608 = vmatpush.bf16.msra.mxu0 %v793
  %1609 = vmatpush.bf16.msra.mxu0 %v791
  %1610 = vmatpush.bf16.msra.mxu0 %v789
  %1611 = vmatpush.bf16.msra.mxu0 %v787
  %1612 = vmatpush.bf16.msra.mxu0 %v785
  %1613 = vmatpush.bf16.msra.mxu0 %v783
  %1614 = vmatmul.bf16.gmra.mxu0 %v1498
  %v1615 = vpop.f32.mrf.mxu0
  %v1616 = vadd.f32 %v1597, %v1615
  %v1617 = vpop.f32.mrf.mxu0
  %v1618 = vadd.f32 %v1599, %v1617
  %1619 = vmatmul.bf16.gmra.mxu0 %v1507
  %v1620 = vpop.f32.mrf.mxu0
  %v1621 = vadd.f32 %v1602, %v1620
  %v1622 = vpop.f32.mrf.mxu0
  %v1623 = vadd.f32 %v1604, %v1622
  %1624 = vdwg.mxu0
  %1625 = vmatpush.bf16.msra.mxu0 %v813
  %1626 = vmatpush.bf16.msra.mxu0 %v811
  %1627 = vmatpush.bf16.msra.mxu0 %v809
  %1628 = vmatpush.bf16.msra.mxu0 %v807
  %1629 = vmatpush.bf16.msra.mxu0 %v805
  %1630 = vmatpush.bf16.msra.mxu0 %v803
  %1631 = vmatpush.bf16.msra.mxu0 %v801
  %1632 = vmatpush.bf16.msra.mxu0 %v799
  %1633 = vmatmul.bf16.gmra.mxu0 %v1499
  %v1634 = vpop.f32.mrf.mxu0
  %v1635 = vadd.f32 %v1616, %v1634
  %v1636 = vpop.f32.mrf.mxu0
  %v1637 = vadd.f32 %v1618, %v1636
  %1638 = vmatmul.bf16.gmra.mxu0 %v1508
  %v1639 = vpop.f32.mrf.mxu0
  %v1640 = vadd.f32 %v1621, %v1639
  %v1641 = vpop.f32.mrf.mxu0
  %v1642 = vadd.f32 %v1623, %v1641
  %1643 = vdwg.mxu0
  %1644 = vmatpush.bf16.msra.mxu0 %v829
  %1645 = vmatpush.bf16.msra.mxu0 %v827
  %1646 = vmatpush.bf16.msra.mxu0 %v825
  %1647 = vmatpush.bf16.msra.mxu0 %v823
  %1648 = vmatpush.bf16.msra.mxu0 %v821
  %1649 = vmatpush.bf16.msra.mxu0 %v819
  %1650 = vmatpush.bf16.msra.mxu0 %v817
  %1651 = vmatpush.bf16.msra.mxu0 %v815
  %1652 = vmatmul.bf16.gmra.mxu0 %v1500
  %v1653 = vpop.f32.mrf.mxu0
  %v1654 = vadd.f32 %v1635, %v1653
  %v1655 = vpop.f32.mrf.mxu0
  %v1656 = vadd.f32 %v1637, %v1655
  %1657 = vmatmul.bf16.gmra.mxu0 %v1509
  %v1658 = vpop.f32.mrf.mxu0
  %v1659 = vadd.f32 %v1640, %v1658
  %v1660 = vpop.f32.mrf.mxu0
  %v1661 = vadd.f32 %v1642, %v1660
  %1662 = vdwg.mxu0
  %1663 = vmatpush.bf16.msra.mxu0 %v845
  %1664 = vmatpush.bf16.msra.mxu0 %v843
  %1665 = vmatpush.bf16.msra.mxu0 %v841
  %1666 = vmatpush.bf16.msra.mxu0 %v839
  %1667 = vmatpush.bf16.msra.mxu0 %v837
  %1668 = vmatpush.bf16.msra.mxu0 %v835
  %1669 = vmatpush.bf16.msra.mxu0 %v833
  %1670 = vmatpush.bf16.msra.mxu0 %v831
  %1671 = vmatmul.bf16.gmra.mxu0 %v1501
  %v1672 = vpop.f32.mrf.mxu0
  %v1673 = vadd.f32 %v1654, %v1672
  %v1674 = vpop.f32.mrf.mxu0
  %v1675 = vadd.f32 %v1656, %v1674
  %1676 = vmatmul.bf16.gmra.mxu0 %v1510
  %v1677 = vpop.f32.mrf.mxu0
  %v1678 = vadd.f32 %v1659, %v1677
  %v1679 = vpop.f32.mrf.mxu0
  %v1680 = vadd.f32 %v1661, %v1679
  %1681 = vdwg.mxu0
  %1682 = vmatpush.bf16.msra.mxu0 %v861
  %1683 = vmatpush.bf16.msra.mxu0 %v859
  %1684 = vmatpush.bf16.msra.mxu0 %v857
  %1685 = vmatpush.bf16.msra.mxu0 %v855
  %1686 = vmatpush.bf16.msra.mxu0 %v853
  %1687 = vmatpush.bf16.msra.mxu0 %v851
  %1688 = vmatpush.bf16.msra.mxu0 %v849
  %1689 = vmatpush.bf16.msra.mxu0 %v847
  %1690 = vmatmul.bf16.gmra.mxu0 %v1502
  %v1691 = vpop.f32.mrf.mxu0
  %v1692 = vadd.f32 %v1673, %v1691
  %v1693 = vpop.f32.mrf.mxu0
  %v1694 = vadd.f32 %v1675, %v1693
  %1695 = vmatmul.bf16.gmra.mxu0 %v1511
  %v1696 = vpop.f32.mrf.mxu0
  %v1697 = vadd.f32 %v1678, %v1696
  %v1698 = vpop.f32.mrf.mxu0
  %v1699 = vadd.f32 %v1680, %v1698
  %1700 = vdwg.mxu0
  %1701 = vmatpush.bf16.msra.mxu0 %v734
  %1702 = vmatpush.bf16.msra.mxu0 %v732
  %1703 = vmatpush.bf16.msra.mxu0 %v730
  %1704 = vmatpush.bf16.msra.mxu0 %v728
  %1705 = vmatpush.bf16.msra.mxu0 %v726
  %1706 = vmatpush.bf16.msra.mxu0 %v724
  %1707 = vmatpush.bf16.msra.mxu0 %v722
  %1708 = vmatpush.bf16.msra.mxu0 %v720
  %1709 = vmatmul.bf16.gmra.mxu0 %v1494
  %v1710 = vpop.f32.mrf.mxu0
  %v1711 = vadd.f32 0.0, %v1710
  %v1712 = vpop.f32.mrf.mxu0
  %v1713 = vadd.f32 0.0, %v1712
  %1714 = vmatmul.bf16.gmra.mxu0 %v1503
  %v1715 = vpop.f32.mrf.mxu0
  %v1716 = vadd.f32 0.0, %v1715
  %v1717 = vpop.f32.mrf.mxu0
  %v1718 = vadd.f32 0.0, %v1717
  %1719 = vdwg.mxu0
  %1720 = vmatpush.bf16.msra.mxu0 %v750
  %1721 = vmatpush.bf16.msra.mxu0 %v748
  %1722 = vmatpush.bf16.msra.mxu0 %v746
  %1723 = vmatpush.bf16.msra.mxu0 %v744
  %1724 = vmatpush.bf16.msra.mxu0 %v742
  %1725 = vmatpush.bf16.msra.mxu0 %v740
  %1726 = vmatpush.bf16.msra.mxu0 %v738
  %1727 = vmatpush.bf16.msra.mxu0 %v736
  %1728 = vmatmul.bf16.gmra.mxu0 %v1495
  %v1729 = vpop.f32.mrf.mxu0
  %v1730 = vadd.f32 %v1711, %v1729
  %v1731 = vpop.f32.mrf.mxu0
  %v1732 = vadd.f32 %v1713, %v1731
  %1733 = vmatmul.bf16.gmra.mxu0 %v1504
  %v1734 = vpop.f32.mrf.mxu0
  %v1735 = vadd.f32 %v1716, %v1734
  %v1736 = vpop.f32.mrf.mxu0
  %v1737 = vadd.f32 %v1718, %v1736
  %1738 = vdwg.mxu0
  %1739 = vmatpush.bf16.msra.mxu0 %v766
  %1740 = vmatpush.bf16.msra.mxu0 %v764
  %1741 = vmatpush.bf16.msra.mxu0 %v762
  %1742 = vmatpush.bf16.msra.mxu0 %v760
  %1743 = vmatpush.bf16.msra.mxu0 %v758
  %1744 = vmatpush.bf16.msra.mxu0 %v756
  %1745 = vmatpush.bf16.msra.mxu0 %v754
  %1746 = vmatpush.bf16.msra.mxu0 %v752
  %1747 = vmatmul.bf16.gmra.mxu0 %v1496
  %v1748 = vpop.f32.mrf.mxu0
  %v1749 = vadd.f32 %v1730, %v1748
  %v1750 = vpop.f32.mrf.mxu0
  %v1751 = vadd.f32 %v1732, %v1750
  %1752 = vmatmul.bf16.gmra.mxu0 %v1505
  %v1753 = vpop.f32.mrf.mxu0
  %v1754 = vadd.f32 %v1735, %v1753
  %v1755 = vpop.f32.mrf.mxu0
  %v1756 = vadd.f32 %v1737, %v1755
  %1757 = vdwg.mxu0
  %1758 = vmatpush.bf16.msra.mxu0 %v782
  %1759 = vmatpush.bf16.msra.mxu0 %v780
  %1760 = vmatpush.bf16.msra.mxu0 %v778
  %1761 = vmatpush.bf16.msra.mxu0 %v776
  %1762 = vmatpush.bf16.msra.mxu0 %v774
  %1763 = vmatpush.bf16.msra.mxu0 %v772
  %1764 = vmatpush.bf16.msra.mxu0 %v770
  %1765 = vmatpush.bf16.msra.mxu0 %v768
  %1766 = vmatmul.bf16.gmra.mxu0 %v1497
  %v1767 = vpop.f32.mrf.mxu0
  %v1768 = vadd.f32 %v1749, %v1767
  %v1769 = vpop.f32.mrf.mxu0
  %v1770 = vadd.f32 %v1751, %v1769
  %1771 = vmatmul.bf16.gmra.mxu0 %v1506
  %v1772 = vpop.f32.mrf.mxu0
  %v1773 = vadd.f32 %v1754, %v1772
  %v1774 = vpop.f32.mrf.mxu0
  %v1775 = vadd.f32 %v1756, %v1774
  %1776 = vdwg.mxu0
  %1777 = vmatpush.bf16.msra.mxu0 %v798
  %1778 = vmatpush.bf16.msra.mxu0 %v796
  %1779 = vmatpush.bf16.msra.mxu0 %v794
  %1780 = vmatpush.bf16.msra.mxu0 %v792
  %1781 = vmatpush.bf16.msra.mxu0 %v790
  %1782 = vmatpush.bf16.msra.mxu0 %v788
  %1783 = vmatpush.bf16.msra.mxu0 %v786
  %1784 = vmatpush.bf16.msra.mxu0 %v784
  %1785 = vmatmul.bf16.gmra.mxu0 %v1498
  %v1786 = vpop.f32.mrf.mxu0
  %v1787 = vadd.f32 %v1768, %v1786
  %v1788 = vpop.f32.mrf.mxu0
  %v1789 = vadd.f32 %v1770, %v1788
  %1790 = vmatmul.bf16.gmra.mxu0 %v1507
  %v1791 = vpop.f32.mrf.mxu0
  %v1792 = vadd.f32 %v1773, %v1791
  %v1793 = vpop.f32.mrf.mxu0
  %v1794 = vadd.f32 %v1775, %v1793
  %1795 = vdwg.mxu0
  %1796 = vmatpush.bf16.msra.mxu0 %v814
  %1797 = vmatpush.bf16.msra.mxu0 %v812
  %1798 = vmatpush.bf16.msra.mxu0 %v810
  %1799 = vmatpush.bf16.msra.mxu0 %v808
  %1800 = vmatpush.bf16.msra.mxu0 %v806
  %1801 = vmatpush.bf16.msra.mxu0 %v804
  %1802 = vmatpush.bf16.msra.mxu0 %v802
  %1803 = vmatpush.bf16.msra.mxu0 %v800
  %1804 = vmatmul.bf16.gmra.mxu0 %v1499
  %v1805 = vpop.f32.mrf.mxu0
  %v1806 = vadd.f32 %v1787, %v1805
  %v1807 = vpop.f32.mrf.mxu0
  %v1808 = vadd.f32 %v1789, %v1807
  %1809 = vmatmul.bf16.gmra.mxu0 %v1508
  %v1810 = vpop.f32.mrf.mxu0
  %v1811 = vadd.f32 %v1792, %v1810
  %v1812 = vpop.f32.mrf.mxu0
  %v1813 = vadd.f32 %v1794, %v1812
  %1814 = vdwg.mxu0
  %1815 = vmatpush.bf16.msra.mxu0 %v830
  %1816 = vmatpush.bf16.msra.mxu0 %v828
  %1817 = vmatpush.bf16.msra.mxu0 %v826
  %1818 = vmatpush.bf16.msra.mxu0 %v824
  %1819 = vmatpush.bf16.msra.mxu0 %v822
  %1820 = vmatpush.bf16.msra.mxu0 %v820
  %1821 = vmatpush.bf16.msra.mxu0 %v818
  %1822 = vmatpush.bf16.msra.mxu0 %v816
  %1823 = vmatmul.bf16.gmra.mxu0 %v1500
  %v1824 = vpop.f32.mrf.mxu0
  %v1825 = vadd.f32 %v1806, %v1824
  %v1826 = vpop.f32.mrf.mxu0
  %v1827 = vadd.f32 %v1808, %v1826
  %1828 = vmatmul.bf16.gmra.mxu0 %v1509
  %v1829 = vpop.f32.mrf.mxu0
  %v1830 = vadd.f32 %v1811, %v1829
  %v1831 = vpop.f32.mrf.mxu0
  %v1832 = vadd.f32 %v1813, %v1831
  %1833 = vdwg.mxu0
  %1834 = vmatpush.bf16.msra.mxu0 %v846
  %1835 = vmatpush.bf16.msra.mxu0 %v844
  %1836 = vmatpush.bf16.msra.mxu0 %v842
  %1837 = vmatpush.bf16.msra.mxu0 %v840
  %1838 = vmatpush.bf16.msra.mxu0 %v838
  %1839 = vmatpush.bf16.msra.mxu0 %v836
  %1840 = vmatpush.bf16.msra.mxu0 %v834
  %1841 = vmatpush.bf16.msra.mxu0 %v832
  %1842 = vmatmul.bf16.gmra.mxu0 %v1501
  %v1843 = vpop.f32.mrf.mxu0
  %v1844 = vadd.f32 %v1825, %v1843
  %v1845 = vpop.f32.mrf.mxu0
  %v1846 = vadd.f32 %v1827, %v1845
  %1847 = vmatmul.bf16.gmra.mxu0 %v1510
  %v1848 = vpop.f32.mrf.mxu0
  %v1849 = vadd.f32 %v1830, %v1848
  %v1850 = vpop.f32.mrf.mxu0
  %v1851 = vadd.f32 %v1832, %v1850
  %1852 = vdwg.mxu0
  %1853 = vmatpush.bf16.msra.mxu0 %v862
  %1854 = vmatpush.bf16.msra.mxu0 %v860
  %1855 = vmatpush.bf16.msra.mxu0 %v858
  %1856 = vmatpush.bf16.msra.mxu0 %v856
  %1857 = vmatpush.bf16.msra.mxu0 %v854
  %1858 = vmatpush.bf16.msra.mxu0 %v852
  %1859 = vmatpush.bf16.msra.mxu0 %v850
  %1860 = vmatpush.bf16.msra.mxu0 %v848
  %1861 = vmatmul.bf16.gmra.mxu0 %v1502
  %v1862 = vpop.f32.mrf.mxu0
  %v1863 = vadd.f32 %v1844, %v1862
  %v1864 = vpop.f32.mrf.mxu0
  %v1865 = vadd.f32 %v1846, %v1864
  %1866 = vmatmul.bf16.gmra.mxu0 %v1511
  %v1867 = vpop.f32.mrf.mxu0
  %v1868 = vadd.f32 %v1849, %v1867
  %v1869 = vpop.f32.mrf.mxu0
  %v1870 = vadd.f32 %v1851, %v1869
  %1871 = vdwg.mxu0
  %v1872 = vmul.f32 %v1692, %v1350
  %v1873 = vmul.f32 %v1863, %v1351
  %v1874 = vmul.f32 %v1694, %v1350
  %v1875 = vmul.f32 %v1865, %v1351
  %v1876 = vmul.f32 %v1697, %v1350
  %v1877 = vmul.f32 %v1868, %v1351
  %v1878 = vmul.f32 %v1699, %v1350
  %v1879 = vmul.f32 %v1870, %v1351
  %v1880 = vadd.f32 %v1872, %v1363
  %v1881 = vadd.f32 %v1873, %v1364
  %v1882 = vadd.f32 %v1874, %v1363
  %v1883 = vadd.f32 %v1875, %v1364
  %v1884 = vadd.f32 %v1876, %v1363
  %v1885 = vadd.f32 %v1877, %v1364
  %v1886 = vadd.f32 %v1878, %v1363
  %v1887 = vadd.f32 %v1879, %v1364
  %v1888 = vmax.f32 %v1880, %v1882
  %v1889 = vmax.f32 %v1881, %v1883
  %v1890 = vmax.f32 %v1884, %v1886
  %v1891 = vmax.f32 %v1885, %v1887
  %v1892 = vmax.f32 %v1888, %v1890
  %v1893 = vmax.f32 %v1889, %v1891
  %v1894 = vmax.f32 %v1892, 0.0
  %v1895 = vmax.f32 %v1893, 0.0
  %v1896 = vpack.c.bf16 %v1894, %v1894
  %v1897 = vpack.c.bf16 %v1895, %v1895
  %s1898 = scalar_lea.vmem %s4, 256
  %v1899 = vld [vmem:[%s1898] sm:$0xff]
  %v1900 = vld [vmem:[%s1898 + $0x8] sm:$0xff]
  %v1901 = vld [vmem:[%s1898 + $0x10] sm:$0xff]
  %v1902 = vld [vmem:[%s1898 + $0x18] sm:$0xff]
  %v1903 = vld [vmem:[%s1898 + $0x20] sm:$0xff]
  %v1904 = vld [vmem:[%s1898 + $0x28] sm:$0xff]
  %v1905 = vld [vmem:[%s1898 + $0x30] sm:$0xff]
  %v1906 = vld [vmem:[%s1898 + $0x38] sm:$0xff]
  %v1907 = vld [vmem:[%s1898 + $0x40] sm:$0xff]
  %v1908 = vld [vmem:[%s1898 + $0x48] sm:$0xff]
  %v1909 = vld [vmem:[%s1898 + $0x50] sm:$0xff]
  %v1910 = vld [vmem:[%s1898 + $0x58] sm:$0xff]
  %v1911 = vld [vmem:[%s1898 + $0x60] sm:$0xff]
  %v1912 = vld [vmem:[%s1898 + $0x68] sm:$0xff]
  %v1913 = vld [vmem:[%s1898 + $0x70] sm:$0xff]
  %v1914 = vld [vmem:[%s1898 + $0x78] sm:$0xff]
  %v1915 = vld [vmem:[%s1898 + $0x80] sm:$0xff]
  %v1916 = vld [vmem:[%s1898 + $0x88] sm:$0xff]
  %v1917 = vld [vmem:[%s1898 + $0x90] sm:$0xff]
  %v1918 = vld [vmem:[%s1898 + $0x98] sm:$0xff]
  %v1919 = vld [vmem:[%s1898 + $0xa0] sm:$0xff]
  %v1920 = vld [vmem:[%s1898 + $0xa8] sm:$0xff]
  %v1921 = vld [vmem:[%s1898 + $0xb0] sm:$0xff]
  %v1922 = vld [vmem:[%s1898 + $0xb8] sm:$0xff]
  %v1923 = vld [vmem:[%s1898 + $0xc0] sm:$0xff]
  %v1924 = vld [vmem:[%s1898 + $0xc8] sm:$0xff]
  %v1925 = vld [vmem:[%s1898 + $0xd0] sm:$0xff]
  %v1926 = vld [vmem:[%s1898 + $0xd8] sm:$0xff]
  %v1927 = vld [vmem:[%s1898 + $0xe0] sm:$0xff]
  %v1928 = vld [vmem:[%s1898 + $0xe8] sm:$0xff]
  %v1929 = vld [vmem:[%s1898 + $0xf0] sm:$0xff]
  %v1930 = vld [vmem:[%s1898 + $0xf8] sm:$0xff]
  %v1963 = vunpack.c.l.b16 %v1899
  %v1964 = vunpack.c.h.b16 %v1899
  %v1965 = vunpack.c.l.b16 %v1900
  %v1966 = vunpack.c.h.b16 %v1900
  %v1967 = vunpack.c.l.b16 %v1901
  %v1968 = vunpack.c.h.b16 %v1901
  %v1969 = vunpack.c.l.b16 %v1902
  %v1970 = vunpack.c.h.b16 %v1902
  %v1971 = vunpack.c.l.b16 %v1903
  %v1972 = vunpack.c.h.b16 %v1903
  %v1973 = vunpack.c.l.b16 %v1904
  %v1974 = vunpack.c.h.b16 %v1904
  %v1975 = vunpack.c.l.b16 %v1905
  %v1976 = vunpack.c.h.b16 %v1905
  %v1977 = vunpack.c.l.b16 %v1906
  %v1978 = vunpack.c.h.b16 %v1906
  %v1979 = vunpack.c.l.b16 %v1907
  %v1980 = vunpack.c.h.b16 %v1907
  %v1981 = vunpack.c.l.b16 %v1908
  %v1982 = vunpack.c.h.b16 %v1908
  %v1983 = vunpack.c.l.b16 %v1909
  %v1984 = vunpack.c.h.b16 %v1909
  %v1985 = vunpack.c.l.b16 %v1910
  %v1986 = vunpack.c.h.b16 %v1910
  %v1987 = vunpack.c.l.b16 %v1911
  %v1988 = vunpack.c.h.b16 %v1911
  %v1989 = vunpack.c.l.b16 %v1912
  %v1990 = vunpack.c.h.b16 %v1912
  %v1991 = vunpack.c.l.b16 %v1913
  %v1992 = vunpack.c.h.b16 %v1913
  %v1993 = vunpack.c.l.b16 %v1914
  %v1994 = vunpack.c.h.b16 %v1914
  %v1995 = vunpack.c.l.b16 %v1915
  %v1996 = vunpack.c.h.b16 %v1915
  %v1997 = vunpack.c.l.b16 %v1916
  %v1998 = vunpack.c.h.b16 %v1916
  %v1999 = vunpack.c.l.b16 %v1917
  %v2000 = vunpack.c.h.b16 %v1917
  %v2001 = vunpack.c.l.b16 %v1918
  %v2002 = vunpack.c.h.b16 %v1918
  %v2003 = vunpack.c.l.b16 %v1919
  %v2004 = vunpack.c.h.b16 %v1919
  %v2005 = vunpack.c.l.b16 %v1920
  %v2006 = vunpack.c.h.b16 %v1920
  %v2007 = vunpack.c.l.b16 %v1921
  %v2008 = vunpack.c.h.b16 %v1921
  %v2009 = vunpack.c.l.b16 %v1922
  %v2010 = vunpack.c.h.b16 %v1922
  %v2011 = vunpack.c.l.b16 %v1923
  %v2012 = vunpack.c.h.b16 %v1923
  %v2013 = vunpack.c.l.b16 %v1924
  %v2014 = vunpack.c.h.b16 %v1924
  %v2015 = vunpack.c.l.b16 %v1925
  %v2016 = vunpack.c.h.b16 %v1925
  %v2017 = vunpack.c.l.b16 %v1926
  %v2018 = vunpack.c.h.b16 %v1926
  %v2019 = vunpack.c.l.b16 %v1927
  %v2020 = vunpack.c.h.b16 %v1927
  %v2021 = vunpack.c.l.b16 %v1928
  %v2022 = vunpack.c.h.b16 %v1928
  %v2023 = vunpack.c.l.b16 %v1929
  %v2024 = vunpack.c.h.b16 %v1929
  %v2025 = vunpack.c.l.b16 %v1930
  %v2026 = vunpack.c.h.b16 %v1930
  %v2027 = vpack.c.b16 %v1965, %v1963
  %v2028 = vpack.c.b16 %v1966, %v1964
  %v2029 = vpack.c.b16 %v1969, %v1967
  %v2030 = vpack.c.b16 %v1970, %v1968
  %v2031 = vpack.c.b16 %v1973, %v1971
  %v2032 = vpack.c.b16 %v1974, %v1972
  %v2033 = vpack.c.b16 %v1977, %v1975
  %v2034 = vpack.c.b16 %v1978, %v1976
  %v2035 = vpack.c.b16 %v1981, %v1979
  %v2036 = vpack.c.b16 %v1982, %v1980
  %v2037 = vpack.c.b16 %v1985, %v1983
  %v2038 = vpack.c.b16 %v1986, %v1984
  %v2039 = vpack.c.b16 %v1989, %v1987
  %v2040 = vpack.c.b16 %v1990, %v1988
  %v2041 = vpack.c.b16 %v1993, %v1991
  %v2042 = vpack.c.b16 %v1994, %v1992
  %v2043 = vpack.c.b16 %v1997, %v1995
  %v2044 = vpack.c.b16 %v1998, %v1996
  %v2045 = vpack.c.b16 %v2001, %v1999
  %v2046 = vpack.c.b16 %v2002, %v2000
  %v2047 = vpack.c.b16 %v2005, %v2003
  %v2048 = vpack.c.b16 %v2006, %v2004
  %v2049 = vpack.c.b16 %v2009, %v2007
  %v2050 = vpack.c.b16 %v2010, %v2008
  %v2051 = vpack.c.b16 %v2013, %v2011
  %v2052 = vpack.c.b16 %v2014, %v2012
  %v2053 = vpack.c.b16 %v2017, %v2015
  %v2054 = vpack.c.b16 %v2018, %v2016
  %v2055 = vpack.c.b16 %v2021, %v2019
  %v2056 = vpack.c.b16 %v2022, %v2020
  %v2057 = vpack.c.b16 %v2025, %v2023
  %v2058 = vpack.c.b16 %v2026, %v2024
  %2091 = vmatpush.bf16.msra.mxu0 %v2041
  %2092 = vmatpush.bf16.msra.mxu0 %v2039
  %2093 = vmatpush.bf16.msra.mxu0 %v2037
  %2094 = vmatpush.bf16.msra.mxu0 %v2035
  %2095 = vmatpush.bf16.msra.mxu0 %v2033
  %2096 = vmatpush.bf16.msra.mxu0 %v2031
  %2097 = vmatpush.bf16.msra.mxu0 %v2029
  %2098 = vmatpush.bf16.msra.mxu0 %v2027
  %2099 = vmatmul.bf16.gmra.mxu0 %v1896
  %v2100 = vpop.f32.mrf.mxu0
  %v2101 = vadd.f32 0.0, %v2100
  %v2102 = vpop.f32.mrf.mxu0
  %2103 = vdwg.mxu0
  %2104 = vmatpush.bf16.msra.mxu0 %v2057
  %2105 = vmatpush.bf16.msra.mxu0 %v2055
  %2106 = vmatpush.bf16.msra.mxu0 %v2053
  %2107 = vmatpush.bf16.msra.mxu0 %v2051
  %2108 = vmatpush.bf16.msra.mxu0 %v2049
  %2109 = vmatpush.bf16.msra.mxu0 %v2047
  %2110 = vmatpush.bf16.msra.mxu0 %v2045
  %2111 = vmatpush.bf16.msra.mxu0 %v2043
  %2112 = vmatmul.bf16.gmra.mxu0 %v1897
  %v2113 = vpop.f32.mrf.mxu0
  %v2114 = vadd.f32 %v2101, %v2113
  %v2115 = vpop.f32.mrf.mxu0
  %2116 = vdwg.mxu0
  %2117 = vmatpush.bf16.msra.mxu0 %v2042
  %2118 = vmatpush.bf16.msra.mxu0 %v2040
  %2119 = vmatpush.bf16.msra.mxu0 %v2038
  %2120 = vmatpush.bf16.msra.mxu0 %v2036
  %2121 = vmatpush.bf16.msra.mxu0 %v2034
  %2122 = vmatpush.bf16.msra.mxu0 %v2032
  %2123 = vmatpush.bf16.msra.mxu0 %v2030
  %2124 = vmatpush.bf16.msra.mxu0 %v2028
  %2125 = vmatmul.bf16.gmra.mxu0 %v1896
  %v2126 = vpop.f32.mrf.mxu0
  %v2127 = vadd.f32 0.0, %v2126
  %v2128 = vpop.f32.mrf.mxu0
  %2129 = vdwg.mxu0
  %2130 = vmatpush.bf16.msra.mxu0 %v2058
  %2131 = vmatpush.bf16.msra.mxu0 %v2056
  %2132 = vmatpush.bf16.msra.mxu0 %v2054
  %2133 = vmatpush.bf16.msra.mxu0 %v2052
  %2134 = vmatpush.bf16.msra.mxu0 %v2050
  %2135 = vmatpush.bf16.msra.mxu0 %v2048
  %2136 = vmatpush.bf16.msra.mxu0 %v2046
  %2137 = vmatpush.bf16.msra.mxu0 %v2044
  %2138 = vmatmul.bf16.gmra.mxu0 %v1897
  %v2139 = vpop.f32.mrf.mxu0
  %v2140 = vadd.f32 %v2127, %v2139
  %v2141 = vpop.f32.mrf.mxu0
  %2142 = vdwg.mxu0
  %v2175 = vunpack.c.l.b16 %v1385
  %v2176 = vunpack.c.h.b16 %v1385
  %v2177 = vunpack.c.l.b16 %v1386
  %v2178 = vunpack.c.h.b16 %v1386
  %v2179 = vunpack.c.l.b16 %v1387
  %v2180 = vunpack.c.h.b16 %v1387
  %v2181 = vunpack.c.l.b16 %v1388
  %v2182 = vunpack.c.h.b16 %v1388
  %v2183 = vunpack.c.l.b16 %v1389
  %v2184 = vunpack.c.h.b16 %v1389
  %v2185 = vunpack.c.l.b16 %v1390
  %v2186 = vunpack.c.h.b16 %v1390
  %v2187 = vunpack.c.l.b16 %v1391
  %v2188 = vunpack.c.h.b16 %v1391
  %v2189 = vunpack.c.l.b16 %v1392
  %v2190 = vunpack.c.h.b16 %v1392
  %v2191 = vunpack.c.l.b16 %v1393
  %v2192 = vunpack.c.h.b16 %v1393
  %v2193 = vunpack.c.l.b16 %v1394
  %v2194 = vunpack.c.h.b16 %v1394
  %v2195 = vunpack.c.l.b16 %v1395
  %v2196 = vunpack.c.h.b16 %v1395
  %v2197 = vunpack.c.l.b16 %v1396
  %v2198 = vunpack.c.h.b16 %v1396
  %v2199 = vunpack.c.l.b16 %v1397
  %v2200 = vunpack.c.h.b16 %v1397
  %v2201 = vunpack.c.l.b16 %v1398
  %v2202 = vunpack.c.h.b16 %v1398
  %v2203 = vunpack.c.l.b16 %v1399
  %v2204 = vunpack.c.h.b16 %v1399
  %v2205 = vunpack.c.l.b16 %v1400
  %v2206 = vunpack.c.h.b16 %v1400
  %v2207 = vunpack.c.l.b16 %v1401
  %v2208 = vunpack.c.h.b16 %v1401
  %v2209 = vunpack.c.l.b16 %v1402
  %v2210 = vunpack.c.h.b16 %v1402
  %v2211 = vunpack.c.l.b16 %v1403
  %v2212 = vunpack.c.h.b16 %v1403
  %v2213 = vunpack.c.l.b16 %v1404
  %v2214 = vunpack.c.h.b16 %v1404
  %v2215 = vunpack.c.l.b16 %v1405
  %v2216 = vunpack.c.h.b16 %v1405
  %v2217 = vunpack.c.l.b16 %v1406
  %v2218 = vunpack.c.h.b16 %v1406
  %v2219 = vunpack.c.l.b16 %v1407
  %v2220 = vunpack.c.h.b16 %v1407
  %v2221 = vunpack.c.l.b16 %v1408
  %v2222 = vunpack.c.h.b16 %v1408
  %v2223 = vunpack.c.l.b16 %v1409
  %v2224 = vunpack.c.h.b16 %v1409
  %v2225 = vunpack.c.l.b16 %v1410
  %v2226 = vunpack.c.h.b16 %v1410
  %v2227 = vunpack.c.l.b16 %v1411
  %v2228 = vunpack.c.h.b16 %v1411
  %v2229 = vunpack.c.l.b16 %v1412
  %v2230 = vunpack.c.h.b16 %v1412
  %v2231 = vunpack.c.l.b16 %v1413
  %v2232 = vunpack.c.h.b16 %v1413
  %v2233 = vunpack.c.l.b16 %v1414
  %v2234 = vunpack.c.h.b16 %v1414
  %v2235 = vunpack.c.l.b16 %v1415
  %v2236 = vunpack.c.h.b16 %v1415
  %v2237 = vunpack.c.l.b16 %v1416
  %v2238 = vunpack.c.h.b16 %v1416
  %v2239 = vpack.c.b16 %v2177, %v2175
  %v2240 = vpack.c.b16 %v2178, %v2176
  %v2241 = vpack.c.b16 %v2181, %v2179
  %v2242 = vpack.c.b16 %v2182, %v2180
  %v2243 = vpack.c.b16 %v2185, %v2183
  %v2244 = vpack.c.b16 %v2186, %v2184
  %v2245 = vpack.c.b16 %v2189, %v2187
  %v2246 = vpack.c.b16 %v2190, %v2188
  %v2247 = vpack.c.b16 %v2193, %v2191
  %v2248 = vpack.c.b16 %v2194, %v2192
  %v2249 = vpack.c.b16 %v2197, %v2195
  %v2250 = vpack.c.b16 %v2198, %v2196
  %v2251 = vpack.c.b16 %v2201, %v2199
  %v2252 = vpack.c.b16 %v2202, %v2200
  %v2253 = vpack.c.b16 %v2205, %v2203
  %v2254 = vpack.c.b16 %v2206, %v2204
  %v2255 = vpack.c.b16 %v2209, %v2207
  %v2256 = vpack.c.b16 %v2210, %v2208
  %v2257 = vpack.c.b16 %v2213, %v2211
  %v2258 = vpack.c.b16 %v2214, %v2212
  %v2259 = vpack.c.b16 %v2217, %v2215
  %v2260 = vpack.c.b16 %v2218, %v2216
  %v2261 = vpack.c.b16 %v2221, %v2219
  %v2262 = vpack.c.b16 %v2222, %v2220
  %v2263 = vpack.c.b16 %v2225, %v2223
  %v2264 = vpack.c.b16 %v2226, %v2224
  %v2265 = vpack.c.b16 %v2229, %v2227
  %v2266 = vpack.c.b16 %v2230, %v2228
  %v2267 = vpack.c.b16 %v2233, %v2231
  %v2268 = vpack.c.b16 %v2234, %v2232
  %v2269 = vpack.c.b16 %v2237, %v2235
  %v2270 = vpack.c.b16 %v2238, %v2236
  %2303 = vmatpush.bf16.msra.mxu0 %v2253
  %2304 = vmatpush.bf16.msra.mxu0 %v2251
  %2305 = vmatpush.bf16.msra.mxu0 %v2249
  %2306 = vmatpush.bf16.msra.mxu0 %v2247
  %2307 = vmatpush.bf16.msra.mxu0 %v2245
  %2308 = vmatpush.bf16.msra.mxu0 %v2243
  %2309 = vmatpush.bf16.msra.mxu0 %v2241
  %2310 = vmatpush.bf16.msra.mxu0 %v2239
  %2311 = vmatmul.bf16.gmra.mxu0 %v1383
  %v2312 = vpop.f32.mrf.mxu0
  %v2313 = vadd.f32 %v2114, %v2312
  %v2314 = vpop.f32.mrf.mxu0
  %2315 = vdwg.mxu0
  %2316 = vmatpush.bf16.msra.mxu0 %v2269
  %2317 = vmatpush.bf16.msra.mxu0 %v2267
  %2318 = vmatpush.bf16.msra.mxu0 %v2265
  %2319 = vmatpush.bf16.msra.mxu0 %v2263
  %2320 = vmatpush.bf16.msra.mxu0 %v2261
  %2321 = vmatpush.bf16.msra.mxu0 %v2259
  %2322 = vmatpush.bf16.msra.mxu0 %v2257
  %2323 = vmatpush.bf16.msra.mxu0 %v2255
  %2324 = vmatmul.bf16.gmra.mxu0 %v1384
  %v2325 = vpop.f32.mrf.mxu0
  %v2326 = vadd.f32 %v2313, %v2325
  %v2327 = vpop.f32.mrf.mxu0
  %2328 = vdwg.mxu0
  %2329 = vmatpush.bf16.msra.mxu0 %v2254
  %2330 = vmatpush.bf16.msra.mxu0 %v2252
  %2331 = vmatpush.bf16.msra.mxu0 %v2250
  %2332 = vmatpush.bf16.msra.mxu0 %v2248
  %2333 = vmatpush.bf16.msra.mxu0 %v2246
  %2334 = vmatpush.bf16.msra.mxu0 %v2244
  %2335 = vmatpush.bf16.msra.mxu0 %v2242
  %2336 = vmatpush.bf16.msra.mxu0 %v2240
  %2337 = vmatmul.bf16.gmra.mxu0 %v1383
  %v2338 = vpop.f32.mrf.mxu0
  %v2339 = vadd.f32 %v2140, %v2338
  %v2340 = vpop.f32.mrf.mxu0
  %2341 = vdwg.mxu0
  %2342 = vmatpush.bf16.msra.mxu0 %v2270
  %2343 = vmatpush.bf16.msra.mxu0 %v2268
  %2344 = vmatpush.bf16.msra.mxu0 %v2266
  %2345 = vmatpush.bf16.msra.mxu0 %v2264
  %2346 = vmatpush.bf16.msra.mxu0 %v2262
  %2347 = vmatpush.bf16.msra.mxu0 %v2260
  %2348 = vmatpush.bf16.msra.mxu0 %v2258
  %2349 = vmatpush.bf16.msra.mxu0 %v2256
  %2350 = vmatmul.bf16.gmra.mxu0 %v1384
  %v2351 = vpop.f32.mrf.mxu0
  %v2352 = vadd.f32 %v2339, %v2351
  %v2353 = vpop.f32.mrf.mxu0
  %2354 = vdwg.mxu0
  %s2355 = scalar_lea.vmem %s0, 288
  %v2356 = vld [vmem:[%s2355] sm:$0xff]
  %v2357 = vld [vmem:[%s2355 + $0x8] sm:$0xff]
  %v2358 = vld [vmem:[%s2355 + $0x10] sm:$0xff]
  %v2359 = vld [vmem:[%s2355 + $0x18] sm:$0xff]
  %v2360 = vld [vmem:[%s2355 + $0x20] sm:$0xf]
  %v2361 = vld [vmem:[%s2355 + $0x24] sm:$0xff]
  %v2362 = vld [vmem:[%s2355 + $0x2c] sm:$0xff]
  %v2363 = vld [vmem:[%s2355 + $0x34] sm:$0xff]
  %v2364 = vld [vmem:[%s2355 + $0x3c] sm:$0xff]
  %v2365 = vld [vmem:[%s2355 + $0x44] sm:$0xf]
  %v2366 = vld [vmem:[%s2355 + $0x48] sm:$0xff]
  %v2367 = vld [vmem:[%s2355 + $0x50] sm:$0xff]
  %v2368 = vld [vmem:[%s2355 + $0x58] sm:$0xff]
  %v2369 = vld [vmem:[%s2355 + $0x60] sm:$0xff]
  %v2370 = vld [vmem:[%s2355 + $0x68] sm:$0xf]
  %v2371 = vld [vmem:[%s2355 + $0x6c] sm:$0xff]
  %v2372 = vld [vmem:[%s2355 + $0x74] sm:$0xff]
  %v2373 = vld [vmem:[%s2355 + $0x7c] sm:$0xff]
  %v2374 = vld [vmem:[%s2355 + $0x84] sm:$0xff]
  %v2375 = vld [vmem:[%s2355 + $0x8c] sm:$0xf]
  %v2396 = vunpack.c.l.b16 %v2356
  %v2397 = vunpack.c.h.b16 %v2356
  %v2398 = vunpack.c.l.b16 %v2357
  %v2399 = vunpack.c.h.b16 %v2357
  %v2400 = vunpack.c.l.b16 %v2358
  %v2401 = vunpack.c.h.b16 %v2358
  %v2402 = vunpack.c.l.b16 %v2359
  %v2403 = vunpack.c.h.b16 %v2359
  %v2404 = vunpack.c.l.b16 %v2360
  %v2405 = vunpack.c.l.b16 %v2361
  %v2406 = vunpack.c.h.b16 %v2361
  %v2407 = vunpack.c.l.b16 %v2362
  %v2408 = vunpack.c.h.b16 %v2362
  %v2409 = vunpack.c.l.b16 %v2363
  %v2410 = vunpack.c.h.b16 %v2363
  %v2411 = vunpack.c.l.b16 %v2364
  %v2412 = vunpack.c.h.b16 %v2364
  %v2413 = vunpack.c.l.b16 %v2365
  %v2414 = vunpack.c.l.b16 %v2366
  %v2415 = vunpack.c.h.b16 %v2366
  %v2416 = vunpack.c.l.b16 %v2367
  %v2417 = vunpack.c.h.b16 %v2367
  %v2418 = vunpack.c.l.b16 %v2368
  %v2419 = vunpack.c.h.b16 %v2368
  %v2420 = vunpack.c.l.b16 %v2369
  %v2421 = vunpack.c.h.b16 %v2369
  %v2422 = vunpack.c.l.b16 %v2370
  %v2423 = vunpack.c.l.b16 %v2371
  %v2424 = vunpack.c.h.b16 %v2371
  %v2425 = vunpack.c.l.b16 %v2372
  %v2426 = vunpack.c.h.b16 %v2372
  %v2427 = vunpack.c.l.b16 %v2373
  %v2428 = vunpack.c.h.b16 %v2373
  %v2429 = vunpack.c.l.b16 %v2374
  %v2430 = vunpack.c.h.b16 %v2374
  %v2431 = vunpack.c.l.b16 %v2375
  %v2432 = vpack.c.b16 %v2405, %v2396
  %v2433 = vpack.c.b16 %v2406, %v2397
  %v2434 = vpack.c.b16 %v2407, %v2398
  %v2435 = vpack.c.b16 %v2408, %v2399
  %v2436 = vpack.c.b16 %v2409, %v2400
  %v2437 = vpack.c.b16 %v2410, %v2401
  %v2438 = vpack.c.b16 %v2411, %v2402
  %v2439 = vpack.c.b16 %v2412, %v2403
  %v2440 = vpack.c.b16 %v2413, %v2404
  %v2441 = vpack.c.b16 %v2423, %v2414
  %v2442 = vpack.c.b16 %v2424, %v2415
  %v2443 = vpack.c.b16 %v2425, %v2416
  %v2444 = vpack.c.b16 %v2426, %v2417
  %v2445 = vpack.c.b16 %v2427, %v2418
  %v2446 = vpack.c.b16 %v2428, %v2419
  %v2447 = vpack.c.b16 %v2429, %v2420
  %v2448 = vpack.c.b16 %v2430, %v2421
  %v2449 = vpack.c.b16 %v2431, %v2422
  %2468 = vmatpush.bf16.msra.mxu0 %v733
  %2469 = vmatpush.bf16.msra.mxu0 %v731
  %2470 = vmatpush.bf16.msra.mxu0 %v729
  %2471 = vmatpush.bf16.msra.mxu0 %v727
  %2472 = vmatpush.bf16.msra.mxu0 %v725
  %2473 = vmatpush.bf16.msra.mxu0 %v723
  %2474 = vmatpush.bf16.msra.mxu0 %v721
  %2475 = vmatpush.bf16.msra.mxu0 %v719
  %2476 = vmatmul.bf16.gmra.mxu0 %v2432
  %v2477 = vpop.f32.mrf.mxu0
  %v2478 = vadd.f32 0.0, %v2477
  %v2479 = vpop.f32.mrf.mxu0
  %v2480 = vadd.f32 0.0, %v2479
  %2481 = vmatmul.bf16.gmra.mxu0 %v2441
  %v2482 = vpop.f32.mrf.mxu0
  %v2483 = vadd.f32 0.0, %v2482
  %v2484 = vpop.f32.mrf.mxu0
  %v2485 = vadd.f32 0.0, %v2484
  %2486 = vdwg.mxu0
  %2487 = vmatpush.bf16.msra.mxu0 %v749
  %2488 = vmatpush.bf16.msra.mxu0 %v747
  %2489 = vmatpush.bf16.msra.mxu0 %v745
  %2490 = vmatpush.bf16.msra.mxu0 %v743
  %2491 = vmatpush.bf16.msra.mxu0 %v741
  %2492 = vmatpush.bf16.msra.mxu0 %v739
  %2493 = vmatpush.bf16.msra.mxu0 %v737
  %2494 = vmatpush.bf16.msra.mxu0 %v735
  %2495 = vmatmul.bf16.gmra.mxu0 %v2433
  %v2496 = vpop.f32.mrf.mxu0
  %v2497 = vadd.f32 %v2478, %v2496
  %v2498 = vpop.f32.mrf.mxu0
  %v2499 = vadd.f32 %v2480, %v2498
  %2500 = vmatmul.bf16.gmra.mxu0 %v2442
  %v2501 = vpop.f32.mrf.mxu0
  %v2502 = vadd.f32 %v2483, %v2501
  %v2503 = vpop.f32.mrf.mxu0
  %v2504 = vadd.f32 %v2485, %v2503
  %2505 = vdwg.mxu0
  %2506 = vmatpush.bf16.msra.mxu0 %v765
  %2507 = vmatpush.bf16.msra.mxu0 %v763
  %2508 = vmatpush.bf16.msra.mxu0 %v761
  %2509 = vmatpush.bf16.msra.mxu0 %v759
  %2510 = vmatpush.bf16.msra.mxu0 %v757
  %2511 = vmatpush.bf16.msra.mxu0 %v755
  %2512 = vmatpush.bf16.msra.mxu0 %v753
  %2513 = vmatpush.bf16.msra.mxu0 %v751
  %2514 = vmatmul.bf16.gmra.mxu0 %v2434
  %v2515 = vpop.f32.mrf.mxu0
  %v2516 = vadd.f32 %v2497, %v2515
  %v2517 = vpop.f32.mrf.mxu0
  %v2518 = vadd.f32 %v2499, %v2517
  %2519 = vmatmul.bf16.gmra.mxu0 %v2443
  %v2520 = vpop.f32.mrf.mxu0
  %v2521 = vadd.f32 %v2502, %v2520
  %v2522 = vpop.f32.mrf.mxu0
  %v2523 = vadd.f32 %v2504, %v2522
  %2524 = vdwg.mxu0
  %2525 = vmatpush.bf16.msra.mxu0 %v781
  %2526 = vmatpush.bf16.msra.mxu0 %v779
  %2527 = vmatpush.bf16.msra.mxu0 %v777
  %2528 = vmatpush.bf16.msra.mxu0 %v775
  %2529 = vmatpush.bf16.msra.mxu0 %v773
  %2530 = vmatpush.bf16.msra.mxu0 %v771
  %2531 = vmatpush.bf16.msra.mxu0 %v769
  %2532 = vmatpush.bf16.msra.mxu0 %v767
  %2533 = vmatmul.bf16.gmra.mxu0 %v2435
  %v2534 = vpop.f32.mrf.mxu0
  %v2535 = vadd.f32 %v2516, %v2534
  %v2536 = vpop.f32.mrf.mxu0
  %v2537 = vadd.f32 %v2518, %v2536
  %2538 = vmatmul.bf16.gmra.mxu0 %v2444
  %v2539 = vpop.f32.mrf.mxu0
  %v2540 = vadd.f32 %v2521, %v2539
  %v2541 = vpop.f32.mrf.mxu0
  %v2542 = vadd.f32 %v2523, %v2541
  %2543 = vdwg.mxu0
  %2544 = vmatpush.bf16.msra.mxu0 %v797
  %2545 = vmatpush.bf16.msra.mxu0 %v795
  %2546 = vmatpush.bf16.msra.mxu0 %v793
  %2547 = vmatpush.bf16.msra.mxu0 %v791
  %2548 = vmatpush.bf16.msra.mxu0 %v789
  %2549 = vmatpush.bf16.msra.mxu0 %v787
  %2550 = vmatpush.bf16.msra.mxu0 %v785
  %2551 = vmatpush.bf16.msra.mxu0 %v783
  %2552 = vmatmul.bf16.gmra.mxu0 %v2436
  %v2553 = vpop.f32.mrf.mxu0
  %v2554 = vadd.f32 %v2535, %v2553
  %v2555 = vpop.f32.mrf.mxu0
  %v2556 = vadd.f32 %v2537, %v2555
  %2557 = vmatmul.bf16.gmra.mxu0 %v2445
  %v2558 = vpop.f32.mrf.mxu0
  %v2559 = vadd.f32 %v2540, %v2558
  %v2560 = vpop.f32.mrf.mxu0
  %v2561 = vadd.f32 %v2542, %v2560
  %2562 = vdwg.mxu0
  %2563 = vmatpush.bf16.msra.mxu0 %v813
  %2564 = vmatpush.bf16.msra.mxu0 %v811
  %2565 = vmatpush.bf16.msra.mxu0 %v809
  %2566 = vmatpush.bf16.msra.mxu0 %v807
  %2567 = vmatpush.bf16.msra.mxu0 %v805
  %2568 = vmatpush.bf16.msra.mxu0 %v803
  %2569 = vmatpush.bf16.msra.mxu0 %v801
  %2570 = vmatpush.bf16.msra.mxu0 %v799
  %2571 = vmatmul.bf16.gmra.mxu0 %v2437
  %v2572 = vpop.f32.mrf.mxu0
  %v2573 = vadd.f32 %v2554, %v2572
  %v2574 = vpop.f32.mrf.mxu0
  %v2575 = vadd.f32 %v2556, %v2574
  %2576 = vmatmul.bf16.gmra.mxu0 %v2446
  %v2577 = vpop.f32.mrf.mxu0
  %v2578 = vadd.f32 %v2559, %v2577
  %v2579 = vpop.f32.mrf.mxu0
  %v2580 = vadd.f32 %v2561, %v2579
  %2581 = vdwg.mxu0
  %2582 = vmatpush.bf16.msra.mxu0 %v829
  %2583 = vmatpush.bf16.msra.mxu0 %v827
  %2584 = vmatpush.bf16.msra.mxu0 %v825
  %2585 = vmatpush.bf16.msra.mxu0 %v823
  %2586 = vmatpush.bf16.msra.mxu0 %v821
  %2587 = vmatpush.bf16.msra.mxu0 %v819
  %2588 = vmatpush.bf16.msra.mxu0 %v817
  %2589 = vmatpush.bf16.msra.mxu0 %v815
  %2590 = vmatmul.bf16.gmra.mxu0 %v2438
  %v2591 = vpop.f32.mrf.mxu0
  %v2592 = vadd.f32 %v2573, %v2591
  %v2593 = vpop.f32.mrf.mxu0
  %v2594 = vadd.f32 %v2575, %v2593
  %2595 = vmatmul.bf16.gmra.mxu0 %v2447
  %v2596 = vpop.f32.mrf.mxu0
  %v2597 = vadd.f32 %v2578, %v2596
  %v2598 = vpop.f32.mrf.mxu0
  %v2599 = vadd.f32 %v2580, %v2598
  %2600 = vdwg.mxu0
  %2601 = vmatpush.bf16.msra.mxu0 %v845
  %2602 = vmatpush.bf16.msra.mxu0 %v843
  %2603 = vmatpush.bf16.msra.mxu0 %v841
  %2604 = vmatpush.bf16.msra.mxu0 %v839
  %2605 = vmatpush.bf16.msra.mxu0 %v837
  %2606 = vmatpush.bf16.msra.mxu0 %v835
  %2607 = vmatpush.bf16.msra.mxu0 %v833
  %2608 = vmatpush.bf16.msra.mxu0 %v831
  %2609 = vmatmul.bf16.gmra.mxu0 %v2439
  %v2610 = vpop.f32.mrf.mxu0
  %v2611 = vadd.f32 %v2592, %v2610
  %v2612 = vpop.f32.mrf.mxu0
  %v2613 = vadd.f32 %v2594, %v2612
  %2614 = vmatmul.bf16.gmra.mxu0 %v2448
  %v2615 = vpop.f32.mrf.mxu0
  %v2616 = vadd.f32 %v2597, %v2615
  %v2617 = vpop.f32.mrf.mxu0
  %v2618 = vadd.f32 %v2599, %v2617
  %2619 = vdwg.mxu0
  %2620 = vmatpush.bf16.msra.mxu0 %v861
  %2621 = vmatpush.bf16.msra.mxu0 %v859
  %2622 = vmatpush.bf16.msra.mxu0 %v857
  %2623 = vmatpush.bf16.msra.mxu0 %v855
  %2624 = vmatpush.bf16.msra.mxu0 %v853
  %2625 = vmatpush.bf16.msra.mxu0 %v851
  %2626 = vmatpush.bf16.msra.mxu0 %v849
  %2627 = vmatpush.bf16.msra.mxu0 %v847
  %2628 = vmatmul.bf16.gmra.mxu0 %v2440
  %v2629 = vpop.f32.mrf.mxu0
  %v2630 = vadd.f32 %v2611, %v2629
  %v2631 = vpop.f32.mrf.mxu0
  %v2632 = vadd.f32 %v2613, %v2631
  %2633 = vmatmul.bf16.gmra.mxu0 %v2449
  %v2634 = vpop.f32.mrf.mxu0
  %v2635 = vadd.f32 %v2616, %v2634
  %v2636 = vpop.f32.mrf.mxu0
  %v2637 = vadd.f32 %v2618, %v2636
  %2638 = vdwg.mxu0
  %2639 = vmatpush.bf16.msra.mxu0 %v734
  %2640 = vmatpush.bf16.msra.mxu0 %v732
  %2641 = vmatpush.bf16.msra.mxu0 %v730
  %2642 = vmatpush.bf16.msra.mxu0 %v728
  %2643 = vmatpush.bf16.msra.mxu0 %v726
  %2644 = vmatpush.bf16.msra.mxu0 %v724
  %2645 = vmatpush.bf16.msra.mxu0 %v722
  %2646 = vmatpush.bf16.msra.mxu0 %v720
  %2647 = vmatmul.bf16.gmra.mxu0 %v2432
  %v2648 = vpop.f32.mrf.mxu0
  %v2649 = vadd.f32 0.0, %v2648
  %v2650 = vpop.f32.mrf.mxu0
  %v2651 = vadd.f32 0.0, %v2650
  %2652 = vmatmul.bf16.gmra.mxu0 %v2441
  %v2653 = vpop.f32.mrf.mxu0
  %v2654 = vadd.f32 0.0, %v2653
  %v2655 = vpop.f32.mrf.mxu0
  %v2656 = vadd.f32 0.0, %v2655
  %2657 = vdwg.mxu0
  %2658 = vmatpush.bf16.msra.mxu0 %v750
  %2659 = vmatpush.bf16.msra.mxu0 %v748
  %2660 = vmatpush.bf16.msra.mxu0 %v746
  %2661 = vmatpush.bf16.msra.mxu0 %v744
  %2662 = vmatpush.bf16.msra.mxu0 %v742
  %2663 = vmatpush.bf16.msra.mxu0 %v740
  %2664 = vmatpush.bf16.msra.mxu0 %v738
  %2665 = vmatpush.bf16.msra.mxu0 %v736
  %2666 = vmatmul.bf16.gmra.mxu0 %v2433
  %v2667 = vpop.f32.mrf.mxu0
  %v2668 = vadd.f32 %v2649, %v2667
  %v2669 = vpop.f32.mrf.mxu0
  %v2670 = vadd.f32 %v2651, %v2669
  %2671 = vmatmul.bf16.gmra.mxu0 %v2442
  %v2672 = vpop.f32.mrf.mxu0
  %v2673 = vadd.f32 %v2654, %v2672
  %v2674 = vpop.f32.mrf.mxu0
  %v2675 = vadd.f32 %v2656, %v2674
  %2676 = vdwg.mxu0
  %2677 = vmatpush.bf16.msra.mxu0 %v766
  %2678 = vmatpush.bf16.msra.mxu0 %v764
  %2679 = vmatpush.bf16.msra.mxu0 %v762
  %2680 = vmatpush.bf16.msra.mxu0 %v760
  %2681 = vmatpush.bf16.msra.mxu0 %v758
  %2682 = vmatpush.bf16.msra.mxu0 %v756
  %2683 = vmatpush.bf16.msra.mxu0 %v754
  %2684 = vmatpush.bf16.msra.mxu0 %v752
  %2685 = vmatmul.bf16.gmra.mxu0 %v2434
  %v2686 = vpop.f32.mrf.mxu0
  %v2687 = vadd.f32 %v2668, %v2686
  %v2688 = vpop.f32.mrf.mxu0
  %v2689 = vadd.f32 %v2670, %v2688
  %2690 = vmatmul.bf16.gmra.mxu0 %v2443
  %v2691 = vpop.f32.mrf.mxu0
  %v2692 = vadd.f32 %v2673, %v2691
  %v2693 = vpop.f32.mrf.mxu0
  %v2694 = vadd.f32 %v2675, %v2693
  %2695 = vdwg.mxu0
  %2696 = vmatpush.bf16.msra.mxu0 %v782
  %2697 = vmatpush.bf16.msra.mxu0 %v780
  %2698 = vmatpush.bf16.msra.mxu0 %v778
  %2699 = vmatpush.bf16.msra.mxu0 %v776
  %2700 = vmatpush.bf16.msra.mxu0 %v774
  %2701 = vmatpush.bf16.msra.mxu0 %v772
  %2702 = vmatpush.bf16.msra.mxu0 %v770
  %2703 = vmatpush.bf16.msra.mxu0 %v768
  %2704 = vmatmul.bf16.gmra.mxu0 %v2435
  %v2705 = vpop.f32.mrf.mxu0
  %v2706 = vadd.f32 %v2687, %v2705
  %v2707 = vpop.f32.mrf.mxu0
  %v2708 = vadd.f32 %v2689, %v2707
  %2709 = vmatmul.bf16.gmra.mxu0 %v2444
  %v2710 = vpop.f32.mrf.mxu0
  %v2711 = vadd.f32 %v2692, %v2710
  %v2712 = vpop.f32.mrf.mxu0
  %v2713 = vadd.f32 %v2694, %v2712
  %2714 = vdwg.mxu0
  %2715 = vmatpush.bf16.msra.mxu0 %v798
  %2716 = vmatpush.bf16.msra.mxu0 %v796
  %2717 = vmatpush.bf16.msra.mxu0 %v794
  %2718 = vmatpush.bf16.msra.mxu0 %v792
  %2719 = vmatpush.bf16.msra.mxu0 %v790
  %2720 = vmatpush.bf16.msra.mxu0 %v788
  %2721 = vmatpush.bf16.msra.mxu0 %v786
  %2722 = vmatpush.bf16.msra.mxu0 %v784
  %2723 = vmatmul.bf16.gmra.mxu0 %v2436
  %v2724 = vpop.f32.mrf.mxu0
  %v2725 = vadd.f32 %v2706, %v2724
  %v2726 = vpop.f32.mrf.mxu0
  %v2727 = vadd.f32 %v2708, %v2726
  %2728 = vmatmul.bf16.gmra.mxu0 %v2445
  %v2729 = vpop.f32.mrf.mxu0
  %v2730 = vadd.f32 %v2711, %v2729
  %v2731 = vpop.f32.mrf.mxu0
  %v2732 = vadd.f32 %v2713, %v2731
  %2733 = vdwg.mxu0
  %2734 = vmatpush.bf16.msra.mxu0 %v814
  %2735 = vmatpush.bf16.msra.mxu0 %v812
  %2736 = vmatpush.bf16.msra.mxu0 %v810
  %2737 = vmatpush.bf16.msra.mxu0 %v808
  %2738 = vmatpush.bf16.msra.mxu0 %v806
  %2739 = vmatpush.bf16.msra.mxu0 %v804
  %2740 = vmatpush.bf16.msra.mxu0 %v802
  %2741 = vmatpush.bf16.msra.mxu0 %v800
  %2742 = vmatmul.bf16.gmra.mxu0 %v2437
  %v2743 = vpop.f32.mrf.mxu0
  %v2744 = vadd.f32 %v2725, %v2743
  %v2745 = vpop.f32.mrf.mxu0
  %v2746 = vadd.f32 %v2727, %v2745
  %2747 = vmatmul.bf16.gmra.mxu0 %v2446
  %v2748 = vpop.f32.mrf.mxu0
  %v2749 = vadd.f32 %v2730, %v2748
  %v2750 = vpop.f32.mrf.mxu0
  %v2751 = vadd.f32 %v2732, %v2750
  %2752 = vdwg.mxu0
  %2753 = vmatpush.bf16.msra.mxu0 %v830
  %2754 = vmatpush.bf16.msra.mxu0 %v828
  %2755 = vmatpush.bf16.msra.mxu0 %v826
  %2756 = vmatpush.bf16.msra.mxu0 %v824
  %2757 = vmatpush.bf16.msra.mxu0 %v822
  %2758 = vmatpush.bf16.msra.mxu0 %v820
  %2759 = vmatpush.bf16.msra.mxu0 %v818
  %2760 = vmatpush.bf16.msra.mxu0 %v816
  %2761 = vmatmul.bf16.gmra.mxu0 %v2438
  %v2762 = vpop.f32.mrf.mxu0
  %v2763 = vadd.f32 %v2744, %v2762
  %v2764 = vpop.f32.mrf.mxu0
  %v2765 = vadd.f32 %v2746, %v2764
  %2766 = vmatmul.bf16.gmra.mxu0 %v2447
  %v2767 = vpop.f32.mrf.mxu0
  %v2768 = vadd.f32 %v2749, %v2767
  %v2769 = vpop.f32.mrf.mxu0
  %v2770 = vadd.f32 %v2751, %v2769
  %2771 = vdwg.mxu0
  %2772 = vmatpush.bf16.msra.mxu0 %v846
  %2773 = vmatpush.bf16.msra.mxu0 %v844
  %2774 = vmatpush.bf16.msra.mxu0 %v842
  %2775 = vmatpush.bf16.msra.mxu0 %v840
  %2776 = vmatpush.bf16.msra.mxu0 %v838
  %2777 = vmatpush.bf16.msra.mxu0 %v836
  %2778 = vmatpush.bf16.msra.mxu0 %v834
  %2779 = vmatpush.bf16.msra.mxu0 %v832
  %2780 = vmatmul.bf16.gmra.mxu0 %v2439
  %v2781 = vpop.f32.mrf.mxu0
  %v2782 = vadd.f32 %v2763, %v2781
  %v2783 = vpop.f32.mrf.mxu0
  %v2784 = vadd.f32 %v2765, %v2783
  %2785 = vmatmul.bf16.gmra.mxu0 %v2448
  %v2786 = vpop.f32.mrf.mxu0
  %v2787 = vadd.f32 %v2768, %v2786
  %v2788 = vpop.f32.mrf.mxu0
  %v2789 = vadd.f32 %v2770, %v2788
  %2790 = vdwg.mxu0
  %2791 = vmatpush.bf16.msra.mxu0 %v862
  %2792 = vmatpush.bf16.msra.mxu0 %v860
  %2793 = vmatpush.bf16.msra.mxu0 %v858
  %2794 = vmatpush.bf16.msra.mxu0 %v856
  %2795 = vmatpush.bf16.msra.mxu0 %v854
  %2796 = vmatpush.bf16.msra.mxu0 %v852
  %2797 = vmatpush.bf16.msra.mxu0 %v850
  %2798 = vmatpush.bf16.msra.mxu0 %v848
  %2799 = vmatmul.bf16.gmra.mxu0 %v2440
  %v2800 = vpop.f32.mrf.mxu0
  %v2801 = vadd.f32 %v2782, %v2800
  %v2802 = vpop.f32.mrf.mxu0
  %v2803 = vadd.f32 %v2784, %v2802
  %2804 = vmatmul.bf16.gmra.mxu0 %v2449
  %v2805 = vpop.f32.mrf.mxu0
  %v2806 = vadd.f32 %v2787, %v2805
  %v2807 = vpop.f32.mrf.mxu0
  %v2808 = vadd.f32 %v2789, %v2807
  %2809 = vdwg.mxu0
  %v2810 = vmul.f32 %v2630, %v1350
  %v2811 = vmul.f32 %v2801, %v1351
  %v2812 = vmul.f32 %v2632, %v1350
  %v2813 = vmul.f32 %v2803, %v1351
  %v2814 = vmul.f32 %v2635, %v1350
  %v2815 = vmul.f32 %v2806, %v1351
  %v2816 = vmul.f32 %v2637, %v1350
  %v2817 = vmul.f32 %v2808, %v1351
  %v2818 = vadd.f32 %v2810, %v1363
  %v2819 = vadd.f32 %v2811, %v1364
  %v2820 = vadd.f32 %v2812, %v1363
  %v2821 = vadd.f32 %v2813, %v1364
  %v2822 = vadd.f32 %v2814, %v1363
  %v2823 = vadd.f32 %v2815, %v1364
  %v2824 = vadd.f32 %v2816, %v1363
  %v2825 = vadd.f32 %v2817, %v1364
  %v2826 = vmax.f32 %v2818, %v2820
  %v2827 = vmax.f32 %v2819, %v2821
  %v2828 = vmax.f32 %v2822, %v2824
  %v2829 = vmax.f32 %v2823, %v2825
  %v2830 = vmax.f32 %v2826, %v2828
  %v2831 = vmax.f32 %v2827, %v2829
  %v2832 = vmax.f32 %v2830, 0.0
  %v2833 = vmax.f32 %v2831, 0.0
  %v2834 = vpack.c.bf16 %v2832, %v2832
  %v2835 = vpack.c.bf16 %v2833, %v2833
  %s2836 = scalar_lea.vmem %s4, 512
  %v2837 = vld [vmem:[%s2836] sm:$0xff]
  %v2838 = vld [vmem:[%s2836 + $0x8] sm:$0xff]
  %v2839 = vld [vmem:[%s2836 + $0x10] sm:$0xff]
  %v2840 = vld [vmem:[%s2836 + $0x18] sm:$0xff]
  %v2841 = vld [vmem:[%s2836 + $0x20] sm:$0xff]
  %v2842 = vld [vmem:[%s2836 + $0x28] sm:$0xff]
  %v2843 = vld [vmem:[%s2836 + $0x30] sm:$0xff]
  %v2844 = vld [vmem:[%s2836 + $0x38] sm:$0xff]
  %v2845 = vld [vmem:[%s2836 + $0x40] sm:$0xff]
  %v2846 = vld [vmem:[%s2836 + $0x48] sm:$0xff]
  %v2847 = vld [vmem:[%s2836 + $0x50] sm:$0xff]
  %v2848 = vld [vmem:[%s2836 + $0x58] sm:$0xff]
  %v2849 = vld [vmem:[%s2836 + $0x60] sm:$0xff]
  %v2850 = vld [vmem:[%s2836 + $0x68] sm:$0xff]
  %v2851 = vld [vmem:[%s2836 + $0x70] sm:$0xff]
  %v2852 = vld [vmem:[%s2836 + $0x78] sm:$0xff]
  %v2853 = vld [vmem:[%s2836 + $0x80] sm:$0xff]
  %v2854 = vld [vmem:[%s2836 + $0x88] sm:$0xff]
  %v2855 = vld [vmem:[%s2836 + $0x90] sm:$0xff]
  %v2856 = vld [vmem:[%s2836 + $0x98] sm:$0xff]
  %v2857 = vld [vmem:[%s2836 + $0xa0] sm:$0xff]
  %v2858 = vld [vmem:[%s2836 + $0xa8] sm:$0xff]
  %v2859 = vld [vmem:[%s2836 + $0xb0] sm:$0xff]
  %v2860 = vld [vmem:[%s2836 + $0xb8] sm:$0xff]
  %v2861 = vld [vmem:[%s2836 + $0xc0] sm:$0xff]
  %v2862 = vld [vmem:[%s2836 + $0xc8] sm:$0xff]
  %v2863 = vld [vmem:[%s2836 + $0xd0] sm:$0xff]
  %v2864 = vld [vmem:[%s2836 + $0xd8] sm:$0xff]
  %v2865 = vld [vmem:[%s2836 + $0xe0] sm:$0xff]
  %v2866 = vld [vmem:[%s2836 + $0xe8] sm:$0xff]
  %v2867 = vld [vmem:[%s2836 + $0xf0] sm:$0xff]
  %v2868 = vld [vmem:[%s2836 + $0xf8] sm:$0xff]
  %v2901 = vunpack.c.l.b16 %v2837
  %v2902 = vunpack.c.h.b16 %v2837
  %v2903 = vunpack.c.l.b16 %v2838
  %v2904 = vunpack.c.h.b16 %v2838
  %v2905 = vunpack.c.l.b16 %v2839
  %v2906 = vunpack.c.h.b16 %v2839
  %v2907 = vunpack.c.l.b16 %v2840
  %v2908 = vunpack.c.h.b16 %v2840
  %v2909 = vunpack.c.l.b16 %v2841
  %v2910 = vunpack.c.h.b16 %v2841
  %v2911 = vunpack.c.l.b16 %v2842
  %v2912 = vunpack.c.h.b16 %v2842
  %v2913 = vunpack.c.l.b16 %v2843
  %v2914 = vunpack.c.h.b16 %v2843
  %v2915 = vunpack.c.l.b16 %v2844
  %v2916 = vunpack.c.h.b16 %v2844
  %v2917 = vunpack.c.l.b16 %v2845
  %v2918 = vunpack.c.h.b16 %v2845
  %v2919 = vunpack.c.l.b16 %v2846
  %v2920 = vunpack.c.h.b16 %v2846
  %v2921 = vunpack.c.l.b16 %v2847
  %v2922 = vunpack.c.h.b16 %v2847
  %v2923 = vunpack.c.l.b16 %v2848
  %v2924 = vunpack.c.h.b16 %v2848
  %v2925 = vunpack.c.l.b16 %v2849
  %v2926 = vunpack.c.h.b16 %v2849
  %v2927 = vunpack.c.l.b16 %v2850
  %v2928 = vunpack.c.h.b16 %v2850
  %v2929 = vunpack.c.l.b16 %v2851
  %v2930 = vunpack.c.h.b16 %v2851
  %v2931 = vunpack.c.l.b16 %v2852
  %v2932 = vunpack.c.h.b16 %v2852
  %v2933 = vunpack.c.l.b16 %v2853
  %v2934 = vunpack.c.h.b16 %v2853
  %v2935 = vunpack.c.l.b16 %v2854
  %v2936 = vunpack.c.h.b16 %v2854
  %v2937 = vunpack.c.l.b16 %v2855
  %v2938 = vunpack.c.h.b16 %v2855
  %v2939 = vunpack.c.l.b16 %v2856
  %v2940 = vunpack.c.h.b16 %v2856
  %v2941 = vunpack.c.l.b16 %v2857
  %v2942 = vunpack.c.h.b16 %v2857
  %v2943 = vunpack.c.l.b16 %v2858
  %v2944 = vunpack.c.h.b16 %v2858
  %v2945 = vunpack.c.l.b16 %v2859
  %v2946 = vunpack.c.h.b16 %v2859
  %v2947 = vunpack.c.l.b16 %v2860
  %v2948 = vunpack.c.h.b16 %v2860
  %v2949 = vunpack.c.l.b16 %v2861
  %v2950 = vunpack.c.h.b16 %v2861
  %v2951 = vunpack.c.l.b16 %v2862
  %v2952 = vunpack.c.h.b16 %v2862
  %v2953 = vunpack.c.l.b16 %v2863
  %v2954 = vunpack.c.h.b16 %v2863
  %v2955 = vunpack.c.l.b16 %v2864
  %v2956 = vunpack.c.h.b16 %v2864
  %v2957 = vunpack.c.l.b16 %v2865
  %v2958 = vunpack.c.h.b16 %v2865
  %v2959 = vunpack.c.l.b16 %v2866
  %v2960 = vunpack.c.h.b16 %v2866
  %v2961 = vunpack.c.l.b16 %v2867
  %v2962 = vunpack.c.h.b16 %v2867
  %v2963 = vunpack.c.l.b16 %v2868
  %v2964 = vunpack.c.h.b16 %v2868
  %v2965 = vpack.c.b16 %v2903, %v2901
  %v2966 = vpack.c.b16 %v2904, %v2902
  %v2967 = vpack.c.b16 %v2907, %v2905
  %v2968 = vpack.c.b16 %v2908, %v2906
  %v2969 = vpack.c.b16 %v2911, %v2909
  %v2970 = vpack.c.b16 %v2912, %v2910
  %v2971 = vpack.c.b16 %v2915, %v2913
  %v2972 = vpack.c.b16 %v2916, %v2914
  %v2973 = vpack.c.b16 %v2919, %v2917
  %v2974 = vpack.c.b16 %v2920, %v2918
  %v2975 = vpack.c.b16 %v2923, %v2921
  %v2976 = vpack.c.b16 %v2924, %v2922
  %v2977 = vpack.c.b16 %v2927, %v2925
  %v2978 = vpack.c.b16 %v2928, %v2926
  %v2979 = vpack.c.b16 %v2931, %v2929
  %v2980 = vpack.c.b16 %v2932, %v2930
  %v2981 = vpack.c.b16 %v2935, %v2933
  %v2982 = vpack.c.b16 %v2936, %v2934
  %v2983 = vpack.c.b16 %v2939, %v2937
  %v2984 = vpack.c.b16 %v2940, %v2938
  %v2985 = vpack.c.b16 %v2943, %v2941
  %v2986 = vpack.c.b16 %v2944, %v2942
  %v2987 = vpack.c.b16 %v2947, %v2945
  %v2988 = vpack.c.b16 %v2948, %v2946
  %v2989 = vpack.c.b16 %v2951, %v2949
  %v2990 = vpack.c.b16 %v2952, %v2950
  %v2991 = vpack.c.b16 %v2955, %v2953
  %v2992 = vpack.c.b16 %v2956, %v2954
  %v2993 = vpack.c.b16 %v2959, %v2957
  %v2994 = vpack.c.b16 %v2960, %v2958
  %v2995 = vpack.c.b16 %v2963, %v2961
  %v2996 = vpack.c.b16 %v2964, %v2962
  %3029 = vmatpush.bf16.msra.mxu0 %v2979
  %3030 = vmatpush.bf16.msra.mxu0 %v2977
  %3031 = vmatpush.bf16.msra.mxu0 %v2975
  %3032 = vmatpush.bf16.msra.mxu0 %v2973
  %3033 = vmatpush.bf16.msra.mxu0 %v2971
  %3034 = vmatpush.bf16.msra.mxu0 %v2969
  %3035 = vmatpush.bf16.msra.mxu0 %v2967
  %3036 = vmatpush.bf16.msra.mxu0 %v2965
  %3037 = vmatmul.bf16.gmra.mxu0 %v2834
  %v3038 = vpop.f32.mrf.mxu0
  %v3039 = vadd.f32 0.0, %v3038
  %v3040 = vpop.f32.mrf.mxu0
  %3041 = vdwg.mxu0
  %3042 = vmatpush.bf16.msra.mxu0 %v2995
  %3043 = vmatpush.bf16.msra.mxu0 %v2993
  %3044 = vmatpush.bf16.msra.mxu0 %v2991
  %3045 = vmatpush.bf16.msra.mxu0 %v2989
  %3046 = vmatpush.bf16.msra.mxu0 %v2987
  %3047 = vmatpush.bf16.msra.mxu0 %v2985
  %3048 = vmatpush.bf16.msra.mxu0 %v2983
  %3049 = vmatpush.bf16.msra.mxu0 %v2981
  %3050 = vmatmul.bf16.gmra.mxu0 %v2835
  %v3051 = vpop.f32.mrf.mxu0
  %v3052 = vadd.f32 %v3039, %v3051
  %v3053 = vpop.f32.mrf.mxu0
  %3054 = vdwg.mxu0
  %3055 = vmatpush.bf16.msra.mxu0 %v2980
  %3056 = vmatpush.bf16.msra.mxu0 %v2978
  %3057 = vmatpush.bf16.msra.mxu0 %v2976
  %3058 = vmatpush.bf16.msra.mxu0 %v2974
  %3059 = vmatpush.bf16.msra.mxu0 %v2972
  %3060 = vmatpush.bf16.msra.mxu0 %v2970
  %3061 = vmatpush.bf16.msra.mxu0 %v2968
  %3062 = vmatpush.bf16.msra.mxu0 %v2966
  %3063 = vmatmul.bf16.gmra.mxu0 %v2834
  %v3064 = vpop.f32.mrf.mxu0
  %v3065 = vadd.f32 0.0, %v3064
  %v3066 = vpop.f32.mrf.mxu0
  %3067 = vdwg.mxu0
  %3068 = vmatpush.bf16.msra.mxu0 %v2996
  %3069 = vmatpush.bf16.msra.mxu0 %v2994
  %3070 = vmatpush.bf16.msra.mxu0 %v2992
  %3071 = vmatpush.bf16.msra.mxu0 %v2990
  %3072 = vmatpush.bf16.msra.mxu0 %v2988
  %3073 = vmatpush.bf16.msra.mxu0 %v2986
  %3074 = vmatpush.bf16.msra.mxu0 %v2984
  %3075 = vmatpush.bf16.msra.mxu0 %v2982
  %3076 = vmatmul.bf16.gmra.mxu0 %v2835
  %v3077 = vpop.f32.mrf.mxu0
  %v3078 = vadd.f32 %v3065, %v3077
  %v3079 = vpop.f32.mrf.mxu0
  %3080 = vdwg.mxu0
  %v3081 = vadd.f32 %v2326, %v3052
  %v3082 = vadd.f32 %v2352, %v3078
  %s3083 = scalar_lea.vmem %s0, 432
  %v3084 = vld [vmem:[%s3083] sm:$0xff]
  %v3085 = vld [vmem:[%s3083 + $0x8] sm:$0xff]
  %v3086 = vld [vmem:[%s3083 + $0x10] sm:$0xff]
  %v3087 = vld [vmem:[%s3083 + $0x18] sm:$0xff]
  %v3088 = vld [vmem:[%s3083 + $0x20] sm:$0xf]
  %v3089 = vld [vmem:[%s3083 + $0x24] sm:$0xff]
  %v3090 = vld [vmem:[%s3083 + $0x2c] sm:$0xff]
  %v3091 = vld [vmem:[%s3083 + $0x34] sm:$0xff]
  %v3092 = vld [vmem:[%s3083 + $0x3c] sm:$0xff]
  %v3093 = vld [vmem:[%s3083 + $0x44] sm:$0xf]
  %v3094 = vld [vmem:[%s3083 + $0x48] sm:$0xff]
  %v3095 = vld [vmem:[%s3083 + $0x50] sm:$0xff]
  %v3096 = vld [vmem:[%s3083 + $0x58] sm:$0xff]
  %v3097 = vld [vmem:[%s3083 + $0x60] sm:$0xff]
  %v3098 = vld [vmem:[%s3083 + $0x68] sm:$0xf]
  %v3099 = vld [vmem:[%s3083 + $0x6c] sm:$0xff]
  %v3100 = vld [vmem:[%s3083 + $0x74] sm:$0xff]
  %v3101 = vld [vmem:[%s3083 + $0x7c] sm:$0xff]
  %v3102 = vld [vmem:[%s3083 + $0x84] sm:$0xff]
  %v3103 = vld [vmem:[%s3083 + $0x8c] sm:$0xf]
  %v3124 = vunpack.c.l.b16 %v3084
  %v3125 = vunpack.c.h.b16 %v3084
  %v3126 = vunpack.c.l.b16 %v3085
  %v3127 = vunpack.c.h.b16 %v3085
  %v3128 = vunpack.c.l.b16 %v3086
  %v3129 = vunpack.c.h.b16 %v3086
  %v3130 = vunpack.c.l.b16 %v3087
  %v3131 = vunpack.c.h.b16 %v3087
  %v3132 = vunpack.c.l.b16 %v3088
  %v3133 = vunpack.c.l.b16 %v3089
  %v3134 = vunpack.c.h.b16 %v3089
  %v3135 = vunpack.c.l.b16 %v3090
  %v3136 = vunpack.c.h.b16 %v3090
  %v3137 = vunpack.c.l.b16 %v3091
  %v3138 = vunpack.c.h.b16 %v3091
  %v3139 = vunpack.c.l.b16 %v3092
  %v3140 = vunpack.c.h.b16 %v3092
  %v3141 = vunpack.c.l.b16 %v3093
  %v3142 = vunpack.c.l.b16 %v3094
  %v3143 = vunpack.c.h.b16 %v3094
  %v3144 = vunpack.c.l.b16 %v3095
  %v3145 = vunpack.c.h.b16 %v3095
  %v3146 = vunpack.c.l.b16 %v3096
  %v3147 = vunpack.c.h.b16 %v3096
  %v3148 = vunpack.c.l.b16 %v3097
  %v3149 = vunpack.c.h.b16 %v3097
  %v3150 = vunpack.c.l.b16 %v3098
  %v3151 = vunpack.c.l.b16 %v3099
  %v3152 = vunpack.c.h.b16 %v3099
  %v3153 = vunpack.c.l.b16 %v3100
  %v3154 = vunpack.c.h.b16 %v3100
  %v3155 = vunpack.c.l.b16 %v3101
  %v3156 = vunpack.c.h.b16 %v3101
  %v3157 = vunpack.c.l.b16 %v3102
  %v3158 = vunpack.c.h.b16 %v3102
  %v3159 = vunpack.c.l.b16 %v3103
  %v3160 = vpack.c.b16 %v3133, %v3124
  %v3161 = vpack.c.b16 %v3134, %v3125
  %v3162 = vpack.c.b16 %v3135, %v3126
  %v3163 = vpack.c.b16 %v3136, %v3127
  %v3164 = vpack.c.b16 %v3137, %v3128
  %v3165 = vpack.c.b16 %v3138, %v3129
  %v3166 = vpack.c.b16 %v3139, %v3130
  %v3167 = vpack.c.b16 %v3140, %v3131
  %v3168 = vpack.c.b16 %v3141, %v3132
  %v3169 = vpack.c.b16 %v3151, %v3142
  %v3170 = vpack.c.b16 %v3152, %v3143
  %v3171 = vpack.c.b16 %v3153, %v3144
  %v3172 = vpack.c.b16 %v3154, %v3145
  %v3173 = vpack.c.b16 %v3155, %v3146
  %v3174 = vpack.c.b16 %v3156, %v3147
  %v3175 = vpack.c.b16 %v3157, %v3148
  %v3176 = vpack.c.b16 %v3158, %v3149
  %v3177 = vpack.c.b16 %v3159, %v3150
  %3196 = vmatpush.bf16.msra.mxu0 %v733
  %3197 = vmatpush.bf16.msra.mxu0 %v731
  %3198 = vmatpush.bf16.msra.mxu0 %v729
  %3199 = vmatpush.bf16.msra.mxu0 %v727
  %3200 = vmatpush.bf16.msra.mxu0 %v725
  %3201 = vmatpush.bf16.msra.mxu0 %v723
  %3202 = vmatpush.bf16.msra.mxu0 %v721
  %3203 = vmatpush.bf16.msra.mxu0 %v719
  %3204 = vmatmul.bf16.gmra.mxu0 %v3160
  %v3205 = vpop.f32.mrf.mxu0
  %v3206 = vadd.f32 0.0, %v3205
  %v3207 = vpop.f32.mrf.mxu0
  %v3208 = vadd.f32 0.0, %v3207
  %3209 = vmatmul.bf16.gmra.mxu0 %v3169
  %v3210 = vpop.f32.mrf.mxu0
  %v3211 = vadd.f32 0.0, %v3210
  %v3212 = vpop.f32.mrf.mxu0
  %v3213 = vadd.f32 0.0, %v3212
  %3214 = vdwg.mxu0
  %3215 = vmatpush.bf16.msra.mxu0 %v749
  %3216 = vmatpush.bf16.msra.mxu0 %v747
  %3217 = vmatpush.bf16.msra.mxu0 %v745
  %3218 = vmatpush.bf16.msra.mxu0 %v743
  %3219 = vmatpush.bf16.msra.mxu0 %v741
  %3220 = vmatpush.bf16.msra.mxu0 %v739
  %3221 = vmatpush.bf16.msra.mxu0 %v737
  %3222 = vmatpush.bf16.msra.mxu0 %v735
  %3223 = vmatmul.bf16.gmra.mxu0 %v3161
  %v3224 = vpop.f32.mrf.mxu0
  %v3225 = vadd.f32 %v3206, %v3224
  %v3226 = vpop.f32.mrf.mxu0
  %v3227 = vadd.f32 %v3208, %v3226
  %3228 = vmatmul.bf16.gmra.mxu0 %v3170
  %v3229 = vpop.f32.mrf.mxu0
  %v3230 = vadd.f32 %v3211, %v3229
  %v3231 = vpop.f32.mrf.mxu0
  %v3232 = vadd.f32 %v3213, %v3231
  %3233 = vdwg.mxu0
  %3234 = vmatpush.bf16.msra.mxu0 %v765
  %3235 = vmatpush.bf16.msra.mxu0 %v763
  %3236 = vmatpush.bf16.msra.mxu0 %v761
  %3237 = vmatpush.bf16.msra.mxu0 %v759
  %3238 = vmatpush.bf16.msra.mxu0 %v757
  %3239 = vmatpush.bf16.msra.mxu0 %v755
  %3240 = vmatpush.bf16.msra.mxu0 %v753
  %3241 = vmatpush.bf16.msra.mxu0 %v751
  %3242 = vmatmul.bf16.gmra.mxu0 %v3162
  %v3243 = vpop.f32.mrf.mxu0
  %v3244 = vadd.f32 %v3225, %v3243
  %v3245 = vpop.f32.mrf.mxu0
  %v3246 = vadd.f32 %v3227, %v3245
  %3247 = vmatmul.bf16.gmra.mxu0 %v3171
  %v3248 = vpop.f32.mrf.mxu0
  %v3249 = vadd.f32 %v3230, %v3248
  %v3250 = vpop.f32.mrf.mxu0
  %v3251 = vadd.f32 %v3232, %v3250
  %3252 = vdwg.mxu0
  %3253 = vmatpush.bf16.msra.mxu0 %v781
  %3254 = vmatpush.bf16.msra.mxu0 %v779
  %3255 = vmatpush.bf16.msra.mxu0 %v777
  %3256 = vmatpush.bf16.msra.mxu0 %v775
  %3257 = vmatpush.bf16.msra.mxu0 %v773
  %3258 = vmatpush.bf16.msra.mxu0 %v771
  %3259 = vmatpush.bf16.msra.mxu0 %v769
  %3260 = vmatpush.bf16.msra.mxu0 %v767
  %3261 = vmatmul.bf16.gmra.mxu0 %v3163
  %v3262 = vpop.f32.mrf.mxu0
  %v3263 = vadd.f32 %v3244, %v3262
  %v3264 = vpop.f32.mrf.mxu0
  %v3265 = vadd.f32 %v3246, %v3264
  %3266 = vmatmul.bf16.gmra.mxu0 %v3172
  %v3267 = vpop.f32.mrf.mxu0
  %v3268 = vadd.f32 %v3249, %v3267
  %v3269 = vpop.f32.mrf.mxu0
  %v3270 = vadd.f32 %v3251, %v3269
  %3271 = vdwg.mxu0
  %3272 = vmatpush.bf16.msra.mxu0 %v797
  %3273 = vmatpush.bf16.msra.mxu0 %v795
  %3274 = vmatpush.bf16.msra.mxu0 %v793
  %3275 = vmatpush.bf16.msra.mxu0 %v791
  %3276 = vmatpush.bf16.msra.mxu0 %v789
  %3277 = vmatpush.bf16.msra.mxu0 %v787
  %3278 = vmatpush.bf16.msra.mxu0 %v785
  %3279 = vmatpush.bf16.msra.mxu0 %v783
  %3280 = vmatmul.bf16.gmra.mxu0 %v3164
  %v3281 = vpop.f32.mrf.mxu0
  %v3282 = vadd.f32 %v3263, %v3281
  %v3283 = vpop.f32.mrf.mxu0
  %v3284 = vadd.f32 %v3265, %v3283
  %3285 = vmatmul.bf16.gmra.mxu0 %v3173
  %v3286 = vpop.f32.mrf.mxu0
  %v3287 = vadd.f32 %v3268, %v3286
  %v3288 = vpop.f32.mrf.mxu0
  %v3289 = vadd.f32 %v3270, %v3288
  %3290 = vdwg.mxu0
  %3291 = vmatpush.bf16.msra.mxu0 %v813
  %3292 = vmatpush.bf16.msra.mxu0 %v811
  %3293 = vmatpush.bf16.msra.mxu0 %v809
  %3294 = vmatpush.bf16.msra.mxu0 %v807
  %3295 = vmatpush.bf16.msra.mxu0 %v805
  %3296 = vmatpush.bf16.msra.mxu0 %v803
  %3297 = vmatpush.bf16.msra.mxu0 %v801
  %3298 = vmatpush.bf16.msra.mxu0 %v799
  %3299 = vmatmul.bf16.gmra.mxu0 %v3165
  %v3300 = vpop.f32.mrf.mxu0
  %v3301 = vadd.f32 %v3282, %v3300
  %v3302 = vpop.f32.mrf.mxu0
  %v3303 = vadd.f32 %v3284, %v3302
  %3304 = vmatmul.bf16.gmra.mxu0 %v3174
  %v3305 = vpop.f32.mrf.mxu0
  %v3306 = vadd.f32 %v3287, %v3305
  %v3307 = vpop.f32.mrf.mxu0
  %v3308 = vadd.f32 %v3289, %v3307
  %3309 = vdwg.mxu0
  %3310 = vmatpush.bf16.msra.mxu0 %v829
  %3311 = vmatpush.bf16.msra.mxu0 %v827
  %3312 = vmatpush.bf16.msra.mxu0 %v825
  %3313 = vmatpush.bf16.msra.mxu0 %v823
  %3314 = vmatpush.bf16.msra.mxu0 %v821
  %3315 = vmatpush.bf16.msra.mxu0 %v819
  %3316 = vmatpush.bf16.msra.mxu0 %v817
  %3317 = vmatpush.bf16.msra.mxu0 %v815
  %3318 = vmatmul.bf16.gmra.mxu0 %v3166
  %v3319 = vpop.f32.mrf.mxu0
  %v3320 = vadd.f32 %v3301, %v3319
  %v3321 = vpop.f32.mrf.mxu0
  %v3322 = vadd.f32 %v3303, %v3321
  %3323 = vmatmul.bf16.gmra.mxu0 %v3175
  %v3324 = vpop.f32.mrf.mxu0
  %v3325 = vadd.f32 %v3306, %v3324
  %v3326 = vpop.f32.mrf.mxu0
  %v3327 = vadd.f32 %v3308, %v3326
  %3328 = vdwg.mxu0
  %3329 = vmatpush.bf16.msra.mxu0 %v845
  %3330 = vmatpush.bf16.msra.mxu0 %v843
  %3331 = vmatpush.bf16.msra.mxu0 %v841
  %3332 = vmatpush.bf16.msra.mxu0 %v839
  %3333 = vmatpush.bf16.msra.mxu0 %v837
  %3334 = vmatpush.bf16.msra.mxu0 %v835
  %3335 = vmatpush.bf16.msra.mxu0 %v833
  %3336 = vmatpush.bf16.msra.mxu0 %v831
  %3337 = vmatmul.bf16.gmra.mxu0 %v3167
  %v3338 = vpop.f32.mrf.mxu0
  %v3339 = vadd.f32 %v3320, %v3338
  %v3340 = vpop.f32.mrf.mxu0
  %v3341 = vadd.f32 %v3322, %v3340
  %3342 = vmatmul.bf16.gmra.mxu0 %v3176
  %v3343 = vpop.f32.mrf.mxu0
  %v3344 = vadd.f32 %v3325, %v3343
  %v3345 = vpop.f32.mrf.mxu0
  %v3346 = vadd.f32 %v3327, %v3345
  %3347 = vdwg.mxu0
  %3348 = vmatpush.bf16.msra.mxu0 %v861
  %3349 = vmatpush.bf16.msra.mxu0 %v859
  %3350 = vmatpush.bf16.msra.mxu0 %v857
  %3351 = vmatpush.bf16.msra.mxu0 %v855
  %3352 = vmatpush.bf16.msra.mxu0 %v853
  %3353 = vmatpush.bf16.msra.mxu0 %v851
  %3354 = vmatpush.bf16.msra.mxu0 %v849
  %3355 = vmatpush.bf16.msra.mxu0 %v847
  %3356 = vmatmul.bf16.gmra.mxu0 %v3168
  %v3357 = vpop.f32.mrf.mxu0
  %v3358 = vadd.f32 %v3339, %v3357
  %v3359 = vpop.f32.mrf.mxu0
  %v3360 = vadd.f32 %v3341, %v3359
  %3361 = vmatmul.bf16.gmra.mxu0 %v3177
  %v3362 = vpop.f32.mrf.mxu0
  %v3363 = vadd.f32 %v3344, %v3362
  %v3364 = vpop.f32.mrf.mxu0
  %v3365 = vadd.f32 %v3346, %v3364
  %3366 = vdwg.mxu0
  %3367 = vmatpush.bf16.msra.mxu0 %v734
  %3368 = vmatpush.bf16.msra.mxu0 %v732
  %3369 = vmatpush.bf16.msra.mxu0 %v730
  %3370 = vmatpush.bf16.msra.mxu0 %v728
  %3371 = vmatpush.bf16.msra.mxu0 %v726
  %3372 = vmatpush.bf16.msra.mxu0 %v724
  %3373 = vmatpush.bf16.msra.mxu0 %v722
  %3374 = vmatpush.bf16.msra.mxu0 %v720
  %3375 = vmatmul.bf16.gmra.mxu0 %v3160
  %v3376 = vpop.f32.mrf.mxu0
  %v3377 = vadd.f32 0.0, %v3376
  %v3378 = vpop.f32.mrf.mxu0
  %v3379 = vadd.f32 0.0, %v3378
  %3380 = vmatmul.bf16.gmra.mxu0 %v3169
  %v3381 = vpop.f32.mrf.mxu0
  %v3382 = vadd.f32 0.0, %v3381
  %v3383 = vpop.f32.mrf.mxu0
  %v3384 = vadd.f32 0.0, %v3383
  %3385 = vdwg.mxu0
  %3386 = vmatpush.bf16.msra.mxu0 %v750
  %3387 = vmatpush.bf16.msra.mxu0 %v748
  %3388 = vmatpush.bf16.msra.mxu0 %v746
  %3389 = vmatpush.bf16.msra.mxu0 %v744
  %3390 = vmatpush.bf16.msra.mxu0 %v742
  %3391 = vmatpush.bf16.msra.mxu0 %v740
  %3392 = vmatpush.bf16.msra.mxu0 %v738
  %3393 = vmatpush.bf16.msra.mxu0 %v736
  %3394 = vmatmul.bf16.gmra.mxu0 %v3161
  %v3395 = vpop.f32.mrf.mxu0
  %v3396 = vadd.f32 %v3377, %v3395
  %v3397 = vpop.f32.mrf.mxu0
  %v3398 = vadd.f32 %v3379, %v3397
  %3399 = vmatmul.bf16.gmra.mxu0 %v3170
  %v3400 = vpop.f32.mrf.mxu0
  %v3401 = vadd.f32 %v3382, %v3400
  %v3402 = vpop.f32.mrf.mxu0
  %v3403 = vadd.f32 %v3384, %v3402
  %3404 = vdwg.mxu0
  %3405 = vmatpush.bf16.msra.mxu0 %v766
  %3406 = vmatpush.bf16.msra.mxu0 %v764
  %3407 = vmatpush.bf16.msra.mxu0 %v762
  %3408 = vmatpush.bf16.msra.mxu0 %v760
  %3409 = vmatpush.bf16.msra.mxu0 %v758
  %3410 = vmatpush.bf16.msra.mxu0 %v756
  %3411 = vmatpush.bf16.msra.mxu0 %v754
  %3412 = vmatpush.bf16.msra.mxu0 %v752
  %3413 = vmatmul.bf16.gmra.mxu0 %v3162
  %v3414 = vpop.f32.mrf.mxu0
  %v3415 = vadd.f32 %v3396, %v3414
  %v3416 = vpop.f32.mrf.mxu0
  %v3417 = vadd.f32 %v3398, %v3416
  %3418 = vmatmul.bf16.gmra.mxu0 %v3171
  %v3419 = vpop.f32.mrf.mxu0
  %v3420 = vadd.f32 %v3401, %v3419
  %v3421 = vpop.f32.mrf.mxu0
  %v3422 = vadd.f32 %v3403, %v3421
  %3423 = vdwg.mxu0
  %3424 = vmatpush.bf16.msra.mxu0 %v782
  %3425 = vmatpush.bf16.msra.mxu0 %v780
  %3426 = vmatpush.bf16.msra.mxu0 %v778
  %3427 = vmatpush.bf16.msra.mxu0 %v776
  %3428 = vmatpush.bf16.msra.mxu0 %v774
  %3429 = vmatpush.bf16.msra.mxu0 %v772
  %3430 = vmatpush.bf16.msra.mxu0 %v770
  %3431 = vmatpush.bf16.msra.mxu0 %v768
  %3432 = vmatmul.bf16.gmra.mxu0 %v3163
  %v3433 = vpop.f32.mrf.mxu0
  %v3434 = vadd.f32 %v3415, %v3433
  %v3435 = vpop.f32.mrf.mxu0
  %v3436 = vadd.f32 %v3417, %v3435
  %3437 = vmatmul.bf16.gmra.mxu0 %v3172
  %v3438 = vpop.f32.mrf.mxu0
  %v3439 = vadd.f32 %v3420, %v3438
  %v3440 = vpop.f32.mrf.mxu0
  %v3441 = vadd.f32 %v3422, %v3440
  %3442 = vdwg.mxu0
  %3443 = vmatpush.bf16.msra.mxu0 %v798
  %3444 = vmatpush.bf16.msra.mxu0 %v796
  %3445 = vmatpush.bf16.msra.mxu0 %v794
  %3446 = vmatpush.bf16.msra.mxu0 %v792
  %3447 = vmatpush.bf16.msra.mxu0 %v790
  %3448 = vmatpush.bf16.msra.mxu0 %v788
  %3449 = vmatpush.bf16.msra.mxu0 %v786
  %3450 = vmatpush.bf16.msra.mxu0 %v784
  %3451 = vmatmul.bf16.gmra.mxu0 %v3164
  %v3452 = vpop.f32.mrf.mxu0
  %v3453 = vadd.f32 %v3434, %v3452
  %v3454 = vpop.f32.mrf.mxu0
  %v3455 = vadd.f32 %v3436, %v3454
  %3456 = vmatmul.bf16.gmra.mxu0 %v3173
  %v3457 = vpop.f32.mrf.mxu0
  %v3458 = vadd.f32 %v3439, %v3457
  %v3459 = vpop.f32.mrf.mxu0
  %v3460 = vadd.f32 %v3441, %v3459
  %3461 = vdwg.mxu0
  %3462 = vmatpush.bf16.msra.mxu0 %v814
  %3463 = vmatpush.bf16.msra.mxu0 %v812
  %3464 = vmatpush.bf16.msra.mxu0 %v810
  %3465 = vmatpush.bf16.msra.mxu0 %v808
  %3466 = vmatpush.bf16.msra.mxu0 %v806
  %3467 = vmatpush.bf16.msra.mxu0 %v804
  %3468 = vmatpush.bf16.msra.mxu0 %v802
  %3469 = vmatpush.bf16.msra.mxu0 %v800
  %3470 = vmatmul.bf16.gmra.mxu0 %v3165
  %v3471 = vpop.f32.mrf.mxu0
  %v3472 = vadd.f32 %v3453, %v3471
  %v3473 = vpop.f32.mrf.mxu0
  %v3474 = vadd.f32 %v3455, %v3473
  %3475 = vmatmul.bf16.gmra.mxu0 %v3174
  %v3476 = vpop.f32.mrf.mxu0
  %v3477 = vadd.f32 %v3458, %v3476
  %v3478 = vpop.f32.mrf.mxu0
  %v3479 = vadd.f32 %v3460, %v3478
  %3480 = vdwg.mxu0
  %3481 = vmatpush.bf16.msra.mxu0 %v830
  %3482 = vmatpush.bf16.msra.mxu0 %v828
  %3483 = vmatpush.bf16.msra.mxu0 %v826
  %3484 = vmatpush.bf16.msra.mxu0 %v824
  %3485 = vmatpush.bf16.msra.mxu0 %v822
  %3486 = vmatpush.bf16.msra.mxu0 %v820
  %3487 = vmatpush.bf16.msra.mxu0 %v818
  %3488 = vmatpush.bf16.msra.mxu0 %v816
  %3489 = vmatmul.bf16.gmra.mxu0 %v3166
  %v3490 = vpop.f32.mrf.mxu0
  %v3491 = vadd.f32 %v3472, %v3490
  %v3492 = vpop.f32.mrf.mxu0
  %v3493 = vadd.f32 %v3474, %v3492
  %3494 = vmatmul.bf16.gmra.mxu0 %v3175
  %v3495 = vpop.f32.mrf.mxu0
  %v3496 = vadd.f32 %v3477, %v3495
  %v3497 = vpop.f32.mrf.mxu0
  %v3498 = vadd.f32 %v3479, %v3497
  %3499 = vdwg.mxu0
  %3500 = vmatpush.bf16.msra.mxu0 %v846
  %3501 = vmatpush.bf16.msra.mxu0 %v844
  %3502 = vmatpush.bf16.msra.mxu0 %v842
  %3503 = vmatpush.bf16.msra.mxu0 %v840
  %3504 = vmatpush.bf16.msra.mxu0 %v838
  %3505 = vmatpush.bf16.msra.mxu0 %v836
  %3506 = vmatpush.bf16.msra.mxu0 %v834
  %3507 = vmatpush.bf16.msra.mxu0 %v832
  %3508 = vmatmul.bf16.gmra.mxu0 %v3167
  %v3509 = vpop.f32.mrf.mxu0
  %v3510 = vadd.f32 %v3491, %v3509
  %v3511 = vpop.f32.mrf.mxu0
  %v3512 = vadd.f32 %v3493, %v3511
  %3513 = vmatmul.bf16.gmra.mxu0 %v3176
  %v3514 = vpop.f32.mrf.mxu0
  %v3515 = vadd.f32 %v3496, %v3514
  %v3516 = vpop.f32.mrf.mxu0
  %v3517 = vadd.f32 %v3498, %v3516
  %3518 = vdwg.mxu0
  %3519 = vmatpush.bf16.msra.mxu0 %v862
  %3520 = vmatpush.bf16.msra.mxu0 %v860
  %3521 = vmatpush.bf16.msra.mxu0 %v858
  %3522 = vmatpush.bf16.msra.mxu0 %v856
  %3523 = vmatpush.bf16.msra.mxu0 %v854
  %3524 = vmatpush.bf16.msra.mxu0 %v852
  %3525 = vmatpush.bf16.msra.mxu0 %v850
  %3526 = vmatpush.bf16.msra.mxu0 %v848
  %3527 = vmatmul.bf16.gmra.mxu0 %v3168
  %v3528 = vpop.f32.mrf.mxu0
  %v3529 = vadd.f32 %v3510, %v3528
  %v3530 = vpop.f32.mrf.mxu0
  %v3531 = vadd.f32 %v3512, %v3530
  %3532 = vmatmul.bf16.gmra.mxu0 %v3177
  %v3533 = vpop.f32.mrf.mxu0
  %v3534 = vadd.f32 %v3515, %v3533
  %v3535 = vpop.f32.mrf.mxu0
  %v3536 = vadd.f32 %v3517, %v3535
  %3537 = vdwg.mxu0
  %v3538 = vmul.f32 %v3358, %v1350
  %v3539 = vmul.f32 %v3529, %v1351
  %v3540 = vmul.f32 %v3360, %v1350
  %v3541 = vmul.f32 %v3531, %v1351
  %v3542 = vmul.f32 %v3363, %v1350
  %v3543 = vmul.f32 %v3534, %v1351
  %v3544 = vmul.f32 %v3365, %v1350
  %v3545 = vmul.f32 %v3536, %v1351
  %v3546 = vadd.f32 %v3538, %v1363
  %v3547 = vadd.f32 %v3539, %v1364
  %v3548 = vadd.f32 %v3540, %v1363
  %v3549 = vadd.f32 %v3541, %v1364
  %v3550 = vadd.f32 %v3542, %v1363
  %v3551 = vadd.f32 %v3543, %v1364
  %v3552 = vadd.f32 %v3544, %v1363
  %v3553 = vadd.f32 %v3545, %v1364
  %v3554 = vmax.f32 %v3546, %v3548
  %v3555 = vmax.f32 %v3547, %v3549
  %v3556 = vmax.f32 %v3550, %v3552
  %v3557 = vmax.f32 %v3551, %v3553
  %v3558 = vmax.f32 %v3554, %v3556
  %v3559 = vmax.f32 %v3555, %v3557
  %v3560 = vmax.f32 %v3558, 0.0
  %v3561 = vmax.f32 %v3559, 0.0
  %v3562 = vpack.c.bf16 %v3560, %v3560
  %v3563 = vpack.c.bf16 %v3561, %v3561
  %s3564 = scalar_lea.vmem %s4, 768
  %v3565 = vld [vmem:[%s3564] sm:$0xff]
  %v3566 = vld [vmem:[%s3564 + $0x8] sm:$0xff]
  %v3567 = vld [vmem:[%s3564 + $0x10] sm:$0xff]
  %v3568 = vld [vmem:[%s3564 + $0x18] sm:$0xff]
  %v3569 = vld [vmem:[%s3564 + $0x20] sm:$0xff]
  %v3570 = vld [vmem:[%s3564 + $0x28] sm:$0xff]
  %v3571 = vld [vmem:[%s3564 + $0x30] sm:$0xff]
  %v3572 = vld [vmem:[%s3564 + $0x38] sm:$0xff]
  %v3573 = vld [vmem:[%s3564 + $0x40] sm:$0xff]
  %v3574 = vld [vmem:[%s3564 + $0x48] sm:$0xff]
  %v3575 = vld [vmem:[%s3564 + $0x50] sm:$0xff]
  %v3576 = vld [vmem:[%s3564 + $0x58] sm:$0xff]
  %v3577 = vld [vmem:[%s3564 + $0x60] sm:$0xff]
  %v3578 = vld [vmem:[%s3564 + $0x68] sm:$0xff]
  %v3579 = vld [vmem:[%s3564 + $0x70] sm:$0xff]
  %v3580 = vld [vmem:[%s3564 + $0x78] sm:$0xff]
  %v3581 = vld [vmem:[%s3564 + $0x80] sm:$0xff]
  %v3582 = vld [vmem:[%s3564 + $0x88] sm:$0xff]
  %v3583 = vld [vmem:[%s3564 + $0x90] sm:$0xff]
  %v3584 = vld [vmem:[%s3564 + $0x98] sm:$0xff]
  %v3585 = vld [vmem:[%s3564 + $0xa0] sm:$0xff]
  %v3586 = vld [vmem:[%s3564 + $0xa8] sm:$0xff]
  %v3587 = vld [vmem:[%s3564 + $0xb0] sm:$0xff]
  %v3588 = vld [vmem:[%s3564 + $0xb8] sm:$0xff]
  %v3589 = vld [vmem:[%s3564 + $0xc0] sm:$0xff]
  %v3590 = vld [vmem:[%s3564 + $0xc8] sm:$0xff]
  %v3591 = vld [vmem:[%s3564 + $0xd0] sm:$0xff]
  %v3592 = vld [vmem:[%s3564 + $0xd8] sm:$0xff]
  %v3593 = vld [vmem:[%s3564 + $0xe0] sm:$0xff]
  %v3594 = vld [vmem:[%s3564 + $0xe8] sm:$0xff]
  %v3595 = vld [vmem:[%s3564 + $0xf0] sm:$0xff]
  %v3596 = vld [vmem:[%s3564 + $0xf8] sm:$0xff]
  %v3629 = vunpack.c.l.b16 %v3565
  %v3630 = vunpack.c.h.b16 %v3565
  %v3631 = vunpack.c.l.b16 %v3566
  %v3632 = vunpack.c.h.b16 %v3566
  %v3633 = vunpack.c.l.b16 %v3567
  %v3634 = vunpack.c.h.b16 %v3567
  %v3635 = vunpack.c.l.b16 %v3568
  %v3636 = vunpack.c.h.b16 %v3568
  %v3637 = vunpack.c.l.b16 %v3569
  %v3638 = vunpack.c.h.b16 %v3569
  %v3639 = vunpack.c.l.b16 %v3570
  %v3640 = vunpack.c.h.b16 %v3570
  %v3641 = vunpack.c.l.b16 %v3571
  %v3642 = vunpack.c.h.b16 %v3571
  %v3643 = vunpack.c.l.b16 %v3572
  %v3644 = vunpack.c.h.b16 %v3572
  %v3645 = vunpack.c.l.b16 %v3573
  %v3646 = vunpack.c.h.b16 %v3573
  %v3647 = vunpack.c.l.b16 %v3574
  %v3648 = vunpack.c.h.b16 %v3574
  %v3649 = vunpack.c.l.b16 %v3575
  %v3650 = vunpack.c.h.b16 %v3575
  %v3651 = vunpack.c.l.b16 %v3576
  %v3652 = vunpack.c.h.b16 %v3576
  %v3653 = vunpack.c.l.b16 %v3577
  %v3654 = vunpack.c.h.b16 %v3577
  %v3655 = vunpack.c.l.b16 %v3578
  %v3656 = vunpack.c.h.b16 %v3578
  %v3657 = vunpack.c.l.b16 %v3579
  %v3658 = vunpack.c.h.b16 %v3579
  %v3659 = vunpack.c.l.b16 %v3580
  %v3660 = vunpack.c.h.b16 %v3580
  %v3661 = vunpack.c.l.b16 %v3581
  %v3662 = vunpack.c.h.b16 %v3581
  %v3663 = vunpack.c.l.b16 %v3582
  %v3664 = vunpack.c.h.b16 %v3582
  %v3665 = vunpack.c.l.b16 %v3583
  %v3666 = vunpack.c.h.b16 %v3583
  %v3667 = vunpack.c.l.b16 %v3584
  %v3668 = vunpack.c.h.b16 %v3584
  %v3669 = vunpack.c.l.b16 %v3585
  %v3670 = vunpack.c.h.b16 %v3585
  %v3671 = vunpack.c.l.b16 %v3586
  %v3672 = vunpack.c.h.b16 %v3586
  %v3673 = vunpack.c.l.b16 %v3587
  %v3674 = vunpack.c.h.b16 %v3587
  %v3675 = vunpack.c.l.b16 %v3588
  %v3676 = vunpack.c.h.b16 %v3588
  %v3677 = vunpack.c.l.b16 %v3589
  %v3678 = vunpack.c.h.b16 %v3589
  %v3679 = vunpack.c.l.b16 %v3590
  %v3680 = vunpack.c.h.b16 %v3590
  %v3681 = vunpack.c.l.b16 %v3591
  %v3682 = vunpack.c.h.b16 %v3591
  %v3683 = vunpack.c.l.b16 %v3592
  %v3684 = vunpack.c.h.b16 %v3592
  %v3685 = vunpack.c.l.b16 %v3593
  %v3686 = vunpack.c.h.b16 %v3593
  %v3687 = vunpack.c.l.b16 %v3594
  %v3688 = vunpack.c.h.b16 %v3594
  %v3689 = vunpack.c.l.b16 %v3595
  %v3690 = vunpack.c.h.b16 %v3595
  %v3691 = vunpack.c.l.b16 %v3596
  %v3692 = vunpack.c.h.b16 %v3596
  %v3693 = vpack.c.b16 %v3631, %v3629
  %v3694 = vpack.c.b16 %v3632, %v3630
  %v3695 = vpack.c.b16 %v3635, %v3633
  %v3696 = vpack.c.b16 %v3636, %v3634
  %v3697 = vpack.c.b16 %v3639, %v3637
  %v3698 = vpack.c.b16 %v3640, %v3638
  %v3699 = vpack.c.b16 %v3643, %v3641
  %v3700 = vpack.c.b16 %v3644, %v3642
  %v3701 = vpack.c.b16 %v3647, %v3645
  %v3702 = vpack.c.b16 %v3648, %v3646
  %v3703 = vpack.c.b16 %v3651, %v3649
  %v3704 = vpack.c.b16 %v3652, %v3650
  %v3705 = vpack.c.b16 %v3655, %v3653
  %v3706 = vpack.c.b16 %v3656, %v3654
  %v3707 = vpack.c.b16 %v3659, %v3657
  %v3708 = vpack.c.b16 %v3660, %v3658
  %v3709 = vpack.c.b16 %v3663, %v3661
  %v3710 = vpack.c.b16 %v3664, %v3662
  %v3711 = vpack.c.b16 %v3667, %v3665
  %v3712 = vpack.c.b16 %v3668, %v3666
  %v3713 = vpack.c.b16 %v3671, %v3669
  %v3714 = vpack.c.b16 %v3672, %v3670
  %v3715 = vpack.c.b16 %v3675, %v3673
  %v3716 = vpack.c.b16 %v3676, %v3674
  %v3717 = vpack.c.b16 %v3679, %v3677
  %v3718 = vpack.c.b16 %v3680, %v3678
  %v3719 = vpack.c.b16 %v3683, %v3681
  %v3720 = vpack.c.b16 %v3684, %v3682
  %v3721 = vpack.c.b16 %v3687, %v3685
  %v3722 = vpack.c.b16 %v3688, %v3686
  %v3723 = vpack.c.b16 %v3691, %v3689
  %v3724 = vpack.c.b16 %v3692, %v3690
  %3757 = vmatpush.bf16.msra.mxu0 %v3707
  %3758 = vmatpush.bf16.msra.mxu0 %v3705
  %3759 = vmatpush.bf16.msra.mxu0 %v3703
  %3760 = vmatpush.bf16.msra.mxu0 %v3701
  %3761 = vmatpush.bf16.msra.mxu0 %v3699
  %3762 = vmatpush.bf16.msra.mxu0 %v3697
  %3763 = vmatpush.bf16.msra.mxu0 %v3695
  %3764 = vmatpush.bf16.msra.mxu0 %v3693
  %3765 = vmatmul.bf16.gmra.mxu0 %v3562
  %v3766 = vpop.f32.mrf.mxu0
  %v3767 = vadd.f32 0.0, %v3766
  %v3768 = vpop.f32.mrf.mxu0
  %3769 = vdwg.mxu0
  %3770 = vmatpush.bf16.msra.mxu0 %v3723
  %3771 = vmatpush.bf16.msra.mxu0 %v3721
  %3772 = vmatpush.bf16.msra.mxu0 %v3719
  %3773 = vmatpush.bf16.msra.mxu0 %v3717
  %3774 = vmatpush.bf16.msra.mxu0 %v3715
  %3775 = vmatpush.bf16.msra.mxu0 %v3713
  %3776 = vmatpush.bf16.msra.mxu0 %v3711
  %3777 = vmatpush.bf16.msra.mxu0 %v3709
  %3778 = vmatmul.bf16.gmra.mxu0 %v3563
  %v3779 = vpop.f32.mrf.mxu0
  %v3780 = vadd.f32 %v3767, %v3779
  %v3781 = vpop.f32.mrf.mxu0
  %3782 = vdwg.mxu0
  %3783 = vmatpush.bf16.msra.mxu0 %v3708
  %3784 = vmatpush.bf16.msra.mxu0 %v3706
  %3785 = vmatpush.bf16.msra.mxu0 %v3704
  %3786 = vmatpush.bf16.msra.mxu0 %v3702
  %3787 = vmatpush.bf16.msra.mxu0 %v3700
  %3788 = vmatpush.bf16.msra.mxu0 %v3698
  %3789 = vmatpush.bf16.msra.mxu0 %v3696
  %3790 = vmatpush.bf16.msra.mxu0 %v3694
  %3791 = vmatmul.bf16.gmra.mxu0 %v3562
  %v3792 = vpop.f32.mrf.mxu0
  %v3793 = vadd.f32 0.0, %v3792
  %v3794 = vpop.f32.mrf.mxu0
  %3795 = vdwg.mxu0
  %3796 = vmatpush.bf16.msra.mxu0 %v3724
  %3797 = vmatpush.bf16.msra.mxu0 %v3722
  %3798 = vmatpush.bf16.msra.mxu0 %v3720
  %3799 = vmatpush.bf16.msra.mxu0 %v3718
  %3800 = vmatpush.bf16.msra.mxu0 %v3716
  %3801 = vmatpush.bf16.msra.mxu0 %v3714
  %3802 = vmatpush.bf16.msra.mxu0 %v3712
  %3803 = vmatpush.bf16.msra.mxu0 %v3710
  %3804 = vmatmul.bf16.gmra.mxu0 %v3563
  %v3805 = vpop.f32.mrf.mxu0
  %v3806 = vadd.f32 %v3793, %v3805
  %v3807 = vpop.f32.mrf.mxu0
  %3808 = vdwg.mxu0
  %v3809 = vadd.f32 %v3081, %v3780
  %v3810 = vadd.f32 %v3082, %v3806
  %s3811 = scalar_lea.vmem %s0, 576
  %v3812 = vld [vmem:[%s3811] sm:$0xff]
  %v3813 = vld [vmem:[%s3811 + $0x8] sm:$0xff]
  %v3814 = vld [vmem:[%s3811 + $0x10] sm:$0xff]
  %v3815 = vld [vmem:[%s3811 + $0x18] sm:$0xff]
  %v3816 = vld [vmem:[%s3811 + $0x20] sm:$0xf]
  %v3817 = vld [vmem:[%s3811 + $0x24] sm:$0xff]
  %v3818 = vld [vmem:[%s3811 + $0x2c] sm:$0xff]
  %v3819 = vld [vmem:[%s3811 + $0x34] sm:$0xff]
  %v3820 = vld [vmem:[%s3811 + $0x3c] sm:$0xff]
  %v3821 = vld [vmem:[%s3811 + $0x44] sm:$0xf]
  %v3822 = vld [vmem:[%s3811 + $0x48] sm:$0xff]
  %v3823 = vld [vmem:[%s3811 + $0x50] sm:$0xff]
  %v3824 = vld [vmem:[%s3811 + $0x58] sm:$0xff]
  %v3825 = vld [vmem:[%s3811 + $0x60] sm:$0xff]
  %v3826 = vld [vmem:[%s3811 + $0x68] sm:$0xf]
  %v3827 = vld [vmem:[%s3811 + $0x6c] sm:$0xff]
  %v3828 = vld [vmem:[%s3811 + $0x74] sm:$0xff]
  %v3829 = vld [vmem:[%s3811 + $0x7c] sm:$0xff]
  %v3830 = vld [vmem:[%s3811 + $0x84] sm:$0xff]
  %v3831 = vld [vmem:[%s3811 + $0x8c] sm:$0xf]
  %v3852 = vunpack.c.l.b16 %v3812
  %v3853 = vunpack.c.h.b16 %v3812
  %v3854 = vunpack.c.l.b16 %v3813
  %v3855 = vunpack.c.h.b16 %v3813
  %v3856 = vunpack.c.l.b16 %v3814
  %v3857 = vunpack.c.h.b16 %v3814
  %v3858 = vunpack.c.l.b16 %v3815
  %v3859 = vunpack.c.h.b16 %v3815
  %v3860 = vunpack.c.l.b16 %v3816
  %v3861 = vunpack.c.l.b16 %v3817
  %v3862 = vunpack.c.h.b16 %v3817
  %v3863 = vunpack.c.l.b16 %v3818
  %v3864 = vunpack.c.h.b16 %v3818
  %v3865 = vunpack.c.l.b16 %v3819
  %v3866 = vunpack.c.h.b16 %v3819
  %v3867 = vunpack.c.l.b16 %v3820
  %v3868 = vunpack.c.h.b16 %v3820
  %v3869 = vunpack.c.l.b16 %v3821
  %v3870 = vunpack.c.l.b16 %v3822
  %v3871 = vunpack.c.h.b16 %v3822
  %v3872 = vunpack.c.l.b16 %v3823
  %v3873 = vunpack.c.h.b16 %v3823
  %v3874 = vunpack.c.l.b16 %v3824
  %v3875 = vunpack.c.h.b16 %v3824
  %v3876 = vunpack.c.l.b16 %v3825
  %v3877 = vunpack.c.h.b16 %v3825
  %v3878 = vunpack.c.l.b16 %v3826
  %v3879 = vunpack.c.l.b16 %v3827
  %v3880 = vunpack.c.h.b16 %v3827
  %v3881 = vunpack.c.l.b16 %v3828
  %v3882 = vunpack.c.h.b16 %v3828
  %v3883 = vunpack.c.l.b16 %v3829
  %v3884 = vunpack.c.h.b16 %v3829
  %v3885 = vunpack.c.l.b16 %v3830
  %v3886 = vunpack.c.h.b16 %v3830
  %v3887 = vunpack.c.l.b16 %v3831
  %v3888 = vpack.c.b16 %v3861, %v3852
  %v3889 = vpack.c.b16 %v3862, %v3853
  %v3890 = vpack.c.b16 %v3863, %v3854
  %v3891 = vpack.c.b16 %v3864, %v3855
  %v3892 = vpack.c.b16 %v3865, %v3856
  %v3893 = vpack.c.b16 %v3866, %v3857
  %v3894 = vpack.c.b16 %v3867, %v3858
  %v3895 = vpack.c.b16 %v3868, %v3859
  %v3896 = vpack.c.b16 %v3869, %v3860
  %v3897 = vpack.c.b16 %v3879, %v3870
  %v3898 = vpack.c.b16 %v3880, %v3871
  %v3899 = vpack.c.b16 %v3881, %v3872
  %v3900 = vpack.c.b16 %v3882, %v3873
  %v3901 = vpack.c.b16 %v3883, %v3874
  %v3902 = vpack.c.b16 %v3884, %v3875
  %v3903 = vpack.c.b16 %v3885, %v3876
  %v3904 = vpack.c.b16 %v3886, %v3877
  %v3905 = vpack.c.b16 %v3887, %v3878
  %3924 = vmatpush.bf16.msra.mxu0 %v733
  %3925 = vmatpush.bf16.msra.mxu0 %v731
  %3926 = vmatpush.bf16.msra.mxu0 %v729
  %3927 = vmatpush.bf16.msra.mxu0 %v727
  %3928 = vmatpush.bf16.msra.mxu0 %v725
  %3929 = vmatpush.bf16.msra.mxu0 %v723
  %3930 = vmatpush.bf16.msra.mxu0 %v721
  %3931 = vmatpush.bf16.msra.mxu0 %v719
  %3932 = vmatmul.bf16.gmra.mxu0 %v3888
  %v3933 = vpop.f32.mrf.mxu0
  %v3934 = vadd.f32 0.0, %v3933
  %v3935 = vpop.f32.mrf.mxu0
  %v3936 = vadd.f32 0.0, %v3935
  %3937 = vmatmul.bf16.gmra.mxu0 %v3897
  %v3938 = vpop.f32.mrf.mxu0
  %v3939 = vadd.f32 0.0, %v3938
  %v3940 = vpop.f32.mrf.mxu0
  %v3941 = vadd.f32 0.0, %v3940
  %3942 = vdwg.mxu0
  %3943 = vmatpush.bf16.msra.mxu0 %v749
  %3944 = vmatpush.bf16.msra.mxu0 %v747
  %3945 = vmatpush.bf16.msra.mxu0 %v745
  %3946 = vmatpush.bf16.msra.mxu0 %v743
  %3947 = vmatpush.bf16.msra.mxu0 %v741
  %3948 = vmatpush.bf16.msra.mxu0 %v739
  %3949 = vmatpush.bf16.msra.mxu0 %v737
  %3950 = vmatpush.bf16.msra.mxu0 %v735
  %3951 = vmatmul.bf16.gmra.mxu0 %v3889
  %v3952 = vpop.f32.mrf.mxu0
  %v3953 = vadd.f32 %v3934, %v3952
  %v3954 = vpop.f32.mrf.mxu0
  %v3955 = vadd.f32 %v3936, %v3954
  %3956 = vmatmul.bf16.gmra.mxu0 %v3898
  %v3957 = vpop.f32.mrf.mxu0
  %v3958 = vadd.f32 %v3939, %v3957
  %v3959 = vpop.f32.mrf.mxu0
  %v3960 = vadd.f32 %v3941, %v3959
  %3961 = vdwg.mxu0
  %3962 = vmatpush.bf16.msra.mxu0 %v765
  %3963 = vmatpush.bf16.msra.mxu0 %v763
  %3964 = vmatpush.bf16.msra.mxu0 %v761
  %3965 = vmatpush.bf16.msra.mxu0 %v759
  %3966 = vmatpush.bf16.msra.mxu0 %v757
  %3967 = vmatpush.bf16.msra.mxu0 %v755
  %3968 = vmatpush.bf16.msra.mxu0 %v753
  %3969 = vmatpush.bf16.msra.mxu0 %v751
  %3970 = vmatmul.bf16.gmra.mxu0 %v3890
  %v3971 = vpop.f32.mrf.mxu0
  %v3972 = vadd.f32 %v3953, %v3971
  %v3973 = vpop.f32.mrf.mxu0
  %v3974 = vadd.f32 %v3955, %v3973
  %3975 = vmatmul.bf16.gmra.mxu0 %v3899
  %v3976 = vpop.f32.mrf.mxu0
  %v3977 = vadd.f32 %v3958, %v3976
  %v3978 = vpop.f32.mrf.mxu0
  %v3979 = vadd.f32 %v3960, %v3978
  %3980 = vdwg.mxu0
  %3981 = vmatpush.bf16.msra.mxu0 %v781
  %3982 = vmatpush.bf16.msra.mxu0 %v779
  %3983 = vmatpush.bf16.msra.mxu0 %v777
  %3984 = vmatpush.bf16.msra.mxu0 %v775
  %3985 = vmatpush.bf16.msra.mxu0 %v773
  %3986 = vmatpush.bf16.msra.mxu0 %v771
  %3987 = vmatpush.bf16.msra.mxu0 %v769
  %3988 = vmatpush.bf16.msra.mxu0 %v767
  %3989 = vmatmul.bf16.gmra.mxu0 %v3891
  %v3990 = vpop.f32.mrf.mxu0
  %v3991 = vadd.f32 %v3972, %v3990
  %v3992 = vpop.f32.mrf.mxu0
  %v3993 = vadd.f32 %v3974, %v3992
  %3994 = vmatmul.bf16.gmra.mxu0 %v3900
  %v3995 = vpop.f32.mrf.mxu0
  %v3996 = vadd.f32 %v3977, %v3995
  %v3997 = vpop.f32.mrf.mxu0
  %v3998 = vadd.f32 %v3979, %v3997
  %3999 = vdwg.mxu0
  %4000 = vmatpush.bf16.msra.mxu0 %v797
  %4001 = vmatpush.bf16.msra.mxu0 %v795
  %4002 = vmatpush.bf16.msra.mxu0 %v793
  %4003 = vmatpush.bf16.msra.mxu0 %v791
  %4004 = vmatpush.bf16.msra.mxu0 %v789
  %4005 = vmatpush.bf16.msra.mxu0 %v787
  %4006 = vmatpush.bf16.msra.mxu0 %v785
  %4007 = vmatpush.bf16.msra.mxu0 %v783
  %4008 = vmatmul.bf16.gmra.mxu0 %v3892
  %v4009 = vpop.f32.mrf.mxu0
  %v4010 = vadd.f32 %v3991, %v4009
  %v4011 = vpop.f32.mrf.mxu0
  %v4012 = vadd.f32 %v3993, %v4011
  %4013 = vmatmul.bf16.gmra.mxu0 %v3901
  %v4014 = vpop.f32.mrf.mxu0
  %v4015 = vadd.f32 %v3996, %v4014
  %v4016 = vpop.f32.mrf.mxu0
  %v4017 = vadd.f32 %v3998, %v4016
  %4018 = vdwg.mxu0
  %4019 = vmatpush.bf16.msra.mxu0 %v813
  %4020 = vmatpush.bf16.msra.mxu0 %v811
  %4021 = vmatpush.bf16.msra.mxu0 %v809
  %4022 = vmatpush.bf16.msra.mxu0 %v807
  %4023 = vmatpush.bf16.msra.mxu0 %v805
  %4024 = vmatpush.bf16.msra.mxu0 %v803
  %4025 = vmatpush.bf16.msra.mxu0 %v801
  %4026 = vmatpush.bf16.msra.mxu0 %v799
  %4027 = vmatmul.bf16.gmra.mxu0 %v3893
  %v4028 = vpop.f32.mrf.mxu0
  %v4029 = vadd.f32 %v4010, %v4028
  %v4030 = vpop.f32.mrf.mxu0
  %v4031 = vadd.f32 %v4012, %v4030
  %4032 = vmatmul.bf16.gmra.mxu0 %v3902
  %v4033 = vpop.f32.mrf.mxu0
  %v4034 = vadd.f32 %v4015, %v4033
  %v4035 = vpop.f32.mrf.mxu0
  %v4036 = vadd.f32 %v4017, %v4035
  %4037 = vdwg.mxu0
  %4038 = vmatpush.bf16.msra.mxu0 %v829
  %4039 = vmatpush.bf16.msra.mxu0 %v827
  %4040 = vmatpush.bf16.msra.mxu0 %v825
  %4041 = vmatpush.bf16.msra.mxu0 %v823
  %4042 = vmatpush.bf16.msra.mxu0 %v821
  %4043 = vmatpush.bf16.msra.mxu0 %v819
  %4044 = vmatpush.bf16.msra.mxu0 %v817
  %4045 = vmatpush.bf16.msra.mxu0 %v815
  %4046 = vmatmul.bf16.gmra.mxu0 %v3894
  %v4047 = vpop.f32.mrf.mxu0
  %v4048 = vadd.f32 %v4029, %v4047
  %v4049 = vpop.f32.mrf.mxu0
  %v4050 = vadd.f32 %v4031, %v4049
  %4051 = vmatmul.bf16.gmra.mxu0 %v3903
  %v4052 = vpop.f32.mrf.mxu0
  %v4053 = vadd.f32 %v4034, %v4052
  %v4054 = vpop.f32.mrf.mxu0
  %v4055 = vadd.f32 %v4036, %v4054
  %4056 = vdwg.mxu0
  %4057 = vmatpush.bf16.msra.mxu0 %v845
  %4058 = vmatpush.bf16.msra.mxu0 %v843
  %4059 = vmatpush.bf16.msra.mxu0 %v841
  %4060 = vmatpush.bf16.msra.mxu0 %v839
  %4061 = vmatpush.bf16.msra.mxu0 %v837
  %4062 = vmatpush.bf16.msra.mxu0 %v835
  %4063 = vmatpush.bf16.msra.mxu0 %v833
  %4064 = vmatpush.bf16.msra.mxu0 %v831
  %4065 = vmatmul.bf16.gmra.mxu0 %v3895
  %v4066 = vpop.f32.mrf.mxu0
  %v4067 = vadd.f32 %v4048, %v4066
  %v4068 = vpop.f32.mrf.mxu0
  %v4069 = vadd.f32 %v4050, %v4068
  %4070 = vmatmul.bf16.gmra.mxu0 %v3904
  %v4071 = vpop.f32.mrf.mxu0
  %v4072 = vadd.f32 %v4053, %v4071
  %v4073 = vpop.f32.mrf.mxu0
  %v4074 = vadd.f32 %v4055, %v4073
  %4075 = vdwg.mxu0
  %4076 = vmatpush.bf16.msra.mxu0 %v861
  %4077 = vmatpush.bf16.msra.mxu0 %v859
  %4078 = vmatpush.bf16.msra.mxu0 %v857
  %4079 = vmatpush.bf16.msra.mxu0 %v855
  %4080 = vmatpush.bf16.msra.mxu0 %v853
  %4081 = vmatpush.bf16.msra.mxu0 %v851
  %4082 = vmatpush.bf16.msra.mxu0 %v849
  %4083 = vmatpush.bf16.msra.mxu0 %v847
  %4084 = vmatmul.bf16.gmra.mxu0 %v3896
  %v4085 = vpop.f32.mrf.mxu0
  %v4086 = vadd.f32 %v4067, %v4085
  %v4087 = vpop.f32.mrf.mxu0
  %v4088 = vadd.f32 %v4069, %v4087
  %4089 = vmatmul.bf16.gmra.mxu0 %v3905
  %v4090 = vpop.f32.mrf.mxu0
  %v4091 = vadd.f32 %v4072, %v4090
  %v4092 = vpop.f32.mrf.mxu0
  %v4093 = vadd.f32 %v4074, %v4092
  %4094 = vdwg.mxu0
  %4095 = vmatpush.bf16.msra.mxu0 %v734
  %4096 = vmatpush.bf16.msra.mxu0 %v732
  %4097 = vmatpush.bf16.msra.mxu0 %v730
  %4098 = vmatpush.bf16.msra.mxu0 %v728
  %4099 = vmatpush.bf16.msra.mxu0 %v726
  %4100 = vmatpush.bf16.msra.mxu0 %v724
  %4101 = vmatpush.bf16.msra.mxu0 %v722
  %4102 = vmatpush.bf16.msra.mxu0 %v720
  %4103 = vmatmul.bf16.gmra.mxu0 %v3888
  %v4104 = vpop.f32.mrf.mxu0
  %v4105 = vadd.f32 0.0, %v4104
  %v4106 = vpop.f32.mrf.mxu0
  %v4107 = vadd.f32 0.0, %v4106
  %4108 = vmatmul.bf16.gmra.mxu0 %v3897
  %v4109 = vpop.f32.mrf.mxu0
  %v4110 = vadd.f32 0.0, %v4109
  %v4111 = vpop.f32.mrf.mxu0
  %v4112 = vadd.f32 0.0, %v4111
  %4113 = vdwg.mxu0
  %4114 = vmatpush.bf16.msra.mxu0 %v750
  %4115 = vmatpush.bf16.msra.mxu0 %v748
  %4116 = vmatpush.bf16.msra.mxu0 %v746
  %4117 = vmatpush.bf16.msra.mxu0 %v744
  %4118 = vmatpush.bf16.msra.mxu0 %v742
  %4119 = vmatpush.bf16.msra.mxu0 %v740
  %4120 = vmatpush.bf16.msra.mxu0 %v738
  %4121 = vmatpush.bf16.msra.mxu0 %v736
  %4122 = vmatmul.bf16.gmra.mxu0 %v3889
  %v4123 = vpop.f32.mrf.mxu0
  %v4124 = vadd.f32 %v4105, %v4123
  %v4125 = vpop.f32.mrf.mxu0
  %v4126 = vadd.f32 %v4107, %v4125
  %4127 = vmatmul.bf16.gmra.mxu0 %v3898
  %v4128 = vpop.f32.mrf.mxu0
  %v4129 = vadd.f32 %v4110, %v4128
  %v4130 = vpop.f32.mrf.mxu0
  %v4131 = vadd.f32 %v4112, %v4130
  %4132 = vdwg.mxu0
  %4133 = vmatpush.bf16.msra.mxu0 %v766
  %4134 = vmatpush.bf16.msra.mxu0 %v764
  %4135 = vmatpush.bf16.msra.mxu0 %v762
  %4136 = vmatpush.bf16.msra.mxu0 %v760
  %4137 = vmatpush.bf16.msra.mxu0 %v758
  %4138 = vmatpush.bf16.msra.mxu0 %v756
  %4139 = vmatpush.bf16.msra.mxu0 %v754
  %4140 = vmatpush.bf16.msra.mxu0 %v752
  %4141 = vmatmul.bf16.gmra.mxu0 %v3890
  %v4142 = vpop.f32.mrf.mxu0
  %v4143 = vadd.f32 %v4124, %v4142
  %v4144 = vpop.f32.mrf.mxu0
  %v4145 = vadd.f32 %v4126, %v4144
  %4146 = vmatmul.bf16.gmra.mxu0 %v3899
  %v4147 = vpop.f32.mrf.mxu0
  %v4148 = vadd.f32 %v4129, %v4147
  %v4149 = vpop.f32.mrf.mxu0
  %v4150 = vadd.f32 %v4131, %v4149
  %4151 = vdwg.mxu0
  %4152 = vmatpush.bf16.msra.mxu0 %v782
  %4153 = vmatpush.bf16.msra.mxu0 %v780
  %4154 = vmatpush.bf16.msra.mxu0 %v778
  %4155 = vmatpush.bf16.msra.mxu0 %v776
  %4156 = vmatpush.bf16.msra.mxu0 %v774
  %4157 = vmatpush.bf16.msra.mxu0 %v772
  %4158 = vmatpush.bf16.msra.mxu0 %v770
  %4159 = vmatpush.bf16.msra.mxu0 %v768
  %4160 = vmatmul.bf16.gmra.mxu0 %v3891
  %v4161 = vpop.f32.mrf.mxu0
  %v4162 = vadd.f32 %v4143, %v4161
  %v4163 = vpop.f32.mrf.mxu0
  %v4164 = vadd.f32 %v4145, %v4163
  %4165 = vmatmul.bf16.gmra.mxu0 %v3900
  %v4166 = vpop.f32.mrf.mxu0
  %v4167 = vadd.f32 %v4148, %v4166
  %v4168 = vpop.f32.mrf.mxu0
  %v4169 = vadd.f32 %v4150, %v4168
  %4170 = vdwg.mxu0
  %4171 = vmatpush.bf16.msra.mxu0 %v798
  %4172 = vmatpush.bf16.msra.mxu0 %v796
  %4173 = vmatpush.bf16.msra.mxu0 %v794
  %4174 = vmatpush.bf16.msra.mxu0 %v792
  %4175 = vmatpush.bf16.msra.mxu0 %v790
  %4176 = vmatpush.bf16.msra.mxu0 %v788
  %4177 = vmatpush.bf16.msra.mxu0 %v786
  %4178 = vmatpush.bf16.msra.mxu0 %v784
  %4179 = vmatmul.bf16.gmra.mxu0 %v3892
  %v4180 = vpop.f32.mrf.mxu0
  %v4181 = vadd.f32 %v4162, %v4180
  %v4182 = vpop.f32.mrf.mxu0
  %v4183 = vadd.f32 %v4164, %v4182
  %4184 = vmatmul.bf16.gmra.mxu0 %v3901
  %v4185 = vpop.f32.mrf.mxu0
  %v4186 = vadd.f32 %v4167, %v4185
  %v4187 = vpop.f32.mrf.mxu0
  %v4188 = vadd.f32 %v4169, %v4187
  %4189 = vdwg.mxu0
  %4190 = vmatpush.bf16.msra.mxu0 %v814
  %4191 = vmatpush.bf16.msra.mxu0 %v812
  %4192 = vmatpush.bf16.msra.mxu0 %v810
  %4193 = vmatpush.bf16.msra.mxu0 %v808
  %4194 = vmatpush.bf16.msra.mxu0 %v806
  %4195 = vmatpush.bf16.msra.mxu0 %v804
  %4196 = vmatpush.bf16.msra.mxu0 %v802
  %4197 = vmatpush.bf16.msra.mxu0 %v800
  %4198 = vmatmul.bf16.gmra.mxu0 %v3893
  %v4199 = vpop.f32.mrf.mxu0
  %v4200 = vadd.f32 %v4181, %v4199
  %v4201 = vpop.f32.mrf.mxu0
  %v4202 = vadd.f32 %v4183, %v4201
  %4203 = vmatmul.bf16.gmra.mxu0 %v3902
  %v4204 = vpop.f32.mrf.mxu0
  %v4205 = vadd.f32 %v4186, %v4204
  %v4206 = vpop.f32.mrf.mxu0
  %v4207 = vadd.f32 %v4188, %v4206
  %4208 = vdwg.mxu0
  %4209 = vmatpush.bf16.msra.mxu0 %v830
  %4210 = vmatpush.bf16.msra.mxu0 %v828
  %4211 = vmatpush.bf16.msra.mxu0 %v826
  %4212 = vmatpush.bf16.msra.mxu0 %v824
  %4213 = vmatpush.bf16.msra.mxu0 %v822
  %4214 = vmatpush.bf16.msra.mxu0 %v820
  %4215 = vmatpush.bf16.msra.mxu0 %v818
  %4216 = vmatpush.bf16.msra.mxu0 %v816
  %4217 = vmatmul.bf16.gmra.mxu0 %v3894
  %v4218 = vpop.f32.mrf.mxu0
  %v4219 = vadd.f32 %v4200, %v4218
  %v4220 = vpop.f32.mrf.mxu0
  %v4221 = vadd.f32 %v4202, %v4220
  %4222 = vmatmul.bf16.gmra.mxu0 %v3903
  %v4223 = vpop.f32.mrf.mxu0
  %v4224 = vadd.f32 %v4205, %v4223
  %v4225 = vpop.f32.mrf.mxu0
  %v4226 = vadd.f32 %v4207, %v4225
  %4227 = vdwg.mxu0
  %4228 = vmatpush.bf16.msra.mxu0 %v846
  %4229 = vmatpush.bf16.msra.mxu0 %v844
  %4230 = vmatpush.bf16.msra.mxu0 %v842
  %4231 = vmatpush.bf16.msra.mxu0 %v840
  %4232 = vmatpush.bf16.msra.mxu0 %v838
  %4233 = vmatpush.bf16.msra.mxu0 %v836
  %4234 = vmatpush.bf16.msra.mxu0 %v834
  %4235 = vmatpush.bf16.msra.mxu0 %v832
  %4236 = vmatmul.bf16.gmra.mxu0 %v3895
  %v4237 = vpop.f32.mrf.mxu0
  %v4238 = vadd.f32 %v4219, %v4237
  %v4239 = vpop.f32.mrf.mxu0
  %v4240 = vadd.f32 %v4221, %v4239
  %4241 = vmatmul.bf16.gmra.mxu0 %v3904
  %v4242 = vpop.f32.mrf.mxu0
  %v4243 = vadd.f32 %v4224, %v4242
  %v4244 = vpop.f32.mrf.mxu0
  %v4245 = vadd.f32 %v4226, %v4244
  %4246 = vdwg.mxu0
  %4247 = vmatpush.bf16.msra.mxu0 %v862
  %4248 = vmatpush.bf16.msra.mxu0 %v860
  %4249 = vmatpush.bf16.msra.mxu0 %v858
  %4250 = vmatpush.bf16.msra.mxu0 %v856
  %4251 = vmatpush.bf16.msra.mxu0 %v854
  %4252 = vmatpush.bf16.msra.mxu0 %v852
  %4253 = vmatpush.bf16.msra.mxu0 %v850
  %4254 = vmatpush.bf16.msra.mxu0 %v848
  %4255 = vmatmul.bf16.gmra.mxu0 %v3896
  %v4256 = vpop.f32.mrf.mxu0
  %v4257 = vadd.f32 %v4238, %v4256
  %v4258 = vpop.f32.mrf.mxu0
  %v4259 = vadd.f32 %v4240, %v4258
  %4260 = vmatmul.bf16.gmra.mxu0 %v3905
  %v4261 = vpop.f32.mrf.mxu0
  %v4262 = vadd.f32 %v4243, %v4261
  %v4263 = vpop.f32.mrf.mxu0
  %v4264 = vadd.f32 %v4245, %v4263
  %4265 = vdwg.mxu0
  %v4266 = vmul.f32 %v4086, %v1350
  %v4267 = vmul.f32 %v4257, %v1351
  %v4268 = vmul.f32 %v4088, %v1350
  %v4269 = vmul.f32 %v4259, %v1351
  %v4270 = vmul.f32 %v4091, %v1350
  %v4271 = vmul.f32 %v4262, %v1351
  %v4272 = vmul.f32 %v4093, %v1350
  %v4273 = vmul.f32 %v4264, %v1351
  %v4274 = vadd.f32 %v4266, %v1363
  %v4275 = vadd.f32 %v4267, %v1364
  %v4276 = vadd.f32 %v4268, %v1363
  %v4277 = vadd.f32 %v4269, %v1364
  %v4278 = vadd.f32 %v4270, %v1363
  %v4279 = vadd.f32 %v4271, %v1364
  %v4280 = vadd.f32 %v4272, %v1363
  %v4281 = vadd.f32 %v4273, %v1364
  %v4282 = vmax.f32 %v4274, %v4276
  %v4283 = vmax.f32 %v4275, %v4277
  %v4284 = vmax.f32 %v4278, %v4280
  %v4285 = vmax.f32 %v4279, %v4281
  %v4286 = vmax.f32 %v4282, %v4284
  %v4287 = vmax.f32 %v4283, %v4285
  %v4288 = vmax.f32 %v4286, 0.0
  %v4289 = vmax.f32 %v4287, 0.0
  %v4290 = vpack.c.bf16 %v4288, %v4288
  %v4291 = vpack.c.bf16 %v4289, %v4289
  %s4292 = scalar_lea.vmem %s4, 1024
  %v4293 = vld [vmem:[%s4292] sm:$0xff]
  %v4294 = vld [vmem:[%s4292 + $0x8] sm:$0xff]
  %v4295 = vld [vmem:[%s4292 + $0x10] sm:$0xff]
  %v4296 = vld [vmem:[%s4292 + $0x18] sm:$0xff]
  %v4297 = vld [vmem:[%s4292 + $0x20] sm:$0xff]
  %v4298 = vld [vmem:[%s4292 + $0x28] sm:$0xff]
  %v4299 = vld [vmem:[%s4292 + $0x30] sm:$0xff]
  %v4300 = vld [vmem:[%s4292 + $0x38] sm:$0xff]
  %v4301 = vld [vmem:[%s4292 + $0x40] sm:$0xff]
  %v4302 = vld [vmem:[%s4292 + $0x48] sm:$0xff]
  %v4303 = vld [vmem:[%s4292 + $0x50] sm:$0xff]
  %v4304 = vld [vmem:[%s4292 + $0x58] sm:$0xff]
  %v4305 = vld [vmem:[%s4292 + $0x60] sm:$0xff]
  %v4306 = vld [vmem:[%s4292 + $0x68] sm:$0xff]
  %v4307 = vld [vmem:[%s4292 + $0x70] sm:$0xff]
  %v4308 = vld [vmem:[%s4292 + $0x78] sm:$0xff]
  %v4309 = vld [vmem:[%s4292 + $0x80] sm:$0xff]
  %v4310 = vld [vmem:[%s4292 + $0x88] sm:$0xff]
  %v4311 = vld [vmem:[%s4292 + $0x90] sm:$0xff]
  %v4312 = vld [vmem:[%s4292 + $0x98] sm:$0xff]
  %v4313 = vld [vmem:[%s4292 + $0xa0] sm:$0xff]
  %v4314 = vld [vmem:[%s4292 + $0xa8] sm:$0xff]
  %v4315 = vld [vmem:[%s4292 + $0xb0] sm:$0xff]
  %v4316 = vld [vmem:[%s4292 + $0xb8] sm:$0xff]
  %v4317 = vld [vmem:[%s4292 + $0xc0] sm:$0xff]
  %v4318 = vld [vmem:[%s4292 + $0xc8] sm:$0xff]
  %v4319 = vld [vmem:[%s4292 + $0xd0] sm:$0xff]
  %v4320 = vld [vmem:[%s4292 + $0xd8] sm:$0xff]
  %v4321 = vld [vmem:[%s4292 + $0xe0] sm:$0xff]
  %v4322 = vld [vmem:[%s4292 + $0xe8] sm:$0xff]
  %v4323 = vld [vmem:[%s4292 + $0xf0] sm:$0xff]
  %v4324 = vld [vmem:[%s4292 + $0xf8] sm:$0xff]
  %v4357 = vunpack.c.l.b16 %v4293
  %v4358 = vunpack.c.h.b16 %v4293
  %v4359 = vunpack.c.l.b16 %v4294
  %v4360 = vunpack.c.h.b16 %v4294
  %v4361 = vunpack.c.l.b16 %v4295
  %v4362 = vunpack.c.h.b16 %v4295
  %v4363 = vunpack.c.l.b16 %v4296
  %v4364 = vunpack.c.h.b16 %v4296
  %v4365 = vunpack.c.l.b16 %v4297
  %v4366 = vunpack.c.h.b16 %v4297
  %v4367 = vunpack.c.l.b16 %v4298
  %v4368 = vunpack.c.h.b16 %v4298
  %v4369 = vunpack.c.l.b16 %v4299
  %v4370 = vunpack.c.h.b16 %v4299
  %v4371 = vunpack.c.l.b16 %v4300
  %v4372 = vunpack.c.h.b16 %v4300
  %v4373 = vunpack.c.l.b16 %v4301
  %v4374 = vunpack.c.h.b16 %v4301
  %v4375 = vunpack.c.l.b16 %v4302
  %v4376 = vunpack.c.h.b16 %v4302
  %v4377 = vunpack.c.l.b16 %v4303
  %v4378 = vunpack.c.h.b16 %v4303
  %v4379 = vunpack.c.l.b16 %v4304
  %v4380 = vunpack.c.h.b16 %v4304
  %v4381 = vunpack.c.l.b16 %v4305
  %v4382 = vunpack.c.h.b16 %v4305
  %v4383 = vunpack.c.l.b16 %v4306
  %v4384 = vunpack.c.h.b16 %v4306
  %v4385 = vunpack.c.l.b16 %v4307
  %v4386 = vunpack.c.h.b16 %v4307
  %v4387 = vunpack.c.l.b16 %v4308
  %v4388 = vunpack.c.h.b16 %v4308
  %v4389 = vunpack.c.l.b16 %v4309
  %v4390 = vunpack.c.h.b16 %v4309
  %v4391 = vunpack.c.l.b16 %v4310
  %v4392 = vunpack.c.h.b16 %v4310
  %v4393 = vunpack.c.l.b16 %v4311
  %v4394 = vunpack.c.h.b16 %v4311
  %v4395 = vunpack.c.l.b16 %v4312
  %v4396 = vunpack.c.h.b16 %v4312
  %v4397 = vunpack.c.l.b16 %v4313
  %v4398 = vunpack.c.h.b16 %v4313
  %v4399 = vunpack.c.l.b16 %v4314
  %v4400 = vunpack.c.h.b16 %v4314
  %v4401 = vunpack.c.l.b16 %v4315
  %v4402 = vunpack.c.h.b16 %v4315
  %v4403 = vunpack.c.l.b16 %v4316
  %v4404 = vunpack.c.h.b16 %v4316
  %v4405 = vunpack.c.l.b16 %v4317
  %v4406 = vunpack.c.h.b16 %v4317
  %v4407 = vunpack.c.l.b16 %v4318
  %v4408 = vunpack.c.h.b16 %v4318
  %v4409 = vunpack.c.l.b16 %v4319
  %v4410 = vunpack.c.h.b16 %v4319
  %v4411 = vunpack.c.l.b16 %v4320
  %v4412 = vunpack.c.h.b16 %v4320
  %v4413 = vunpack.c.l.b16 %v4321
  %v4414 = vunpack.c.h.b16 %v4321
  %v4415 = vunpack.c.l.b16 %v4322
  %v4416 = vunpack.c.h.b16 %v4322
  %v4417 = vunpack.c.l.b16 %v4323
  %v4418 = vunpack.c.h.b16 %v4323
  %v4419 = vunpack.c.l.b16 %v4324
  %v4420 = vunpack.c.h.b16 %v4324
  %v4421 = vpack.c.b16 %v4359, %v4357
  %v4422 = vpack.c.b16 %v4360, %v4358
  %v4423 = vpack.c.b16 %v4363, %v4361
  %v4424 = vpack.c.b16 %v4364, %v4362
  %v4425 = vpack.c.b16 %v4367, %v4365
  %v4426 = vpack.c.b16 %v4368, %v4366
  %v4427 = vpack.c.b16 %v4371, %v4369
  %v4428 = vpack.c.b16 %v4372, %v4370
  %v4429 = vpack.c.b16 %v4375, %v4373
  %v4430 = vpack.c.b16 %v4376, %v4374
  %v4431 = vpack.c.b16 %v4379, %v4377
  %v4432 = vpack.c.b16 %v4380, %v4378
  %v4433 = vpack.c.b16 %v4383, %v4381
  %v4434 = vpack.c.b16 %v4384, %v4382
  %v4435 = vpack.c.b16 %v4387, %v4385
  %v4436 = vpack.c.b16 %v4388, %v4386
  %v4437 = vpack.c.b16 %v4391, %v4389
  %v4438 = vpack.c.b16 %v4392, %v4390
  %v4439 = vpack.c.b16 %v4395, %v4393
  %v4440 = vpack.c.b16 %v4396, %v4394
  %v4441 = vpack.c.b16 %v4399, %v4397
  %v4442 = vpack.c.b16 %v4400, %v4398
  %v4443 = vpack.c.b16 %v4403, %v4401
  %v4444 = vpack.c.b16 %v4404, %v4402
  %v4445 = vpack.c.b16 %v4407, %v4405
  %v4446 = vpack.c.b16 %v4408, %v4406
  %v4447 = vpack.c.b16 %v4411, %v4409
  %v4448 = vpack.c.b16 %v4412, %v4410
  %v4449 = vpack.c.b16 %v4415, %v4413
  %v4450 = vpack.c.b16 %v4416, %v4414
  %v4451 = vpack.c.b16 %v4419, %v4417
  %v4452 = vpack.c.b16 %v4420, %v4418
  %4485 = vmatpush.bf16.msra.mxu0 %v4435
  %4486 = vmatpush.bf16.msra.mxu0 %v4433
  %4487 = vmatpush.bf16.msra.mxu0 %v4431
  %4488 = vmatpush.bf16.msra.mxu0 %v4429
  %4489 = vmatpush.bf16.msra.mxu0 %v4427
  %4490 = vmatpush.bf16.msra.mxu0 %v4425
  %4491 = vmatpush.bf16.msra.mxu0 %v4423
  %4492 = vmatpush.bf16.msra.mxu0 %v4421
  %4493 = vmatmul.bf16.gmra.mxu0 %v4290
  %v4494 = vpop.f32.mrf.mxu0
  %v4495 = vadd.f32 0.0, %v4494
  %v4496 = vpop.f32.mrf.mxu0
  %4497 = vdwg.mxu0
  %4498 = vmatpush.bf16.msra.mxu0 %v4451
  %4499 = vmatpush.bf16.msra.mxu0 %v4449
  %4500 = vmatpush.bf16.msra.mxu0 %v4447
  %4501 = vmatpush.bf16.msra.mxu0 %v4445
  %4502 = vmatpush.bf16.msra.mxu0 %v4443
  %4503 = vmatpush.bf16.msra.mxu0 %v4441
  %4504 = vmatpush.bf16.msra.mxu0 %v4439
  %4505 = vmatpush.bf16.msra.mxu0 %v4437
  %4506 = vmatmul.bf16.gmra.mxu0 %v4291
  %v4507 = vpop.f32.mrf.mxu0
  %v4508 = vadd.f32 %v4495, %v4507
  %v4509 = vpop.f32.mrf.mxu0
  %4510 = vdwg.mxu0
  %4511 = vmatpush.bf16.msra.mxu0 %v4436
  %4512 = vmatpush.bf16.msra.mxu0 %v4434
  %4513 = vmatpush.bf16.msra.mxu0 %v4432
  %4514 = vmatpush.bf16.msra.mxu0 %v4430
  %4515 = vmatpush.bf16.msra.mxu0 %v4428
  %4516 = vmatpush.bf16.msra.mxu0 %v4426
  %4517 = vmatpush.bf16.msra.mxu0 %v4424
  %4518 = vmatpush.bf16.msra.mxu0 %v4422
  %4519 = vmatmul.bf16.gmra.mxu0 %v4290
  %v4520 = vpop.f32.mrf.mxu0
  %v4521 = vadd.f32 0.0, %v4520
  %v4522 = vpop.f32.mrf.mxu0
  %4523 = vdwg.mxu0
  %4524 = vmatpush.bf16.msra.mxu0 %v4452
  %4525 = vmatpush.bf16.msra.mxu0 %v4450
  %4526 = vmatpush.bf16.msra.mxu0 %v4448
  %4527 = vmatpush.bf16.msra.mxu0 %v4446
  %4528 = vmatpush.bf16.msra.mxu0 %v4444
  %4529 = vmatpush.bf16.msra.mxu0 %v4442
  %4530 = vmatpush.bf16.msra.mxu0 %v4440
  %4531 = vmatpush.bf16.msra.mxu0 %v4438
  %4532 = vmatmul.bf16.gmra.mxu0 %v4291
  %v4533 = vpop.f32.mrf.mxu0
  %v4534 = vadd.f32 %v4521, %v4533
  %v4535 = vpop.f32.mrf.mxu0
  %4536 = vdwg.mxu0
  %v4537 = vadd.f32 %v3809, %v4508
  %v4538 = vadd.f32 %v3810, %v4534
  %s4539 = scalar_lea.vmem %s0, 720
  %v4540 = vld [vmem:[%s4539] sm:$0xff]
  %v4541 = vld [vmem:[%s4539 + $0x8] sm:$0xff]
  %v4542 = vld [vmem:[%s4539 + $0x10] sm:$0xff]
  %v4543 = vld [vmem:[%s4539 + $0x18] sm:$0xff]
  %v4544 = vld [vmem:[%s4539 + $0x20] sm:$0xf]
  %v4545 = vld [vmem:[%s4539 + $0x24] sm:$0xff]
  %v4546 = vld [vmem:[%s4539 + $0x2c] sm:$0xff]
  %v4547 = vld [vmem:[%s4539 + $0x34] sm:$0xff]
  %v4548 = vld [vmem:[%s4539 + $0x3c] sm:$0xff]
  %v4549 = vld [vmem:[%s4539 + $0x44] sm:$0xf]
  %v4550 = vld [vmem:[%s4539 + $0x48] sm:$0xff]
  %v4551 = vld [vmem:[%s4539 + $0x50] sm:$0xff]
  %v4552 = vld [vmem:[%s4539 + $0x58] sm:$0xff]
  %v4553 = vld [vmem:[%s4539 + $0x60] sm:$0xff]
  %v4554 = vld [vmem:[%s4539 + $0x68] sm:$0xf]
  %v4555 = vld [vmem:[%s4539 + $0x6c] sm:$0xff]
  %v4556 = vld [vmem:[%s4539 + $0x74] sm:$0xff]
  %v4557 = vld [vmem:[%s4539 + $0x7c] sm:$0xff]
  %v4558 = vld [vmem:[%s4539 + $0x84] sm:$0xff]
  %v4559 = vld [vmem:[%s4539 + $0x8c] sm:$0xf]
  %v4580 = vunpack.c.l.b16 %v4540
  %v4581 = vunpack.c.h.b16 %v4540
  %v4582 = vunpack.c.l.b16 %v4541
  %v4583 = vunpack.c.h.b16 %v4541
  %v4584 = vunpack.c.l.b16 %v4542
  %v4585 = vunpack.c.h.b16 %v4542
  %v4586 = vunpack.c.l.b16 %v4543
  %v4587 = vunpack.c.h.b16 %v4543
  %v4588 = vunpack.c.l.b16 %v4544
  %v4589 = vunpack.c.l.b16 %v4545
  %v4590 = vunpack.c.h.b16 %v4545
  %v4591 = vunpack.c.l.b16 %v4546
  %v4592 = vunpack.c.h.b16 %v4546
  %v4593 = vunpack.c.l.b16 %v4547
  %v4594 = vunpack.c.h.b16 %v4547
  %v4595 = vunpack.c.l.b16 %v4548
  %v4596 = vunpack.c.h.b16 %v4548
  %v4597 = vunpack.c.l.b16 %v4549
  %v4598 = vunpack.c.l.b16 %v4550
  %v4599 = vunpack.c.h.b16 %v4550
  %v4600 = vunpack.c.l.b16 %v4551
  %v4601 = vunpack.c.h.b16 %v4551
  %v4602 = vunpack.c.l.b16 %v4552
  %v4603 = vunpack.c.h.b16 %v4552
  %v4604 = vunpack.c.l.b16 %v4553
  %v4605 = vunpack.c.h.b16 %v4553
  %v4606 = vunpack.c.l.b16 %v4554
  %v4607 = vunpack.c.l.b16 %v4555
  %v4608 = vunpack.c.h.b16 %v4555
  %v4609 = vunpack.c.l.b16 %v4556
  %v4610 = vunpack.c.h.b16 %v4556
  %v4611 = vunpack.c.l.b16 %v4557
  %v4612 = vunpack.c.h.b16 %v4557
  %v4613 = vunpack.c.l.b16 %v4558
  %v4614 = vunpack.c.h.b16 %v4558
  %v4615 = vunpack.c.l.b16 %v4559
  %v4616 = vpack.c.b16 %v4589, %v4580
  %v4617 = vpack.c.b16 %v4590, %v4581
  %v4618 = vpack.c.b16 %v4591, %v4582
  %v4619 = vpack.c.b16 %v4592, %v4583
  %v4620 = vpack.c.b16 %v4593, %v4584
  %v4621 = vpack.c.b16 %v4594, %v4585
  %v4622 = vpack.c.b16 %v4595, %v4586
  %v4623 = vpack.c.b16 %v4596, %v4587
  %v4624 = vpack.c.b16 %v4597, %v4588
  %v4625 = vpack.c.b16 %v4607, %v4598
  %v4626 = vpack.c.b16 %v4608, %v4599
  %v4627 = vpack.c.b16 %v4609, %v4600
  %v4628 = vpack.c.b16 %v4610, %v4601
  %v4629 = vpack.c.b16 %v4611, %v4602
  %v4630 = vpack.c.b16 %v4612, %v4603
  %v4631 = vpack.c.b16 %v4613, %v4604
  %v4632 = vpack.c.b16 %v4614, %v4605
  %v4633 = vpack.c.b16 %v4615, %v4606
  %4652 = vmatpush.bf16.msra.mxu0 %v733
  %4653 = vmatpush.bf16.msra.mxu0 %v731
  %4654 = vmatpush.bf16.msra.mxu0 %v729
  %4655 = vmatpush.bf16.msra.mxu0 %v727
  %4656 = vmatpush.bf16.msra.mxu0 %v725
  %4657 = vmatpush.bf16.msra.mxu0 %v723
  %4658 = vmatpush.bf16.msra.mxu0 %v721
  %4659 = vmatpush.bf16.msra.mxu0 %v719
  %4660 = vmatmul.bf16.gmra.mxu0 %v4616
  %v4661 = vpop.f32.mrf.mxu0
  %v4662 = vadd.f32 0.0, %v4661
  %v4663 = vpop.f32.mrf.mxu0
  %v4664 = vadd.f32 0.0, %v4663
  %4665 = vmatmul.bf16.gmra.mxu0 %v4625
  %v4666 = vpop.f32.mrf.mxu0
  %v4667 = vadd.f32 0.0, %v4666
  %v4668 = vpop.f32.mrf.mxu0
  %v4669 = vadd.f32 0.0, %v4668
  %4670 = vdwg.mxu0
  %4671 = vmatpush.bf16.msra.mxu0 %v749
  %4672 = vmatpush.bf16.msra.mxu0 %v747
  %4673 = vmatpush.bf16.msra.mxu0 %v745
  %4674 = vmatpush.bf16.msra.mxu0 %v743
  %4675 = vmatpush.bf16.msra.mxu0 %v741
  %4676 = vmatpush.bf16.msra.mxu0 %v739
  %4677 = vmatpush.bf16.msra.mxu0 %v737
  %4678 = vmatpush.bf16.msra.mxu0 %v735
  %4679 = vmatmul.bf16.gmra.mxu0 %v4617
  %v4680 = vpop.f32.mrf.mxu0
  %v4681 = vadd.f32 %v4662, %v4680
  %v4682 = vpop.f32.mrf.mxu0
  %v4683 = vadd.f32 %v4664, %v4682
  %4684 = vmatmul.bf16.gmra.mxu0 %v4626
  %v4685 = vpop.f32.mrf.mxu0
  %v4686 = vadd.f32 %v4667, %v4685
  %v4687 = vpop.f32.mrf.mxu0
  %v4688 = vadd.f32 %v4669, %v4687
  %4689 = vdwg.mxu0
  %4690 = vmatpush.bf16.msra.mxu0 %v765
  %4691 = vmatpush.bf16.msra.mxu0 %v763
  %4692 = vmatpush.bf16.msra.mxu0 %v761
  %4693 = vmatpush.bf16.msra.mxu0 %v759
  %4694 = vmatpush.bf16.msra.mxu0 %v757
  %4695 = vmatpush.bf16.msra.mxu0 %v755
  %4696 = vmatpush.bf16.msra.mxu0 %v753
  %4697 = vmatpush.bf16.msra.mxu0 %v751
  %4698 = vmatmul.bf16.gmra.mxu0 %v4618
  %v4699 = vpop.f32.mrf.mxu0
  %v4700 = vadd.f32 %v4681, %v4699
  %v4701 = vpop.f32.mrf.mxu0
  %v4702 = vadd.f32 %v4683, %v4701
  %4703 = vmatmul.bf16.gmra.mxu0 %v4627
  %v4704 = vpop.f32.mrf.mxu0
  %v4705 = vadd.f32 %v4686, %v4704
  %v4706 = vpop.f32.mrf.mxu0
  %v4707 = vadd.f32 %v4688, %v4706
  %4708 = vdwg.mxu0
  %4709 = vmatpush.bf16.msra.mxu0 %v781
  %4710 = vmatpush.bf16.msra.mxu0 %v779
  %4711 = vmatpush.bf16.msra.mxu0 %v777
  %4712 = vmatpush.bf16.msra.mxu0 %v775
  %4713 = vmatpush.bf16.msra.mxu0 %v773
  %4714 = vmatpush.bf16.msra.mxu0 %v771
  %4715 = vmatpush.bf16.msra.mxu0 %v769
  %4716 = vmatpush.bf16.msra.mxu0 %v767
  %4717 = vmatmul.bf16.gmra.mxu0 %v4619
  %v4718 = vpop.f32.mrf.mxu0
  %v4719 = vadd.f32 %v4700, %v4718
  %v4720 = vpop.f32.mrf.mxu0
  %v4721 = vadd.f32 %v4702, %v4720
  %4722 = vmatmul.bf16.gmra.mxu0 %v4628
  %v4723 = vpop.f32.mrf.mxu0
  %v4724 = vadd.f32 %v4705, %v4723
  %v4725 = vpop.f32.mrf.mxu0
  %v4726 = vadd.f32 %v4707, %v4725
  %4727 = vdwg.mxu0
  %4728 = vmatpush.bf16.msra.mxu0 %v797
  %4729 = vmatpush.bf16.msra.mxu0 %v795
  %4730 = vmatpush.bf16.msra.mxu0 %v793
  %4731 = vmatpush.bf16.msra.mxu0 %v791
  %4732 = vmatpush.bf16.msra.mxu0 %v789
  %4733 = vmatpush.bf16.msra.mxu0 %v787
  %4734 = vmatpush.bf16.msra.mxu0 %v785
  %4735 = vmatpush.bf16.msra.mxu0 %v783
  %4736 = vmatmul.bf16.gmra.mxu0 %v4620
  %v4737 = vpop.f32.mrf.mxu0
  %v4738 = vadd.f32 %v4719, %v4737
  %v4739 = vpop.f32.mrf.mxu0
  %v4740 = vadd.f32 %v4721, %v4739
  %4741 = vmatmul.bf16.gmra.mxu0 %v4629
  %v4742 = vpop.f32.mrf.mxu0
  %v4743 = vadd.f32 %v4724, %v4742
  %v4744 = vpop.f32.mrf.mxu0
  %v4745 = vadd.f32 %v4726, %v4744
  %4746 = vdwg.mxu0
  %4747 = vmatpush.bf16.msra.mxu0 %v813
  %4748 = vmatpush.bf16.msra.mxu0 %v811
  %4749 = vmatpush.bf16.msra.mxu0 %v809
  %4750 = vmatpush.bf16.msra.mxu0 %v807
  %4751 = vmatpush.bf16.msra.mxu0 %v805
  %4752 = vmatpush.bf16.msra.mxu0 %v803
  %4753 = vmatpush.bf16.msra.mxu0 %v801
  %4754 = vmatpush.bf16.msra.mxu0 %v799
  %4755 = vmatmul.bf16.gmra.mxu0 %v4621
  %v4756 = vpop.f32.mrf.mxu0
  %v4757 = vadd.f32 %v4738, %v4756
  %v4758 = vpop.f32.mrf.mxu0
  %v4759 = vadd.f32 %v4740, %v4758
  %4760 = vmatmul.bf16.gmra.mxu0 %v4630
  %v4761 = vpop.f32.mrf.mxu0
  %v4762 = vadd.f32 %v4743, %v4761
  %v4763 = vpop.f32.mrf.mxu0
  %v4764 = vadd.f32 %v4745, %v4763
  %4765 = vdwg.mxu0
  %4766 = vmatpush.bf16.msra.mxu0 %v829
  %4767 = vmatpush.bf16.msra.mxu0 %v827
  %4768 = vmatpush.bf16.msra.mxu0 %v825
  %4769 = vmatpush.bf16.msra.mxu0 %v823
  %4770 = vmatpush.bf16.msra.mxu0 %v821
  %4771 = vmatpush.bf16.msra.mxu0 %v819
  %4772 = vmatpush.bf16.msra.mxu0 %v817
  %4773 = vmatpush.bf16.msra.mxu0 %v815
  %4774 = vmatmul.bf16.gmra.mxu0 %v4622
  %v4775 = vpop.f32.mrf.mxu0
  %v4776 = vadd.f32 %v4757, %v4775
  %v4777 = vpop.f32.mrf.mxu0
  %v4778 = vadd.f32 %v4759, %v4777
  %4779 = vmatmul.bf16.gmra.mxu0 %v4631
  %v4780 = vpop.f32.mrf.mxu0
  %v4781 = vadd.f32 %v4762, %v4780
  %v4782 = vpop.f32.mrf.mxu0
  %v4783 = vadd.f32 %v4764, %v4782
  %4784 = vdwg.mxu0
  %4785 = vmatpush.bf16.msra.mxu0 %v845
  %4786 = vmatpush.bf16.msra.mxu0 %v843
  %4787 = vmatpush.bf16.msra.mxu0 %v841
  %4788 = vmatpush.bf16.msra.mxu0 %v839
  %4789 = vmatpush.bf16.msra.mxu0 %v837
  %4790 = vmatpush.bf16.msra.mxu0 %v835
  %4791 = vmatpush.bf16.msra.mxu0 %v833
  %4792 = vmatpush.bf16.msra.mxu0 %v831
  %4793 = vmatmul.bf16.gmra.mxu0 %v4623
  %v4794 = vpop.f32.mrf.mxu0
  %v4795 = vadd.f32 %v4776, %v4794
  %v4796 = vpop.f32.mrf.mxu0
  %v4797 = vadd.f32 %v4778, %v4796
  %4798 = vmatmul.bf16.gmra.mxu0 %v4632
  %v4799 = vpop.f32.mrf.mxu0
  %v4800 = vadd.f32 %v4781, %v4799
  %v4801 = vpop.f32.mrf.mxu0
  %v4802 = vadd.f32 %v4783, %v4801
  %4803 = vdwg.mxu0
  %4804 = vmatpush.bf16.msra.mxu0 %v861
  %4805 = vmatpush.bf16.msra.mxu0 %v859
  %4806 = vmatpush.bf16.msra.mxu0 %v857
  %4807 = vmatpush.bf16.msra.mxu0 %v855
  %4808 = vmatpush.bf16.msra.mxu0 %v853
  %4809 = vmatpush.bf16.msra.mxu0 %v851
  %4810 = vmatpush.bf16.msra.mxu0 %v849
  %4811 = vmatpush.bf16.msra.mxu0 %v847
  %4812 = vmatmul.bf16.gmra.mxu0 %v4624
  %v4813 = vpop.f32.mrf.mxu0
  %v4814 = vadd.f32 %v4795, %v4813
  %v4815 = vpop.f32.mrf.mxu0
  %v4816 = vadd.f32 %v4797, %v4815
  %4817 = vmatmul.bf16.gmra.mxu0 %v4633
  %v4818 = vpop.f32.mrf.mxu0
  %v4819 = vadd.f32 %v4800, %v4818
  %v4820 = vpop.f32.mrf.mxu0
  %v4821 = vadd.f32 %v4802, %v4820
  %4822 = vdwg.mxu0
  %4823 = vmatpush.bf16.msra.mxu0 %v734
  %4824 = vmatpush.bf16.msra.mxu0 %v732
  %4825 = vmatpush.bf16.msra.mxu0 %v730
  %4826 = vmatpush.bf16.msra.mxu0 %v728
  %4827 = vmatpush.bf16.msra.mxu0 %v726
  %4828 = vmatpush.bf16.msra.mxu0 %v724
  %4829 = vmatpush.bf16.msra.mxu0 %v722
  %4830 = vmatpush.bf16.msra.mxu0 %v720
  %4831 = vmatmul.bf16.gmra.mxu0 %v4616
  %v4832 = vpop.f32.mrf.mxu0
  %v4833 = vadd.f32 0.0, %v4832
  %v4834 = vpop.f32.mrf.mxu0
  %v4835 = vadd.f32 0.0, %v4834
  %4836 = vmatmul.bf16.gmra.mxu0 %v4625
  %v4837 = vpop.f32.mrf.mxu0
  %v4838 = vadd.f32 0.0, %v4837
  %v4839 = vpop.f32.mrf.mxu0
  %v4840 = vadd.f32 0.0, %v4839
  %4841 = vdwg.mxu0
  %4842 = vmatpush.bf16.msra.mxu0 %v750
  %4843 = vmatpush.bf16.msra.mxu0 %v748
  %4844 = vmatpush.bf16.msra.mxu0 %v746
  %4845 = vmatpush.bf16.msra.mxu0 %v744
  %4846 = vmatpush.bf16.msra.mxu0 %v742
  %4847 = vmatpush.bf16.msra.mxu0 %v740
  %4848 = vmatpush.bf16.msra.mxu0 %v738
  %4849 = vmatpush.bf16.msra.mxu0 %v736
  %4850 = vmatmul.bf16.gmra.mxu0 %v4617
  %v4851 = vpop.f32.mrf.mxu0
  %v4852 = vadd.f32 %v4833, %v4851
  %v4853 = vpop.f32.mrf.mxu0
  %v4854 = vadd.f32 %v4835, %v4853
  %4855 = vmatmul.bf16.gmra.mxu0 %v4626
  %v4856 = vpop.f32.mrf.mxu0
  %v4857 = vadd.f32 %v4838, %v4856
  %v4858 = vpop.f32.mrf.mxu0
  %v4859 = vadd.f32 %v4840, %v4858
  %4860 = vdwg.mxu0
  %4861 = vmatpush.bf16.msra.mxu0 %v766
  %4862 = vmatpush.bf16.msra.mxu0 %v764
  %4863 = vmatpush.bf16.msra.mxu0 %v762
  %4864 = vmatpush.bf16.msra.mxu0 %v760
  %4865 = vmatpush.bf16.msra.mxu0 %v758
  %4866 = vmatpush.bf16.msra.mxu0 %v756
  %4867 = vmatpush.bf16.msra.mxu0 %v754
  %4868 = vmatpush.bf16.msra.mxu0 %v752
  %4869 = vmatmul.bf16.gmra.mxu0 %v4618
  %v4870 = vpop.f32.mrf.mxu0
  %v4871 = vadd.f32 %v4852, %v4870
  %v4872 = vpop.f32.mrf.mxu0
  %v4873 = vadd.f32 %v4854, %v4872
  %4874 = vmatmul.bf16.gmra.mxu0 %v4627
  %v4875 = vpop.f32.mrf.mxu0
  %v4876 = vadd.f32 %v4857, %v4875
  %v4877 = vpop.f32.mrf.mxu0
  %v4878 = vadd.f32 %v4859, %v4877
  %4879 = vdwg.mxu0
  %4880 = vmatpush.bf16.msra.mxu0 %v782
  %4881 = vmatpush.bf16.msra.mxu0 %v780
  %4882 = vmatpush.bf16.msra.mxu0 %v778
  %4883 = vmatpush.bf16.msra.mxu0 %v776
  %4884 = vmatpush.bf16.msra.mxu0 %v774
  %4885 = vmatpush.bf16.msra.mxu0 %v772
  %4886 = vmatpush.bf16.msra.mxu0 %v770
  %4887 = vmatpush.bf16.msra.mxu0 %v768
  %4888 = vmatmul.bf16.gmra.mxu0 %v4619
  %v4889 = vpop.f32.mrf.mxu0
  %v4890 = vadd.f32 %v4871, %v4889
  %v4891 = vpop.f32.mrf.mxu0
  %v4892 = vadd.f32 %v4873, %v4891
  %4893 = vmatmul.bf16.gmra.mxu0 %v4628
  %v4894 = vpop.f32.mrf.mxu0
  %v4895 = vadd.f32 %v4876, %v4894
  %v4896 = vpop.f32.mrf.mxu0
  %v4897 = vadd.f32 %v4878, %v4896
  %4898 = vdwg.mxu0
  %4899 = vmatpush.bf16.msra.mxu0 %v798
  %4900 = vmatpush.bf16.msra.mxu0 %v796
  %4901 = vmatpush.bf16.msra.mxu0 %v794
  %4902 = vmatpush.bf16.msra.mxu0 %v792
  %4903 = vmatpush.bf16.msra.mxu0 %v790
  %4904 = vmatpush.bf16.msra.mxu0 %v788
  %4905 = vmatpush.bf16.msra.mxu0 %v786
  %4906 = vmatpush.bf16.msra.mxu0 %v784
  %4907 = vmatmul.bf16.gmra.mxu0 %v4620
  %v4908 = vpop.f32.mrf.mxu0
  %v4909 = vadd.f32 %v4890, %v4908
  %v4910 = vpop.f32.mrf.mxu0
  %v4911 = vadd.f32 %v4892, %v4910
  %4912 = vmatmul.bf16.gmra.mxu0 %v4629
  %v4913 = vpop.f32.mrf.mxu0
  %v4914 = vadd.f32 %v4895, %v4913
  %v4915 = vpop.f32.mrf.mxu0
  %v4916 = vadd.f32 %v4897, %v4915
  %4917 = vdwg.mxu0
  %4918 = vmatpush.bf16.msra.mxu0 %v814
  %4919 = vmatpush.bf16.msra.mxu0 %v812
  %4920 = vmatpush.bf16.msra.mxu0 %v810
  %4921 = vmatpush.bf16.msra.mxu0 %v808
  %4922 = vmatpush.bf16.msra.mxu0 %v806
  %4923 = vmatpush.bf16.msra.mxu0 %v804
  %4924 = vmatpush.bf16.msra.mxu0 %v802
  %4925 = vmatpush.bf16.msra.mxu0 %v800
  %4926 = vmatmul.bf16.gmra.mxu0 %v4621
  %v4927 = vpop.f32.mrf.mxu0
  %v4928 = vadd.f32 %v4909, %v4927
  %v4929 = vpop.f32.mrf.mxu0
  %v4930 = vadd.f32 %v4911, %v4929
  %4931 = vmatmul.bf16.gmra.mxu0 %v4630
  %v4932 = vpop.f32.mrf.mxu0
  %v4933 = vadd.f32 %v4914, %v4932
  %v4934 = vpop.f32.mrf.mxu0
  %v4935 = vadd.f32 %v4916, %v4934
  %4936 = vdwg.mxu0
  %4937 = vmatpush.bf16.msra.mxu0 %v830
  %4938 = vmatpush.bf16.msra.mxu0 %v828
  %4939 = vmatpush.bf16.msra.mxu0 %v826
  %4940 = vmatpush.bf16.msra.mxu0 %v824
  %4941 = vmatpush.bf16.msra.mxu0 %v822
  %4942 = vmatpush.bf16.msra.mxu0 %v820
  %4943 = vmatpush.bf16.msra.mxu0 %v818
  %4944 = vmatpush.bf16.msra.mxu0 %v816
  %4945 = vmatmul.bf16.gmra.mxu0 %v4622
  %v4946 = vpop.f32.mrf.mxu0
  %v4947 = vadd.f32 %v4928, %v4946
  %v4948 = vpop.f32.mrf.mxu0
  %v4949 = vadd.f32 %v4930, %v4948
  %4950 = vmatmul.bf16.gmra.mxu0 %v4631
  %v4951 = vpop.f32.mrf.mxu0
  %v4952 = vadd.f32 %v4933, %v4951
  %v4953 = vpop.f32.mrf.mxu0
  %v4954 = vadd.f32 %v4935, %v4953
  %4955 = vdwg.mxu0
  %4956 = vmatpush.bf16.msra.mxu0 %v846
  %4957 = vmatpush.bf16.msra.mxu0 %v844
  %4958 = vmatpush.bf16.msra.mxu0 %v842
  %4959 = vmatpush.bf16.msra.mxu0 %v840
  %4960 = vmatpush.bf16.msra.mxu0 %v838
  %4961 = vmatpush.bf16.msra.mxu0 %v836
  %4962 = vmatpush.bf16.msra.mxu0 %v834
  %4963 = vmatpush.bf16.msra.mxu0 %v832
  %4964 = vmatmul.bf16.gmra.mxu0 %v4623
  %v4965 = vpop.f32.mrf.mxu0
  %v4966 = vadd.f32 %v4947, %v4965
  %v4967 = vpop.f32.mrf.mxu0
  %v4968 = vadd.f32 %v4949, %v4967
  %4969 = vmatmul.bf16.gmra.mxu0 %v4632
  %v4970 = vpop.f32.mrf.mxu0
  %v4971 = vadd.f32 %v4952, %v4970
  %v4972 = vpop.f32.mrf.mxu0
  %v4973 = vadd.f32 %v4954, %v4972
  %4974 = vdwg.mxu0
  %4975 = vmatpush.bf16.msra.mxu0 %v862
  %4976 = vmatpush.bf16.msra.mxu0 %v860
  %4977 = vmatpush.bf16.msra.mxu0 %v858
  %4978 = vmatpush.bf16.msra.mxu0 %v856
  %4979 = vmatpush.bf16.msra.mxu0 %v854
  %4980 = vmatpush.bf16.msra.mxu0 %v852
  %4981 = vmatpush.bf16.msra.mxu0 %v850
  %4982 = vmatpush.bf16.msra.mxu0 %v848
  %4983 = vmatmul.bf16.gmra.mxu0 %v4624
  %v4984 = vpop.f32.mrf.mxu0
  %v4985 = vadd.f32 %v4966, %v4984
  %v4986 = vpop.f32.mrf.mxu0
  %v4987 = vadd.f32 %v4968, %v4986
  %4988 = vmatmul.bf16.gmra.mxu0 %v4633
  %v4989 = vpop.f32.mrf.mxu0
  %v4990 = vadd.f32 %v4971, %v4989
  %v4991 = vpop.f32.mrf.mxu0
  %v4992 = vadd.f32 %v4973, %v4991
  %4993 = vdwg.mxu0
  %v4994 = vmul.f32 %v4814, %v1350
  %v4995 = vmul.f32 %v4985, %v1351
  %v4996 = vmul.f32 %v4816, %v1350
  %v4997 = vmul.f32 %v4987, %v1351
  %v4998 = vmul.f32 %v4819, %v1350
  %v4999 = vmul.f32 %v4990, %v1351
  %v5000 = vmul.f32 %v4821, %v1350
  %v5001 = vmul.f32 %v4992, %v1351
  %v5002 = vadd.f32 %v4994, %v1363
  %v5003 = vadd.f32 %v4995, %v1364
  %v5004 = vadd.f32 %v4996, %v1363
  %v5005 = vadd.f32 %v4997, %v1364
  %v5006 = vadd.f32 %v4998, %v1363
  %v5007 = vadd.f32 %v4999, %v1364
  %v5008 = vadd.f32 %v5000, %v1363
  %v5009 = vadd.f32 %v5001, %v1364
  %v5010 = vmax.f32 %v5002, %v5004
  %v5011 = vmax.f32 %v5003, %v5005
  %v5012 = vmax.f32 %v5006, %v5008
  %v5013 = vmax.f32 %v5007, %v5009
  %v5014 = vmax.f32 %v5010, %v5012
  %v5015 = vmax.f32 %v5011, %v5013
  %v5016 = vmax.f32 %v5014, 0.0
  %v5017 = vmax.f32 %v5015, 0.0
  %v5018 = vpack.c.bf16 %v5016, %v5016
  %v5019 = vpack.c.bf16 %v5017, %v5017
  %s5020 = scalar_lea.vmem %s4, 1280
  %v5021 = vld [vmem:[%s5020] sm:$0xff]
  %v5022 = vld [vmem:[%s5020 + $0x8] sm:$0xff]
  %v5023 = vld [vmem:[%s5020 + $0x10] sm:$0xff]
  %v5024 = vld [vmem:[%s5020 + $0x18] sm:$0xff]
  %v5025 = vld [vmem:[%s5020 + $0x20] sm:$0xff]
  %v5026 = vld [vmem:[%s5020 + $0x28] sm:$0xff]
  %v5027 = vld [vmem:[%s5020 + $0x30] sm:$0xff]
  %v5028 = vld [vmem:[%s5020 + $0x38] sm:$0xff]
  %v5029 = vld [vmem:[%s5020 + $0x40] sm:$0xff]
  %v5030 = vld [vmem:[%s5020 + $0x48] sm:$0xff]
  %v5031 = vld [vmem:[%s5020 + $0x50] sm:$0xff]
  %v5032 = vld [vmem:[%s5020 + $0x58] sm:$0xff]
  %v5033 = vld [vmem:[%s5020 + $0x60] sm:$0xff]
  %v5034 = vld [vmem:[%s5020 + $0x68] sm:$0xff]
  %v5035 = vld [vmem:[%s5020 + $0x70] sm:$0xff]
  %v5036 = vld [vmem:[%s5020 + $0x78] sm:$0xff]
  %v5037 = vld [vmem:[%s5020 + $0x80] sm:$0xff]
  %v5038 = vld [vmem:[%s5020 + $0x88] sm:$0xff]
  %v5039 = vld [vmem:[%s5020 + $0x90] sm:$0xff]
  %v5040 = vld [vmem:[%s5020 + $0x98] sm:$0xff]
  %v5041 = vld [vmem:[%s5020 + $0xa0] sm:$0xff]
  %v5042 = vld [vmem:[%s5020 + $0xa8] sm:$0xff]
  %v5043 = vld [vmem:[%s5020 + $0xb0] sm:$0xff]
  %v5044 = vld [vmem:[%s5020 + $0xb8] sm:$0xff]
  %v5045 = vld [vmem:[%s5020 + $0xc0] sm:$0xff]
  %v5046 = vld [vmem:[%s5020 + $0xc8] sm:$0xff]
  %v5047 = vld [vmem:[%s5020 + $0xd0] sm:$0xff]
  %v5048 = vld [vmem:[%s5020 + $0xd8] sm:$0xff]
  %v5049 = vld [vmem:[%s5020 + $0xe0] sm:$0xff]
  %v5050 = vld [vmem:[%s5020 + $0xe8] sm:$0xff]
  %v5051 = vld [vmem:[%s5020 + $0xf0] sm:$0xff]
  %v5052 = vld [vmem:[%s5020 + $0xf8] sm:$0xff]
  %v5085 = vunpack.c.l.b16 %v5021
  %v5086 = vunpack.c.h.b16 %v5021
  %v5087 = vunpack.c.l.b16 %v5022
  %v5088 = vunpack.c.h.b16 %v5022
  %v5089 = vunpack.c.l.b16 %v5023
  %v5090 = vunpack.c.h.b16 %v5023
  %v5091 = vunpack.c.l.b16 %v5024
  %v5092 = vunpack.c.h.b16 %v5024
  %v5093 = vunpack.c.l.b16 %v5025
  %v5094 = vunpack.c.h.b16 %v5025
  %v5095 = vunpack.c.l.b16 %v5026
  %v5096 = vunpack.c.h.b16 %v5026
  %v5097 = vunpack.c.l.b16 %v5027
  %v5098 = vunpack.c.h.b16 %v5027
  %v5099 = vunpack.c.l.b16 %v5028
  %v5100 = vunpack.c.h.b16 %v5028
  %v5101 = vunpack.c.l.b16 %v5029
  %v5102 = vunpack.c.h.b16 %v5029
  %v5103 = vunpack.c.l.b16 %v5030
  %v5104 = vunpack.c.h.b16 %v5030
  %v5105 = vunpack.c.l.b16 %v5031
  %v5106 = vunpack.c.h.b16 %v5031
  %v5107 = vunpack.c.l.b16 %v5032
  %v5108 = vunpack.c.h.b16 %v5032
  %v5109 = vunpack.c.l.b16 %v5033
  %v5110 = vunpack.c.h.b16 %v5033
  %v5111 = vunpack.c.l.b16 %v5034
  %v5112 = vunpack.c.h.b16 %v5034
  %v5113 = vunpack.c.l.b16 %v5035
  %v5114 = vunpack.c.h.b16 %v5035
  %v5115 = vunpack.c.l.b16 %v5036
  %v5116 = vunpack.c.h.b16 %v5036
  %v5117 = vunpack.c.l.b16 %v5037
  %v5118 = vunpack.c.h.b16 %v5037
  %v5119 = vunpack.c.l.b16 %v5038
  %v5120 = vunpack.c.h.b16 %v5038
  %v5121 = vunpack.c.l.b16 %v5039
  %v5122 = vunpack.c.h.b16 %v5039
  %v5123 = vunpack.c.l.b16 %v5040
  %v5124 = vunpack.c.h.b16 %v5040
  %v5125 = vunpack.c.l.b16 %v5041
  %v5126 = vunpack.c.h.b16 %v5041
  %v5127 = vunpack.c.l.b16 %v5042
  %v5128 = vunpack.c.h.b16 %v5042
  %v5129 = vunpack.c.l.b16 %v5043
  %v5130 = vunpack.c.h.b16 %v5043
  %v5131 = vunpack.c.l.b16 %v5044
  %v5132 = vunpack.c.h.b16 %v5044
  %v5133 = vunpack.c.l.b16 %v5045
  %v5134 = vunpack.c.h.b16 %v5045
  %v5135 = vunpack.c.l.b16 %v5046
  %v5136 = vunpack.c.h.b16 %v5046
  %v5137 = vunpack.c.l.b16 %v5047
  %v5138 = vunpack.c.h.b16 %v5047
  %v5139 = vunpack.c.l.b16 %v5048
  %v5140 = vunpack.c.h.b16 %v5048
  %v5141 = vunpack.c.l.b16 %v5049
  %v5142 = vunpack.c.h.b16 %v5049
  %v5143 = vunpack.c.l.b16 %v5050
  %v5144 = vunpack.c.h.b16 %v5050
  %v5145 = vunpack.c.l.b16 %v5051
  %v5146 = vunpack.c.h.b16 %v5051
  %v5147 = vunpack.c.l.b16 %v5052
  %v5148 = vunpack.c.h.b16 %v5052
  %v5149 = vpack.c.b16 %v5087, %v5085
  %v5150 = vpack.c.b16 %v5088, %v5086
  %v5151 = vpack.c.b16 %v5091, %v5089
  %v5152 = vpack.c.b16 %v5092, %v5090
  %v5153 = vpack.c.b16 %v5095, %v5093
  %v5154 = vpack.c.b16 %v5096, %v5094
  %v5155 = vpack.c.b16 %v5099, %v5097
  %v5156 = vpack.c.b16 %v5100, %v5098
  %v5157 = vpack.c.b16 %v5103, %v5101
  %v5158 = vpack.c.b16 %v5104, %v5102
  %v5159 = vpack.c.b16 %v5107, %v5105
  %v5160 = vpack.c.b16 %v5108, %v5106
  %v5161 = vpack.c.b16 %v5111, %v5109
  %v5162 = vpack.c.b16 %v5112, %v5110
  %v5163 = vpack.c.b16 %v5115, %v5113
  %v5164 = vpack.c.b16 %v5116, %v5114
  %v5165 = vpack.c.b16 %v5119, %v5117
  %v5166 = vpack.c.b16 %v5120, %v5118
  %v5167 = vpack.c.b16 %v5123, %v5121
  %v5168 = vpack.c.b16 %v5124, %v5122
  %v5169 = vpack.c.b16 %v5127, %v5125
  %v5170 = vpack.c.b16 %v5128, %v5126
  %v5171 = vpack.c.b16 %v5131, %v5129
  %v5172 = vpack.c.b16 %v5132, %v5130
  %v5173 = vpack.c.b16 %v5135, %v5133
  %v5174 = vpack.c.b16 %v5136, %v5134
  %v5175 = vpack.c.b16 %v5139, %v5137
  %v5176 = vpack.c.b16 %v5140, %v5138
  %v5177 = vpack.c.b16 %v5143, %v5141
  %v5178 = vpack.c.b16 %v5144, %v5142
  %v5179 = vpack.c.b16 %v5147, %v5145
  %v5180 = vpack.c.b16 %v5148, %v5146
  %5213 = vmatpush.bf16.msra.mxu0 %v5163
  %5214 = vmatpush.bf16.msra.mxu0 %v5161
  %5215 = vmatpush.bf16.msra.mxu0 %v5159
  %5216 = vmatpush.bf16.msra.mxu0 %v5157
  %5217 = vmatpush.bf16.msra.mxu0 %v5155
  %5218 = vmatpush.bf16.msra.mxu0 %v5153
  %5219 = vmatpush.bf16.msra.mxu0 %v5151
  %5220 = vmatpush.bf16.msra.mxu0 %v5149
  %5221 = vmatmul.bf16.gmra.mxu0 %v5018
  %v5222 = vpop.f32.mrf.mxu0
  %v5223 = vadd.f32 0.0, %v5222
  %v5224 = vpop.f32.mrf.mxu0
  %5225 = vdwg.mxu0
  %5226 = vmatpush.bf16.msra.mxu0 %v5179
  %5227 = vmatpush.bf16.msra.mxu0 %v5177
  %5228 = vmatpush.bf16.msra.mxu0 %v5175
  %5229 = vmatpush.bf16.msra.mxu0 %v5173
  %5230 = vmatpush.bf16.msra.mxu0 %v5171
  %5231 = vmatpush.bf16.msra.mxu0 %v5169
  %5232 = vmatpush.bf16.msra.mxu0 %v5167
  %5233 = vmatpush.bf16.msra.mxu0 %v5165
  %5234 = vmatmul.bf16.gmra.mxu0 %v5019
  %v5235 = vpop.f32.mrf.mxu0
  %v5236 = vadd.f32 %v5223, %v5235
  %v5237 = vpop.f32.mrf.mxu0
  %5238 = vdwg.mxu0
  %5239 = vmatpush.bf16.msra.mxu0 %v5164
  %5240 = vmatpush.bf16.msra.mxu0 %v5162
  %5241 = vmatpush.bf16.msra.mxu0 %v5160
  %5242 = vmatpush.bf16.msra.mxu0 %v5158
  %5243 = vmatpush.bf16.msra.mxu0 %v5156
  %5244 = vmatpush.bf16.msra.mxu0 %v5154
  %5245 = vmatpush.bf16.msra.mxu0 %v5152
  %5246 = vmatpush.bf16.msra.mxu0 %v5150
  %5247 = vmatmul.bf16.gmra.mxu0 %v5018
  %v5248 = vpop.f32.mrf.mxu0
  %v5249 = vadd.f32 0.0, %v5248
  %v5250 = vpop.f32.mrf.mxu0
  %5251 = vdwg.mxu0
  %5252 = vmatpush.bf16.msra.mxu0 %v5180
  %5253 = vmatpush.bf16.msra.mxu0 %v5178
  %5254 = vmatpush.bf16.msra.mxu0 %v5176
  %5255 = vmatpush.bf16.msra.mxu0 %v5174
  %5256 = vmatpush.bf16.msra.mxu0 %v5172
  %5257 = vmatpush.bf16.msra.mxu0 %v5170
  %5258 = vmatpush.bf16.msra.mxu0 %v5168
  %5259 = vmatpush.bf16.msra.mxu0 %v5166
  %5260 = vmatmul.bf16.gmra.mxu0 %v5019
  %v5261 = vpop.f32.mrf.mxu0
  %v5262 = vadd.f32 %v5249, %v5261
  %v5263 = vpop.f32.mrf.mxu0
  %5264 = vdwg.mxu0
  %v5265 = vadd.f32 %v4537, %v5236
  %v5266 = vadd.f32 %v4538, %v5262
  %s5267 = scalar_lea.vmem %s0, 864
  %v5268 = vld [vmem:[%s5267] sm:$0xff]
  %v5269 = vld [vmem:[%s5267 + $0x8] sm:$0xff]
  %v5270 = vld [vmem:[%s5267 + $0x10] sm:$0xff]
  %v5271 = vld [vmem:[%s5267 + $0x18] sm:$0xff]
  %v5272 = vld [vmem:[%s5267 + $0x20] sm:$0xf]
  %v5273 = vld [vmem:[%s5267 + $0x24] sm:$0xff]
  %v5274 = vld [vmem:[%s5267 + $0x2c] sm:$0xff]
  %v5275 = vld [vmem:[%s5267 + $0x34] sm:$0xff]
  %v5276 = vld [vmem:[%s5267 + $0x3c] sm:$0xff]
  %v5277 = vld [vmem:[%s5267 + $0x44] sm:$0xf]
  %v5278 = vld [vmem:[%s5267 + $0x48] sm:$0xff]
  %v5279 = vld [vmem:[%s5267 + $0x50] sm:$0xff]
  %v5280 = vld [vmem:[%s5267 + $0x58] sm:$0xff]
  %v5281 = vld [vmem:[%s5267 + $0x60] sm:$0xff]
  %v5282 = vld [vmem:[%s5267 + $0x68] sm:$0xf]
  %v5283 = vld [vmem:[%s5267 + $0x6c] sm:$0xff]
  %v5284 = vld [vmem:[%s5267 + $0x74] sm:$0xff]
  %v5285 = vld [vmem:[%s5267 + $0x7c] sm:$0xff]
  %v5286 = vld [vmem:[%s5267 + $0x84] sm:$0xff]
  %v5287 = vld [vmem:[%s5267 + $0x8c] sm:$0xf]
  %v5308 = vunpack.c.l.b16 %v5268
  %v5309 = vunpack.c.h.b16 %v5268
  %v5310 = vunpack.c.l.b16 %v5269
  %v5311 = vunpack.c.h.b16 %v5269
  %v5312 = vunpack.c.l.b16 %v5270
  %v5313 = vunpack.c.h.b16 %v5270
  %v5314 = vunpack.c.l.b16 %v5271
  %v5315 = vunpack.c.h.b16 %v5271
  %v5316 = vunpack.c.l.b16 %v5272
  %v5317 = vunpack.c.l.b16 %v5273
  %v5318 = vunpack.c.h.b16 %v5273
  %v5319 = vunpack.c.l.b16 %v5274
  %v5320 = vunpack.c.h.b16 %v5274
  %v5321 = vunpack.c.l.b16 %v5275
  %v5322 = vunpack.c.h.b16 %v5275
  %v5323 = vunpack.c.l.b16 %v5276
  %v5324 = vunpack.c.h.b16 %v5276
  %v5325 = vunpack.c.l.b16 %v5277
  %v5326 = vunpack.c.l.b16 %v5278
  %v5327 = vunpack.c.h.b16 %v5278
  %v5328 = vunpack.c.l.b16 %v5279
  %v5329 = vunpack.c.h.b16 %v5279
  %v5330 = vunpack.c.l.b16 %v5280
  %v5331 = vunpack.c.h.b16 %v5280
  %v5332 = vunpack.c.l.b16 %v5281
  %v5333 = vunpack.c.h.b16 %v5281
  %v5334 = vunpack.c.l.b16 %v5282
  %v5335 = vunpack.c.l.b16 %v5283
  %v5336 = vunpack.c.h.b16 %v5283
  %v5337 = vunpack.c.l.b16 %v5284
  %v5338 = vunpack.c.h.b16 %v5284
  %v5339 = vunpack.c.l.b16 %v5285
  %v5340 = vunpack.c.h.b16 %v5285
  %v5341 = vunpack.c.l.b16 %v5286
  %v5342 = vunpack.c.h.b16 %v5286
  %v5343 = vunpack.c.l.b16 %v5287
  %v5344 = vpack.c.b16 %v5317, %v5308
  %v5345 = vpack.c.b16 %v5318, %v5309
  %v5346 = vpack.c.b16 %v5319, %v5310
  %v5347 = vpack.c.b16 %v5320, %v5311
  %v5348 = vpack.c.b16 %v5321, %v5312
  %v5349 = vpack.c.b16 %v5322, %v5313
  %v5350 = vpack.c.b16 %v5323, %v5314
  %v5351 = vpack.c.b16 %v5324, %v5315
  %v5352 = vpack.c.b16 %v5325, %v5316
  %v5353 = vpack.c.b16 %v5335, %v5326
  %v5354 = vpack.c.b16 %v5336, %v5327
  %v5355 = vpack.c.b16 %v5337, %v5328
  %v5356 = vpack.c.b16 %v5338, %v5329
  %v5357 = vpack.c.b16 %v5339, %v5330
  %v5358 = vpack.c.b16 %v5340, %v5331
  %v5359 = vpack.c.b16 %v5341, %v5332
  %v5360 = vpack.c.b16 %v5342, %v5333
  %v5361 = vpack.c.b16 %v5343, %v5334
  %5380 = vmatpush.bf16.msra.mxu0 %v733
  %5381 = vmatpush.bf16.msra.mxu0 %v731
  %5382 = vmatpush.bf16.msra.mxu0 %v729
  %5383 = vmatpush.bf16.msra.mxu0 %v727
  %5384 = vmatpush.bf16.msra.mxu0 %v725
  %5385 = vmatpush.bf16.msra.mxu0 %v723
  %5386 = vmatpush.bf16.msra.mxu0 %v721
  %5387 = vmatpush.bf16.msra.mxu0 %v719
  %5388 = vmatmul.bf16.gmra.mxu0 %v5344
  %v5389 = vpop.f32.mrf.mxu0
  %v5390 = vadd.f32 0.0, %v5389
  %v5391 = vpop.f32.mrf.mxu0
  %v5392 = vadd.f32 0.0, %v5391
  %5393 = vmatmul.bf16.gmra.mxu0 %v5353
  %v5394 = vpop.f32.mrf.mxu0
  %v5395 = vadd.f32 0.0, %v5394
  %v5396 = vpop.f32.mrf.mxu0
  %v5397 = vadd.f32 0.0, %v5396
  %5398 = vdwg.mxu0
  %5399 = vmatpush.bf16.msra.mxu0 %v749
  %5400 = vmatpush.bf16.msra.mxu0 %v747
  %5401 = vmatpush.bf16.msra.mxu0 %v745
  %5402 = vmatpush.bf16.msra.mxu0 %v743
  %5403 = vmatpush.bf16.msra.mxu0 %v741
  %5404 = vmatpush.bf16.msra.mxu0 %v739
  %5405 = vmatpush.bf16.msra.mxu0 %v737
  %5406 = vmatpush.bf16.msra.mxu0 %v735
  %5407 = vmatmul.bf16.gmra.mxu0 %v5345
  %v5408 = vpop.f32.mrf.mxu0
  %v5409 = vadd.f32 %v5390, %v5408
  %v5410 = vpop.f32.mrf.mxu0
  %v5411 = vadd.f32 %v5392, %v5410
  %5412 = vmatmul.bf16.gmra.mxu0 %v5354
  %v5413 = vpop.f32.mrf.mxu0
  %v5414 = vadd.f32 %v5395, %v5413
  %v5415 = vpop.f32.mrf.mxu0
  %v5416 = vadd.f32 %v5397, %v5415
  %5417 = vdwg.mxu0
  %5418 = vmatpush.bf16.msra.mxu0 %v765
  %5419 = vmatpush.bf16.msra.mxu0 %v763
  %5420 = vmatpush.bf16.msra.mxu0 %v761
  %5421 = vmatpush.bf16.msra.mxu0 %v759
  %5422 = vmatpush.bf16.msra.mxu0 %v757
  %5423 = vmatpush.bf16.msra.mxu0 %v755
  %5424 = vmatpush.bf16.msra.mxu0 %v753
  %5425 = vmatpush.bf16.msra.mxu0 %v751
  %5426 = vmatmul.bf16.gmra.mxu0 %v5346
  %v5427 = vpop.f32.mrf.mxu0
  %v5428 = vadd.f32 %v5409, %v5427
  %v5429 = vpop.f32.mrf.mxu0
  %v5430 = vadd.f32 %v5411, %v5429
  %5431 = vmatmul.bf16.gmra.mxu0 %v5355
  %v5432 = vpop.f32.mrf.mxu0
  %v5433 = vadd.f32 %v5414, %v5432
  %v5434 = vpop.f32.mrf.mxu0
  %v5435 = vadd.f32 %v5416, %v5434
  %5436 = vdwg.mxu0
  %5437 = vmatpush.bf16.msra.mxu0 %v781
  %5438 = vmatpush.bf16.msra.mxu0 %v779
  %5439 = vmatpush.bf16.msra.mxu0 %v777
  %5440 = vmatpush.bf16.msra.mxu0 %v775
  %5441 = vmatpush.bf16.msra.mxu0 %v773
  %5442 = vmatpush.bf16.msra.mxu0 %v771
  %5443 = vmatpush.bf16.msra.mxu0 %v769
  %5444 = vmatpush.bf16.msra.mxu0 %v767
  %5445 = vmatmul.bf16.gmra.mxu0 %v5347
  %v5446 = vpop.f32.mrf.mxu0
  %v5447 = vadd.f32 %v5428, %v5446
  %v5448 = vpop.f32.mrf.mxu0
  %v5449 = vadd.f32 %v5430, %v5448
  %5450 = vmatmul.bf16.gmra.mxu0 %v5356
  %v5451 = vpop.f32.mrf.mxu0
  %v5452 = vadd.f32 %v5433, %v5451
  %v5453 = vpop.f32.mrf.mxu0
  %v5454 = vadd.f32 %v5435, %v5453
  %5455 = vdwg.mxu0
  %5456 = vmatpush.bf16.msra.mxu0 %v797
  %5457 = vmatpush.bf16.msra.mxu0 %v795
  %5458 = vmatpush.bf16.msra.mxu0 %v793
  %5459 = vmatpush.bf16.msra.mxu0 %v791
  %5460 = vmatpush.bf16.msra.mxu0 %v789
  %5461 = vmatpush.bf16.msra.mxu0 %v787
  %5462 = vmatpush.bf16.msra.mxu0 %v785
  %5463 = vmatpush.bf16.msra.mxu0 %v783
  %5464 = vmatmul.bf16.gmra.mxu0 %v5348
  %v5465 = vpop.f32.mrf.mxu0
  %v5466 = vadd.f32 %v5447, %v5465
  %v5467 = vpop.f32.mrf.mxu0
  %v5468 = vadd.f32 %v5449, %v5467
  %5469 = vmatmul.bf16.gmra.mxu0 %v5357
  %v5470 = vpop.f32.mrf.mxu0
  %v5471 = vadd.f32 %v5452, %v5470
  %v5472 = vpop.f32.mrf.mxu0
  %v5473 = vadd.f32 %v5454, %v5472
  %5474 = vdwg.mxu0
  %5475 = vmatpush.bf16.msra.mxu0 %v813
  %5476 = vmatpush.bf16.msra.mxu0 %v811
  %5477 = vmatpush.bf16.msra.mxu0 %v809
  %5478 = vmatpush.bf16.msra.mxu0 %v807
  %5479 = vmatpush.bf16.msra.mxu0 %v805
  %5480 = vmatpush.bf16.msra.mxu0 %v803
  %5481 = vmatpush.bf16.msra.mxu0 %v801
  %5482 = vmatpush.bf16.msra.mxu0 %v799
  %5483 = vmatmul.bf16.gmra.mxu0 %v5349
  %v5484 = vpop.f32.mrf.mxu0
  %v5485 = vadd.f32 %v5466, %v5484
  %v5486 = vpop.f32.mrf.mxu0
  %v5487 = vadd.f32 %v5468, %v5486
  %5488 = vmatmul.bf16.gmra.mxu0 %v5358
  %v5489 = vpop.f32.mrf.mxu0
  %v5490 = vadd.f32 %v5471, %v5489
  %v5491 = vpop.f32.mrf.mxu0
  %v5492 = vadd.f32 %v5473, %v5491
  %5493 = vdwg.mxu0
  %5494 = vmatpush.bf16.msra.mxu0 %v829
  %5495 = vmatpush.bf16.msra.mxu0 %v827
  %5496 = vmatpush.bf16.msra.mxu0 %v825
  %5497 = vmatpush.bf16.msra.mxu0 %v823
  %5498 = vmatpush.bf16.msra.mxu0 %v821
  %5499 = vmatpush.bf16.msra.mxu0 %v819
  %5500 = vmatpush.bf16.msra.mxu0 %v817
  %5501 = vmatpush.bf16.msra.mxu0 %v815
  %5502 = vmatmul.bf16.gmra.mxu0 %v5350
  %v5503 = vpop.f32.mrf.mxu0
  %v5504 = vadd.f32 %v5485, %v5503
  %v5505 = vpop.f32.mrf.mxu0
  %v5506 = vadd.f32 %v5487, %v5505
  %5507 = vmatmul.bf16.gmra.mxu0 %v5359
  %v5508 = vpop.f32.mrf.mxu0
  %v5509 = vadd.f32 %v5490, %v5508
  %v5510 = vpop.f32.mrf.mxu0
  %v5511 = vadd.f32 %v5492, %v5510
  %5512 = vdwg.mxu0
  %5513 = vmatpush.bf16.msra.mxu0 %v845
  %5514 = vmatpush.bf16.msra.mxu0 %v843
  %5515 = vmatpush.bf16.msra.mxu0 %v841
  %5516 = vmatpush.bf16.msra.mxu0 %v839
  %5517 = vmatpush.bf16.msra.mxu0 %v837
  %5518 = vmatpush.bf16.msra.mxu0 %v835
  %5519 = vmatpush.bf16.msra.mxu0 %v833
  %5520 = vmatpush.bf16.msra.mxu0 %v831
  %5521 = vmatmul.bf16.gmra.mxu0 %v5351
  %v5522 = vpop.f32.mrf.mxu0
  %v5523 = vadd.f32 %v5504, %v5522
  %v5524 = vpop.f32.mrf.mxu0
  %v5525 = vadd.f32 %v5506, %v5524
  %5526 = vmatmul.bf16.gmra.mxu0 %v5360
  %v5527 = vpop.f32.mrf.mxu0
  %v5528 = vadd.f32 %v5509, %v5527
  %v5529 = vpop.f32.mrf.mxu0
  %v5530 = vadd.f32 %v5511, %v5529
  %5531 = vdwg.mxu0
  %5532 = vmatpush.bf16.msra.mxu0 %v861
  %5533 = vmatpush.bf16.msra.mxu0 %v859
  %5534 = vmatpush.bf16.msra.mxu0 %v857
  %5535 = vmatpush.bf16.msra.mxu0 %v855
  %5536 = vmatpush.bf16.msra.mxu0 %v853
  %5537 = vmatpush.bf16.msra.mxu0 %v851
  %5538 = vmatpush.bf16.msra.mxu0 %v849
  %5539 = vmatpush.bf16.msra.mxu0 %v847
  %5540 = vmatmul.bf16.gmra.mxu0 %v5352
  %v5541 = vpop.f32.mrf.mxu0
  %v5542 = vadd.f32 %v5523, %v5541
  %v5543 = vpop.f32.mrf.mxu0
  %v5544 = vadd.f32 %v5525, %v5543
  %5545 = vmatmul.bf16.gmra.mxu0 %v5361
  %v5546 = vpop.f32.mrf.mxu0
  %v5547 = vadd.f32 %v5528, %v5546
  %v5548 = vpop.f32.mrf.mxu0
  %v5549 = vadd.f32 %v5530, %v5548
  %5550 = vdwg.mxu0
  %5551 = vmatpush.bf16.msra.mxu0 %v734
  %5552 = vmatpush.bf16.msra.mxu0 %v732
  %5553 = vmatpush.bf16.msra.mxu0 %v730
  %5554 = vmatpush.bf16.msra.mxu0 %v728
  %5555 = vmatpush.bf16.msra.mxu0 %v726
  %5556 = vmatpush.bf16.msra.mxu0 %v724
  %5557 = vmatpush.bf16.msra.mxu0 %v722
  %5558 = vmatpush.bf16.msra.mxu0 %v720
  %5559 = vmatmul.bf16.gmra.mxu0 %v5344
  %v5560 = vpop.f32.mrf.mxu0
  %v5561 = vadd.f32 0.0, %v5560
  %v5562 = vpop.f32.mrf.mxu0
  %v5563 = vadd.f32 0.0, %v5562
  %5564 = vmatmul.bf16.gmra.mxu0 %v5353
  %v5565 = vpop.f32.mrf.mxu0
  %v5566 = vadd.f32 0.0, %v5565
  %v5567 = vpop.f32.mrf.mxu0
  %v5568 = vadd.f32 0.0, %v5567
  %5569 = vdwg.mxu0
  %5570 = vmatpush.bf16.msra.mxu0 %v750
  %5571 = vmatpush.bf16.msra.mxu0 %v748
  %5572 = vmatpush.bf16.msra.mxu0 %v746
  %5573 = vmatpush.bf16.msra.mxu0 %v744
  %5574 = vmatpush.bf16.msra.mxu0 %v742
  %5575 = vmatpush.bf16.msra.mxu0 %v740
  %5576 = vmatpush.bf16.msra.mxu0 %v738
  %5577 = vmatpush.bf16.msra.mxu0 %v736
  %5578 = vmatmul.bf16.gmra.mxu0 %v5345
  %v5579 = vpop.f32.mrf.mxu0
  %v5580 = vadd.f32 %v5561, %v5579
  %v5581 = vpop.f32.mrf.mxu0
  %v5582 = vadd.f32 %v5563, %v5581
  %5583 = vmatmul.bf16.gmra.mxu0 %v5354
  %v5584 = vpop.f32.mrf.mxu0
  %v5585 = vadd.f32 %v5566, %v5584
  %v5586 = vpop.f32.mrf.mxu0
  %v5587 = vadd.f32 %v5568, %v5586
  %5588 = vdwg.mxu0
  %5589 = vmatpush.bf16.msra.mxu0 %v766
  %5590 = vmatpush.bf16.msra.mxu0 %v764
  %5591 = vmatpush.bf16.msra.mxu0 %v762
  %5592 = vmatpush.bf16.msra.mxu0 %v760
  %5593 = vmatpush.bf16.msra.mxu0 %v758
  %5594 = vmatpush.bf16.msra.mxu0 %v756
  %5595 = vmatpush.bf16.msra.mxu0 %v754
  %5596 = vmatpush.bf16.msra.mxu0 %v752
  %5597 = vmatmul.bf16.gmra.mxu0 %v5346
  %v5598 = vpop.f32.mrf.mxu0
  %v5599 = vadd.f32 %v5580, %v5598
  %v5600 = vpop.f32.mrf.mxu0
  %v5601 = vadd.f32 %v5582, %v5600
  %5602 = vmatmul.bf16.gmra.mxu0 %v5355
  %v5603 = vpop.f32.mrf.mxu0
  %v5604 = vadd.f32 %v5585, %v5603
  %v5605 = vpop.f32.mrf.mxu0
  %v5606 = vadd.f32 %v5587, %v5605
  %5607 = vdwg.mxu0
  %5608 = vmatpush.bf16.msra.mxu0 %v782
  %5609 = vmatpush.bf16.msra.mxu0 %v780
  %5610 = vmatpush.bf16.msra.mxu0 %v778
  %5611 = vmatpush.bf16.msra.mxu0 %v776
  %5612 = vmatpush.bf16.msra.mxu0 %v774
  %5613 = vmatpush.bf16.msra.mxu0 %v772
  %5614 = vmatpush.bf16.msra.mxu0 %v770
  %5615 = vmatpush.bf16.msra.mxu0 %v768
  %5616 = vmatmul.bf16.gmra.mxu0 %v5347
  %v5617 = vpop.f32.mrf.mxu0
  %v5618 = vadd.f32 %v5599, %v5617
  %v5619 = vpop.f32.mrf.mxu0
  %v5620 = vadd.f32 %v5601, %v5619
  %5621 = vmatmul.bf16.gmra.mxu0 %v5356
  %v5622 = vpop.f32.mrf.mxu0
  %v5623 = vadd.f32 %v5604, %v5622
  %v5624 = vpop.f32.mrf.mxu0
  %v5625 = vadd.f32 %v5606, %v5624
  %5626 = vdwg.mxu0
  %5627 = vmatpush.bf16.msra.mxu0 %v798
  %5628 = vmatpush.bf16.msra.mxu0 %v796
  %5629 = vmatpush.bf16.msra.mxu0 %v794
  %5630 = vmatpush.bf16.msra.mxu0 %v792
  %5631 = vmatpush.bf16.msra.mxu0 %v790
  %5632 = vmatpush.bf16.msra.mxu0 %v788
  %5633 = vmatpush.bf16.msra.mxu0 %v786
  %5634 = vmatpush.bf16.msra.mxu0 %v784
  %5635 = vmatmul.bf16.gmra.mxu0 %v5348
  %v5636 = vpop.f32.mrf.mxu0
  %v5637 = vadd.f32 %v5618, %v5636
  %v5638 = vpop.f32.mrf.mxu0
  %v5639 = vadd.f32 %v5620, %v5638
  %5640 = vmatmul.bf16.gmra.mxu0 %v5357
  %v5641 = vpop.f32.mrf.mxu0
  %v5642 = vadd.f32 %v5623, %v5641
  %v5643 = vpop.f32.mrf.mxu0
  %v5644 = vadd.f32 %v5625, %v5643
  %5645 = vdwg.mxu0
  %5646 = vmatpush.bf16.msra.mxu0 %v814
  %5647 = vmatpush.bf16.msra.mxu0 %v812
  %5648 = vmatpush.bf16.msra.mxu0 %v810
  %5649 = vmatpush.bf16.msra.mxu0 %v808
  %5650 = vmatpush.bf16.msra.mxu0 %v806
  %5651 = vmatpush.bf16.msra.mxu0 %v804
  %5652 = vmatpush.bf16.msra.mxu0 %v802
  %5653 = vmatpush.bf16.msra.mxu0 %v800
  %5654 = vmatmul.bf16.gmra.mxu0 %v5349
  %v5655 = vpop.f32.mrf.mxu0
  %v5656 = vadd.f32 %v5637, %v5655
  %v5657 = vpop.f32.mrf.mxu0
  %v5658 = vadd.f32 %v5639, %v5657
  %5659 = vmatmul.bf16.gmra.mxu0 %v5358
  %v5660 = vpop.f32.mrf.mxu0
  %v5661 = vadd.f32 %v5642, %v5660
  %v5662 = vpop.f32.mrf.mxu0
  %v5663 = vadd.f32 %v5644, %v5662
  %5664 = vdwg.mxu0
  %5665 = vmatpush.bf16.msra.mxu0 %v830
  %5666 = vmatpush.bf16.msra.mxu0 %v828
  %5667 = vmatpush.bf16.msra.mxu0 %v826
  %5668 = vmatpush.bf16.msra.mxu0 %v824
  %5669 = vmatpush.bf16.msra.mxu0 %v822
  %5670 = vmatpush.bf16.msra.mxu0 %v820
  %5671 = vmatpush.bf16.msra.mxu0 %v818
  %5672 = vmatpush.bf16.msra.mxu0 %v816
  %5673 = vmatmul.bf16.gmra.mxu0 %v5350
  %v5674 = vpop.f32.mrf.mxu0
  %v5675 = vadd.f32 %v5656, %v5674
  %v5676 = vpop.f32.mrf.mxu0
  %v5677 = vadd.f32 %v5658, %v5676
  %5678 = vmatmul.bf16.gmra.mxu0 %v5359
  %v5679 = vpop.f32.mrf.mxu0
  %v5680 = vadd.f32 %v5661, %v5679
  %v5681 = vpop.f32.mrf.mxu0
  %v5682 = vadd.f32 %v5663, %v5681
  %5683 = vdwg.mxu0
  %5684 = vmatpush.bf16.msra.mxu0 %v846
  %5685 = vmatpush.bf16.msra.mxu0 %v844
  %5686 = vmatpush.bf16.msra.mxu0 %v842
  %5687 = vmatpush.bf16.msra.mxu0 %v840
  %5688 = vmatpush.bf16.msra.mxu0 %v838
  %5689 = vmatpush.bf16.msra.mxu0 %v836
  %5690 = vmatpush.bf16.msra.mxu0 %v834
  %5691 = vmatpush.bf16.msra.mxu0 %v832
  %5692 = vmatmul.bf16.gmra.mxu0 %v5351
  %v5693 = vpop.f32.mrf.mxu0
  %v5694 = vadd.f32 %v5675, %v5693
  %v5695 = vpop.f32.mrf.mxu0
  %v5696 = vadd.f32 %v5677, %v5695
  %5697 = vmatmul.bf16.gmra.mxu0 %v5360
  %v5698 = vpop.f32.mrf.mxu0
  %v5699 = vadd.f32 %v5680, %v5698
  %v5700 = vpop.f32.mrf.mxu0
  %v5701 = vadd.f32 %v5682, %v5700
  %5702 = vdwg.mxu0
  %5703 = vmatpush.bf16.msra.mxu0 %v862
  %5704 = vmatpush.bf16.msra.mxu0 %v860
  %5705 = vmatpush.bf16.msra.mxu0 %v858
  %5706 = vmatpush.bf16.msra.mxu0 %v856
  %5707 = vmatpush.bf16.msra.mxu0 %v854
  %5708 = vmatpush.bf16.msra.mxu0 %v852
  %5709 = vmatpush.bf16.msra.mxu0 %v850
  %5710 = vmatpush.bf16.msra.mxu0 %v848
  %5711 = vmatmul.bf16.gmra.mxu0 %v5352
  %v5712 = vpop.f32.mrf.mxu0
  %v5713 = vadd.f32 %v5694, %v5712
  %v5714 = vpop.f32.mrf.mxu0
  %v5715 = vadd.f32 %v5696, %v5714
  %5716 = vmatmul.bf16.gmra.mxu0 %v5361
  %v5717 = vpop.f32.mrf.mxu0
  %v5718 = vadd.f32 %v5699, %v5717
  %v5719 = vpop.f32.mrf.mxu0
  %v5720 = vadd.f32 %v5701, %v5719
  %5721 = vdwg.mxu0
  %v5722 = vmul.f32 %v5542, %v1350
  %v5723 = vmul.f32 %v5713, %v1351
  %v5724 = vmul.f32 %v5544, %v1350
  %v5725 = vmul.f32 %v5715, %v1351
  %v5726 = vmul.f32 %v5547, %v1350
  %v5727 = vmul.f32 %v5718, %v1351
  %v5728 = vmul.f32 %v5549, %v1350
  %v5729 = vmul.f32 %v5720, %v1351
  %v5730 = vadd.f32 %v5722, %v1363
  %v5731 = vadd.f32 %v5723, %v1364
  %v5732 = vadd.f32 %v5724, %v1363
  %v5733 = vadd.f32 %v5725, %v1364
  %v5734 = vadd.f32 %v5726, %v1363
  %v5735 = vadd.f32 %v5727, %v1364
  %v5736 = vadd.f32 %v5728, %v1363
  %v5737 = vadd.f32 %v5729, %v1364
  %v5738 = vmax.f32 %v5730, %v5732
  %v5739 = vmax.f32 %v5731, %v5733
  %v5740 = vmax.f32 %v5734, %v5736
  %v5741 = vmax.f32 %v5735, %v5737
  %v5742 = vmax.f32 %v5738, %v5740
  %v5743 = vmax.f32 %v5739, %v5741
  %v5744 = vmax.f32 %v5742, 0.0
  %v5745 = vmax.f32 %v5743, 0.0
  %v5746 = vpack.c.bf16 %v5744, %v5744
  %v5747 = vpack.c.bf16 %v5745, %v5745
  %s5748 = scalar_lea.vmem %s4, 1536
  %v5749 = vld [vmem:[%s5748] sm:$0xff]
  %v5750 = vld [vmem:[%s5748 + $0x8] sm:$0xff]
  %v5751 = vld [vmem:[%s5748 + $0x10] sm:$0xff]
  %v5752 = vld [vmem:[%s5748 + $0x18] sm:$0xff]
  %v5753 = vld [vmem:[%s5748 + $0x20] sm:$0xff]
  %v5754 = vld [vmem:[%s5748 + $0x28] sm:$0xff]
  %v5755 = vld [vmem:[%s5748 + $0x30] sm:$0xff]
  %v5756 = vld [vmem:[%s5748 + $0x38] sm:$0xff]
  %v5757 = vld [vmem:[%s5748 + $0x40] sm:$0xff]
  %v5758 = vld [vmem:[%s5748 + $0x48] sm:$0xff]
  %v5759 = vld [vmem:[%s5748 + $0x50] sm:$0xff]
  %v5760 = vld [vmem:[%s5748 + $0x58] sm:$0xff]
  %v5761 = vld [vmem:[%s5748 + $0x60] sm:$0xff]
  %v5762 = vld [vmem:[%s5748 + $0x68] sm:$0xff]
  %v5763 = vld [vmem:[%s5748 + $0x70] sm:$0xff]
  %v5764 = vld [vmem:[%s5748 + $0x78] sm:$0xff]
  %v5765 = vld [vmem:[%s5748 + $0x80] sm:$0xff]
  %v5766 = vld [vmem:[%s5748 + $0x88] sm:$0xff]
  %v5767 = vld [vmem:[%s5748 + $0x90] sm:$0xff]
  %v5768 = vld [vmem:[%s5748 + $0x98] sm:$0xff]
  %v5769 = vld [vmem:[%s5748 + $0xa0] sm:$0xff]
  %v5770 = vld [vmem:[%s5748 + $0xa8] sm:$0xff]
  %v5771 = vld [vmem:[%s5748 + $0xb0] sm:$0xff]
  %v5772 = vld [vmem:[%s5748 + $0xb8] sm:$0xff]
  %v5773 = vld [vmem:[%s5748 + $0xc0] sm:$0xff]
  %v5774 = vld [vmem:[%s5748 + $0xc8] sm:$0xff]
  %v5775 = vld [vmem:[%s5748 + $0xd0] sm:$0xff]
  %v5776 = vld [vmem:[%s5748 + $0xd8] sm:$0xff]
  %v5777 = vld [vmem:[%s5748 + $0xe0] sm:$0xff]
  %v5778 = vld [vmem:[%s5748 + $0xe8] sm:$0xff]
  %v5779 = vld [vmem:[%s5748 + $0xf0] sm:$0xff]
  %v5780 = vld [vmem:[%s5748 + $0xf8] sm:$0xff]
  %v5813 = vunpack.c.l.b16 %v5749
  %v5814 = vunpack.c.h.b16 %v5749
  %v5815 = vunpack.c.l.b16 %v5750
  %v5816 = vunpack.c.h.b16 %v5750
  %v5817 = vunpack.c.l.b16 %v5751
  %v5818 = vunpack.c.h.b16 %v5751
  %v5819 = vunpack.c.l.b16 %v5752
  %v5820 = vunpack.c.h.b16 %v5752
  %v5821 = vunpack.c.l.b16 %v5753
  %v5822 = vunpack.c.h.b16 %v5753
  %v5823 = vunpack.c.l.b16 %v5754
  %v5824 = vunpack.c.h.b16 %v5754
  %v5825 = vunpack.c.l.b16 %v5755
  %v5826 = vunpack.c.h.b16 %v5755
  %v5827 = vunpack.c.l.b16 %v5756
  %v5828 = vunpack.c.h.b16 %v5756
  %v5829 = vunpack.c.l.b16 %v5757
  %v5830 = vunpack.c.h.b16 %v5757
  %v5831 = vunpack.c.l.b16 %v5758
  %v5832 = vunpack.c.h.b16 %v5758
  %v5833 = vunpack.c.l.b16 %v5759
  %v5834 = vunpack.c.h.b16 %v5759
  %v5835 = vunpack.c.l.b16 %v5760
  %v5836 = vunpack.c.h.b16 %v5760
  %v5837 = vunpack.c.l.b16 %v5761
  %v5838 = vunpack.c.h.b16 %v5761
  %v5839 = vunpack.c.l.b16 %v5762
  %v5840 = vunpack.c.h.b16 %v5762
  %v5841 = vunpack.c.l.b16 %v5763
  %v5842 = vunpack.c.h.b16 %v5763
  %v5843 = vunpack.c.l.b16 %v5764
  %v5844 = vunpack.c.h.b16 %v5764
  %v5845 = vunpack.c.l.b16 %v5765
  %v5846 = vunpack.c.h.b16 %v5765
  %v5847 = vunpack.c.l.b16 %v5766
  %v5848 = vunpack.c.h.b16 %v5766
  %v5849 = vunpack.c.l.b16 %v5767
  %v5850 = vunpack.c.h.b16 %v5767
  %v5851 = vunpack.c.l.b16 %v5768
  %v5852 = vunpack.c.h.b16 %v5768
  %v5853 = vunpack.c.l.b16 %v5769
  %v5854 = vunpack.c.h.b16 %v5769
  %v5855 = vunpack.c.l.b16 %v5770
  %v5856 = vunpack.c.h.b16 %v5770
  %v5857 = vunpack.c.l.b16 %v5771
  %v5858 = vunpack.c.h.b16 %v5771
  %v5859 = vunpack.c.l.b16 %v5772
  %v5860 = vunpack.c.h.b16 %v5772
  %v5861 = vunpack.c.l.b16 %v5773
  %v5862 = vunpack.c.h.b16 %v5773
  %v5863 = vunpack.c.l.b16 %v5774
  %v5864 = vunpack.c.h.b16 %v5774
  %v5865 = vunpack.c.l.b16 %v5775
  %v5866 = vunpack.c.h.b16 %v5775
  %v5867 = vunpack.c.l.b16 %v5776
  %v5868 = vunpack.c.h.b16 %v5776
  %v5869 = vunpack.c.l.b16 %v5777
  %v5870 = vunpack.c.h.b16 %v5777
  %v5871 = vunpack.c.l.b16 %v5778
  %v5872 = vunpack.c.h.b16 %v5778
  %v5873 = vunpack.c.l.b16 %v5779
  %v5874 = vunpack.c.h.b16 %v5779
  %v5875 = vunpack.c.l.b16 %v5780
  %v5876 = vunpack.c.h.b16 %v5780
  %v5877 = vpack.c.b16 %v5815, %v5813
  %v5878 = vpack.c.b16 %v5816, %v5814
  %v5879 = vpack.c.b16 %v5819, %v5817
  %v5880 = vpack.c.b16 %v5820, %v5818
  %v5881 = vpack.c.b16 %v5823, %v5821
  %v5882 = vpack.c.b16 %v5824, %v5822
  %v5883 = vpack.c.b16 %v5827, %v5825
  %v5884 = vpack.c.b16 %v5828, %v5826
  %v5885 = vpack.c.b16 %v5831, %v5829
  %v5886 = vpack.c.b16 %v5832, %v5830
  %v5887 = vpack.c.b16 %v5835, %v5833
  %v5888 = vpack.c.b16 %v5836, %v5834
  %v5889 = vpack.c.b16 %v5839, %v5837
  %v5890 = vpack.c.b16 %v5840, %v5838
  %v5891 = vpack.c.b16 %v5843, %v5841
  %v5892 = vpack.c.b16 %v5844, %v5842
  %v5893 = vpack.c.b16 %v5847, %v5845
  %v5894 = vpack.c.b16 %v5848, %v5846
  %v5895 = vpack.c.b16 %v5851, %v5849
  %v5896 = vpack.c.b16 %v5852, %v5850
  %v5897 = vpack.c.b16 %v5855, %v5853
  %v5898 = vpack.c.b16 %v5856, %v5854
  %v5899 = vpack.c.b16 %v5859, %v5857
  %v5900 = vpack.c.b16 %v5860, %v5858
  %v5901 = vpack.c.b16 %v5863, %v5861
  %v5902 = vpack.c.b16 %v5864, %v5862
  %v5903 = vpack.c.b16 %v5867, %v5865
  %v5904 = vpack.c.b16 %v5868, %v5866
  %v5905 = vpack.c.b16 %v5871, %v5869
  %v5906 = vpack.c.b16 %v5872, %v5870
  %v5907 = vpack.c.b16 %v5875, %v5873
  %v5908 = vpack.c.b16 %v5876, %v5874
  %5941 = vmatpush.bf16.msra.mxu0 %v5891
  %5942 = vmatpush.bf16.msra.mxu0 %v5889
  %5943 = vmatpush.bf16.msra.mxu0 %v5887
  %5944 = vmatpush.bf16.msra.mxu0 %v5885
  %5945 = vmatpush.bf16.msra.mxu0 %v5883
  %5946 = vmatpush.bf16.msra.mxu0 %v5881
  %5947 = vmatpush.bf16.msra.mxu0 %v5879
  %5948 = vmatpush.bf16.msra.mxu0 %v5877
  %5949 = vmatmul.bf16.gmra.mxu0 %v5746
  %v5950 = vpop.f32.mrf.mxu0
  %v5951 = vadd.f32 0.0, %v5950
  %v5952 = vpop.f32.mrf.mxu0
  %5953 = vdwg.mxu0
  %5954 = vmatpush.bf16.msra.mxu0 %v5907
  %5955 = vmatpush.bf16.msra.mxu0 %v5905
  %5956 = vmatpush.bf16.msra.mxu0 %v5903
  %5957 = vmatpush.bf16.msra.mxu0 %v5901
  %5958 = vmatpush.bf16.msra.mxu0 %v5899
  %5959 = vmatpush.bf16.msra.mxu0 %v5897
  %5960 = vmatpush.bf16.msra.mxu0 %v5895
  %5961 = vmatpush.bf16.msra.mxu0 %v5893
  %5962 = vmatmul.bf16.gmra.mxu0 %v5747
  %v5963 = vpop.f32.mrf.mxu0
  %v5964 = vadd.f32 %v5951, %v5963
  %v5965 = vpop.f32.mrf.mxu0
  %5966 = vdwg.mxu0
  %5967 = vmatpush.bf16.msra.mxu0 %v5892
  %5968 = vmatpush.bf16.msra.mxu0 %v5890
  %5969 = vmatpush.bf16.msra.mxu0 %v5888
  %5970 = vmatpush.bf16.msra.mxu0 %v5886
  %5971 = vmatpush.bf16.msra.mxu0 %v5884
  %5972 = vmatpush.bf16.msra.mxu0 %v5882
  %5973 = vmatpush.bf16.msra.mxu0 %v5880
  %5974 = vmatpush.bf16.msra.mxu0 %v5878
  %5975 = vmatmul.bf16.gmra.mxu0 %v5746
  %v5976 = vpop.f32.mrf.mxu0
  %v5977 = vadd.f32 0.0, %v5976
  %v5978 = vpop.f32.mrf.mxu0
  %5979 = vdwg.mxu0
  %5980 = vmatpush.bf16.msra.mxu0 %v5908
  %5981 = vmatpush.bf16.msra.mxu0 %v5906
  %5982 = vmatpush.bf16.msra.mxu0 %v5904
  %5983 = vmatpush.bf16.msra.mxu0 %v5902
  %5984 = vmatpush.bf16.msra.mxu0 %v5900
  %5985 = vmatpush.bf16.msra.mxu0 %v5898
  %5986 = vmatpush.bf16.msra.mxu0 %v5896
  %5987 = vmatpush.bf16.msra.mxu0 %v5894
  %5988 = vmatmul.bf16.gmra.mxu0 %v5747
  %v5989 = vpop.f32.mrf.mxu0
  %v5990 = vadd.f32 %v5977, %v5989
  %v5991 = vpop.f32.mrf.mxu0
  %5992 = vdwg.mxu0
  %v5993 = vadd.f32 %v5265, %v5964
  %v5994 = vadd.f32 %v5266, %v5990
  %s5995 = scalar_lea.vmem %s0, 1008
  %v5996 = vld [vmem:[%s5995] sm:$0xff]
  %v5997 = vld [vmem:[%s5995 + $0x8] sm:$0xff]
  %v5998 = vld [vmem:[%s5995 + $0x10] sm:$0xff]
  %v5999 = vld [vmem:[%s5995 + $0x18] sm:$0xff]
  %v6000 = vld [vmem:[%s5995 + $0x20] sm:$0xf]
  %v6001 = vld [vmem:[%s5995 + $0x24] sm:$0xff]
  %v6002 = vld [vmem:[%s5995 + $0x2c] sm:$0xff]
  %v6003 = vld [vmem:[%s5995 + $0x34] sm:$0xff]
  %v6004 = vld [vmem:[%s5995 + $0x3c] sm:$0xff]
  %v6005 = vld [vmem:[%s5995 + $0x44] sm:$0xf]
  %v6006 = vld [vmem:[%s5995 + $0x48] sm:$0xff]
  %v6007 = vld [vmem:[%s5995 + $0x50] sm:$0xff]
  %v6008 = vld [vmem:[%s5995 + $0x58] sm:$0xff]
  %v6009 = vld [vmem:[%s5995 + $0x60] sm:$0xff]
  %v6010 = vld [vmem:[%s5995 + $0x68] sm:$0xf]
  %v6011 = vld [vmem:[%s5995 + $0x6c] sm:$0xff]
  %v6012 = vld [vmem:[%s5995 + $0x74] sm:$0xff]
  %v6013 = vld [vmem:[%s5995 + $0x7c] sm:$0xff]
  %v6014 = vld [vmem:[%s5995 + $0x84] sm:$0xff]
  %v6015 = vld [vmem:[%s5995 + $0x8c] sm:$0xf]
  %v6036 = vunpack.c.l.b16 %v5996
  %v6037 = vunpack.c.h.b16 %v5996
  %v6038 = vunpack.c.l.b16 %v5997
  %v6039 = vunpack.c.h.b16 %v5997
  %v6040 = vunpack.c.l.b16 %v5998
  %v6041 = vunpack.c.h.b16 %v5998
  %v6042 = vunpack.c.l.b16 %v5999
  %v6043 = vunpack.c.h.b16 %v5999
  %v6044 = vunpack.c.l.b16 %v6000
  %v6045 = vunpack.c.l.b16 %v6001
  %v6046 = vunpack.c.h.b16 %v6001
  %v6047 = vunpack.c.l.b16 %v6002
  %v6048 = vunpack.c.h.b16 %v6002
  %v6049 = vunpack.c.l.b16 %v6003
  %v6050 = vunpack.c.h.b16 %v6003
  %v6051 = vunpack.c.l.b16 %v6004
  %v6052 = vunpack.c.h.b16 %v6004
  %v6053 = vunpack.c.l.b16 %v6005
  %v6054 = vunpack.c.l.b16 %v6006
  %v6055 = vunpack.c.h.b16 %v6006
  %v6056 = vunpack.c.l.b16 %v6007
  %v6057 = vunpack.c.h.b16 %v6007
  %v6058 = vunpack.c.l.b16 %v6008
  %v6059 = vunpack.c.h.b16 %v6008
  %v6060 = vunpack.c.l.b16 %v6009
  %v6061 = vunpack.c.h.b16 %v6009
  %v6062 = vunpack.c.l.b16 %v6010
  %v6063 = vunpack.c.l.b16 %v6011
  %v6064 = vunpack.c.h.b16 %v6011
  %v6065 = vunpack.c.l.b16 %v6012
  %v6066 = vunpack.c.h.b16 %v6012
  %v6067 = vunpack.c.l.b16 %v6013
  %v6068 = vunpack.c.h.b16 %v6013
  %v6069 = vunpack.c.l.b16 %v6014
  %v6070 = vunpack.c.h.b16 %v6014
  %v6071 = vunpack.c.l.b16 %v6015
  %v6072 = vpack.c.b16 %v6045, %v6036
  %v6073 = vpack.c.b16 %v6046, %v6037
  %v6074 = vpack.c.b16 %v6047, %v6038
  %v6075 = vpack.c.b16 %v6048, %v6039
  %v6076 = vpack.c.b16 %v6049, %v6040
  %v6077 = vpack.c.b16 %v6050, %v6041
  %v6078 = vpack.c.b16 %v6051, %v6042
  %v6079 = vpack.c.b16 %v6052, %v6043
  %v6080 = vpack.c.b16 %v6053, %v6044
  %v6081 = vpack.c.b16 %v6063, %v6054
  %v6082 = vpack.c.b16 %v6064, %v6055
  %v6083 = vpack.c.b16 %v6065, %v6056
  %v6084 = vpack.c.b16 %v6066, %v6057
  %v6085 = vpack.c.b16 %v6067, %v6058
  %v6086 = vpack.c.b16 %v6068, %v6059
  %v6087 = vpack.c.b16 %v6069, %v6060
  %v6088 = vpack.c.b16 %v6070, %v6061
  %v6089 = vpack.c.b16 %v6071, %v6062
  %6108 = vmatpush.bf16.msra.mxu0 %v733
  %6109 = vmatpush.bf16.msra.mxu0 %v731
  %6110 = vmatpush.bf16.msra.mxu0 %v729
  %6111 = vmatpush.bf16.msra.mxu0 %v727
  %6112 = vmatpush.bf16.msra.mxu0 %v725
  %6113 = vmatpush.bf16.msra.mxu0 %v723
  %6114 = vmatpush.bf16.msra.mxu0 %v721
  %6115 = vmatpush.bf16.msra.mxu0 %v719
  %6116 = vmatmul.bf16.gmra.mxu0 %v6072
  %v6117 = vpop.f32.mrf.mxu0
  %v6118 = vadd.f32 0.0, %v6117
  %v6119 = vpop.f32.mrf.mxu0
  %v6120 = vadd.f32 0.0, %v6119
  %6121 = vmatmul.bf16.gmra.mxu0 %v6081
  %v6122 = vpop.f32.mrf.mxu0
  %v6123 = vadd.f32 0.0, %v6122
  %v6124 = vpop.f32.mrf.mxu0
  %v6125 = vadd.f32 0.0, %v6124
  %6126 = vdwg.mxu0
  %6127 = vmatpush.bf16.msra.mxu0 %v749
  %6128 = vmatpush.bf16.msra.mxu0 %v747
  %6129 = vmatpush.bf16.msra.mxu0 %v745
  %6130 = vmatpush.bf16.msra.mxu0 %v743
  %6131 = vmatpush.bf16.msra.mxu0 %v741
  %6132 = vmatpush.bf16.msra.mxu0 %v739
  %6133 = vmatpush.bf16.msra.mxu0 %v737
  %6134 = vmatpush.bf16.msra.mxu0 %v735
  %6135 = vmatmul.bf16.gmra.mxu0 %v6073
  %v6136 = vpop.f32.mrf.mxu0
  %v6137 = vadd.f32 %v6118, %v6136
  %v6138 = vpop.f32.mrf.mxu0
  %v6139 = vadd.f32 %v6120, %v6138
  %6140 = vmatmul.bf16.gmra.mxu0 %v6082
  %v6141 = vpop.f32.mrf.mxu0
  %v6142 = vadd.f32 %v6123, %v6141
  %v6143 = vpop.f32.mrf.mxu0
  %v6144 = vadd.f32 %v6125, %v6143
  %6145 = vdwg.mxu0
  %6146 = vmatpush.bf16.msra.mxu0 %v765
  %6147 = vmatpush.bf16.msra.mxu0 %v763
  %6148 = vmatpush.bf16.msra.mxu0 %v761
  %6149 = vmatpush.bf16.msra.mxu0 %v759
  %6150 = vmatpush.bf16.msra.mxu0 %v757
  %6151 = vmatpush.bf16.msra.mxu0 %v755
  %6152 = vmatpush.bf16.msra.mxu0 %v753
  %6153 = vmatpush.bf16.msra.mxu0 %v751
  %6154 = vmatmul.bf16.gmra.mxu0 %v6074
  %v6155 = vpop.f32.mrf.mxu0
  %v6156 = vadd.f32 %v6137, %v6155
  %v6157 = vpop.f32.mrf.mxu0
  %v6158 = vadd.f32 %v6139, %v6157
  %6159 = vmatmul.bf16.gmra.mxu0 %v6083
  %v6160 = vpop.f32.mrf.mxu0
  %v6161 = vadd.f32 %v6142, %v6160
  %v6162 = vpop.f32.mrf.mxu0
  %v6163 = vadd.f32 %v6144, %v6162
  %6164 = vdwg.mxu0
  %6165 = vmatpush.bf16.msra.mxu0 %v781
  %6166 = vmatpush.bf16.msra.mxu0 %v779
  %6167 = vmatpush.bf16.msra.mxu0 %v777
  %6168 = vmatpush.bf16.msra.mxu0 %v775
  %6169 = vmatpush.bf16.msra.mxu0 %v773
  %6170 = vmatpush.bf16.msra.mxu0 %v771
  %6171 = vmatpush.bf16.msra.mxu0 %v769
  %6172 = vmatpush.bf16.msra.mxu0 %v767
  %6173 = vmatmul.bf16.gmra.mxu0 %v6075
  %v6174 = vpop.f32.mrf.mxu0
  %v6175 = vadd.f32 %v6156, %v6174
  %v6176 = vpop.f32.mrf.mxu0
  %v6177 = vadd.f32 %v6158, %v6176
  %6178 = vmatmul.bf16.gmra.mxu0 %v6084
  %v6179 = vpop.f32.mrf.mxu0
  %v6180 = vadd.f32 %v6161, %v6179
  %v6181 = vpop.f32.mrf.mxu0
  %v6182 = vadd.f32 %v6163, %v6181
  %6183 = vdwg.mxu0
  %6184 = vmatpush.bf16.msra.mxu0 %v797
  %6185 = vmatpush.bf16.msra.mxu0 %v795
  %6186 = vmatpush.bf16.msra.mxu0 %v793
  %6187 = vmatpush.bf16.msra.mxu0 %v791
  %6188 = vmatpush.bf16.msra.mxu0 %v789
  %6189 = vmatpush.bf16.msra.mxu0 %v787
  %6190 = vmatpush.bf16.msra.mxu0 %v785
  %6191 = vmatpush.bf16.msra.mxu0 %v783
  %6192 = vmatmul.bf16.gmra.mxu0 %v6076
  %v6193 = vpop.f32.mrf.mxu0
  %v6194 = vadd.f32 %v6175, %v6193
  %v6195 = vpop.f32.mrf.mxu0
  %v6196 = vadd.f32 %v6177, %v6195
  %6197 = vmatmul.bf16.gmra.mxu0 %v6085
  %v6198 = vpop.f32.mrf.mxu0
  %v6199 = vadd.f32 %v6180, %v6198
  %v6200 = vpop.f32.mrf.mxu0
  %v6201 = vadd.f32 %v6182, %v6200
  %6202 = vdwg.mxu0
  %6203 = vmatpush.bf16.msra.mxu0 %v813
  %6204 = vmatpush.bf16.msra.mxu0 %v811
  %6205 = vmatpush.bf16.msra.mxu0 %v809
  %6206 = vmatpush.bf16.msra.mxu0 %v807
  %6207 = vmatpush.bf16.msra.mxu0 %v805
  %6208 = vmatpush.bf16.msra.mxu0 %v803
  %6209 = vmatpush.bf16.msra.mxu0 %v801
  %6210 = vmatpush.bf16.msra.mxu0 %v799
  %6211 = vmatmul.bf16.gmra.mxu0 %v6077
  %v6212 = vpop.f32.mrf.mxu0
  %v6213 = vadd.f32 %v6194, %v6212
  %v6214 = vpop.f32.mrf.mxu0
  %v6215 = vadd.f32 %v6196, %v6214
  %6216 = vmatmul.bf16.gmra.mxu0 %v6086
  %v6217 = vpop.f32.mrf.mxu0
  %v6218 = vadd.f32 %v6199, %v6217
  %v6219 = vpop.f32.mrf.mxu0
  %v6220 = vadd.f32 %v6201, %v6219
  %6221 = vdwg.mxu0
  %6222 = vmatpush.bf16.msra.mxu0 %v829
  %6223 = vmatpush.bf16.msra.mxu0 %v827
  %6224 = vmatpush.bf16.msra.mxu0 %v825
  %6225 = vmatpush.bf16.msra.mxu0 %v823
  %6226 = vmatpush.bf16.msra.mxu0 %v821
  %6227 = vmatpush.bf16.msra.mxu0 %v819
  %6228 = vmatpush.bf16.msra.mxu0 %v817
  %6229 = vmatpush.bf16.msra.mxu0 %v815
  %6230 = vmatmul.bf16.gmra.mxu0 %v6078
  %v6231 = vpop.f32.mrf.mxu0
  %v6232 = vadd.f32 %v6213, %v6231
  %v6233 = vpop.f32.mrf.mxu0
  %v6234 = vadd.f32 %v6215, %v6233
  %6235 = vmatmul.bf16.gmra.mxu0 %v6087
  %v6236 = vpop.f32.mrf.mxu0
  %v6237 = vadd.f32 %v6218, %v6236
  %v6238 = vpop.f32.mrf.mxu0
  %v6239 = vadd.f32 %v6220, %v6238
  %6240 = vdwg.mxu0
  %6241 = vmatpush.bf16.msra.mxu0 %v845
  %6242 = vmatpush.bf16.msra.mxu0 %v843
  %6243 = vmatpush.bf16.msra.mxu0 %v841
  %6244 = vmatpush.bf16.msra.mxu0 %v839
  %6245 = vmatpush.bf16.msra.mxu0 %v837
  %6246 = vmatpush.bf16.msra.mxu0 %v835
  %6247 = vmatpush.bf16.msra.mxu0 %v833
  %6248 = vmatpush.bf16.msra.mxu0 %v831
  %6249 = vmatmul.bf16.gmra.mxu0 %v6079
  %v6250 = vpop.f32.mrf.mxu0
  %v6251 = vadd.f32 %v6232, %v6250
  %v6252 = vpop.f32.mrf.mxu0
  %v6253 = vadd.f32 %v6234, %v6252
  %6254 = vmatmul.bf16.gmra.mxu0 %v6088
  %v6255 = vpop.f32.mrf.mxu0
  %v6256 = vadd.f32 %v6237, %v6255
  %v6257 = vpop.f32.mrf.mxu0
  %v6258 = vadd.f32 %v6239, %v6257
  %6259 = vdwg.mxu0
  %6260 = vmatpush.bf16.msra.mxu0 %v861
  %6261 = vmatpush.bf16.msra.mxu0 %v859
  %6262 = vmatpush.bf16.msra.mxu0 %v857
  %6263 = vmatpush.bf16.msra.mxu0 %v855
  %6264 = vmatpush.bf16.msra.mxu0 %v853
  %6265 = vmatpush.bf16.msra.mxu0 %v851
  %6266 = vmatpush.bf16.msra.mxu0 %v849
  %6267 = vmatpush.bf16.msra.mxu0 %v847
  %6268 = vmatmul.bf16.gmra.mxu0 %v6080
  %v6269 = vpop.f32.mrf.mxu0
  %v6270 = vadd.f32 %v6251, %v6269
  %v6271 = vpop.f32.mrf.mxu0
  %v6272 = vadd.f32 %v6253, %v6271
  %6273 = vmatmul.bf16.gmra.mxu0 %v6089
  %v6274 = vpop.f32.mrf.mxu0
  %v6275 = vadd.f32 %v6256, %v6274
  %v6276 = vpop.f32.mrf.mxu0
  %v6277 = vadd.f32 %v6258, %v6276
  %6278 = vdwg.mxu0
  %6279 = vmatpush.bf16.msra.mxu0 %v734
  %6280 = vmatpush.bf16.msra.mxu0 %v732
  %6281 = vmatpush.bf16.msra.mxu0 %v730
  %6282 = vmatpush.bf16.msra.mxu0 %v728
  %6283 = vmatpush.bf16.msra.mxu0 %v726
  %6284 = vmatpush.bf16.msra.mxu0 %v724
  %6285 = vmatpush.bf16.msra.mxu0 %v722
  %6286 = vmatpush.bf16.msra.mxu0 %v720
  %6287 = vmatmul.bf16.gmra.mxu0 %v6072
  %v6288 = vpop.f32.mrf.mxu0
  %v6289 = vadd.f32 0.0, %v6288
  %v6290 = vpop.f32.mrf.mxu0
  %v6291 = vadd.f32 0.0, %v6290
  %6292 = vmatmul.bf16.gmra.mxu0 %v6081
  %v6293 = vpop.f32.mrf.mxu0
  %v6294 = vadd.f32 0.0, %v6293
  %v6295 = vpop.f32.mrf.mxu0
  %v6296 = vadd.f32 0.0, %v6295
  %6297 = vdwg.mxu0
  %6298 = vmatpush.bf16.msra.mxu0 %v750
  %6299 = vmatpush.bf16.msra.mxu0 %v748
  %6300 = vmatpush.bf16.msra.mxu0 %v746
  %6301 = vmatpush.bf16.msra.mxu0 %v744
  %6302 = vmatpush.bf16.msra.mxu0 %v742
  %6303 = vmatpush.bf16.msra.mxu0 %v740
  %6304 = vmatpush.bf16.msra.mxu0 %v738
  %6305 = vmatpush.bf16.msra.mxu0 %v736
  %6306 = vmatmul.bf16.gmra.mxu0 %v6073
  %v6307 = vpop.f32.mrf.mxu0
  %v6308 = vadd.f32 %v6289, %v6307
  %v6309 = vpop.f32.mrf.mxu0
  %v6310 = vadd.f32 %v6291, %v6309
  %6311 = vmatmul.bf16.gmra.mxu0 %v6082
  %v6312 = vpop.f32.mrf.mxu0
  %v6313 = vadd.f32 %v6294, %v6312
  %v6314 = vpop.f32.mrf.mxu0
  %v6315 = vadd.f32 %v6296, %v6314
  %6316 = vdwg.mxu0
  %6317 = vmatpush.bf16.msra.mxu0 %v766
  %6318 = vmatpush.bf16.msra.mxu0 %v764
  %6319 = vmatpush.bf16.msra.mxu0 %v762
  %6320 = vmatpush.bf16.msra.mxu0 %v760
  %6321 = vmatpush.bf16.msra.mxu0 %v758
  %6322 = vmatpush.bf16.msra.mxu0 %v756
  %6323 = vmatpush.bf16.msra.mxu0 %v754
  %6324 = vmatpush.bf16.msra.mxu0 %v752
  %6325 = vmatmul.bf16.gmra.mxu0 %v6074
  %v6326 = vpop.f32.mrf.mxu0
  %v6327 = vadd.f32 %v6308, %v6326
  %v6328 = vpop.f32.mrf.mxu0
  %v6329 = vadd.f32 %v6310, %v6328
  %6330 = vmatmul.bf16.gmra.mxu0 %v6083
  %v6331 = vpop.f32.mrf.mxu0
  %v6332 = vadd.f32 %v6313, %v6331
  %v6333 = vpop.f32.mrf.mxu0
  %v6334 = vadd.f32 %v6315, %v6333
  %6335 = vdwg.mxu0
  %6336 = vmatpush.bf16.msra.mxu0 %v782
  %6337 = vmatpush.bf16.msra.mxu0 %v780
  %6338 = vmatpush.bf16.msra.mxu0 %v778
  %6339 = vmatpush.bf16.msra.mxu0 %v776
  %6340 = vmatpush.bf16.msra.mxu0 %v774
  %6341 = vmatpush.bf16.msra.mxu0 %v772
  %6342 = vmatpush.bf16.msra.mxu0 %v770
  %6343 = vmatpush.bf16.msra.mxu0 %v768
  %6344 = vmatmul.bf16.gmra.mxu0 %v6075
  %v6345 = vpop.f32.mrf.mxu0
  %v6346 = vadd.f32 %v6327, %v6345
  %v6347 = vpop.f32.mrf.mxu0
  %v6348 = vadd.f32 %v6329, %v6347
  %6349 = vmatmul.bf16.gmra.mxu0 %v6084
  %v6350 = vpop.f32.mrf.mxu0
  %v6351 = vadd.f32 %v6332, %v6350
  %v6352 = vpop.f32.mrf.mxu0
  %v6353 = vadd.f32 %v6334, %v6352
  %6354 = vdwg.mxu0
  %6355 = vmatpush.bf16.msra.mxu0 %v798
  %6356 = vmatpush.bf16.msra.mxu0 %v796
  %6357 = vmatpush.bf16.msra.mxu0 %v794
  %6358 = vmatpush.bf16.msra.mxu0 %v792
  %6359 = vmatpush.bf16.msra.mxu0 %v790
  %6360 = vmatpush.bf16.msra.mxu0 %v788
  %6361 = vmatpush.bf16.msra.mxu0 %v786
  %6362 = vmatpush.bf16.msra.mxu0 %v784
  %6363 = vmatmul.bf16.gmra.mxu0 %v6076
  %v6364 = vpop.f32.mrf.mxu0
  %v6365 = vadd.f32 %v6346, %v6364
  %v6366 = vpop.f32.mrf.mxu0
  %v6367 = vadd.f32 %v6348, %v6366
  %6368 = vmatmul.bf16.gmra.mxu0 %v6085
  %v6369 = vpop.f32.mrf.mxu0
  %v6370 = vadd.f32 %v6351, %v6369
  %v6371 = vpop.f32.mrf.mxu0
  %v6372 = vadd.f32 %v6353, %v6371
  %6373 = vdwg.mxu0
  %6374 = vmatpush.bf16.msra.mxu0 %v814
  %6375 = vmatpush.bf16.msra.mxu0 %v812
  %6376 = vmatpush.bf16.msra.mxu0 %v810
  %6377 = vmatpush.bf16.msra.mxu0 %v808
  %6378 = vmatpush.bf16.msra.mxu0 %v806
  %6379 = vmatpush.bf16.msra.mxu0 %v804
  %6380 = vmatpush.bf16.msra.mxu0 %v802
  %6381 = vmatpush.bf16.msra.mxu0 %v800
  %6382 = vmatmul.bf16.gmra.mxu0 %v6077
  %v6383 = vpop.f32.mrf.mxu0
  %v6384 = vadd.f32 %v6365, %v6383
  %v6385 = vpop.f32.mrf.mxu0
  %v6386 = vadd.f32 %v6367, %v6385
  %6387 = vmatmul.bf16.gmra.mxu0 %v6086
  %v6388 = vpop.f32.mrf.mxu0
  %v6389 = vadd.f32 %v6370, %v6388
  %v6390 = vpop.f32.mrf.mxu0
  %v6391 = vadd.f32 %v6372, %v6390
  %6392 = vdwg.mxu0
  %6393 = vmatpush.bf16.msra.mxu0 %v830
  %6394 = vmatpush.bf16.msra.mxu0 %v828
  %6395 = vmatpush.bf16.msra.mxu0 %v826
  %6396 = vmatpush.bf16.msra.mxu0 %v824
  %6397 = vmatpush.bf16.msra.mxu0 %v822
  %6398 = vmatpush.bf16.msra.mxu0 %v820
  %6399 = vmatpush.bf16.msra.mxu0 %v818
  %6400 = vmatpush.bf16.msra.mxu0 %v816
  %6401 = vmatmul.bf16.gmra.mxu0 %v6078
  %v6402 = vpop.f32.mrf.mxu0
  %v6403 = vadd.f32 %v6384, %v6402
  %v6404 = vpop.f32.mrf.mxu0
  %v6405 = vadd.f32 %v6386, %v6404
  %6406 = vmatmul.bf16.gmra.mxu0 %v6087
  %v6407 = vpop.f32.mrf.mxu0
  %v6408 = vadd.f32 %v6389, %v6407
  %v6409 = vpop.f32.mrf.mxu0
  %v6410 = vadd.f32 %v6391, %v6409
  %6411 = vdwg.mxu0
  %6412 = vmatpush.bf16.msra.mxu0 %v846
  %6413 = vmatpush.bf16.msra.mxu0 %v844
  %6414 = vmatpush.bf16.msra.mxu0 %v842
  %6415 = vmatpush.bf16.msra.mxu0 %v840
  %6416 = vmatpush.bf16.msra.mxu0 %v838
  %6417 = vmatpush.bf16.msra.mxu0 %v836
  %6418 = vmatpush.bf16.msra.mxu0 %v834
  %6419 = vmatpush.bf16.msra.mxu0 %v832
  %6420 = vmatmul.bf16.gmra.mxu0 %v6079
  %v6421 = vpop.f32.mrf.mxu0
  %v6422 = vadd.f32 %v6403, %v6421
  %v6423 = vpop.f32.mrf.mxu0
  %v6424 = vadd.f32 %v6405, %v6423
  %6425 = vmatmul.bf16.gmra.mxu0 %v6088
  %v6426 = vpop.f32.mrf.mxu0
  %v6427 = vadd.f32 %v6408, %v6426
  %v6428 = vpop.f32.mrf.mxu0
  %v6429 = vadd.f32 %v6410, %v6428
  %6430 = vdwg.mxu0
  %6431 = vmatpush.bf16.msra.mxu0 %v862
  %6432 = vmatpush.bf16.msra.mxu0 %v860
  %6433 = vmatpush.bf16.msra.mxu0 %v858
  %6434 = vmatpush.bf16.msra.mxu0 %v856
  %6435 = vmatpush.bf16.msra.mxu0 %v854
  %6436 = vmatpush.bf16.msra.mxu0 %v852
  %6437 = vmatpush.bf16.msra.mxu0 %v850
  %6438 = vmatpush.bf16.msra.mxu0 %v848
  %6439 = vmatmul.bf16.gmra.mxu0 %v6080
  %v6440 = vpop.f32.mrf.mxu0
  %v6441 = vadd.f32 %v6422, %v6440
  %v6442 = vpop.f32.mrf.mxu0
  %v6443 = vadd.f32 %v6424, %v6442
  %6444 = vmatmul.bf16.gmra.mxu0 %v6089
  %v6445 = vpop.f32.mrf.mxu0
  %v6446 = vadd.f32 %v6427, %v6445
  %v6447 = vpop.f32.mrf.mxu0
  %v6448 = vadd.f32 %v6429, %v6447
  %6449 = vdwg.mxu0
  %v6450 = vmul.f32 %v6270, %v1350
  %v6451 = vmul.f32 %v6441, %v1351
  %v6452 = vmul.f32 %v6272, %v1350
  %v6453 = vmul.f32 %v6443, %v1351
  %v6454 = vmul.f32 %v6275, %v1350
  %v6455 = vmul.f32 %v6446, %v1351
  %v6456 = vmul.f32 %v6277, %v1350
  %v6457 = vmul.f32 %v6448, %v1351
  %v6458 = vadd.f32 %v6450, %v1363
  %v6459 = vadd.f32 %v6451, %v1364
  %v6460 = vadd.f32 %v6452, %v1363
  %v6461 = vadd.f32 %v6453, %v1364
  %v6462 = vadd.f32 %v6454, %v1363
  %v6463 = vadd.f32 %v6455, %v1364
  %v6464 = vadd.f32 %v6456, %v1363
  %v6465 = vadd.f32 %v6457, %v1364
  %v6466 = vmax.f32 %v6458, %v6460
  %v6467 = vmax.f32 %v6459, %v6461
  %v6468 = vmax.f32 %v6462, %v6464
  %v6469 = vmax.f32 %v6463, %v6465
  %v6470 = vmax.f32 %v6466, %v6468
  %v6471 = vmax.f32 %v6467, %v6469
  %v6472 = vmax.f32 %v6470, 0.0
  %v6473 = vmax.f32 %v6471, 0.0
  %v6474 = vpack.c.bf16 %v6472, %v6472
  %v6475 = vpack.c.bf16 %v6473, %v6473
  %s6476 = scalar_lea.vmem %s4, 1792
  %v6477 = vld [vmem:[%s6476] sm:$0xff]
  %v6478 = vld [vmem:[%s6476 + $0x8] sm:$0xff]
  %v6479 = vld [vmem:[%s6476 + $0x10] sm:$0xff]
  %v6480 = vld [vmem:[%s6476 + $0x18] sm:$0xff]
  %v6481 = vld [vmem:[%s6476 + $0x20] sm:$0xff]
  %v6482 = vld [vmem:[%s6476 + $0x28] sm:$0xff]
  %v6483 = vld [vmem:[%s6476 + $0x30] sm:$0xff]
  %v6484 = vld [vmem:[%s6476 + $0x38] sm:$0xff]
  %v6485 = vld [vmem:[%s6476 + $0x40] sm:$0xff]
  %v6486 = vld [vmem:[%s6476 + $0x48] sm:$0xff]
  %v6487 = vld [vmem:[%s6476 + $0x50] sm:$0xff]
  %v6488 = vld [vmem:[%s6476 + $0x58] sm:$0xff]
  %v6489 = vld [vmem:[%s6476 + $0x60] sm:$0xff]
  %v6490 = vld [vmem:[%s6476 + $0x68] sm:$0xff]
  %v6491 = vld [vmem:[%s6476 + $0x70] sm:$0xff]
  %v6492 = vld [vmem:[%s6476 + $0x78] sm:$0xff]
  %v6493 = vld [vmem:[%s6476 + $0x80] sm:$0xff]
  %v6494 = vld [vmem:[%s6476 + $0x88] sm:$0xff]
  %v6495 = vld [vmem:[%s6476 + $0x90] sm:$0xff]
  %v6496 = vld [vmem:[%s6476 + $0x98] sm:$0xff]
  %v6497 = vld [vmem:[%s6476 + $0xa0] sm:$0xff]
  %v6498 = vld [vmem:[%s6476 + $0xa8] sm:$0xff]
  %v6499 = vld [vmem:[%s6476 + $0xb0] sm:$0xff]
  %v6500 = vld [vmem:[%s6476 + $0xb8] sm:$0xff]
  %v6501 = vld [vmem:[%s6476 + $0xc0] sm:$0xff]
  %v6502 = vld [vmem:[%s6476 + $0xc8] sm:$0xff]
  %v6503 = vld [vmem:[%s6476 + $0xd0] sm:$0xff]
  %v6504 = vld [vmem:[%s6476 + $0xd8] sm:$0xff]
  %v6505 = vld [vmem:[%s6476 + $0xe0] sm:$0xff]
  %v6506 = vld [vmem:[%s6476 + $0xe8] sm:$0xff]
  %v6507 = vld [vmem:[%s6476 + $0xf0] sm:$0xff]
  %v6508 = vld [vmem:[%s6476 + $0xf8] sm:$0xff]
  %v6541 = vunpack.c.l.b16 %v6477
  %v6542 = vunpack.c.h.b16 %v6477
  %v6543 = vunpack.c.l.b16 %v6478
  %v6544 = vunpack.c.h.b16 %v6478
  %v6545 = vunpack.c.l.b16 %v6479
  %v6546 = vunpack.c.h.b16 %v6479
  %v6547 = vunpack.c.l.b16 %v6480
  %v6548 = vunpack.c.h.b16 %v6480
  %v6549 = vunpack.c.l.b16 %v6481
  %v6550 = vunpack.c.h.b16 %v6481
  %v6551 = vunpack.c.l.b16 %v6482
  %v6552 = vunpack.c.h.b16 %v6482
  %v6553 = vunpack.c.l.b16 %v6483
  %v6554 = vunpack.c.h.b16 %v6483
  %v6555 = vunpack.c.l.b16 %v6484
  %v6556 = vunpack.c.h.b16 %v6484
  %v6557 = vunpack.c.l.b16 %v6485
  %v6558 = vunpack.c.h.b16 %v6485
  %v6559 = vunpack.c.l.b16 %v6486
  %v6560 = vunpack.c.h.b16 %v6486
  %v6561 = vunpack.c.l.b16 %v6487
  %v6562 = vunpack.c.h.b16 %v6487
  %v6563 = vunpack.c.l.b16 %v6488
  %v6564 = vunpack.c.h.b16 %v6488
  %v6565 = vunpack.c.l.b16 %v6489
  %v6566 = vunpack.c.h.b16 %v6489
  %v6567 = vunpack.c.l.b16 %v6490
  %v6568 = vunpack.c.h.b16 %v6490
  %v6569 = vunpack.c.l.b16 %v6491
  %v6570 = vunpack.c.h.b16 %v6491
  %v6571 = vunpack.c.l.b16 %v6492
  %v6572 = vunpack.c.h.b16 %v6492
  %v6573 = vunpack.c.l.b16 %v6493
  %v6574 = vunpack.c.h.b16 %v6493
  %v6575 = vunpack.c.l.b16 %v6494
  %v6576 = vunpack.c.h.b16 %v6494
  %v6577 = vunpack.c.l.b16 %v6495
  %v6578 = vunpack.c.h.b16 %v6495
  %v6579 = vunpack.c.l.b16 %v6496
  %v6580 = vunpack.c.h.b16 %v6496
  %v6581 = vunpack.c.l.b16 %v6497
  %v6582 = vunpack.c.h.b16 %v6497
  %v6583 = vunpack.c.l.b16 %v6498
  %v6584 = vunpack.c.h.b16 %v6498
  %v6585 = vunpack.c.l.b16 %v6499
  %v6586 = vunpack.c.h.b16 %v6499
  %v6587 = vunpack.c.l.b16 %v6500
  %v6588 = vunpack.c.h.b16 %v6500
  %v6589 = vunpack.c.l.b16 %v6501
  %v6590 = vunpack.c.h.b16 %v6501
  %v6591 = vunpack.c.l.b16 %v6502
  %v6592 = vunpack.c.h.b16 %v6502
  %v6593 = vunpack.c.l.b16 %v6503
  %v6594 = vunpack.c.h.b16 %v6503
  %v6595 = vunpack.c.l.b16 %v6504
  %v6596 = vunpack.c.h.b16 %v6504
  %v6597 = vunpack.c.l.b16 %v6505
  %v6598 = vunpack.c.h.b16 %v6505
  %v6599 = vunpack.c.l.b16 %v6506
  %v6600 = vunpack.c.h.b16 %v6506
  %v6601 = vunpack.c.l.b16 %v6507
  %v6602 = vunpack.c.h.b16 %v6507
  %v6603 = vunpack.c.l.b16 %v6508
  %v6604 = vunpack.c.h.b16 %v6508
  %v6605 = vpack.c.b16 %v6543, %v6541
  %v6606 = vpack.c.b16 %v6544, %v6542
  %v6607 = vpack.c.b16 %v6547, %v6545
  %v6608 = vpack.c.b16 %v6548, %v6546
  %v6609 = vpack.c.b16 %v6551, %v6549
  %v6610 = vpack.c.b16 %v6552, %v6550
  %v6611 = vpack.c.b16 %v6555, %v6553
  %v6612 = vpack.c.b16 %v6556, %v6554
  %v6613 = vpack.c.b16 %v6559, %v6557
  %v6614 = vpack.c.b16 %v6560, %v6558
  %v6615 = vpack.c.b16 %v6563, %v6561
  %v6616 = vpack.c.b16 %v6564, %v6562
  %v6617 = vpack.c.b16 %v6567, %v6565
  %v6618 = vpack.c.b16 %v6568, %v6566
  %v6619 = vpack.c.b16 %v6571, %v6569
  %v6620 = vpack.c.b16 %v6572, %v6570
  %v6621 = vpack.c.b16 %v6575, %v6573
  %v6622 = vpack.c.b16 %v6576, %v6574
  %v6623 = vpack.c.b16 %v6579, %v6577
  %v6624 = vpack.c.b16 %v6580, %v6578
  %v6625 = vpack.c.b16 %v6583, %v6581
  %v6626 = vpack.c.b16 %v6584, %v6582
  %v6627 = vpack.c.b16 %v6587, %v6585
  %v6628 = vpack.c.b16 %v6588, %v6586
  %v6629 = vpack.c.b16 %v6591, %v6589
  %v6630 = vpack.c.b16 %v6592, %v6590
  %v6631 = vpack.c.b16 %v6595, %v6593
  %v6632 = vpack.c.b16 %v6596, %v6594
  %v6633 = vpack.c.b16 %v6599, %v6597
  %v6634 = vpack.c.b16 %v6600, %v6598
  %v6635 = vpack.c.b16 %v6603, %v6601
  %v6636 = vpack.c.b16 %v6604, %v6602
  %6669 = vmatpush.bf16.msra.mxu0 %v6619
  %6670 = vmatpush.bf16.msra.mxu0 %v6617
  %6671 = vmatpush.bf16.msra.mxu0 %v6615
  %6672 = vmatpush.bf16.msra.mxu0 %v6613
  %6673 = vmatpush.bf16.msra.mxu0 %v6611
  %6674 = vmatpush.bf16.msra.mxu0 %v6609
  %6675 = vmatpush.bf16.msra.mxu0 %v6607
  %6676 = vmatpush.bf16.msra.mxu0 %v6605
  %6677 = vmatmul.bf16.gmra.mxu0 %v6474
  %v6678 = vpop.f32.mrf.mxu0
  %v6679 = vadd.f32 0.0, %v6678
  %v6680 = vpop.f32.mrf.mxu0
  %6681 = vdwg.mxu0
  %6682 = vmatpush.bf16.msra.mxu0 %v6635
  %6683 = vmatpush.bf16.msra.mxu0 %v6633
  %6684 = vmatpush.bf16.msra.mxu0 %v6631
  %6685 = vmatpush.bf16.msra.mxu0 %v6629
  %6686 = vmatpush.bf16.msra.mxu0 %v6627
  %6687 = vmatpush.bf16.msra.mxu0 %v6625
  %6688 = vmatpush.bf16.msra.mxu0 %v6623
  %6689 = vmatpush.bf16.msra.mxu0 %v6621
  %6690 = vmatmul.bf16.gmra.mxu0 %v6475
  %v6691 = vpop.f32.mrf.mxu0
  %v6692 = vadd.f32 %v6679, %v6691
  %v6693 = vpop.f32.mrf.mxu0
  %6694 = vdwg.mxu0
  %6695 = vmatpush.bf16.msra.mxu0 %v6620
  %6696 = vmatpush.bf16.msra.mxu0 %v6618
  %6697 = vmatpush.bf16.msra.mxu0 %v6616
  %6698 = vmatpush.bf16.msra.mxu0 %v6614
  %6699 = vmatpush.bf16.msra.mxu0 %v6612
  %6700 = vmatpush.bf16.msra.mxu0 %v6610
  %6701 = vmatpush.bf16.msra.mxu0 %v6608
  %6702 = vmatpush.bf16.msra.mxu0 %v6606
  %6703 = vmatmul.bf16.gmra.mxu0 %v6474
  %v6704 = vpop.f32.mrf.mxu0
  %v6705 = vadd.f32 0.0, %v6704
  %v6706 = vpop.f32.mrf.mxu0
  %6707 = vdwg.mxu0
  %6708 = vmatpush.bf16.msra.mxu0 %v6636
  %6709 = vmatpush.bf16.msra.mxu0 %v6634
  %6710 = vmatpush.bf16.msra.mxu0 %v6632
  %6711 = vmatpush.bf16.msra.mxu0 %v6630
  %6712 = vmatpush.bf16.msra.mxu0 %v6628
  %6713 = vmatpush.bf16.msra.mxu0 %v6626
  %6714 = vmatpush.bf16.msra.mxu0 %v6624
  %6715 = vmatpush.bf16.msra.mxu0 %v6622
  %6716 = vmatmul.bf16.gmra.mxu0 %v6475
  %v6717 = vpop.f32.mrf.mxu0
  %v6718 = vadd.f32 %v6705, %v6717
  %v6719 = vpop.f32.mrf.mxu0
  %6720 = vdwg.mxu0
  %v6721 = vadd.f32 %v5993, %v6692
  %v6722 = vadd.f32 %v5994, %v6718
  %s6723 = scalar_lea.vmem %s0, 1152
  %v6724 = vld [vmem:[%s6723] sm:$0xff]
  %v6725 = vld [vmem:[%s6723 + $0x8] sm:$0xff]
  %v6726 = vld [vmem:[%s6723 + $0x10] sm:$0xff]
  %v6727 = vld [vmem:[%s6723 + $0x18] sm:$0xff]
  %v6728 = vld [vmem:[%s6723 + $0x20] sm:$0xf]
  %v6729 = vld [vmem:[%s6723 + $0x24] sm:$0xff]
  %v6730 = vld [vmem:[%s6723 + $0x2c] sm:$0xff]
  %v6731 = vld [vmem:[%s6723 + $0x34] sm:$0xff]
  %v6732 = vld [vmem:[%s6723 + $0x3c] sm:$0xff]
  %v6733 = vld [vmem:[%s6723 + $0x44] sm:$0xf]
  %v6734 = vld [vmem:[%s6723 + $0x48] sm:$0xff]
  %v6735 = vld [vmem:[%s6723 + $0x50] sm:$0xff]
  %v6736 = vld [vmem:[%s6723 + $0x58] sm:$0xff]
  %v6737 = vld [vmem:[%s6723 + $0x60] sm:$0xff]
  %v6738 = vld [vmem:[%s6723 + $0x68] sm:$0xf]
  %v6739 = vld [vmem:[%s6723 + $0x6c] sm:$0xff]
  %v6740 = vld [vmem:[%s6723 + $0x74] sm:$0xff]
  %v6741 = vld [vmem:[%s6723 + $0x7c] sm:$0xff]
  %v6742 = vld [vmem:[%s6723 + $0x84] sm:$0xff]
  %v6743 = vld [vmem:[%s6723 + $0x8c] sm:$0xf]
  %v6764 = vunpack.c.l.b16 %v6724
  %v6765 = vunpack.c.h.b16 %v6724
  %v6766 = vunpack.c.l.b16 %v6725
  %v6767 = vunpack.c.h.b16 %v6725
  %v6768 = vunpack.c.l.b16 %v6726
  %v6769 = vunpack.c.h.b16 %v6726
  %v6770 = vunpack.c.l.b16 %v6727
  %v6771 = vunpack.c.h.b16 %v6727
  %v6772 = vunpack.c.l.b16 %v6728
  %v6773 = vunpack.c.l.b16 %v6729
  %v6774 = vunpack.c.h.b16 %v6729
  %v6775 = vunpack.c.l.b16 %v6730
  %v6776 = vunpack.c.h.b16 %v6730
  %v6777 = vunpack.c.l.b16 %v6731
  %v6778 = vunpack.c.h.b16 %v6731
  %v6779 = vunpack.c.l.b16 %v6732
  %v6780 = vunpack.c.h.b16 %v6732
  %v6781 = vunpack.c.l.b16 %v6733
  %v6782 = vunpack.c.l.b16 %v6734
  %v6783 = vunpack.c.h.b16 %v6734
  %v6784 = vunpack.c.l.b16 %v6735
  %v6785 = vunpack.c.h.b16 %v6735
  %v6786 = vunpack.c.l.b16 %v6736
  %v6787 = vunpack.c.h.b16 %v6736
  %v6788 = vunpack.c.l.b16 %v6737
  %v6789 = vunpack.c.h.b16 %v6737
  %v6790 = vunpack.c.l.b16 %v6738
  %v6791 = vunpack.c.l.b16 %v6739
  %v6792 = vunpack.c.h.b16 %v6739
  %v6793 = vunpack.c.l.b16 %v6740
  %v6794 = vunpack.c.h.b16 %v6740
  %v6795 = vunpack.c.l.b16 %v6741
  %v6796 = vunpack.c.h.b16 %v6741
  %v6797 = vunpack.c.l.b16 %v6742
  %v6798 = vunpack.c.h.b16 %v6742
  %v6799 = vunpack.c.l.b16 %v6743
  %v6800 = vpack.c.b16 %v6773, %v6764
  %v6801 = vpack.c.b16 %v6774, %v6765
  %v6802 = vpack.c.b16 %v6775, %v6766
  %v6803 = vpack.c.b16 %v6776, %v6767
  %v6804 = vpack.c.b16 %v6777, %v6768
  %v6805 = vpack.c.b16 %v6778, %v6769
  %v6806 = vpack.c.b16 %v6779, %v6770
  %v6807 = vpack.c.b16 %v6780, %v6771
  %v6808 = vpack.c.b16 %v6781, %v6772
  %v6809 = vpack.c.b16 %v6791, %v6782
  %v6810 = vpack.c.b16 %v6792, %v6783
  %v6811 = vpack.c.b16 %v6793, %v6784
  %v6812 = vpack.c.b16 %v6794, %v6785
  %v6813 = vpack.c.b16 %v6795, %v6786
  %v6814 = vpack.c.b16 %v6796, %v6787
  %v6815 = vpack.c.b16 %v6797, %v6788
  %v6816 = vpack.c.b16 %v6798, %v6789
  %v6817 = vpack.c.b16 %v6799, %v6790
  %6836 = vmatpush.bf16.msra.mxu0 %v733
  %6837 = vmatpush.bf16.msra.mxu0 %v731
  %6838 = vmatpush.bf16.msra.mxu0 %v729
  %6839 = vmatpush.bf16.msra.mxu0 %v727
  %6840 = vmatpush.bf16.msra.mxu0 %v725
  %6841 = vmatpush.bf16.msra.mxu0 %v723
  %6842 = vmatpush.bf16.msra.mxu0 %v721
  %6843 = vmatpush.bf16.msra.mxu0 %v719
  %6844 = vmatmul.bf16.gmra.mxu0 %v6800
  %v6845 = vpop.f32.mrf.mxu0
  %v6846 = vadd.f32 0.0, %v6845
  %v6847 = vpop.f32.mrf.mxu0
  %v6848 = vadd.f32 0.0, %v6847
  %6849 = vmatmul.bf16.gmra.mxu0 %v6809
  %v6850 = vpop.f32.mrf.mxu0
  %v6851 = vadd.f32 0.0, %v6850
  %v6852 = vpop.f32.mrf.mxu0
  %v6853 = vadd.f32 0.0, %v6852
  %6854 = vdwg.mxu0
  %6855 = vmatpush.bf16.msra.mxu0 %v749
  %6856 = vmatpush.bf16.msra.mxu0 %v747
  %6857 = vmatpush.bf16.msra.mxu0 %v745
  %6858 = vmatpush.bf16.msra.mxu0 %v743
  %6859 = vmatpush.bf16.msra.mxu0 %v741
  %6860 = vmatpush.bf16.msra.mxu0 %v739
  %6861 = vmatpush.bf16.msra.mxu0 %v737
  %6862 = vmatpush.bf16.msra.mxu0 %v735
  %6863 = vmatmul.bf16.gmra.mxu0 %v6801
  %v6864 = vpop.f32.mrf.mxu0
  %v6865 = vadd.f32 %v6846, %v6864
  %v6866 = vpop.f32.mrf.mxu0
  %v6867 = vadd.f32 %v6848, %v6866
  %6868 = vmatmul.bf16.gmra.mxu0 %v6810
  %v6869 = vpop.f32.mrf.mxu0
  %v6870 = vadd.f32 %v6851, %v6869
  %v6871 = vpop.f32.mrf.mxu0
  %v6872 = vadd.f32 %v6853, %v6871
  %6873 = vdwg.mxu0
  %6874 = vmatpush.bf16.msra.mxu0 %v765
  %6875 = vmatpush.bf16.msra.mxu0 %v763
  %6876 = vmatpush.bf16.msra.mxu0 %v761
  %6877 = vmatpush.bf16.msra.mxu0 %v759
  %6878 = vmatpush.bf16.msra.mxu0 %v757
  %6879 = vmatpush.bf16.msra.mxu0 %v755
  %6880 = vmatpush.bf16.msra.mxu0 %v753
  %6881 = vmatpush.bf16.msra.mxu0 %v751
  %6882 = vmatmul.bf16.gmra.mxu0 %v6802
  %v6883 = vpop.f32.mrf.mxu0
  %v6884 = vadd.f32 %v6865, %v6883
  %v6885 = vpop.f32.mrf.mxu0
  %v6886 = vadd.f32 %v6867, %v6885
  %6887 = vmatmul.bf16.gmra.mxu0 %v6811
  %v6888 = vpop.f32.mrf.mxu0
  %v6889 = vadd.f32 %v6870, %v6888
  %v6890 = vpop.f32.mrf.mxu0
  %v6891 = vadd.f32 %v6872, %v6890
  %6892 = vdwg.mxu0
  %6893 = vmatpush.bf16.msra.mxu0 %v781
  %6894 = vmatpush.bf16.msra.mxu0 %v779
  %6895 = vmatpush.bf16.msra.mxu0 %v777
  %6896 = vmatpush.bf16.msra.mxu0 %v775
  %6897 = vmatpush.bf16.msra.mxu0 %v773
  %6898 = vmatpush.bf16.msra.mxu0 %v771
  %6899 = vmatpush.bf16.msra.mxu0 %v769
  %6900 = vmatpush.bf16.msra.mxu0 %v767
  %6901 = vmatmul.bf16.gmra.mxu0 %v6803
  %v6902 = vpop.f32.mrf.mxu0
  %v6903 = vadd.f32 %v6884, %v6902
  %v6904 = vpop.f32.mrf.mxu0
  %v6905 = vadd.f32 %v6886, %v6904
  %6906 = vmatmul.bf16.gmra.mxu0 %v6812
  %v6907 = vpop.f32.mrf.mxu0
  %v6908 = vadd.f32 %v6889, %v6907
  %v6909 = vpop.f32.mrf.mxu0
  %v6910 = vadd.f32 %v6891, %v6909
  %6911 = vdwg.mxu0
  %6912 = vmatpush.bf16.msra.mxu0 %v797
  %6913 = vmatpush.bf16.msra.mxu0 %v795
  %6914 = vmatpush.bf16.msra.mxu0 %v793
  %6915 = vmatpush.bf16.msra.mxu0 %v791
  %6916 = vmatpush.bf16.msra.mxu0 %v789
  %6917 = vmatpush.bf16.msra.mxu0 %v787
  %6918 = vmatpush.bf16.msra.mxu0 %v785
  %6919 = vmatpush.bf16.msra.mxu0 %v783
  %6920 = vmatmul.bf16.gmra.mxu0 %v6804
  %v6921 = vpop.f32.mrf.mxu0
  %v6922 = vadd.f32 %v6903, %v6921
  %v6923 = vpop.f32.mrf.mxu0
  %v6924 = vadd.f32 %v6905, %v6923
  %6925 = vmatmul.bf16.gmra.mxu0 %v6813
  %v6926 = vpop.f32.mrf.mxu0
  %v6927 = vadd.f32 %v6908, %v6926
  %v6928 = vpop.f32.mrf.mxu0
  %v6929 = vadd.f32 %v6910, %v6928
  %6930 = vdwg.mxu0
  %6931 = vmatpush.bf16.msra.mxu0 %v813
  %6932 = vmatpush.bf16.msra.mxu0 %v811
  %6933 = vmatpush.bf16.msra.mxu0 %v809
  %6934 = vmatpush.bf16.msra.mxu0 %v807
  %6935 = vmatpush.bf16.msra.mxu0 %v805
  %6936 = vmatpush.bf16.msra.mxu0 %v803
  %6937 = vmatpush.bf16.msra.mxu0 %v801
  %6938 = vmatpush.bf16.msra.mxu0 %v799
  %6939 = vmatmul.bf16.gmra.mxu0 %v6805
  %v6940 = vpop.f32.mrf.mxu0
  %v6941 = vadd.f32 %v6922, %v6940
  %v6942 = vpop.f32.mrf.mxu0
  %v6943 = vadd.f32 %v6924, %v6942
  %6944 = vmatmul.bf16.gmra.mxu0 %v6814
  %v6945 = vpop.f32.mrf.mxu0
  %v6946 = vadd.f32 %v6927, %v6945
  %v6947 = vpop.f32.mrf.mxu0
  %v6948 = vadd.f32 %v6929, %v6947
  %6949 = vdwg.mxu0
  %6950 = vmatpush.bf16.msra.mxu0 %v829
  %6951 = vmatpush.bf16.msra.mxu0 %v827
  %6952 = vmatpush.bf16.msra.mxu0 %v825
  %6953 = vmatpush.bf16.msra.mxu0 %v823
  %6954 = vmatpush.bf16.msra.mxu0 %v821
  %6955 = vmatpush.bf16.msra.mxu0 %v819
  %6956 = vmatpush.bf16.msra.mxu0 %v817
  %6957 = vmatpush.bf16.msra.mxu0 %v815
  %6958 = vmatmul.bf16.gmra.mxu0 %v6806
  %v6959 = vpop.f32.mrf.mxu0
  %v6960 = vadd.f32 %v6941, %v6959
  %v6961 = vpop.f32.mrf.mxu0
  %v6962 = vadd.f32 %v6943, %v6961
  %6963 = vmatmul.bf16.gmra.mxu0 %v6815
  %v6964 = vpop.f32.mrf.mxu0
  %v6965 = vadd.f32 %v6946, %v6964
  %v6966 = vpop.f32.mrf.mxu0
  %v6967 = vadd.f32 %v6948, %v6966
  %6968 = vdwg.mxu0
  %6969 = vmatpush.bf16.msra.mxu0 %v845
  %6970 = vmatpush.bf16.msra.mxu0 %v843
  %6971 = vmatpush.bf16.msra.mxu0 %v841
  %6972 = vmatpush.bf16.msra.mxu0 %v839
  %6973 = vmatpush.bf16.msra.mxu0 %v837
  %6974 = vmatpush.bf16.msra.mxu0 %v835
  %6975 = vmatpush.bf16.msra.mxu0 %v833
  %6976 = vmatpush.bf16.msra.mxu0 %v831
  %6977 = vmatmul.bf16.gmra.mxu0 %v6807
  %v6978 = vpop.f32.mrf.mxu0
  %v6979 = vadd.f32 %v6960, %v6978
  %v6980 = vpop.f32.mrf.mxu0
  %v6981 = vadd.f32 %v6962, %v6980
  %6982 = vmatmul.bf16.gmra.mxu0 %v6816
  %v6983 = vpop.f32.mrf.mxu0
  %v6984 = vadd.f32 %v6965, %v6983
  %v6985 = vpop.f32.mrf.mxu0
  %v6986 = vadd.f32 %v6967, %v6985
  %6987 = vdwg.mxu0
  %6988 = vmatpush.bf16.msra.mxu0 %v861
  %6989 = vmatpush.bf16.msra.mxu0 %v859
  %6990 = vmatpush.bf16.msra.mxu0 %v857
  %6991 = vmatpush.bf16.msra.mxu0 %v855
  %6992 = vmatpush.bf16.msra.mxu0 %v853
  %6993 = vmatpush.bf16.msra.mxu0 %v851
  %6994 = vmatpush.bf16.msra.mxu0 %v849
  %6995 = vmatpush.bf16.msra.mxu0 %v847
  %6996 = vmatmul.bf16.gmra.mxu0 %v6808
  %v6997 = vpop.f32.mrf.mxu0
  %v6998 = vadd.f32 %v6979, %v6997
  %v6999 = vpop.f32.mrf.mxu0
  %v7000 = vadd.f32 %v6981, %v6999
  %7001 = vmatmul.bf16.gmra.mxu0 %v6817
  %v7002 = vpop.f32.mrf.mxu0
  %v7003 = vadd.f32 %v6984, %v7002
  %v7004 = vpop.f32.mrf.mxu0
  %v7005 = vadd.f32 %v6986, %v7004
  %7006 = vdwg.mxu0
  %7007 = vmatpush.bf16.msra.mxu0 %v734
  %7008 = vmatpush.bf16.msra.mxu0 %v732
  %7009 = vmatpush.bf16.msra.mxu0 %v730
  %7010 = vmatpush.bf16.msra.mxu0 %v728
  %7011 = vmatpush.bf16.msra.mxu0 %v726
  %7012 = vmatpush.bf16.msra.mxu0 %v724
  %7013 = vmatpush.bf16.msra.mxu0 %v722
  %7014 = vmatpush.bf16.msra.mxu0 %v720
  %7015 = vmatmul.bf16.gmra.mxu0 %v6800
  %v7016 = vpop.f32.mrf.mxu0
  %v7017 = vadd.f32 0.0, %v7016
  %v7018 = vpop.f32.mrf.mxu0
  %v7019 = vadd.f32 0.0, %v7018
  %7020 = vmatmul.bf16.gmra.mxu0 %v6809
  %v7021 = vpop.f32.mrf.mxu0
  %v7022 = vadd.f32 0.0, %v7021
  %v7023 = vpop.f32.mrf.mxu0
  %v7024 = vadd.f32 0.0, %v7023
  %7025 = vdwg.mxu0
  %7026 = vmatpush.bf16.msra.mxu0 %v750
  %7027 = vmatpush.bf16.msra.mxu0 %v748
  %7028 = vmatpush.bf16.msra.mxu0 %v746
  %7029 = vmatpush.bf16.msra.mxu0 %v744
  %7030 = vmatpush.bf16.msra.mxu0 %v742
  %7031 = vmatpush.bf16.msra.mxu0 %v740
  %7032 = vmatpush.bf16.msra.mxu0 %v738
  %7033 = vmatpush.bf16.msra.mxu0 %v736
  %7034 = vmatmul.bf16.gmra.mxu0 %v6801
  %v7035 = vpop.f32.mrf.mxu0
  %v7036 = vadd.f32 %v7017, %v7035
  %v7037 = vpop.f32.mrf.mxu0
  %v7038 = vadd.f32 %v7019, %v7037
  %7039 = vmatmul.bf16.gmra.mxu0 %v6810
  %v7040 = vpop.f32.mrf.mxu0
  %v7041 = vadd.f32 %v7022, %v7040
  %v7042 = vpop.f32.mrf.mxu0
  %v7043 = vadd.f32 %v7024, %v7042
  %7044 = vdwg.mxu0
  %7045 = vmatpush.bf16.msra.mxu0 %v766
  %7046 = vmatpush.bf16.msra.mxu0 %v764
  %7047 = vmatpush.bf16.msra.mxu0 %v762
  %7048 = vmatpush.bf16.msra.mxu0 %v760
  %7049 = vmatpush.bf16.msra.mxu0 %v758
  %7050 = vmatpush.bf16.msra.mxu0 %v756
  %7051 = vmatpush.bf16.msra.mxu0 %v754
  %7052 = vmatpush.bf16.msra.mxu0 %v752
  %7053 = vmatmul.bf16.gmra.mxu0 %v6802
  %v7054 = vpop.f32.mrf.mxu0
  %v7055 = vadd.f32 %v7036, %v7054
  %v7056 = vpop.f32.mrf.mxu0
  %v7057 = vadd.f32 %v7038, %v7056
  %7058 = vmatmul.bf16.gmra.mxu0 %v6811
  %v7059 = vpop.f32.mrf.mxu0
  %v7060 = vadd.f32 %v7041, %v7059
  %v7061 = vpop.f32.mrf.mxu0
  %v7062 = vadd.f32 %v7043, %v7061
  %7063 = vdwg.mxu0
  %7064 = vmatpush.bf16.msra.mxu0 %v782
  %7065 = vmatpush.bf16.msra.mxu0 %v780
  %7066 = vmatpush.bf16.msra.mxu0 %v778
  %7067 = vmatpush.bf16.msra.mxu0 %v776
  %7068 = vmatpush.bf16.msra.mxu0 %v774
  %7069 = vmatpush.bf16.msra.mxu0 %v772
  %7070 = vmatpush.bf16.msra.mxu0 %v770
  %7071 = vmatpush.bf16.msra.mxu0 %v768
  %7072 = vmatmul.bf16.gmra.mxu0 %v6803
  %v7073 = vpop.f32.mrf.mxu0
  %v7074 = vadd.f32 %v7055, %v7073
  %v7075 = vpop.f32.mrf.mxu0
  %v7076 = vadd.f32 %v7057, %v7075
  %7077 = vmatmul.bf16.gmra.mxu0 %v6812
  %v7078 = vpop.f32.mrf.mxu0
  %v7079 = vadd.f32 %v7060, %v7078
  %v7080 = vpop.f32.mrf.mxu0
  %v7081 = vadd.f32 %v7062, %v7080
  %7082 = vdwg.mxu0
  %7083 = vmatpush.bf16.msra.mxu0 %v798
  %7084 = vmatpush.bf16.msra.mxu0 %v796
  %7085 = vmatpush.bf16.msra.mxu0 %v794
  %7086 = vmatpush.bf16.msra.mxu0 %v792
  %7087 = vmatpush.bf16.msra.mxu0 %v790
  %7088 = vmatpush.bf16.msra.mxu0 %v788
  %7089 = vmatpush.bf16.msra.mxu0 %v786
  %7090 = vmatpush.bf16.msra.mxu0 %v784
  %7091 = vmatmul.bf16.gmra.mxu0 %v6804
  %v7092 = vpop.f32.mrf.mxu0
  %v7093 = vadd.f32 %v7074, %v7092
  %v7094 = vpop.f32.mrf.mxu0
  %v7095 = vadd.f32 %v7076, %v7094
  %7096 = vmatmul.bf16.gmra.mxu0 %v6813
  %v7097 = vpop.f32.mrf.mxu0
  %v7098 = vadd.f32 %v7079, %v7097
  %v7099 = vpop.f32.mrf.mxu0
  %v7100 = vadd.f32 %v7081, %v7099
  %7101 = vdwg.mxu0
  %7102 = vmatpush.bf16.msra.mxu0 %v814
  %7103 = vmatpush.bf16.msra.mxu0 %v812
  %7104 = vmatpush.bf16.msra.mxu0 %v810
  %7105 = vmatpush.bf16.msra.mxu0 %v808
  %7106 = vmatpush.bf16.msra.mxu0 %v806
  %7107 = vmatpush.bf16.msra.mxu0 %v804
  %7108 = vmatpush.bf16.msra.mxu0 %v802
  %7109 = vmatpush.bf16.msra.mxu0 %v800
  %7110 = vmatmul.bf16.gmra.mxu0 %v6805
  %v7111 = vpop.f32.mrf.mxu0
  %v7112 = vadd.f32 %v7093, %v7111
  %v7113 = vpop.f32.mrf.mxu0
  %v7114 = vadd.f32 %v7095, %v7113
  %7115 = vmatmul.bf16.gmra.mxu0 %v6814
  %v7116 = vpop.f32.mrf.mxu0
  %v7117 = vadd.f32 %v7098, %v7116
  %v7118 = vpop.f32.mrf.mxu0
  %v7119 = vadd.f32 %v7100, %v7118
  %7120 = vdwg.mxu0
  %7121 = vmatpush.bf16.msra.mxu0 %v830
  %7122 = vmatpush.bf16.msra.mxu0 %v828
  %7123 = vmatpush.bf16.msra.mxu0 %v826
  %7124 = vmatpush.bf16.msra.mxu0 %v824
  %7125 = vmatpush.bf16.msra.mxu0 %v822
  %7126 = vmatpush.bf16.msra.mxu0 %v820
  %7127 = vmatpush.bf16.msra.mxu0 %v818
  %7128 = vmatpush.bf16.msra.mxu0 %v816
  %7129 = vmatmul.bf16.gmra.mxu0 %v6806
  %v7130 = vpop.f32.mrf.mxu0
  %v7131 = vadd.f32 %v7112, %v7130
  %v7132 = vpop.f32.mrf.mxu0
  %v7133 = vadd.f32 %v7114, %v7132
  %7134 = vmatmul.bf16.gmra.mxu0 %v6815
  %v7135 = vpop.f32.mrf.mxu0
  %v7136 = vadd.f32 %v7117, %v7135
  %v7137 = vpop.f32.mrf.mxu0
  %v7138 = vadd.f32 %v7119, %v7137
  %7139 = vdwg.mxu0
  %7140 = vmatpush.bf16.msra.mxu0 %v846
  %7141 = vmatpush.bf16.msra.mxu0 %v844
  %7142 = vmatpush.bf16.msra.mxu0 %v842
  %7143 = vmatpush.bf16.msra.mxu0 %v840
  %7144 = vmatpush.bf16.msra.mxu0 %v838
  %7145 = vmatpush.bf16.msra.mxu0 %v836
  %7146 = vmatpush.bf16.msra.mxu0 %v834
  %7147 = vmatpush.bf16.msra.mxu0 %v832
  %7148 = vmatmul.bf16.gmra.mxu0 %v6807
  %v7149 = vpop.f32.mrf.mxu0
  %v7150 = vadd.f32 %v7131, %v7149
  %v7151 = vpop.f32.mrf.mxu0
  %v7152 = vadd.f32 %v7133, %v7151
  %7153 = vmatmul.bf16.gmra.mxu0 %v6816
  %v7154 = vpop.f32.mrf.mxu0
  %v7155 = vadd.f32 %v7136, %v7154
  %v7156 = vpop.f32.mrf.mxu0
  %v7157 = vadd.f32 %v7138, %v7156
  %7158 = vdwg.mxu0
  %7159 = vmatpush.bf16.msra.mxu0 %v862
  %7160 = vmatpush.bf16.msra.mxu0 %v860
  %7161 = vmatpush.bf16.msra.mxu0 %v858
  %7162 = vmatpush.bf16.msra.mxu0 %v856
  %7163 = vmatpush.bf16.msra.mxu0 %v854
  %7164 = vmatpush.bf16.msra.mxu0 %v852
  %7165 = vmatpush.bf16.msra.mxu0 %v850
  %7166 = vmatpush.bf16.msra.mxu0 %v848
  %7167 = vmatmul.bf16.gmra.mxu0 %v6808
  %v7168 = vpop.f32.mrf.mxu0
  %v7169 = vadd.f32 %v7150, %v7168
  %v7170 = vpop.f32.mrf.mxu0
  %v7171 = vadd.f32 %v7152, %v7170
  %7172 = vmatmul.bf16.gmra.mxu0 %v6817
  %v7173 = vpop.f32.mrf.mxu0
  %v7174 = vadd.f32 %v7155, %v7173
  %v7175 = vpop.f32.mrf.mxu0
  %v7176 = vadd.f32 %v7157, %v7175
  %7177 = vdwg.mxu0
  %v7178 = vmul.f32 %v6998, %v1350
  %v7179 = vmul.f32 %v7169, %v1351
  %v7180 = vmul.f32 %v7000, %v1350
  %v7181 = vmul.f32 %v7171, %v1351
  %v7182 = vmul.f32 %v7003, %v1350
  %v7183 = vmul.f32 %v7174, %v1351
  %v7184 = vmul.f32 %v7005, %v1350
  %v7185 = vmul.f32 %v7176, %v1351
  %v7186 = vadd.f32 %v7178, %v1363
  %v7187 = vadd.f32 %v7179, %v1364
  %v7188 = vadd.f32 %v7180, %v1363
  %v7189 = vadd.f32 %v7181, %v1364
  %v7190 = vadd.f32 %v7182, %v1363
  %v7191 = vadd.f32 %v7183, %v1364
  %v7192 = vadd.f32 %v7184, %v1363
  %v7193 = vadd.f32 %v7185, %v1364
  %v7194 = vmax.f32 %v7186, %v7188
  %v7195 = vmax.f32 %v7187, %v7189
  %v7196 = vmax.f32 %v7190, %v7192
  %v7197 = vmax.f32 %v7191, %v7193
  %v7198 = vmax.f32 %v7194, %v7196
  %v7199 = vmax.f32 %v7195, %v7197
  %v7200 = vmax.f32 %v7198, 0.0
  %v7201 = vmax.f32 %v7199, 0.0
  %v7202 = vpack.c.bf16 %v7200, %v7200
  %v7203 = vpack.c.bf16 %v7201, %v7201
  %s7204 = scalar_lea.vmem %s4, 2048
  %v7205 = vld [vmem:[%s7204] sm:$0xff]
  %v7206 = vld [vmem:[%s7204 + $0x8] sm:$0xff]
  %v7207 = vld [vmem:[%s7204 + $0x10] sm:$0xff]
  %v7208 = vld [vmem:[%s7204 + $0x18] sm:$0xff]
  %v7209 = vld [vmem:[%s7204 + $0x20] sm:$0xff]
  %v7210 = vld [vmem:[%s7204 + $0x28] sm:$0xff]
  %v7211 = vld [vmem:[%s7204 + $0x30] sm:$0xff]
  %v7212 = vld [vmem:[%s7204 + $0x38] sm:$0xff]
  %v7213 = vld [vmem:[%s7204 + $0x40] sm:$0xff]
  %v7214 = vld [vmem:[%s7204 + $0x48] sm:$0xff]
  %v7215 = vld [vmem:[%s7204 + $0x50] sm:$0xff]
  %v7216 = vld [vmem:[%s7204 + $0x58] sm:$0xff]
  %v7217 = vld [vmem:[%s7204 + $0x60] sm:$0xff]
  %v7218 = vld [vmem:[%s7204 + $0x68] sm:$0xff]
  %v7219 = vld [vmem:[%s7204 + $0x70] sm:$0xff]
  %v7220 = vld [vmem:[%s7204 + $0x78] sm:$0xff]
  %v7221 = vld [vmem:[%s7204 + $0x80] sm:$0xff]
  %v7222 = vld [vmem:[%s7204 + $0x88] sm:$0xff]
  %v7223 = vld [vmem:[%s7204 + $0x90] sm:$0xff]
  %v7224 = vld [vmem:[%s7204 + $0x98] sm:$0xff]
  %v7225 = vld [vmem:[%s7204 + $0xa0] sm:$0xff]
  %v7226 = vld [vmem:[%s7204 + $0xa8] sm:$0xff]
  %v7227 = vld [vmem:[%s7204 + $0xb0] sm:$0xff]
  %v7228 = vld [vmem:[%s7204 + $0xb8] sm:$0xff]
  %v7229 = vld [vmem:[%s7204 + $0xc0] sm:$0xff]
  %v7230 = vld [vmem:[%s7204 + $0xc8] sm:$0xff]
  %v7231 = vld [vmem:[%s7204 + $0xd0] sm:$0xff]
  %v7232 = vld [vmem:[%s7204 + $0xd8] sm:$0xff]
  %v7233 = vld [vmem:[%s7204 + $0xe0] sm:$0xff]
  %v7234 = vld [vmem:[%s7204 + $0xe8] sm:$0xff]
  %v7235 = vld [vmem:[%s7204 + $0xf0] sm:$0xff]
  %v7236 = vld [vmem:[%s7204 + $0xf8] sm:$0xff]
  %v7269 = vunpack.c.l.b16 %v7205
  %v7270 = vunpack.c.h.b16 %v7205
  %v7271 = vunpack.c.l.b16 %v7206
  %v7272 = vunpack.c.h.b16 %v7206
  %v7273 = vunpack.c.l.b16 %v7207
  %v7274 = vunpack.c.h.b16 %v7207
  %v7275 = vunpack.c.l.b16 %v7208
  %v7276 = vunpack.c.h.b16 %v7208
  %v7277 = vunpack.c.l.b16 %v7209
  %v7278 = vunpack.c.h.b16 %v7209
  %v7279 = vunpack.c.l.b16 %v7210
  %v7280 = vunpack.c.h.b16 %v7210
  %v7281 = vunpack.c.l.b16 %v7211
  %v7282 = vunpack.c.h.b16 %v7211
  %v7283 = vunpack.c.l.b16 %v7212
  %v7284 = vunpack.c.h.b16 %v7212
  %v7285 = vunpack.c.l.b16 %v7213
  %v7286 = vunpack.c.h.b16 %v7213
  %v7287 = vunpack.c.l.b16 %v7214
  %v7288 = vunpack.c.h.b16 %v7214
  %v7289 = vunpack.c.l.b16 %v7215
  %v7290 = vunpack.c.h.b16 %v7215
  %v7291 = vunpack.c.l.b16 %v7216
  %v7292 = vunpack.c.h.b16 %v7216
  %v7293 = vunpack.c.l.b16 %v7217
  %v7294 = vunpack.c.h.b16 %v7217
  %v7295 = vunpack.c.l.b16 %v7218
  %v7296 = vunpack.c.h.b16 %v7218
  %v7297 = vunpack.c.l.b16 %v7219
  %v7298 = vunpack.c.h.b16 %v7219
  %v7299 = vunpack.c.l.b16 %v7220
  %v7300 = vunpack.c.h.b16 %v7220
  %v7301 = vunpack.c.l.b16 %v7221
  %v7302 = vunpack.c.h.b16 %v7221
  %v7303 = vunpack.c.l.b16 %v7222
  %v7304 = vunpack.c.h.b16 %v7222
  %v7305 = vunpack.c.l.b16 %v7223
  %v7306 = vunpack.c.h.b16 %v7223
  %v7307 = vunpack.c.l.b16 %v7224
  %v7308 = vunpack.c.h.b16 %v7224
  %v7309 = vunpack.c.l.b16 %v7225
  %v7310 = vunpack.c.h.b16 %v7225
  %v7311 = vunpack.c.l.b16 %v7226
  %v7312 = vunpack.c.h.b16 %v7226
  %v7313 = vunpack.c.l.b16 %v7227
  %v7314 = vunpack.c.h.b16 %v7227
  %v7315 = vunpack.c.l.b16 %v7228
  %v7316 = vunpack.c.h.b16 %v7228
  %v7317 = vunpack.c.l.b16 %v7229
  %v7318 = vunpack.c.h.b16 %v7229
  %v7319 = vunpack.c.l.b16 %v7230
  %v7320 = vunpack.c.h.b16 %v7230
  %v7321 = vunpack.c.l.b16 %v7231
  %v7322 = vunpack.c.h.b16 %v7231
  %v7323 = vunpack.c.l.b16 %v7232
  %v7324 = vunpack.c.h.b16 %v7232
  %v7325 = vunpack.c.l.b16 %v7233
  %v7326 = vunpack.c.h.b16 %v7233
  %v7327 = vunpack.c.l.b16 %v7234
  %v7328 = vunpack.c.h.b16 %v7234
  %v7329 = vunpack.c.l.b16 %v7235
  %v7330 = vunpack.c.h.b16 %v7235
  %v7331 = vunpack.c.l.b16 %v7236
  %v7332 = vunpack.c.h.b16 %v7236
  %v7333 = vpack.c.b16 %v7271, %v7269
  %v7334 = vpack.c.b16 %v7272, %v7270
  %v7335 = vpack.c.b16 %v7275, %v7273
  %v7336 = vpack.c.b16 %v7276, %v7274
  %v7337 = vpack.c.b16 %v7279, %v7277
  %v7338 = vpack.c.b16 %v7280, %v7278
  %v7339 = vpack.c.b16 %v7283, %v7281
  %v7340 = vpack.c.b16 %v7284, %v7282
  %v7341 = vpack.c.b16 %v7287, %v7285
  %v7342 = vpack.c.b16 %v7288, %v7286
  %v7343 = vpack.c.b16 %v7291, %v7289
  %v7344 = vpack.c.b16 %v7292, %v7290
  %v7345 = vpack.c.b16 %v7295, %v7293
  %v7346 = vpack.c.b16 %v7296, %v7294
  %v7347 = vpack.c.b16 %v7299, %v7297
  %v7348 = vpack.c.b16 %v7300, %v7298
  %v7349 = vpack.c.b16 %v7303, %v7301
  %v7350 = vpack.c.b16 %v7304, %v7302
  %v7351 = vpack.c.b16 %v7307, %v7305
  %v7352 = vpack.c.b16 %v7308, %v7306
  %v7353 = vpack.c.b16 %v7311, %v7309
  %v7354 = vpack.c.b16 %v7312, %v7310
  %v7355 = vpack.c.b16 %v7315, %v7313
  %v7356 = vpack.c.b16 %v7316, %v7314
  %v7357 = vpack.c.b16 %v7319, %v7317
  %v7358 = vpack.c.b16 %v7320, %v7318
  %v7359 = vpack.c.b16 %v7323, %v7321
  %v7360 = vpack.c.b16 %v7324, %v7322
  %v7361 = vpack.c.b16 %v7327, %v7325
  %v7362 = vpack.c.b16 %v7328, %v7326
  %v7363 = vpack.c.b16 %v7331, %v7329
  %v7364 = vpack.c.b16 %v7332, %v7330
  %7397 = vmatpush.bf16.msra.mxu0 %v7347
  %7398 = vmatpush.bf16.msra.mxu0 %v7345
  %7399 = vmatpush.bf16.msra.mxu0 %v7343
  %7400 = vmatpush.bf16.msra.mxu0 %v7341
  %7401 = vmatpush.bf16.msra.mxu0 %v7339
  %7402 = vmatpush.bf16.msra.mxu0 %v7337
  %7403 = vmatpush.bf16.msra.mxu0 %v7335
  %7404 = vmatpush.bf16.msra.mxu0 %v7333
  %7405 = vmatmul.bf16.gmra.mxu0 %v7202
  %v7406 = vpop.f32.mrf.mxu0
  %v7407 = vadd.f32 0.0, %v7406
  %v7408 = vpop.f32.mrf.mxu0
  %7409 = vdwg.mxu0
  %7410 = vmatpush.bf16.msra.mxu0 %v7363
  %7411 = vmatpush.bf16.msra.mxu0 %v7361
  %7412 = vmatpush.bf16.msra.mxu0 %v7359
  %7413 = vmatpush.bf16.msra.mxu0 %v7357
  %7414 = vmatpush.bf16.msra.mxu0 %v7355
  %7415 = vmatpush.bf16.msra.mxu0 %v7353
  %7416 = vmatpush.bf16.msra.mxu0 %v7351
  %7417 = vmatpush.bf16.msra.mxu0 %v7349
  %7418 = vmatmul.bf16.gmra.mxu0 %v7203
  %v7419 = vpop.f32.mrf.mxu0
  %v7420 = vadd.f32 %v7407, %v7419
  %v7421 = vpop.f32.mrf.mxu0
  %7422 = vdwg.mxu0
  %7423 = vmatpush.bf16.msra.mxu0 %v7348
  %7424 = vmatpush.bf16.msra.mxu0 %v7346
  %7425 = vmatpush.bf16.msra.mxu0 %v7344
  %7426 = vmatpush.bf16.msra.mxu0 %v7342
  %7427 = vmatpush.bf16.msra.mxu0 %v7340
  %7428 = vmatpush.bf16.msra.mxu0 %v7338
  %7429 = vmatpush.bf16.msra.mxu0 %v7336
  %7430 = vmatpush.bf16.msra.mxu0 %v7334
  %7431 = vmatmul.bf16.gmra.mxu0 %v7202
  %v7432 = vpop.f32.mrf.mxu0
  %v7433 = vadd.f32 0.0, %v7432
  %v7434 = vpop.f32.mrf.mxu0
  %7435 = vdwg.mxu0
  %7436 = vmatpush.bf16.msra.mxu0 %v7364
  %7437 = vmatpush.bf16.msra.mxu0 %v7362
  %7438 = vmatpush.bf16.msra.mxu0 %v7360
  %7439 = vmatpush.bf16.msra.mxu0 %v7358
  %7440 = vmatpush.bf16.msra.mxu0 %v7356
  %7441 = vmatpush.bf16.msra.mxu0 %v7354
  %7442 = vmatpush.bf16.msra.mxu0 %v7352
  %7443 = vmatpush.bf16.msra.mxu0 %v7350
  %7444 = vmatmul.bf16.gmra.mxu0 %v7203
  %v7445 = vpop.f32.mrf.mxu0
  %v7446 = vadd.f32 %v7433, %v7445
  %v7447 = vpop.f32.mrf.mxu0
  %7448 = vdwg.mxu0
  %v7449 = vadd.f32 %v6721, %v7420
  %v7450 = vadd.f32 %v6722, %v7446
  %v7451 = vld [vmem:[%s5] sm:$0x3]
  %v7453 = vperm.slane %v7451, 0
  %v7454 = vperm.slane %v7451, 1
  %v7457 = vadd.f32 %v7449, %v7453
  %v7458 = vadd.f32 %v7450, %v7454
  %v7459 = vmax.f32 %v7457, 0.0
  %v7460 = vmax.f32 %v7458, 0.0
  %v7461 = vpack.c.bf16 %v7459, %v7459
  %v7462 = vpack.c.bf16 %v7460, %v7460
  %v7463 = vld [vmem:[%s6] sm:$0xf]
  %v7464 = vld [vmem:[%s6 + $0x4] sm:$0xf]
  %v7465 = vld [vmem:[%s6 + $0x8] sm:$0xf]
  %v7466 = vld [vmem:[%s6 + $0xc] sm:$0xf]
  %v7467 = vld [vmem:[%s6 + $0x10] sm:$0xf]
  %v7468 = vld [vmem:[%s6 + $0x14] sm:$0xf]
  %v7469 = vld [vmem:[%s6 + $0x18] sm:$0xf]
  %v7470 = vld [vmem:[%s6 + $0x1c] sm:$0xf]
  %v7471 = vld [vmem:[%s6 + $0x20] sm:$0xf]
  %v7472 = vld [vmem:[%s6 + $0x24] sm:$0xf]
  %v7473 = vld [vmem:[%s6 + $0x28] sm:$0xf]
  %v7474 = vld [vmem:[%s6 + $0x2c] sm:$0xf]
  %v7475 = vld [vmem:[%s6 + $0x30] sm:$0xf]
  %v7476 = vld [vmem:[%s6 + $0x34] sm:$0xf]
  %v7477 = vld [vmem:[%s6 + $0x38] sm:$0xf]
  %v7478 = vld [vmem:[%s6 + $0x3c] sm:$0xf]
  %v7479 = vld [vmem:[%s6 + $0x40] sm:$0xf]
  %v7480 = vld [vmem:[%s6 + $0x44] sm:$0xf]
  %v7481 = vld [vmem:[%s6 + $0x48] sm:$0xf]
  %v7482 = vld [vmem:[%s6 + $0x4c] sm:$0xf]
  %v7483 = vld [vmem:[%s6 + $0x50] sm:$0xf]
  %v7484 = vld [vmem:[%s6 + $0x54] sm:$0xf]
  %v7485 = vld [vmem:[%s6 + $0x58] sm:$0xf]
  %v7486 = vld [vmem:[%s6 + $0x5c] sm:$0xf]
  %v7487 = vld [vmem:[%s6 + $0x60] sm:$0xf]
  %v7488 = vld [vmem:[%s6 + $0x64] sm:$0xf]
  %v7489 = vld [vmem:[%s6 + $0x68] sm:$0xf]
  %v7490 = vld [vmem:[%s6 + $0x6c] sm:$0xf]
  %v7491 = vld [vmem:[%s6 + $0x70] sm:$0xf]
  %v7492 = vld [vmem:[%s6 + $0x74] sm:$0xf]
  %v7493 = vld [vmem:[%s6 + $0x78] sm:$0xf]
  %v7494 = vld [vmem:[%s6 + $0x7c] sm:$0xf]
  %v7495 = vld [vmem:[%s7] sm:$0x1]
  %v7497 = vperm.slane %v7495, 0
  %v7531 = vunpack.c.l.b16 %v7463
  %v7532 = vunpack.c.l.b16 %v7464
  %v7533 = vunpack.c.l.b16 %v7465
  %v7534 = vunpack.c.l.b16 %v7466
  %v7535 = vunpack.c.l.b16 %v7467
  %v7536 = vunpack.c.l.b16 %v7468
  %v7537 = vunpack.c.l.b16 %v7469
  %v7538 = vunpack.c.l.b16 %v7470
  %v7539 = vunpack.c.l.b16 %v7471
  %v7540 = vunpack.c.l.b16 %v7472
  %v7541 = vunpack.c.l.b16 %v7473
  %v7542 = vunpack.c.l.b16 %v7474
  %v7543 = vunpack.c.l.b16 %v7475
  %v7544 = vunpack.c.l.b16 %v7476
  %v7545 = vunpack.c.l.b16 %v7477
  %v7546 = vunpack.c.l.b16 %v7478
  %v7547 = vunpack.c.l.b16 %v7479
  %v7548 = vunpack.c.l.b16 %v7480
  %v7549 = vunpack.c.l.b16 %v7481
  %v7550 = vunpack.c.l.b16 %v7482
  %v7551 = vunpack.c.l.b16 %v7483
  %v7552 = vunpack.c.l.b16 %v7484
  %v7553 = vunpack.c.l.b16 %v7485
  %v7554 = vunpack.c.l.b16 %v7486
  %v7555 = vunpack.c.l.b16 %v7487
  %v7556 = vunpack.c.l.b16 %v7488
  %v7557 = vunpack.c.l.b16 %v7489
  %v7558 = vunpack.c.l.b16 %v7490
  %v7559 = vunpack.c.l.b16 %v7491
  %v7560 = vunpack.c.l.b16 %v7492
  %v7561 = vunpack.c.l.b16 %v7493
  %v7562 = vunpack.c.l.b16 %v7494
  %v7563 = vpack.c.b16 %v7532, %v7531
  %v7564 = vpack.c.b16 %v7534, %v7533
  %v7565 = vpack.c.b16 %v7536, %v7535
  %v7566 = vpack.c.b16 %v7538, %v7537
  %v7567 = vpack.c.b16 %v7540, %v7539
  %v7568 = vpack.c.b16 %v7542, %v7541
  %v7569 = vpack.c.b16 %v7544, %v7543
  %v7570 = vpack.c.b16 %v7546, %v7545
  %v7571 = vpack.c.b16 %v7548, %v7547
  %v7572 = vpack.c.b16 %v7550, %v7549
  %v7573 = vpack.c.b16 %v7552, %v7551
  %v7574 = vpack.c.b16 %v7554, %v7553
  %v7575 = vpack.c.b16 %v7556, %v7555
  %v7576 = vpack.c.b16 %v7558, %v7557
  %v7577 = vpack.c.b16 %v7560, %v7559
  %v7578 = vpack.c.b16 %v7562, %v7561
  %7595 = vmatpush.bf16.msra.mxu0 %v7570
  %7596 = vmatpush.bf16.msra.mxu0 %v7569
  %7597 = vmatpush.bf16.msra.mxu0 %v7568
  %7598 = vmatpush.bf16.msra.mxu0 %v7567
  %7599 = vmatpush.bf16.msra.mxu0 %v7566
  %7600 = vmatpush.bf16.msra.mxu0 %v7565
  %7601 = vmatpush.bf16.msra.mxu0 %v7564
  %7602 = vmatpush.bf16.msra.mxu0 %v7563
  %7603 = vmatmul.bf16.gmra.mxu0 %v7461
  %v7604 = vpop.f32.mrf.mxu0
  %v7605 = vadd.f32 %v7497, %v7604
  %v7606 = vpop.f32.mrf.mxu0
  %7607 = vdwg.mxu0
  %7608 = vmatpush.bf16.msra.mxu0 %v7578
  %7609 = vmatpush.bf16.msra.mxu0 %v7577
  %7610 = vmatpush.bf16.msra.mxu0 %v7576
  %7611 = vmatpush.bf16.msra.mxu0 %v7575
  %7612 = vmatpush.bf16.msra.mxu0 %v7574
  %7613 = vmatpush.bf16.msra.mxu0 %v7573
  %7614 = vmatpush.bf16.msra.mxu0 %v7572
  %7615 = vmatpush.bf16.msra.mxu0 %v7571
  %7616 = vmatmul.bf16.gmra.mxu0 %v7462
  %v7617 = vpop.f32.mrf.mxu0
  %v7618 = vadd.f32 %v7605, %v7617
  %v7619 = vpop.f32.mrf.mxu0
  %7620 = vdwg.mxu0
  %7621 = vst [vmem:[%s8] sm:$0xff] %v7618
  // Predicated region
  $region34: #{cnn_forward.5} parent=0 // pred_check
    _
  $region35: #{cnn_forward.5} parent=0 // pred_check_branch
    %7623 = sbr.rel (0) target = $region37
  $region36: #{cnn_forward.5} parent=0 // pred_region
    _
  $region37: #{cnn_forward.5} parent=0 // pred_fallthru
    _
  // Predicated region
  $region38: #{cnn_forward.5} parent=0 // pred_check
    _
  $region39: #{cnn_forward.5} parent=0 // pred_check_branch
    %7625 = sbr.rel (0) target = $region41
  $region40: #{cnn_forward.5} parent=0 // pred_region
    _
  $region41: #{cnn_forward.5} parent=0 // pred_fallthru
    _

</llo_original>
